<compile_context>
chip_gen: v6e
topology: v6e:2x2x1
jax: 0.10.0
libtpu: 0.0.40
codegen_flags: <defaults>
</compile_context>

<pallas_src>
import functools

import jax
import jax.numpy as jnp
import numpy as np
from jax.experimental import pallas as pl
from jax.experimental.pallas import tpu as pltpu


def _gabor_kernel(x_ref, wmu_ref, p_ref, o_ref, *, fout, precision):
    x = x_ref[...]                                              # (tile_n, Fin) f32

    # One fused MXU matmul against [W.T | (-2*mu).T] -> (tile_n, 2*F).
    fused = jnp.dot(x, wmu_ref[...],
                    preferred_element_type=jnp.float32, precision=precision)
    lin = fused[:, :fout] + p_ref[0:1, :]                       # x @ W.T + b
    neg2_xmu = fused[:, fout:]                                  # -2 * (x @ mu.T), exact fold

    # ||x||^2 per row: VPU mul + XLU cross-lane reduce (rides non-critical slots).
    x_sq = jnp.sum(x * x, axis=-1, keepdims=True)               # (tile_n, 1)

    # D = ||x||^2 + ||mu||^2 - 2 x.mu ;  exponent = (-gamma/2) * D
    d = (x_sq + p_ref[1:2, :]) + neg2_xmu
    expo = d * p_ref[2:3, :]

    o_ref[...] = (jnp.sin(lin) * jnp.exp(expo)).astype(o_ref.dtype)


def _auto_tile_n(n_rows: int) -> int:
    """>=8 grid steps when N permits (>=4 per v7x TensorCore), >=512 rows/step,
    capped at 4096 rows (VMEM headroom on every generation)."""
    rows8 = max(8, -(-n_rows // 8) * 8)          # N rounded up to a sublane multiple
    tile = max(512, n_rows // 8)
    tile = min(4096, tile)
    tile = max(8, (tile // 8) * 8)               # sublane (8) aligned
    return min(tile, rows8)


@functools.partial(jax.jit,
                   static_argnames=("fout", "tile_n", "out_dtype", "precision"))
def gabor_layer(x, wmu_packed, params_packed, *, fout=None, tile_n=None,
                out_dtype=jnp.float32, precision=None):
    """x: (N, Fin). wmu_packed: (Fin, 2*Fp). params_packed: (3, Fp); Fp % 128 == 0.

    out_dtype=jnp.bfloat16 is the recommended production setting on v5e/v6e
    (halves the dominant HBM write traffic); precision=lax.Precision.HIGHEST
    gives PyTorch-fp32-exact matmuls at negligible MXU cost (K=16)."""
    N, Fin = x.shape
    two_fp = wmu_packed.shape[1]
    Fp = two_fp // 2
    assert wmu_packed.shape[0] == Fin
    assert params_packed.shape == (3, Fp)
    assert Fp % 128 == 0, "pack_gabor_params pads Fout to a multiple of 128"

    if tile_n is None:
        tile_n = _auto_tile_n(N)
    grid_n = pl.cdiv(N, tile_n)                 # partial last block handled by Pallas

    out = pl.pallas_call(
        functools.partial(_gabor_kernel, fout=Fp, precision=precision),
        out_shape=jax.ShapeDtypeStruct((N, Fp), out_dtype),
        grid_spec=pltpu.PrefetchScalarGridSpec(
            num_scalar_prefetch=0,
            grid=(grid_n,),
            in_specs=[
                pl.BlockSpec((tile_n, Fin), lambda i: (i, 0)),     # x tile
                pl.BlockSpec((Fin, two_fp), lambda i: (0, 0)),     # [W.T | -2*mu.T]
                pl.BlockSpec((3, Fp), lambda i: (0, 0)),           # [b; ||mu||^2; -g/2]
            ],
            out_specs=pl.BlockSpec((tile_n, Fp), lambda i: (i, 0)),
        ),
        compiler_params=pltpu.CompilerParams(
            dimension_semantics=("parallel",),
            vmem_limit_bytes=32 * 1024 * 1024,   # guard for big tiles on v5e (16 MiB default)
        ),
    )(x, wmu_packed, params_packed)

    if fout is not None and fout < Fp:           # only for non-128-multiple Fout
        out = out[:, :fout]
    return out


def pack_gabor_params(w, b, mu, gamma):
    """One-time transform of module params into the kernel's packed layout.

    Returns (wmu_packed (Fin, 2*Fp), params_packed (3, Fp), fout). Fp = Fout
    rounded up to a multiple of 128 (lane-aligned split point, unmasked stores).
    Only exact power-of-two folds are applied so default-precision MXU results
    stay bit-identical to the unpacked reference math."""
    w = jnp.asarray(w, jnp.float32)
    b = jnp.asarray(b, jnp.float32)
    mu = jnp.asarray(mu, jnp.float32)
    gamma = jnp.asarray(gamma, jnp.float32)

    fout, _ = w.shape
    fp = ((fout + 127) // 128) * 128
    pad = fp - fout
    if pad:
        w = jnp.pad(w, ((0, pad), (0, 0)))
        mu = jnp.pad(mu, ((0, pad), (0, 0)))
        b = jnp.pad(b, (0, pad))
        gamma = jnp.pad(gamma, (0, pad))

    wmu_packed = jnp.concatenate([w.T, (-2.0) * mu.T], axis=1)   # (Fin, 2*Fp)
    mu_sq = jnp.sum(mu * mu, axis=-1)                            # (Fp,)
    params_packed = jnp.stack([b, mu_sq, -0.5 * gamma], axis=0)  # (3, Fp)
    return wmu_packed, params_packed, fout


def init_gabor_params(key, in_features, out_features, weight_scale,
                      alpha=1.0, beta=1.0):
    """Deterministic synthetic init mirroring GaborLayer.__init__ shapes."""
    k_w, k_b, k_mu, k_g = jax.random.split(key, 4)

    mu = 2.0 * jax.random.uniform(k_mu, (out_features, in_features)) - 1.0
    gamma = jax.random.gamma(k_g, alpha, (out_features,)) / beta

    bound = 1.0 / np.sqrt(in_features)
    w = jax.random.uniform(k_w, (out_features, in_features),
                           minval=-bound, maxval=bound)
    w = w * weight_scale * jnp.sqrt(gamma)[:, None]
    b = jax.random.uniform(k_b, (out_features,), minval=-np.pi, maxval=np.pi)

    return (w.astype(jnp.float32), b.astype(jnp.float32),
            mu.astype(jnp.float32), gamma.astype(jnp.float32))


def gabor_reference(x, w, b, mu, gamma):
    """Pure-JAX reference matching the PyTorch forward exactly."""
    D = (jnp.sum(x ** 2, -1)[..., None]
         + jnp.sum(mu ** 2, -1)[None, :]
         - 2.0 * (x @ mu.T))
    return jnp.sin(x @ w.T + b) * jnp.exp(-0.5 * D * gamma[None, :])


if __name__ == "__main__":
    key = jax.random.PRNGKey(0)
    k_param, k_x = jax.random.split(key)

    in_features = 16
    out_features = 128
    N = 4096                      # auto tile -> 512 rows/step, 8 grid steps
    weight_scale = 32.0

    w, b, mu, gamma = init_gabor_params(k_param, in_features, out_features,
                                        weight_scale, alpha=1.0, beta=1.0)
    wmu_packed, params_packed, fout = pack_gabor_params(w, b, mu, gamma)

    x = jax.random.uniform(k_x, (N, in_features), minval=-1.0, maxval=1.0,
                           dtype=jnp.float32)
    ref = gabor_reference(x, w, b, mu, gamma)

    # f32 output: tight numerics gate against the pure-JAX reference.
    out = jax.block_until_ready(
        gabor_layer(x, wmu_packed, params_packed, fout=fout))
    np.testing.assert_allclose(np.asarray(out), np.asarray(ref),
                               rtol=2e-5, atol=2e-5)

    # Ragged N: no pad / no out[:N] copies — Pallas masks the partial last block.
    x_odd = x[:1000]
    out_odd = jax.block_until_ready(
        gabor_layer(x_odd, wmu_packed, params_packed, fout=fout))
    np.testing.assert_allclose(np.asarray(out_odd), np.asarray(ref)[:1000],
                               rtol=2e-5, atol=2e-5)

    # bf16 output: production setting for the HBM-write-bound v5e/v6e regime
    # (outputs lie in [-1, 1], so bf16 quantization is ~1e-2 absolute).
    out_bf16 = jax.block_until_ready(
        gabor_layer(x, wmu_packed, params_packed, fout=fout,
                    out_dtype=jnp.bfloat16))
    np.testing.assert_allclose(np.asarray(out_bf16).astype(np.float32),
                               np.asarray(ref), rtol=2e-2, atol=2e-2)

    print("KERNEL_OK")
</pallas_src>

<mosaic_0001>
module attributes {stable_mosaic.version = 11 : i64} {
  func.func @_gabor_kernel(%arg0: i32, %arg1: memref<512x16xf32, #tpu.memory_space<vmem>>, %arg2: memref<16x256xf32, #tpu.memory_space<vmem>>, %arg3: memref<3x128xf32, #tpu.memory_space<vmem>>, %arg4: memref<512x128xf32, #tpu.memory_space<vmem>>) attributes {dimension_semantics = [#tpu.dimension_semantics<parallel>], iteration_bounds = array<i64: 8>, scalar_prefetch = 0 : i64, scratch_operands = 0 : i64, tpu.core_type = #tpu.core_type<tc>, window_params = [{transform_indices = @transform_0, window_bounds = array<i64: 512, 16>}, {pipeline_mode = #tpu.pipeline_mode<synchronous>, transform_indices = @transform_1, window_bounds = array<i64: 16, 256>}, {pipeline_mode = #tpu.pipeline_mode<synchronous>, transform_indices = @transform_2, window_bounds = array<i64: 3, 128>}, {transform_indices = @transform_3, window_bounds = array<i64: 512, 128>}]} {
    %c0 = arith.constant 0 : index
    %c0_0 = arith.constant 0 : index
    %0 = vector.load %arg1[%c0, %c0_0] : memref<512x16xf32, #tpu.memory_space<vmem>>, vector<512x16xf32>
    %c0_1 = arith.constant 0 : index
    %c0_2 = arith.constant 0 : index
    %1 = vector.load %arg2[%c0_1, %c0_2] : memref<16x256xf32, #tpu.memory_space<vmem>>, vector<16x256xf32>
    %cst = arith.constant dense<0.000000e+00> : vector<512x256xf32>
    %2 = tpu.matmul %0, %1, %cst {dimension_numbers = #tpu.dot_dimension_numbers<[1], [0], [0], [1], [0, 0, 1, 1], [], []>} : vector<512x16xf32>, vector<16x256xf32>, vector<512x256xf32> -> vector<512x256xf32>
    %3 = vector.extract_strided_slice %2 {offsets = [0, 0], sizes = [512, 128], strides = [1, 1]} : vector<512x256xf32> to vector<512x128xf32>
    %c0_3 = arith.constant 0 : index
    %c0_4 = arith.constant 0 : index
    %4 = vector.load %arg3[%c0_3, %c0_4] : memref<3x128xf32, #tpu.memory_space<vmem>>, vector<1x128xf32>
    %5 = vector.broadcast %4 : vector<1x128xf32> to vector<512x128xf32>
    %6 = arith.addf %3, %5 : vector<512x128xf32>
    %7 = vector.extract_strided_slice %2 {offsets = [0, 128], sizes = [512, 128], strides = [1, 1]} : vector<512x256xf32> to vector<512x128xf32>
    %8 = arith.mulf %0, %0 : vector<512x16xf32>
    %cst_5 = arith.constant dense<0.000000e+00> : vector<512xf32>
    %9 = vector.multi_reduction <add>, %8, %cst_5 [1] : vector<512x16xf32> to vector<512xf32>
    %10 = vector.shape_cast %9 : vector<512xf32> to vector<512x1xf32>
    %c1 = arith.constant 1 : index
    %c0_6 = arith.constant 0 : index
    %11 = vector.load %arg3[%c1, %c0_6] : memref<3x128xf32, #tpu.memory_space<vmem>>, vector<1x128xf32>
    %12 = vector.broadcast %10 : vector<512x1xf32> to vector<512x128xf32>
    %13 = vector.broadcast %11 : vector<1x128xf32> to vector<512x128xf32>
    %14 = arith.addf %12, %13 : vector<512x128xf32>
    %15 = arith.addf %14, %7 : vector<512x128xf32>
    %c2 = arith.constant 2 : index
    %c0_7 = arith.constant 0 : index
    %16 = vector.load %arg3[%c2, %c0_7] : memref<3x128xf32, #tpu.memory_space<vmem>>, vector<1x128xf32>
    %17 = vector.broadcast %16 : vector<1x128xf32> to vector<512x128xf32>
    %18 = arith.mulf %15, %17 : vector<512x128xf32>
    %19 = math.sin %6 : vector<512x128xf32>
    %20 = math.exp %18 : vector<512x128xf32>
    %21 = arith.mulf %19, %20 : vector<512x128xf32>
    %c0_8 = arith.constant 0 : index
    %c0_9 = arith.constant 0 : index
    %22 = vector.load %arg4[%c0_8, %c0_9] : memref<512x128xf32, #tpu.memory_space<vmem>>, vector<512x128xf32>
    tpu.vector_store %arg4[%c0_8, %c0_9], %21 {strides = array<i32>} : memref<512x128xf32, #tpu.memory_space<vmem>>, vector<512x128xf32>,
    return
  }
  func.func @transform_0(%arg0: i32) -> (i32, i32) {
    %c0_i32 = arith.constant 0 : i32
    %c0_i32_0 = arith.constant 0 : i32
    return %arg0, %c0_i32 : i32, i32
  }
  func.func @transform_1(%arg0: i32) -> (i32, i32) {
    %c0_i32 = arith.constant 0 : i32
    %c0_i32_0 = arith.constant 0 : i32
    %c0_i32_1 = arith.constant 0 : i32
    return %c0_i32, %c0_i32_0 : i32, i32
  }
  func.func @transform_2(%arg0: i32) -> (i32, i32) {
    %c0_i32 = arith.constant 0 : i32
    %c0_i32_0 = arith.constant 0 : i32
    %c0_i32_1 = arith.constant 0 : i32
    return %c0_i32, %c0_i32_0 : i32, i32
  }
  func.func @transform_3(%arg0: i32) -> (i32, i32) {
    %c0_i32 = arith.constant 0 : i32
    %c0_i32_0 = arith.constant 0 : i32
    return %arg0, %c0_i32 : i32, i32
  }
}

</mosaic_0001>

<llo_original>
// kernel: gabor_layer.1
$region0: #{gabor_layer.1}
  #allocation0 [shape = 'u32[]', space=smem, size = 0x4, offset = 0x4, fixed_abs, tag = 'smem constant byte address 0x4 - core index']
  #allocation1 [shape = 'u32[144,128]{1,0:T(1,128)}', space=vmem, size = 0x12000, scoped, tag = 'internal scratch']
  %s0 = inlined_call_operand.vmem [shape: f32[4096,16], index: 0, kind: input, shape index: {}]
  %s1 = inlined_call_operand.vmem [shape: f32[16,256], index: 1, kind: input, shape index: {}]
  %s2 = inlined_call_operand.vmem [shape: f32[3,128], index: 2, kind: input, shape index: {}]
  %s3 = inlined_call_operand.hbm [shape: f32[4096,128], index: 3, kind: output, shape index: {}]
  %s4 = sld [smem:[#allocation0]]
  $region45: #{gabor_layer.1} parent=0
    _
  %s6 = ssub.s32 1, %s4
  %s7 = scalar_select 0, %s6, %s4
  $region1: #{gabor_layer.1} parent=0
    #allocation2 [shape = 'u8[524288]{0}', space=vmem, size = 0x80000, scoped, tag = 'output window, operand 0']
    #allocation3 [shape = 's32[2]{0}', space=sflag, size = 0x8, scoped, tag = 'scoped memory for gabor_layer.1']
    %8 = vsyncpa [#allocation3], 0
    %s9 = scalar_lea.sflag [#allocation3], 1
    %10 = vsyncpa %s9, 0
    loop: start=0, step=1, limit=10
    $region2: #{gabor_layer.1} parent=1 // loop_pre_header
      _
    $region3: #{gabor_layer.1} parent=1 // loop_header
      %s12 = sphi 0, %s16
      %p13 = scmp.ge.s32.totalorder %s12, 10
      %s22 = sphi 0, %s24
      %s25 = sphi 0, %s22
      %s26 = sphi 0, %s25
      %s42 = sphi 0, %s26
      %s46 = sphi 0, %s46
      %s48 = sphi 0, %s46
      %s49 = sphi 0, %s48
      %s63 = sphi 0, %s49
      %s67 = sphi 0, %s67
      %s69 = sphi 0, %s67
      %s70 = sphi 0, %s69
      %s84 = sphi 0, %s70
      %s90 = sphi 0, %s92
      %s93 = sphi 0, %s90
      %s94 = sphi 0, %s93
      %s110 = sphi 0, %s94
    $region4: #{gabor_layer.1} parent=1 // loop_header_branch
      %15 = sbr.rel (%p13) target = $region8
    $region5: #{gabor_layer.1} parent=1 // loop_body
      %s17 = ssub.s32 %s12, 1
      %s18 = ssub.s32 %s12, 2
      %s19 = sadd.s32 %s12, 1
      %s20 = ssub.s32 %s12, %s19
      %p21 = scmp.eq.s32.totalorder %s20, 0
      %s23 = sadd.s32 %s22, 1
      %s24 = scalar_select %p21, %s22, %s23
      %p27 = pneg %p21
      %p28 = scmp.eq.s32.totalorder %s12, 7
      %p29 = por %p27, %p28
      %p30 = scmp.ne.s32.totalorder %s22, %s25
      %p31 = scmp.eq.s32.totalorder %s12, 0
      %p32 = por %p30, %p31
      %p33 = scmp.ne.s32.totalorder %s22, %s25
      %p34 = scmp.eq.s32.totalorder %s17, 7
      %p35 = por %p33, %p34
      %p36 = scmp.ne.s32.totalorder %s25, %s26
      %p37 = scmp.eq.s32.totalorder %s17, 0
      %p38 = por %p36, %p37
      %p39 = scmp.ne.s32.totalorder %s25, %s26
      %p40 = scmp.eq.s32.totalorder %s18, 7
      %p41 = por %p39, %p40
      %p43 = scmp.ne.s32.totalorder %s26, %s42
      %p44 = scmp.eq.s32.totalorder %s18, 0
      %p45 = por %p43, %p44
      %s47 = sadd.s32 %s46, 1
      %p50 = scmp.eq.s32.totalorder %s12, 7
      %p51 = scmp.ne.s32.totalorder %s46, %s48
      %p52 = scmp.eq.s32.totalorder %s12, 0
      %p53 = por %p51, %p52
      %p54 = scmp.ne.s32.totalorder %s46, %s48
      %p55 = scmp.eq.s32.totalorder %s17, 7
      %p56 = por %p54, %p55
      %p57 = scmp.ne.s32.totalorder %s48, %s49
      %p58 = scmp.eq.s32.totalorder %s17, 0
      %p59 = por %p57, %p58
      %p60 = scmp.ne.s32.totalorder %s48, %s49
      %p61 = scmp.eq.s32.totalorder %s18, 7
      %p62 = por %p60, %p61
      %p64 = scmp.ne.s32.totalorder %s49, %s63
      %p65 = scmp.eq.s32.totalorder %s18, 0
      %p66 = por %p64, %p65
      %s68 = sadd.s32 %s67, 1
      %p71 = scmp.eq.s32.totalorder %s12, 7
      %p72 = scmp.ne.s32.totalorder %s67, %s69
      %p73 = scmp.eq.s32.totalorder %s12, 0
      %p74 = por %p72, %p73
      %p75 = scmp.ne.s32.totalorder %s67, %s69
      %p76 = scmp.eq.s32.totalorder %s17, 7
      %p77 = por %p75, %p76
      %p78 = scmp.ne.s32.totalorder %s69, %s70
      %p79 = scmp.eq.s32.totalorder %s17, 0
      %p80 = por %p78, %p79
      %p81 = scmp.ne.s32.totalorder %s69, %s70
      %p82 = scmp.eq.s32.totalorder %s18, 7
      %p83 = por %p81, %p82
      %p85 = scmp.ne.s32.totalorder %s70, %s84
      %p86 = scmp.eq.s32.totalorder %s18, 0
      %p87 = por %p85, %p86
      %s88 = ssub.s32 %s12, %s19
      %p89 = scmp.eq.s32.totalorder %s88, 0
      %s91 = sadd.s32 %s90, 1
      %s92 = scalar_select %p89, %s90, %s91
      %p95 = pneg %p89
      %p96 = scmp.eq.s32.totalorder %s12, 7
      %p97 = por %p95, %p96
      %p98 = scmp.ne.s32.totalorder %s90, %s93
      %p99 = scmp.eq.s32.totalorder %s12, 0
      %p100 = por %p98, %p99
      %p101 = scmp.ne.s32.totalorder %s90, %s93
      %p102 = scmp.eq.s32.totalorder %s17, 7
      %p103 = por %p101, %p102
      %p104 = scmp.ne.s32.totalorder %s93, %s94
      %p105 = scmp.eq.s32.totalorder %s17, 0
      %p106 = por %p104, %p105
      %p107 = scmp.ne.s32.totalorder %s93, %s94
      %p108 = scmp.eq.s32.totalorder %s18, 7
      %p109 = por %p107, %p108
      %p111 = scmp.ne.s32.totalorder %s94, %s110
      %p112 = scmp.eq.s32.totalorder %s18, 0
      %p113 = por %p111, %p112
      %p114 = scmp.le.s32.totalorder 1, %s12
      %p115 = scmp.lt.s32.totalorder %s12, 9
      %p116 = pnand %p114, %p115
      %p117 = pneg %p116
      // Predicated region
      $region9: #{gabor_layer.1} parent=5 // pred_check
        _
      $region10: #{gabor_layer.1} parent=5 // pred_check_branch
        %119 = sbr.rel (%p116) target = $region12
      $region11: #{gabor_layer.1} parent=5 // pred_region
        %s120 = ssub.s32 %s12, 1
        // Predicated region
        $region13: #{gabor_layer.1} parent=11 // pred_check
          %p121 = pneg %p59
        $region14: #{gabor_layer.1} parent=11 // pred_check_branch
          %123 = sbr.rel (%p121) target = $region16
        $region15: #{gabor_layer.1} parent=11 // pred_region
          _
        $region16: #{gabor_layer.1} parent=11 // pred_fallthru
          _
        // Predicated region
        $region17: #{gabor_layer.1} parent=11 // pred_check
          %p124 = pneg %p80
        $region18: #{gabor_layer.1} parent=11 // pred_check_branch
          %126 = sbr.rel (%p124) target = $region20
        $region19: #{gabor_layer.1} parent=11 // pred_region
          _
        $region20: #{gabor_layer.1} parent=11 // pred_fallthru
          _
      $region12: #{gabor_layer.1} parent=5 // pred_fallthru
        _
      %p127 = scmp.lt.s32.totalorder %s12, 8
      // Predicated region
      $region21: #{gabor_layer.1} parent=5 // pred_check
        %p128 = pneg %p127
      $region22: #{gabor_layer.1} parent=5 // pred_check_branch
        %130 = sbr.rel (%p128) target = $region24
      $region23: #{gabor_layer.1} parent=5 // pred_region
        // Predicated region
        $region25: #{gabor_layer.1} parent=23 // pred_check
          %p131 = pneg %p32
        $region26: #{gabor_layer.1} parent=23 // pred_check_branch
          %133 = sbr.rel (%p131) target = $region28
        $region27: #{gabor_layer.1} parent=23 // pred_region
          %s134 = smul.u32 64, %s12
          %p135 = scmp.lt.s32.totalorder %s134, 511
          %s136 = scalar_select %p135, %s134, 511
          %s137 = smul.addr %s136, 8
          %s138 = scalar_lea.vmem %s0, %s137
          %s139 = smul.u32 64, %s12
        $region28: #{gabor_layer.1} parent=23 // pred_fallthru
          _
      $region24: #{gabor_layer.1} parent=5 // pred_fallthru
        _
      %p140 = scmp.le.s32.totalorder 1, %s12
      %p141 = scmp.lt.s32.totalorder %s12, 9
      %p142 = pnand %p140, %p141
      %p143 = pneg %p142
      // Predicated region
      $region29: #{gabor_layer.1} parent=5 // pred_check
        _
      $region30: #{gabor_layer.1} parent=5 // pred_check_branch
        %145 = sbr.rel (%p142) target = $region32
      $region31: #{gabor_layer.1} parent=5 // pred_region
        %s146 = ssub.s32 %s12, 1
        %s147 = smul.u32 64, %s17
        %p148 = scmp.lt.s32.totalorder %s147, 511
        %s149 = scalar_select %p148, %s147, 511
        %s150 = smul.addr %s149, 8
        %s151 = scalar_lea.vmem %s0, %s150
        %p152 = pneg %p38
        %p153 = pneg %p35
        %p154 = pneg %p59
        %p155 = pneg %p56
        %p156 = pneg %p80
        %p157 = pneg %p77
        %p158 = pneg %p106
        %p159 = pneg %p103
        %s160 = sand.u32 %s93, 1
        %s161 = scalar_lea.sflag [#allocation3], %s160
        %s162 = sand.u32 %s93, 1
        %s163 = smul.addr %s162, 512
        %s164 = scalar_lea.vmem [#allocation2], %s163
        %s165 = smul.u32 64, %s17
        %p166 = scmp.lt.s32.totalorder %s165, 511
        %s167 = scalar_select %p166, %s165, 511
        %s168 = smul.addr %s167, 8
        %s169 = scalar_lea.vmem %s0, %s168
        %s170 = smul.u32 64, %s17
        %s171 = smul.u32 64, %s17
        %v172 = vld [vmem:[%s169] sm:$0xff]
        %v173 = vld [vmem:[%s169 + $0x8] sm:$0xff]
        %v174 = vld [vmem:[%s169 + $0x10] sm:$0xff]
        %v175 = vld [vmem:[%s169 + $0x18] sm:$0xff]
        %v176 = vld [vmem:[%s169 + $0x20] sm:$0xff]
        %v177 = vld [vmem:[%s169 + $0x28] sm:$0xff]
        %v178 = vld [vmem:[%s169 + $0x30] sm:$0xff]
        %v179 = vld [vmem:[%s169 + $0x38] sm:$0xff]
        %v180 = vld [vmem:[%s169 + $0x40] sm:$0xff]
        %v181 = vld [vmem:[%s169 + $0x48] sm:$0xff]
        %v182 = vld [vmem:[%s169 + $0x50] sm:$0xff]
        %v183 = vld [vmem:[%s169 + $0x58] sm:$0xff]
        %v184 = vld [vmem:[%s169 + $0x60] sm:$0xff]
        %v185 = vld [vmem:[%s169 + $0x68] sm:$0xff]
        %v186 = vld [vmem:[%s169 + $0x70] sm:$0xff]
        %v187 = vld [vmem:[%s169 + $0x78] sm:$0xff]
        %v188 = vld [vmem:[%s169 + $0x80] sm:$0xff]
        %v189 = vld [vmem:[%s169 + $0x88] sm:$0xff]
        %v190 = vld [vmem:[%s169 + $0x90] sm:$0xff]
        %v191 = vld [vmem:[%s169 + $0x98] sm:$0xff]
        %v192 = vld [vmem:[%s169 + $0xa0] sm:$0xff]
        %v193 = vld [vmem:[%s169 + $0xa8] sm:$0xff]
        %v194 = vld [vmem:[%s169 + $0xb0] sm:$0xff]
        %v195 = vld [vmem:[%s169 + $0xb8] sm:$0xff]
        %v196 = vld [vmem:[%s169 + $0xc0] sm:$0xff]
        %v197 = vld [vmem:[%s169 + $0xc8] sm:$0xff]
        %v198 = vld [vmem:[%s169 + $0xd0] sm:$0xff]
        %v199 = vld [vmem:[%s169 + $0xd8] sm:$0xff]
        %v200 = vld [vmem:[%s169 + $0xe0] sm:$0xff]
        %v201 = vld [vmem:[%s169 + $0xe8] sm:$0xff]
        %v202 = vld [vmem:[%s169 + $0xf0] sm:$0xff]
        %v203 = vld [vmem:[%s169 + $0xf8] sm:$0xff]
        %v204 = vld [vmem:[%s169 + $0x100] sm:$0xff]
        %v205 = vld [vmem:[%s169 + $0x108] sm:$0xff]
        %v206 = vld [vmem:[%s169 + $0x110] sm:$0xff]
        %v207 = vld [vmem:[%s169 + $0x118] sm:$0xff]
        %v208 = vld [vmem:[%s169 + $0x120] sm:$0xff]
        %v209 = vld [vmem:[%s169 + $0x128] sm:$0xff]
        %v210 = vld [vmem:[%s169 + $0x130] sm:$0xff]
        %v211 = vld [vmem:[%s169 + $0x138] sm:$0xff]
        %v212 = vld [vmem:[%s169 + $0x140] sm:$0xff]
        %v213 = vld [vmem:[%s169 + $0x148] sm:$0xff]
        %v214 = vld [vmem:[%s169 + $0x150] sm:$0xff]
        %v215 = vld [vmem:[%s169 + $0x158] sm:$0xff]
        %v216 = vld [vmem:[%s169 + $0x160] sm:$0xff]
        %v217 = vld [vmem:[%s169 + $0x168] sm:$0xff]
        %v218 = vld [vmem:[%s169 + $0x170] sm:$0xff]
        %v219 = vld [vmem:[%s169 + $0x178] sm:$0xff]
        %v220 = vld [vmem:[%s169 + $0x180] sm:$0xff]
        %v221 = vld [vmem:[%s169 + $0x188] sm:$0xff]
        %v222 = vld [vmem:[%s169 + $0x190] sm:$0xff]
        %v223 = vld [vmem:[%s169 + $0x198] sm:$0xff]
        %v224 = vld [vmem:[%s169 + $0x1a0] sm:$0xff]
        %v225 = vld [vmem:[%s169 + $0x1a8] sm:$0xff]
        %v226 = vld [vmem:[%s169 + $0x1b0] sm:$0xff]
        %v227 = vld [vmem:[%s169 + $0x1b8] sm:$0xff]
        %v228 = vld [vmem:[%s169 + $0x1c0] sm:$0xff]
        %v229 = vld [vmem:[%s169 + $0x1c8] sm:$0xff]
        %v230 = vld [vmem:[%s169 + $0x1d0] sm:$0xff]
        %v231 = vld [vmem:[%s169 + $0x1d8] sm:$0xff]
        %v232 = vld [vmem:[%s169 + $0x1e0] sm:$0xff]
        %v233 = vld [vmem:[%s169 + $0x1e8] sm:$0xff]
        %v234 = vld [vmem:[%s169 + $0x1f0] sm:$0xff]
        %v235 = vld [vmem:[%s169 + $0x1f8] sm:$0xff]
        %v236 = vld [vmem:[%s1] sm:$0xff]
        %v237 = vld [vmem:[%s1 + $0x8] sm:$0xff]
        %v238 = vld [vmem:[%s1 + $0x10] sm:$0xff]
        %v239 = vld [vmem:[%s1 + $0x18] sm:$0xff]
        %vm240 = vcmask 130048
        %v242 = vsel %vm240, %v172, 0
        %v245 = vsel %vm240, %v173, 0
        %v248 = vsel %vm240, %v174, 0
        %v251 = vsel %vm240, %v175, 0
        %v254 = vsel %vm240, %v176, 0
        %v257 = vsel %vm240, %v177, 0
        %v260 = vsel %vm240, %v178, 0
        %v263 = vsel %vm240, %v179, 0
        %v266 = vsel %vm240, %v180, 0
        %v269 = vsel %vm240, %v181, 0
        %v272 = vsel %vm240, %v182, 0
        %v275 = vsel %vm240, %v183, 0
        %v278 = vsel %vm240, %v184, 0
        %v281 = vsel %vm240, %v185, 0
        %v284 = vsel %vm240, %v186, 0
        %v287 = vsel %vm240, %v187, 0
        %v290 = vsel %vm240, %v188, 0
        %v293 = vsel %vm240, %v189, 0
        %v296 = vsel %vm240, %v190, 0
        %v299 = vsel %vm240, %v191, 0
        %v302 = vsel %vm240, %v192, 0
        %v305 = vsel %vm240, %v193, 0
        %v308 = vsel %vm240, %v194, 0
        %v311 = vsel %vm240, %v195, 0
        %v314 = vsel %vm240, %v196, 0
        %v317 = vsel %vm240, %v197, 0
        %v320 = vsel %vm240, %v198, 0
        %v323 = vsel %vm240, %v199, 0
        %v326 = vsel %vm240, %v200, 0
        %v329 = vsel %vm240, %v201, 0
        %v332 = vsel %vm240, %v202, 0
        %v335 = vsel %vm240, %v203, 0
        %v338 = vsel %vm240, %v204, 0
        %v341 = vsel %vm240, %v205, 0
        %v344 = vsel %vm240, %v206, 0
        %v347 = vsel %vm240, %v207, 0
        %v350 = vsel %vm240, %v208, 0
        %v353 = vsel %vm240, %v209, 0
        %v356 = vsel %vm240, %v210, 0
        %v359 = vsel %vm240, %v211, 0
        %v362 = vsel %vm240, %v212, 0
        %v365 = vsel %vm240, %v213, 0
        %v368 = vsel %vm240, %v214, 0
        %v371 = vsel %vm240, %v215, 0
        %v374 = vsel %vm240, %v216, 0
        %v377 = vsel %vm240, %v217, 0
        %v380 = vsel %vm240, %v218, 0
        %v383 = vsel %vm240, %v219, 0
        %v386 = vsel %vm240, %v220, 0
        %v389 = vsel %vm240, %v221, 0
        %v392 = vsel %vm240, %v222, 0
        %v395 = vsel %vm240, %v223, 0
        %v398 = vsel %vm240, %v224, 0
        %v401 = vsel %vm240, %v225, 0
        %v404 = vsel %vm240, %v226, 0
        %v407 = vsel %vm240, %v227, 0
        %v410 = vsel %vm240, %v228, 0
        %v413 = vsel %vm240, %v229, 0
        %v416 = vsel %vm240, %v230, 0
        %v419 = vsel %vm240, %v231, 0
        %v422 = vsel %vm240, %v232, 0
        %v425 = vsel %vm240, %v233, 0
        %v428 = vsel %vm240, %v234, 0
        %v431 = vsel %vm240, %v235, 0
        %433 = vmatprep.subr.mxu0 0.0
        %434 = vmatpush1.msra.mxu0 0.0
        %435 = vmatprep.subr.mxu0 0.0
        %436 = vmatpush1.msra.mxu0 0.0
        %437 = vmatprep.subr.mxu0 0.0
        %438 = vmatpush1.msra.mxu0 0.0
        %439 = vmatprep.subr.mxu0 0.0
        %440 = vmatpush1.msra.mxu0 0.0
        %441 = vmatprep.subr.mxu0 0.0
        %442 = vmatpush1.msra.mxu0 0.0
        %443 = vmatprep.subr.mxu0 0.0
        %444 = vmatpush1.msra.mxu0 0.0
        %445 = vmatprep.subr.mxu0 0.0
        %446 = vmatpush1.msra.mxu0 0.0
        %447 = vmatprep.subr.mxu0 0.0
        %448 = vmatpush1.msra.mxu0 0.0
        %449 = vmatprep.subr.mxu0 0.0
        %450 = vmatpush1.msra.mxu0 0.0
        %451 = vmatprep.subr.mxu0 0.0
        %452 = vmatpush1.msra.mxu0 0.0
        %453 = vmatprep.subr.mxu0 0.0
        %454 = vmatpush1.msra.mxu0 0.0
        %455 = vmatprep.subr.mxu0 0.0
        %456 = vmatpush1.msra.mxu0 0.0
        %457 = vmatprep.subr.mxu0 0.0
        %458 = vmatpush1.msra.mxu0 0.0
        %459 = vmatprep.subr.mxu0 0.0
        %460 = vmatpush1.msra.mxu0 0.0
        %461 = vmatprep.subr.mxu0 %v239
        %462 = vmatpush1.msra.mxu0 %v238
        %463 = vmatprep.subr.mxu0 %v237
        %464 = vmatpush1.msra.mxu0 %v236
        %465 = vmatprep.subr.mxu0 0.0
        %466 = vmatpush2.msra.mxu0 0.0
        %467 = vmatprep.subr.mxu0 0.0
        %468 = vmatpush2.msra.mxu0 0.0
        %469 = vmatprep.subr.mxu0 0.0
        %470 = vmatpush2.msra.mxu0 0.0
        %471 = vmatprep.subr.mxu0 0.0
        %472 = vmatpush2.msra.mxu0 0.0
        %473 = vmatprep.subr.mxu0 0.0
        %474 = vmatpush2.msra.mxu0 0.0
        %475 = vmatprep.subr.mxu0 0.0
        %476 = vmatpush2.msra.mxu0 0.0
        %477 = vmatprep.subr.mxu0 0.0
        %478 = vmatpush2.msra.mxu0 0.0
        %479 = vmatprep.subr.mxu0 0.0
        %480 = vmatpush2.msra.mxu0 0.0
        %481 = vmatprep.subr.mxu0 0.0
        %482 = vmatpush2.msra.mxu0 0.0
        %483 = vmatprep.subr.mxu0 0.0
        %484 = vmatpush2.msra.mxu0 0.0
        %485 = vmatprep.subr.mxu0 0.0
        %486 = vmatpush2.msra.mxu0 0.0
        %487 = vmatprep.subr.mxu0 0.0
        %488 = vmatpush2.msra.mxu0 0.0
        %489 = vmatprep.subr.mxu0 0.0
        %490 = vmatpush2.msra.mxu0 0.0
        %491 = vmatprep.subr.mxu0 0.0
        %492 = vmatpush2.msra.mxu0 0.0
        %493 = vmatprep.subr.mxu0 0.0
        %494 = vmatpush2.msra.mxu0 0.0
        %495 = vmatprep.subr.mxu0 0.0
        %496 = vmatpush2.msra.mxu0 0.0
        %497 = vmatprep.mubr.f32.mxu0 0.0
        %498 = vmatmul.mubr.f32.gmra.mxu0 %v242
        %v499 = vpop.f32.mrf.mxu0
        %v500 = vadd.f32 0.0, %v499
        %v501 = vpop.f32.mrf.mxu0
        %v502 = vadd.f32 0.0, %v501
        %503 = vmatprep.mubr.f32.mxu0 0.0
        %504 = vmatmul.mubr.f32.gmra.mxu0 %v245
        %v505 = vpop.f32.mrf.mxu0
        %v506 = vadd.f32 0.0, %v505
        %v507 = vpop.f32.mrf.mxu0
        %v508 = vadd.f32 0.0, %v507
        %509 = vmatprep.mubr.f32.mxu0 0.0
        %510 = vmatmul.mubr.f32.gmra.mxu0 %v248
        %v511 = vpop.f32.mrf.mxu0
        %v512 = vadd.f32 0.0, %v511
        %v513 = vpop.f32.mrf.mxu0
        %v514 = vadd.f32 0.0, %v513
        %515 = vmatprep.mubr.f32.mxu0 0.0
        %516 = vmatmul.mubr.f32.gmra.mxu0 %v251
        %v517 = vpop.f32.mrf.mxu0
        %v518 = vadd.f32 0.0, %v517
        %v519 = vpop.f32.mrf.mxu0
        %v520 = vadd.f32 0.0, %v519
        %521 = vmatprep.mubr.f32.mxu0 0.0
        %522 = vmatmul.mubr.f32.gmra.mxu0 %v254
        %v523 = vpop.f32.mrf.mxu0
        %v524 = vadd.f32 0.0, %v523
        %v525 = vpop.f32.mrf.mxu0
        %v526 = vadd.f32 0.0, %v525
        %527 = vmatprep.mubr.f32.mxu0 0.0
        %528 = vmatmul.mubr.f32.gmra.mxu0 %v257
        %v529 = vpop.f32.mrf.mxu0
        %v530 = vadd.f32 0.0, %v529
        %v531 = vpop.f32.mrf.mxu0
        %v532 = vadd.f32 0.0, %v531
        %533 = vmatprep.mubr.f32.mxu0 0.0
        %534 = vmatmul.mubr.f32.gmra.mxu0 %v260
        %v535 = vpop.f32.mrf.mxu0
        %v536 = vadd.f32 0.0, %v535
        %v537 = vpop.f32.mrf.mxu0
        %v538 = vadd.f32 0.0, %v537
        %539 = vmatprep.mubr.f32.mxu0 0.0
        %540 = vmatmul.mubr.f32.gmra.mxu0 %v263
        %v541 = vpop.f32.mrf.mxu0
        %v542 = vadd.f32 0.0, %v541
        %v543 = vpop.f32.mrf.mxu0
        %v544 = vadd.f32 0.0, %v543
        %545 = vmatprep.mubr.f32.mxu0 0.0
        %546 = vmatmul.mubr.f32.gmra.mxu0 %v266
        %v547 = vpop.f32.mrf.mxu0
        %v548 = vadd.f32 0.0, %v547
        %v549 = vpop.f32.mrf.mxu0
        %v550 = vadd.f32 0.0, %v549
        %551 = vmatprep.mubr.f32.mxu0 0.0
        %552 = vmatmul.mubr.f32.gmra.mxu0 %v269
        %v553 = vpop.f32.mrf.mxu0
        %v554 = vadd.f32 0.0, %v553
        %v555 = vpop.f32.mrf.mxu0
        %v556 = vadd.f32 0.0, %v555
        %557 = vmatprep.mubr.f32.mxu0 0.0
        %558 = vmatmul.mubr.f32.gmra.mxu0 %v272
        %v559 = vpop.f32.mrf.mxu0
        %v560 = vadd.f32 0.0, %v559
        %v561 = vpop.f32.mrf.mxu0
        %v562 = vadd.f32 0.0, %v561
        %563 = vmatprep.mubr.f32.mxu0 0.0
        %564 = vmatmul.mubr.f32.gmra.mxu0 %v275
        %v565 = vpop.f32.mrf.mxu0
        %v566 = vadd.f32 0.0, %v565
        %v567 = vpop.f32.mrf.mxu0
        %v568 = vadd.f32 0.0, %v567
        %569 = vmatprep.mubr.f32.mxu0 0.0
        %570 = vmatmul.mubr.f32.gmra.mxu0 %v278
        %v571 = vpop.f32.mrf.mxu0
        %v572 = vadd.f32 0.0, %v571
        %v573 = vpop.f32.mrf.mxu0
        %v574 = vadd.f32 0.0, %v573
        %575 = vmatprep.mubr.f32.mxu0 0.0
        %576 = vmatmul.mubr.f32.gmra.mxu0 %v281
        %v577 = vpop.f32.mrf.mxu0
        %v578 = vadd.f32 0.0, %v577
        %v579 = vpop.f32.mrf.mxu0
        %v580 = vadd.f32 0.0, %v579
        %581 = vmatprep.mubr.f32.mxu0 0.0
        %582 = vmatmul.mubr.f32.gmra.mxu0 %v284
        %v583 = vpop.f32.mrf.mxu0
        %v584 = vadd.f32 0.0, %v583
        %v585 = vpop.f32.mrf.mxu0
        %v586 = vadd.f32 0.0, %v585
        %587 = vmatprep.mubr.f32.mxu0 0.0
        %588 = vmatmul.mubr.f32.gmra.mxu0 %v287
        %v589 = vpop.f32.mrf.mxu0
        %v590 = vadd.f32 0.0, %v589
        %v591 = vpop.f32.mrf.mxu0
        %v592 = vadd.f32 0.0, %v591
        %593 = vmatprep.mubr.f32.mxu0 0.0
        %594 = vmatmul.mubr.f32.gmra.mxu0 %v290
        %v595 = vpop.f32.mrf.mxu0
        %v596 = vadd.f32 0.0, %v595
        %v597 = vpop.f32.mrf.mxu0
        %v598 = vadd.f32 0.0, %v597
        %599 = vmatprep.mubr.f32.mxu0 0.0
        %600 = vmatmul.mubr.f32.gmra.mxu0 %v293
        %v601 = vpop.f32.mrf.mxu0
        %v602 = vadd.f32 0.0, %v601
        %v603 = vpop.f32.mrf.mxu0
        %v604 = vadd.f32 0.0, %v603
        %605 = vmatprep.mubr.f32.mxu0 0.0
        %606 = vmatmul.mubr.f32.gmra.mxu0 %v296
        %v607 = vpop.f32.mrf.mxu0
        %v608 = vadd.f32 0.0, %v607
        %v609 = vpop.f32.mrf.mxu0
        %v610 = vadd.f32 0.0, %v609
        %611 = vmatprep.mubr.f32.mxu0 0.0
        %612 = vmatmul.mubr.f32.gmra.mxu0 %v299
        %v613 = vpop.f32.mrf.mxu0
        %v614 = vadd.f32 0.0, %v613
        %v615 = vpop.f32.mrf.mxu0
        %v616 = vadd.f32 0.0, %v615
        %617 = vmatprep.mubr.f32.mxu0 0.0
        %618 = vmatmul.mubr.f32.gmra.mxu0 %v302
        %v619 = vpop.f32.mrf.mxu0
        %v620 = vadd.f32 0.0, %v619
        %v621 = vpop.f32.mrf.mxu0
        %v622 = vadd.f32 0.0, %v621
        %623 = vmatprep.mubr.f32.mxu0 0.0
        %624 = vmatmul.mubr.f32.gmra.mxu0 %v305
        %v625 = vpop.f32.mrf.mxu0
        %v626 = vadd.f32 0.0, %v625
        %v627 = vpop.f32.mrf.mxu0
        %v628 = vadd.f32 0.0, %v627
        %629 = vmatprep.mubr.f32.mxu0 0.0
        %630 = vmatmul.mubr.f32.gmra.mxu0 %v308
        %v631 = vpop.f32.mrf.mxu0
        %v632 = vadd.f32 0.0, %v631
        %v633 = vpop.f32.mrf.mxu0
        %v634 = vadd.f32 0.0, %v633
        %635 = vmatprep.mubr.f32.mxu0 0.0
        %636 = vmatmul.mubr.f32.gmra.mxu0 %v311
        %v637 = vpop.f32.mrf.mxu0
        %v638 = vadd.f32 0.0, %v637
        %v639 = vpop.f32.mrf.mxu0
        %v640 = vadd.f32 0.0, %v639
        %641 = vmatprep.mubr.f32.mxu0 0.0
        %642 = vmatmul.mubr.f32.gmra.mxu0 %v314
        %v643 = vpop.f32.mrf.mxu0
        %v644 = vadd.f32 0.0, %v643
        %v645 = vpop.f32.mrf.mxu0
        %v646 = vadd.f32 0.0, %v645
        %647 = vmatprep.mubr.f32.mxu0 0.0
        %648 = vmatmul.mubr.f32.gmra.mxu0 %v317
        %v649 = vpop.f32.mrf.mxu0
        %v650 = vadd.f32 0.0, %v649
        %v651 = vpop.f32.mrf.mxu0
        %v652 = vadd.f32 0.0, %v651
        %653 = vmatprep.mubr.f32.mxu0 0.0
        %654 = vmatmul.mubr.f32.gmra.mxu0 %v320
        %v655 = vpop.f32.mrf.mxu0
        %v656 = vadd.f32 0.0, %v655
        %v657 = vpop.f32.mrf.mxu0
        %v658 = vadd.f32 0.0, %v657
        %659 = vmatprep.mubr.f32.mxu0 0.0
        %660 = vmatmul.mubr.f32.gmra.mxu0 %v323
        %v661 = vpop.f32.mrf.mxu0
        %v662 = vadd.f32 0.0, %v661
        %v663 = vpop.f32.mrf.mxu0
        %v664 = vadd.f32 0.0, %v663
        %665 = vmatprep.mubr.f32.mxu0 0.0
        %666 = vmatmul.mubr.f32.gmra.mxu0 %v326
        %v667 = vpop.f32.mrf.mxu0
        %v668 = vadd.f32 0.0, %v667
        %v669 = vpop.f32.mrf.mxu0
        %v670 = vadd.f32 0.0, %v669
        %671 = vmatprep.mubr.f32.mxu0 0.0
        %672 = vmatmul.mubr.f32.gmra.mxu0 %v329
        %v673 = vpop.f32.mrf.mxu0
        %v674 = vadd.f32 0.0, %v673
        %v675 = vpop.f32.mrf.mxu0
        %v676 = vadd.f32 0.0, %v675
        %677 = vmatprep.mubr.f32.mxu0 0.0
        %678 = vmatmul.mubr.f32.gmra.mxu0 %v332
        %v679 = vpop.f32.mrf.mxu0
        %v680 = vadd.f32 0.0, %v679
        %v681 = vpop.f32.mrf.mxu0
        %v682 = vadd.f32 0.0, %v681
        %683 = vmatprep.mubr.f32.mxu0 0.0
        %684 = vmatmul.mubr.f32.gmra.mxu0 %v335
        %v685 = vpop.f32.mrf.mxu0
        %v686 = vadd.f32 0.0, %v685
        %v687 = vpop.f32.mrf.mxu0
        %v688 = vadd.f32 0.0, %v687
        %689 = vmatprep.mubr.f32.mxu0 0.0
        %690 = vmatmul.mubr.f32.gmra.mxu0 %v338
        %v691 = vpop.f32.mrf.mxu0
        %v692 = vadd.f32 0.0, %v691
        %v693 = vpop.f32.mrf.mxu0
        %v694 = vadd.f32 0.0, %v693
        %695 = vmatprep.mubr.f32.mxu0 0.0
        %696 = vmatmul.mubr.f32.gmra.mxu0 %v341
        %v697 = vpop.f32.mrf.mxu0
        %v698 = vadd.f32 0.0, %v697
        %v699 = vpop.f32.mrf.mxu0
        %v700 = vadd.f32 0.0, %v699
        %701 = vmatprep.mubr.f32.mxu0 0.0
        %702 = vmatmul.mubr.f32.gmra.mxu0 %v344
        %v703 = vpop.f32.mrf.mxu0
        %v704 = vadd.f32 0.0, %v703
        %v705 = vpop.f32.mrf.mxu0
        %v706 = vadd.f32 0.0, %v705
        %707 = vmatprep.mubr.f32.mxu0 0.0
        %708 = vmatmul.mubr.f32.gmra.mxu0 %v347
        %v709 = vpop.f32.mrf.mxu0
        %v710 = vadd.f32 0.0, %v709
        %v711 = vpop.f32.mrf.mxu0
        %v712 = vadd.f32 0.0, %v711
        %713 = vmatprep.mubr.f32.mxu0 0.0
        %714 = vmatmul.mubr.f32.gmra.mxu0 %v350
        %v715 = vpop.f32.mrf.mxu0
        %v716 = vadd.f32 0.0, %v715
        %v717 = vpop.f32.mrf.mxu0
        %v718 = vadd.f32 0.0, %v717
        %719 = vmatprep.mubr.f32.mxu0 0.0
        %720 = vmatmul.mubr.f32.gmra.mxu0 %v353
        %v721 = vpop.f32.mrf.mxu0
        %v722 = vadd.f32 0.0, %v721
        %v723 = vpop.f32.mrf.mxu0
        %v724 = vadd.f32 0.0, %v723
        %725 = vmatprep.mubr.f32.mxu0 0.0
        %726 = vmatmul.mubr.f32.gmra.mxu0 %v356
        %v727 = vpop.f32.mrf.mxu0
        %v728 = vadd.f32 0.0, %v727
        %v729 = vpop.f32.mrf.mxu0
        %v730 = vadd.f32 0.0, %v729
        %731 = vmatprep.mubr.f32.mxu0 0.0
        %732 = vmatmul.mubr.f32.gmra.mxu0 %v359
        %v733 = vpop.f32.mrf.mxu0
        %v734 = vadd.f32 0.0, %v733
        %v735 = vpop.f32.mrf.mxu0
        %v736 = vadd.f32 0.0, %v735
        %737 = vmatprep.mubr.f32.mxu0 0.0
        %738 = vmatmul.mubr.f32.gmra.mxu0 %v362
        %v739 = vpop.f32.mrf.mxu0
        %v740 = vadd.f32 0.0, %v739
        %v741 = vpop.f32.mrf.mxu0
        %v742 = vadd.f32 0.0, %v741
        %743 = vmatprep.mubr.f32.mxu0 0.0
        %744 = vmatmul.mubr.f32.gmra.mxu0 %v365
        %v745 = vpop.f32.mrf.mxu0
        %v746 = vadd.f32 0.0, %v745
        %v747 = vpop.f32.mrf.mxu0
        %v748 = vadd.f32 0.0, %v747
        %749 = vmatprep.mubr.f32.mxu0 0.0
        %750 = vmatmul.mubr.f32.gmra.mxu0 %v368
        %v751 = vpop.f32.mrf.mxu0
        %v752 = vadd.f32 0.0, %v751
        %v753 = vpop.f32.mrf.mxu0
        %v754 = vadd.f32 0.0, %v753
        %755 = vmatprep.mubr.f32.mxu0 0.0
        %756 = vmatmul.mubr.f32.gmra.mxu0 %v371
        %v757 = vpop.f32.mrf.mxu0
        %v758 = vadd.f32 0.0, %v757
        %v759 = vpop.f32.mrf.mxu0
        %v760 = vadd.f32 0.0, %v759
        %761 = vmatprep.mubr.f32.mxu0 0.0
        %762 = vmatmul.mubr.f32.gmra.mxu0 %v374
        %v763 = vpop.f32.mrf.mxu0
        %v764 = vadd.f32 0.0, %v763
        %v765 = vpop.f32.mrf.mxu0
        %v766 = vadd.f32 0.0, %v765
        %767 = vmatprep.mubr.f32.mxu0 0.0
        %768 = vmatmul.mubr.f32.gmra.mxu0 %v377
        %v769 = vpop.f32.mrf.mxu0
        %v770 = vadd.f32 0.0, %v769
        %v771 = vpop.f32.mrf.mxu0
        %v772 = vadd.f32 0.0, %v771
        %773 = vmatprep.mubr.f32.mxu0 0.0
        %774 = vmatmul.mubr.f32.gmra.mxu0 %v380
        %v775 = vpop.f32.mrf.mxu0
        %v776 = vadd.f32 0.0, %v775
        %v777 = vpop.f32.mrf.mxu0
        %v778 = vadd.f32 0.0, %v777
        %779 = vmatprep.mubr.f32.mxu0 0.0
        %780 = vmatmul.mubr.f32.gmra.mxu0 %v383
        %v781 = vpop.f32.mrf.mxu0
        %v782 = vadd.f32 0.0, %v781
        %v783 = vpop.f32.mrf.mxu0
        %v784 = vadd.f32 0.0, %v783
        %785 = vmatprep.mubr.f32.mxu0 0.0
        %786 = vmatmul.mubr.f32.gmra.mxu0 %v386
        %v787 = vpop.f32.mrf.mxu0
        %v788 = vadd.f32 0.0, %v787
        %v789 = vpop.f32.mrf.mxu0
        %v790 = vadd.f32 0.0, %v789
        %791 = vmatprep.mubr.f32.mxu0 0.0
        %792 = vmatmul.mubr.f32.gmra.mxu0 %v389
        %v793 = vpop.f32.mrf.mxu0
        %v794 = vadd.f32 0.0, %v793
        %v795 = vpop.f32.mrf.mxu0
        %v796 = vadd.f32 0.0, %v795
        %797 = vmatprep.mubr.f32.mxu0 0.0
        %798 = vmatmul.mubr.f32.gmra.mxu0 %v392
        %v799 = vpop.f32.mrf.mxu0
        %v800 = vadd.f32 0.0, %v799
        %v801 = vpop.f32.mrf.mxu0
        %v802 = vadd.f32 0.0, %v801
        %803 = vmatprep.mubr.f32.mxu0 0.0
        %804 = vmatmul.mubr.f32.gmra.mxu0 %v395
        %v805 = vpop.f32.mrf.mxu0
        %v806 = vadd.f32 0.0, %v805
        %v807 = vpop.f32.mrf.mxu0
        %v808 = vadd.f32 0.0, %v807
        %809 = vmatprep.mubr.f32.mxu0 0.0
        %810 = vmatmul.mubr.f32.gmra.mxu0 %v398
        %v811 = vpop.f32.mrf.mxu0
        %v812 = vadd.f32 0.0, %v811
        %v813 = vpop.f32.mrf.mxu0
        %v814 = vadd.f32 0.0, %v813
        %815 = vmatprep.mubr.f32.mxu0 0.0
        %816 = vmatmul.mubr.f32.gmra.mxu0 %v401
        %v817 = vpop.f32.mrf.mxu0
        %v818 = vadd.f32 0.0, %v817
        %v819 = vpop.f32.mrf.mxu0
        %v820 = vadd.f32 0.0, %v819
        %821 = vmatprep.mubr.f32.mxu0 0.0
        %822 = vmatmul.mubr.f32.gmra.mxu0 %v404
        %v823 = vpop.f32.mrf.mxu0
        %v824 = vadd.f32 0.0, %v823
        %v825 = vpop.f32.mrf.mxu0
        %v826 = vadd.f32 0.0, %v825
        %827 = vmatprep.mubr.f32.mxu0 0.0
        %828 = vmatmul.mubr.f32.gmra.mxu0 %v407
        %v829 = vpop.f32.mrf.mxu0
        %v830 = vadd.f32 0.0, %v829
        %v831 = vpop.f32.mrf.mxu0
        %v832 = vadd.f32 0.0, %v831
        %833 = vmatprep.mubr.f32.mxu0 0.0
        %834 = vmatmul.mubr.f32.gmra.mxu0 %v410
        %v835 = vpop.f32.mrf.mxu0
        %v836 = vadd.f32 0.0, %v835
        %v837 = vpop.f32.mrf.mxu0
        %v838 = vadd.f32 0.0, %v837
        %839 = vmatprep.mubr.f32.mxu0 0.0
        %840 = vmatmul.mubr.f32.gmra.mxu0 %v413
        %v841 = vpop.f32.mrf.mxu0
        %v842 = vadd.f32 0.0, %v841
        %v843 = vpop.f32.mrf.mxu0
        %v844 = vadd.f32 0.0, %v843
        %845 = vmatprep.mubr.f32.mxu0 0.0
        %846 = vmatmul.mubr.f32.gmra.mxu0 %v416
        %v847 = vpop.f32.mrf.mxu0
        %v848 = vadd.f32 0.0, %v847
        %v849 = vpop.f32.mrf.mxu0
        %v850 = vadd.f32 0.0, %v849
        %851 = vmatprep.mubr.f32.mxu0 0.0
        %852 = vmatmul.mubr.f32.gmra.mxu0 %v419
        %v853 = vpop.f32.mrf.mxu0
        %v854 = vadd.f32 0.0, %v853
        %v855 = vpop.f32.mrf.mxu0
        %v856 = vadd.f32 0.0, %v855
        %857 = vmatprep.mubr.f32.mxu0 0.0
        %858 = vmatmul.mubr.f32.gmra.mxu0 %v422
        %v859 = vpop.f32.mrf.mxu0
        %v860 = vadd.f32 0.0, %v859
        %v861 = vpop.f32.mrf.mxu0
        %v862 = vadd.f32 0.0, %v861
        %863 = vmatprep.mubr.f32.mxu0 0.0
        %864 = vmatmul.mubr.f32.gmra.mxu0 %v425
        %v865 = vpop.f32.mrf.mxu0
        %v866 = vadd.f32 0.0, %v865
        %v867 = vpop.f32.mrf.mxu0
        %v868 = vadd.f32 0.0, %v867
        %869 = vmatprep.mubr.f32.mxu0 0.0
        %870 = vmatmul.mubr.f32.gmra.mxu0 %v428
        %v871 = vpop.f32.mrf.mxu0
        %v872 = vadd.f32 0.0, %v871
        %v873 = vpop.f32.mrf.mxu0
        %v874 = vadd.f32 0.0, %v873
        %875 = vmatprep.mubr.f32.mxu0 0.0
        %876 = vmatmul.mubr.f32.gmra.mxu0 %v431
        %v877 = vpop.f32.mrf.mxu0
        %v878 = vadd.f32 0.0, %v877
        %v879 = vpop.f32.mrf.mxu0
        %v880 = vadd.f32 0.0, %v879
        %881 = vdwg.mxu0
        %v882 = vld [vmem:[%s2] sm:$0x1]
        %v883 = vlaneseq
        %v884 = vshrl.u32 %v883, 7
        %v885 = vsub.s32 0, %v884
        %v886 = vrot.slane %v882, %v885
        %v887 = vadd.f32 %v500, %v886
        %v888 = vadd.f32 %v506, %v886
        %v889 = vadd.f32 %v512, %v886
        %v890 = vadd.f32 %v518, %v886
        %v891 = vadd.f32 %v524, %v886
        %v892 = vadd.f32 %v530, %v886
        %v893 = vadd.f32 %v536, %v886
        %v894 = vadd.f32 %v542, %v886
        %v895 = vadd.f32 %v548, %v886
        %v896 = vadd.f32 %v554, %v886
        %v897 = vadd.f32 %v560, %v886
        %v898 = vadd.f32 %v566, %v886
        %v899 = vadd.f32 %v572, %v886
        %v900 = vadd.f32 %v578, %v886
        %v901 = vadd.f32 %v584, %v886
        %v902 = vadd.f32 %v590, %v886
        %v903 = vadd.f32 %v596, %v886
        %v904 = vadd.f32 %v602, %v886
        %v905 = vadd.f32 %v608, %v886
        %v906 = vadd.f32 %v614, %v886
        %v907 = vadd.f32 %v620, %v886
        %v908 = vadd.f32 %v626, %v886
        %v909 = vadd.f32 %v632, %v886
        %v910 = vadd.f32 %v638, %v886
        %v911 = vadd.f32 %v644, %v886
        %v912 = vadd.f32 %v650, %v886
        %v913 = vadd.f32 %v656, %v886
        %v914 = vadd.f32 %v662, %v886
        %v915 = vadd.f32 %v668, %v886
        %v916 = vadd.f32 %v674, %v886
        %v917 = vadd.f32 %v680, %v886
        %v918 = vadd.f32 %v686, %v886
        %v919 = vadd.f32 %v692, %v886
        %v920 = vadd.f32 %v698, %v886
        %v921 = vadd.f32 %v704, %v886
        %v922 = vadd.f32 %v710, %v886
        %v923 = vadd.f32 %v716, %v886
        %v924 = vadd.f32 %v722, %v886
        %v925 = vadd.f32 %v728, %v886
        %v926 = vadd.f32 %v734, %v886
        %v927 = vadd.f32 %v740, %v886
        %v928 = vadd.f32 %v746, %v886
        %v929 = vadd.f32 %v752, %v886
        %v930 = vadd.f32 %v758, %v886
        %v931 = vadd.f32 %v764, %v886
        %v932 = vadd.f32 %v770, %v886
        %v933 = vadd.f32 %v776, %v886
        %v934 = vadd.f32 %v782, %v886
        %v935 = vadd.f32 %v788, %v886
        %v936 = vadd.f32 %v794, %v886
        %v937 = vadd.f32 %v800, %v886
        %v938 = vadd.f32 %v806, %v886
        %v939 = vadd.f32 %v812, %v886
        %v940 = vadd.f32 %v818, %v886
        %v941 = vadd.f32 %v824, %v886
        %v942 = vadd.f32 %v830, %v886
        %v943 = vadd.f32 %v836, %v886
        %v944 = vadd.f32 %v842, %v886
        %v945 = vadd.f32 %v848, %v886
        %v946 = vadd.f32 %v854, %v886
        %v947 = vadd.f32 %v860, %v886
        %v948 = vadd.f32 %v866, %v886
        %v949 = vadd.f32 %v872, %v886
        %v950 = vadd.f32 %v878, %v886
        %v951 = vmul.f32 %v172, %v172
        %v952 = vmul.f32 %v173, %v173
        %v953 = vmul.f32 %v174, %v174
        %v954 = vmul.f32 %v175, %v175
        %v955 = vmul.f32 %v176, %v176
        %v956 = vmul.f32 %v177, %v177
        %v957 = vmul.f32 %v178, %v178
        %v958 = vmul.f32 %v179, %v179
        %v959 = vmul.f32 %v180, %v180
        %v960 = vmul.f32 %v181, %v181
        %v961 = vmul.f32 %v182, %v182
        %v962 = vmul.f32 %v183, %v183
        %v963 = vmul.f32 %v184, %v184
        %v964 = vmul.f32 %v185, %v185
        %v965 = vmul.f32 %v186, %v186
        %v966 = vmul.f32 %v187, %v187
        %v967 = vmul.f32 %v188, %v188
        %v968 = vmul.f32 %v189, %v189
        %v969 = vmul.f32 %v190, %v190
        %v970 = vmul.f32 %v191, %v191
        %v971 = vmul.f32 %v192, %v192
        %v972 = vmul.f32 %v193, %v193
        %v973 = vmul.f32 %v194, %v194
        %v974 = vmul.f32 %v195, %v195
        %v975 = vmul.f32 %v196, %v196
        %v976 = vmul.f32 %v197, %v197
        %v977 = vmul.f32 %v198, %v198
        %v978 = vmul.f32 %v199, %v199
        %v979 = vmul.f32 %v200, %v200
        %v980 = vmul.f32 %v201, %v201
        %v981 = vmul.f32 %v202, %v202
        %v982 = vmul.f32 %v203, %v203
        %v983 = vmul.f32 %v204, %v204
        %v984 = vmul.f32 %v205, %v205
        %v985 = vmul.f32 %v206, %v206
        %v986 = vmul.f32 %v207, %v207
        %v987 = vmul.f32 %v208, %v208
        %v988 = vmul.f32 %v209, %v209
        %v989 = vmul.f32 %v210, %v210
        %v990 = vmul.f32 %v211, %v211
        %v991 = vmul.f32 %v212, %v212
        %v992 = vmul.f32 %v213, %v213
        %v993 = vmul.f32 %v214, %v214
        %v994 = vmul.f32 %v215, %v215
        %v995 = vmul.f32 %v216, %v216
        %v996 = vmul.f32 %v217, %v217
        %v997 = vmul.f32 %v218, %v218
        %v998 = vmul.f32 %v219, %v219
        %v999 = vmul.f32 %v220, %v220
        %v1000 = vmul.f32 %v221, %v221
        %v1001 = vmul.f32 %v222, %v222
        %v1002 = vmul.f32 %v223, %v223
        %v1003 = vmul.f32 %v224, %v224
        %v1004 = vmul.f32 %v225, %v225
        %v1005 = vmul.f32 %v226, %v226
        %v1006 = vmul.f32 %v227, %v227
        %v1007 = vmul.f32 %v228, %v228
        %v1008 = vmul.f32 %v229, %v229
        %v1009 = vmul.f32 %v230, %v230
        %v1010 = vmul.f32 %v231, %v231
        %v1011 = vmul.f32 %v232, %v232
        %v1012 = vmul.f32 %v233, %v233
        %v1013 = vmul.f32 %v234, %v234
        %v1014 = vmul.f32 %v235, %v235
        %v1015 = vsel %vm240, %v951, 0.0
        %1016 = vadd.xlane.f32.xlu0 %v1015
        %v1017 = vpop.xlane.xlu0 %1016
        %v1018 = vsel %vm240, %v952, 0.0
        %1019 = vadd.xlane.f32.xlu0 %v1018
        %v1020 = vpop.xlane.xlu0 %1019
        %v1021 = vsel %vm240, %v953, 0.0
        %1022 = vadd.xlane.f32.xlu0 %v1021
        %v1023 = vpop.xlane.xlu0 %1022
        %v1024 = vsel %vm240, %v954, 0.0
        %1025 = vadd.xlane.f32.xlu0 %v1024
        %v1026 = vpop.xlane.xlu0 %1025
        %v1027 = vsel %vm240, %v955, 0.0
        %1028 = vadd.xlane.f32.xlu0 %v1027
        %v1029 = vpop.xlane.xlu0 %1028
        %v1030 = vsel %vm240, %v956, 0.0
        %1031 = vadd.xlane.f32.xlu0 %v1030
        %v1032 = vpop.xlane.xlu0 %1031
        %v1033 = vsel %vm240, %v957, 0.0
        %1034 = vadd.xlane.f32.xlu0 %v1033
        %v1035 = vpop.xlane.xlu0 %1034
        %v1036 = vsel %vm240, %v958, 0.0
        %1037 = vadd.xlane.f32.xlu0 %v1036
        %v1038 = vpop.xlane.xlu0 %1037
        %v1039 = vsel %vm240, %v959, 0.0
        %1040 = vadd.xlane.f32.xlu0 %v1039
        %v1041 = vpop.xlane.xlu0 %1040
        %v1042 = vsel %vm240, %v960, 0.0
        %1043 = vadd.xlane.f32.xlu0 %v1042
        %v1044 = vpop.xlane.xlu0 %1043
        %v1045 = vsel %vm240, %v961, 0.0
        %1046 = vadd.xlane.f32.xlu0 %v1045
        %v1047 = vpop.xlane.xlu0 %1046
        %v1048 = vsel %vm240, %v962, 0.0
        %1049 = vadd.xlane.f32.xlu0 %v1048
        %v1050 = vpop.xlane.xlu0 %1049
        %v1051 = vsel %vm240, %v963, 0.0
        %1052 = vadd.xlane.f32.xlu0 %v1051
        %v1053 = vpop.xlane.xlu0 %1052
        %v1054 = vsel %vm240, %v964, 0.0
        %1055 = vadd.xlane.f32.xlu0 %v1054
        %v1056 = vpop.xlane.xlu0 %1055
        %v1057 = vsel %vm240, %v965, 0.0
        %1058 = vadd.xlane.f32.xlu0 %v1057
        %v1059 = vpop.xlane.xlu0 %1058
        %v1060 = vsel %vm240, %v966, 0.0
        %1061 = vadd.xlane.f32.xlu0 %v1060
        %v1062 = vpop.xlane.xlu0 %1061
        %v1063 = vsel %vm240, %v967, 0.0
        %1064 = vadd.xlane.f32.xlu0 %v1063
        %v1065 = vpop.xlane.xlu0 %1064
        %v1066 = vsel %vm240, %v968, 0.0
        %1067 = vadd.xlane.f32.xlu0 %v1066
        %v1068 = vpop.xlane.xlu0 %1067
        %v1069 = vsel %vm240, %v969, 0.0
        %1070 = vadd.xlane.f32.xlu0 %v1069
        %v1071 = vpop.xlane.xlu0 %1070
        %v1072 = vsel %vm240, %v970, 0.0
        %1073 = vadd.xlane.f32.xlu0 %v1072
        %v1074 = vpop.xlane.xlu0 %1073
        %v1075 = vsel %vm240, %v971, 0.0
        %1076 = vadd.xlane.f32.xlu0 %v1075
        %v1077 = vpop.xlane.xlu0 %1076
        %v1078 = vsel %vm240, %v972, 0.0
        %1079 = vadd.xlane.f32.xlu0 %v1078
        %v1080 = vpop.xlane.xlu0 %1079
        %v1081 = vsel %vm240, %v973, 0.0
        %1082 = vadd.xlane.f32.xlu0 %v1081
        %v1083 = vpop.xlane.xlu0 %1082
        %v1084 = vsel %vm240, %v974, 0.0
        %1085 = vadd.xlane.f32.xlu0 %v1084
        %v1086 = vpop.xlane.xlu0 %1085
        %v1087 = vsel %vm240, %v975, 0.0
        %1088 = vadd.xlane.f32.xlu0 %v1087
        %v1089 = vpop.xlane.xlu0 %1088
        %v1090 = vsel %vm240, %v976, 0.0
        %1091 = vadd.xlane.f32.xlu0 %v1090
        %v1092 = vpop.xlane.xlu0 %1091
        %v1093 = vsel %vm240, %v977, 0.0
        %1094 = vadd.xlane.f32.xlu0 %v1093
        %v1095 = vpop.xlane.xlu0 %1094
        %v1096 = vsel %vm240, %v978, 0.0
        %1097 = vadd.xlane.f32.xlu0 %v1096
        %v1098 = vpop.xlane.xlu0 %1097
        %v1099 = vsel %vm240, %v979, 0.0
        %1100 = vadd.xlane.f32.xlu0 %v1099
        %v1101 = vpop.xlane.xlu0 %1100
        %v1102 = vsel %vm240, %v980, 0.0
        %1103 = vadd.xlane.f32.xlu0 %v1102
        %v1104 = vpop.xlane.xlu0 %1103
        %v1105 = vsel %vm240, %v981, 0.0
        %1106 = vadd.xlane.f32.xlu0 %v1105
        %v1107 = vpop.xlane.xlu0 %1106
        %v1108 = vsel %vm240, %v982, 0.0
        %1109 = vadd.xlane.f32.xlu0 %v1108
        %v1110 = vpop.xlane.xlu0 %1109
        %v1111 = vsel %vm240, %v983, 0.0
        %1112 = vadd.xlane.f32.xlu0 %v1111
        %v1113 = vpop.xlane.xlu0 %1112
        %v1114 = vsel %vm240, %v984, 0.0
        %1115 = vadd.xlane.f32.xlu0 %v1114
        %v1116 = vpop.xlane.xlu0 %1115
        %v1117 = vsel %vm240, %v985, 0.0
        %1118 = vadd.xlane.f32.xlu0 %v1117
        %v1119 = vpop.xlane.xlu0 %1118
        %v1120 = vsel %vm240, %v986, 0.0
        %1121 = vadd.xlane.f32.xlu0 %v1120
        %v1122 = vpop.xlane.xlu0 %1121
        %v1123 = vsel %vm240, %v987, 0.0
        %1124 = vadd.xlane.f32.xlu0 %v1123
        %v1125 = vpop.xlane.xlu0 %1124
        %v1126 = vsel %vm240, %v988, 0.0
        %1127 = vadd.xlane.f32.xlu0 %v1126
        %v1128 = vpop.xlane.xlu0 %1127
        %v1129 = vsel %vm240, %v989, 0.0
        %1130 = vadd.xlane.f32.xlu0 %v1129
        %v1131 = vpop.xlane.xlu0 %1130
        %v1132 = vsel %vm240, %v990, 0.0
        %1133 = vadd.xlane.f32.xlu0 %v1132
        %v1134 = vpop.xlane.xlu0 %1133
        %v1135 = vsel %vm240, %v991, 0.0
        %1136 = vadd.xlane.f32.xlu0 %v1135
        %v1137 = vpop.xlane.xlu0 %1136
        %v1138 = vsel %vm240, %v992, 0.0
        %1139 = vadd.xlane.f32.xlu0 %v1138
        %v1140 = vpop.xlane.xlu0 %1139
        %v1141 = vsel %vm240, %v993, 0.0
        %1142 = vadd.xlane.f32.xlu0 %v1141
        %v1143 = vpop.xlane.xlu0 %1142
        %v1144 = vsel %vm240, %v994, 0.0
        %1145 = vadd.xlane.f32.xlu0 %v1144
        %v1146 = vpop.xlane.xlu0 %1145
        %v1147 = vsel %vm240, %v995, 0.0
        %1148 = vadd.xlane.f32.xlu0 %v1147
        %v1149 = vpop.xlane.xlu0 %1148
        %v1150 = vsel %vm240, %v996, 0.0
        %1151 = vadd.xlane.f32.xlu0 %v1150
        %v1152 = vpop.xlane.xlu0 %1151
        %v1153 = vsel %vm240, %v997, 0.0
        %1154 = vadd.xlane.f32.xlu0 %v1153
        %v1155 = vpop.xlane.xlu0 %1154
        %v1156 = vsel %vm240, %v998, 0.0
        %1157 = vadd.xlane.f32.xlu0 %v1156
        %v1158 = vpop.xlane.xlu0 %1157
        %v1159 = vsel %vm240, %v999, 0.0
        %1160 = vadd.xlane.f32.xlu0 %v1159
        %v1161 = vpop.xlane.xlu0 %1160
        %v1162 = vsel %vm240, %v1000, 0.0
        %1163 = vadd.xlane.f32.xlu0 %v1162
        %v1164 = vpop.xlane.xlu0 %1163
        %v1165 = vsel %vm240, %v1001, 0.0
        %1166 = vadd.xlane.f32.xlu0 %v1165
        %v1167 = vpop.xlane.xlu0 %1166
        %v1168 = vsel %vm240, %v1002, 0.0
        %1169 = vadd.xlane.f32.xlu0 %v1168
        %v1170 = vpop.xlane.xlu0 %1169
        %v1171 = vsel %vm240, %v1003, 0.0
        %1172 = vadd.xlane.f32.xlu0 %v1171
        %v1173 = vpop.xlane.xlu0 %1172
        %v1174 = vsel %vm240, %v1004, 0.0
        %1175 = vadd.xlane.f32.xlu0 %v1174
        %v1176 = vpop.xlane.xlu0 %1175
        %v1177 = vsel %vm240, %v1005, 0.0
        %1178 = vadd.xlane.f32.xlu0 %v1177
        %v1179 = vpop.xlane.xlu0 %1178
        %v1180 = vsel %vm240, %v1006, 0.0
        %1181 = vadd.xlane.f32.xlu0 %v1180
        %v1182 = vpop.xlane.xlu0 %1181
        %v1183 = vsel %vm240, %v1007, 0.0
        %1184 = vadd.xlane.f32.xlu0 %v1183
        %v1185 = vpop.xlane.xlu0 %1184
        %v1186 = vsel %vm240, %v1008, 0.0
        %1187 = vadd.xlane.f32.xlu0 %v1186
        %v1188 = vpop.xlane.xlu0 %1187
        %v1189 = vsel %vm240, %v1009, 0.0
        %1190 = vadd.xlane.f32.xlu0 %v1189
        %v1191 = vpop.xlane.xlu0 %1190
        %v1192 = vsel %vm240, %v1010, 0.0
        %1193 = vadd.xlane.f32.xlu0 %v1192
        %v1194 = vpop.xlane.xlu0 %1193
        %v1195 = vsel %vm240, %v1011, 0.0
        %1196 = vadd.xlane.f32.xlu0 %v1195
        %v1197 = vpop.xlane.xlu0 %1196
        %v1198 = vsel %vm240, %v1012, 0.0
        %1199 = vadd.xlane.f32.xlu0 %v1198
        %v1200 = vpop.xlane.xlu0 %1199
        %v1201 = vsel %vm240, %v1013, 0.0
        %1202 = vadd.xlane.f32.xlu0 %v1201
        %v1203 = vpop.xlane.xlu0 %1202
        %v1204 = vsel %vm240, %v1014, 0.0
        %1205 = vadd.xlane.f32.xlu0 %v1204
        %v1206 = vpop.xlane.xlu0 %1205
        %v1207 = vld [vmem:[%s2 + $0x1] sm:$0x1]
        %v1208 = vlaneseq
        %v1209 = vshrl.u32 %v1208, 7
        %v1210 = vsub.s32 0, %v1209
        %v1211 = vrot.slane %v1207, %v1210
        %v1212 = vadd.f32 %v1017, %v1211
        %v1213 = vadd.f32 %v1020, %v1211
        %v1214 = vadd.f32 %v1023, %v1211
        %v1215 = vadd.f32 %v1026, %v1211
        %v1216 = vadd.f32 %v1029, %v1211
        %v1217 = vadd.f32 %v1032, %v1211
        %v1218 = vadd.f32 %v1035, %v1211
        %v1219 = vadd.f32 %v1038, %v1211
        %v1220 = vadd.f32 %v1041, %v1211
        %v1221 = vadd.f32 %v1044, %v1211
        %v1222 = vadd.f32 %v1047, %v1211
        %v1223 = vadd.f32 %v1050, %v1211
        %v1224 = vadd.f32 %v1053, %v1211
        %v1225 = vadd.f32 %v1056, %v1211
        %v1226 = vadd.f32 %v1059, %v1211
        %v1227 = vadd.f32 %v1062, %v1211
        %v1228 = vadd.f32 %v1065, %v1211
        %v1229 = vadd.f32 %v1068, %v1211
        %v1230 = vadd.f32 %v1071, %v1211
        %v1231 = vadd.f32 %v1074, %v1211
        %v1232 = vadd.f32 %v1077, %v1211
        %v1233 = vadd.f32 %v1080, %v1211
        %v1234 = vadd.f32 %v1083, %v1211
        %v1235 = vadd.f32 %v1086, %v1211
        %v1236 = vadd.f32 %v1089, %v1211
        %v1237 = vadd.f32 %v1092, %v1211
        %v1238 = vadd.f32 %v1095, %v1211
        %v1239 = vadd.f32 %v1098, %v1211
        %v1240 = vadd.f32 %v1101, %v1211
        %v1241 = vadd.f32 %v1104, %v1211
        %v1242 = vadd.f32 %v1107, %v1211
        %v1243 = vadd.f32 %v1110, %v1211
        %v1244 = vadd.f32 %v1113, %v1211
        %v1245 = vadd.f32 %v1116, %v1211
        %v1246 = vadd.f32 %v1119, %v1211
        %v1247 = vadd.f32 %v1122, %v1211
        %v1248 = vadd.f32 %v1125, %v1211
        %v1249 = vadd.f32 %v1128, %v1211
        %v1250 = vadd.f32 %v1131, %v1211
        %v1251 = vadd.f32 %v1134, %v1211
        %v1252 = vadd.f32 %v1137, %v1211
        %v1253 = vadd.f32 %v1140, %v1211
        %v1254 = vadd.f32 %v1143, %v1211
        %v1255 = vadd.f32 %v1146, %v1211
        %v1256 = vadd.f32 %v1149, %v1211
        %v1257 = vadd.f32 %v1152, %v1211
        %v1258 = vadd.f32 %v1155, %v1211
        %v1259 = vadd.f32 %v1158, %v1211
        %v1260 = vadd.f32 %v1161, %v1211
        %v1261 = vadd.f32 %v1164, %v1211
        %v1262 = vadd.f32 %v1167, %v1211
        %v1263 = vadd.f32 %v1170, %v1211
        %v1264 = vadd.f32 %v1173, %v1211
        %v1265 = vadd.f32 %v1176, %v1211
        %v1266 = vadd.f32 %v1179, %v1211
        %v1267 = vadd.f32 %v1182, %v1211
        %v1268 = vadd.f32 %v1185, %v1211
        %v1269 = vadd.f32 %v1188, %v1211
        %v1270 = vadd.f32 %v1191, %v1211
        %v1271 = vadd.f32 %v1194, %v1211
        %v1272 = vadd.f32 %v1197, %v1211
        %v1273 = vadd.f32 %v1200, %v1211
        %v1274 = vadd.f32 %v1203, %v1211
        %v1275 = vadd.f32 %v1206, %v1211
        %v1276 = vadd.f32 %v1212, %v502
        %v1277 = vadd.f32 %v1213, %v508
        %v1278 = vadd.f32 %v1214, %v514
        %v1279 = vadd.f32 %v1215, %v520
        %v1280 = vadd.f32 %v1216, %v526
        %v1281 = vadd.f32 %v1217, %v532
        %v1282 = vadd.f32 %v1218, %v538
        %v1283 = vadd.f32 %v1219, %v544
        %v1284 = vadd.f32 %v1220, %v550
        %v1285 = vadd.f32 %v1221, %v556
        %v1286 = vadd.f32 %v1222, %v562
        %v1287 = vadd.f32 %v1223, %v568
        %v1288 = vadd.f32 %v1224, %v574
        %v1289 = vadd.f32 %v1225, %v580
        %v1290 = vadd.f32 %v1226, %v586
        %v1291 = vadd.f32 %v1227, %v592
        %v1292 = vadd.f32 %v1228, %v598
        %v1293 = vadd.f32 %v1229, %v604
        %v1294 = vadd.f32 %v1230, %v610
        %v1295 = vadd.f32 %v1231, %v616
        %v1296 = vadd.f32 %v1232, %v622
        %v1297 = vadd.f32 %v1233, %v628
        %v1298 = vadd.f32 %v1234, %v634
        %v1299 = vadd.f32 %v1235, %v640
        %v1300 = vadd.f32 %v1236, %v646
        %v1301 = vadd.f32 %v1237, %v652
        %v1302 = vadd.f32 %v1238, %v658
        %v1303 = vadd.f32 %v1239, %v664
        %v1304 = vadd.f32 %v1240, %v670
        %v1305 = vadd.f32 %v1241, %v676
        %v1306 = vadd.f32 %v1242, %v682
        %v1307 = vadd.f32 %v1243, %v688
        %v1308 = vadd.f32 %v1244, %v694
        %v1309 = vadd.f32 %v1245, %v700
        %v1310 = vadd.f32 %v1246, %v706
        %v1311 = vadd.f32 %v1247, %v712
        %v1312 = vadd.f32 %v1248, %v718
        %v1313 = vadd.f32 %v1249, %v724
        %v1314 = vadd.f32 %v1250, %v730
        %v1315 = vadd.f32 %v1251, %v736
        %v1316 = vadd.f32 %v1252, %v742
        %v1317 = vadd.f32 %v1253, %v748
        %v1318 = vadd.f32 %v1254, %v754
        %v1319 = vadd.f32 %v1255, %v760
        %v1320 = vadd.f32 %v1256, %v766
        %v1321 = vadd.f32 %v1257, %v772
        %v1322 = vadd.f32 %v1258, %v778
        %v1323 = vadd.f32 %v1259, %v784
        %v1324 = vadd.f32 %v1260, %v790
        %v1325 = vadd.f32 %v1261, %v796
        %v1326 = vadd.f32 %v1262, %v802
        %v1327 = vadd.f32 %v1263, %v808
        %v1328 = vadd.f32 %v1264, %v814
        %v1329 = vadd.f32 %v1265, %v820
        %v1330 = vadd.f32 %v1266, %v826
        %v1331 = vadd.f32 %v1267, %v832
        %v1332 = vadd.f32 %v1268, %v838
        %v1333 = vadd.f32 %v1269, %v844
        %v1334 = vadd.f32 %v1270, %v850
        %v1335 = vadd.f32 %v1271, %v856
        %v1336 = vadd.f32 %v1272, %v862
        %v1337 = vadd.f32 %v1273, %v868
        %v1338 = vadd.f32 %v1274, %v874
        %v1339 = vadd.f32 %v1275, %v880
        %v1340 = vld [vmem:[%s2 + $0x2] sm:$0x1]
        %v1341 = vlaneseq
        %v1342 = vshrl.u32 %v1341, 7
        %v1343 = vsub.s32 0, %v1342
        %v1344 = vrot.slane %v1340, %v1343
        %v1345 = vmul.f32 %v1276, %v1344
        %v1346 = vmul.f32 %v1277, %v1344
        %v1347 = vmul.f32 %v1278, %v1344
        %v1348 = vmul.f32 %v1279, %v1344
        %v1349 = vmul.f32 %v1280, %v1344
        %v1350 = vmul.f32 %v1281, %v1344
        %v1351 = vmul.f32 %v1282, %v1344
        %v1352 = vmul.f32 %v1283, %v1344
        %v1353 = vmul.f32 %v1284, %v1344
        %v1354 = vmul.f32 %v1285, %v1344
        %v1355 = vmul.f32 %v1286, %v1344
        %v1356 = vmul.f32 %v1287, %v1344
        %v1357 = vmul.f32 %v1288, %v1344
        %v1358 = vmul.f32 %v1289, %v1344
        %v1359 = vmul.f32 %v1290, %v1344
        %v1360 = vmul.f32 %v1291, %v1344
        %v1361 = vmul.f32 %v1292, %v1344
        %v1362 = vmul.f32 %v1293, %v1344
        %v1363 = vmul.f32 %v1294, %v1344
        %v1364 = vmul.f32 %v1295, %v1344
        %v1365 = vmul.f32 %v1296, %v1344
        %v1366 = vmul.f32 %v1297, %v1344
        %v1367 = vmul.f32 %v1298, %v1344
        %v1368 = vmul.f32 %v1299, %v1344
        %v1369 = vmul.f32 %v1300, %v1344
        %v1370 = vmul.f32 %v1301, %v1344
        %v1371 = vmul.f32 %v1302, %v1344
        %v1372 = vmul.f32 %v1303, %v1344
        %v1373 = vmul.f32 %v1304, %v1344
        %v1374 = vmul.f32 %v1305, %v1344
        %v1375 = vmul.f32 %v1306, %v1344
        %v1376 = vmul.f32 %v1307, %v1344
        %v1377 = vmul.f32 %v1308, %v1344
        %v1378 = vmul.f32 %v1309, %v1344
        %v1379 = vmul.f32 %v1310, %v1344
        %v1380 = vmul.f32 %v1311, %v1344
        %v1381 = vmul.f32 %v1312, %v1344
        %v1382 = vmul.f32 %v1313, %v1344
        %v1383 = vmul.f32 %v1314, %v1344
        %v1384 = vmul.f32 %v1315, %v1344
        %v1385 = vmul.f32 %v1316, %v1344
        %v1386 = vmul.f32 %v1317, %v1344
        %v1387 = vmul.f32 %v1318, %v1344
        %v1388 = vmul.f32 %v1319, %v1344
        %v1389 = vmul.f32 %v1320, %v1344
        %v1390 = vmul.f32 %v1321, %v1344
        %v1391 = vmul.f32 %v1322, %v1344
        %v1392 = vmul.f32 %v1323, %v1344
        %v1393 = vmul.f32 %v1324, %v1344
        %v1394 = vmul.f32 %v1325, %v1344
        %v1395 = vmul.f32 %v1326, %v1344
        %v1396 = vmul.f32 %v1327, %v1344
        %v1397 = vmul.f32 %v1328, %v1344
        %v1398 = vmul.f32 %v1329, %v1344
        %v1399 = vmul.f32 %v1330, %v1344
        %v1400 = vmul.f32 %v1331, %v1344
        %v1401 = vmul.f32 %v1332, %v1344
        %v1402 = vmul.f32 %v1333, %v1344
        %v1403 = vmul.f32 %v1334, %v1344
        %v1404 = vmul.f32 %v1335, %v1344
        %v1405 = vmul.f32 %v1336, %v1344
        %v1406 = vmul.f32 %v1337, %v1344
        %v1407 = vmul.f32 %v1338, %v1344
        %v1408 = vmul.f32 %v1339, %v1344
        %v1409 = vand.u32 2147483647, %v887
        %vm1410 = vcmp.le.f32.partialorder %v1409, 0.7853982
        %vm1411 = vcmp.lt.s32.totalorder %v887, 0
        %v1412 = vand.u32 %v887, 2139095040
        %v1413 = vshrl.u32 %v1412, 23
        %v1414 = vsub.s32 %v1413, 127
        %v1415 = vand.u32 2147483647, %v887
        %v1416 = vand.u32 %v1415, 8388607
        %v1417 = vor.u32 %v1416, 8388608
        %v1418 = vsub.s32 0, %v1417
        %v1419 = vadd.s32 %v1414, 1
        %vm1420 = vcmp.gt.s32.totalorder %v1419, 0
        %v1421 = vsel %vm1420, %v1419, 0
        %v1422 = vshrl.u32 %v1421, 5
        %v1423 = vand.u32 %v1421, 31
        %v1424 = vsub.s32 32, %v1423
        %v1425 = vshrl.u32 683565275, %v1424
        %v1426 = vshll.u32 683565275, %v1423
        %v1427 = vshrl.u32 2475754826, %v1424
        %v1428 = vor.u32 %v1426, %v1427
        %v1429 = vshll.u32 2475754826, %v1423
        %v1430 = vshrl.u32 2131351028, %v1424
        %v1431 = vor.u32 %v1429, %v1430
        %v1432 = vshll.u32 2131351028, %v1423
        %v1433 = vshrl.u32 2102212464, %v1424
        %v1434 = vor.u32 %v1432, %v1433
        %v1435 = vshll.u32 2102212464, %v1423
        %v1436 = vshrl.u32 920167782, %v1424
        %v1437 = vor.u32 %v1435, %v1436
        %v1438 = vshll.u32 920167782, %v1423
        %v1439 = vshrl.u32 1326507024, %v1424
        %v1440 = vor.u32 %v1438, %v1439
        %vm1441 = vcmp.lt.s32.totalorder %v1422, 1
        %vm1442 = vcmp.lt.s32.totalorder %v1422, 2
        %vm1443 = vcmp.lt.s32.totalorder %v1422, 3
        %vm1444 = vcmp.lt.s32.totalorder %v1422, 4
        %v1445 = vsel %vm1441, %v1425, %v1428
        %v1446 = vsel %vm1444, %v1434, 2102212464
        %v1447 = vsel %vm1443, %v1431, %v1446
        %v1448 = vsel %vm1442, %v1445, %v1447
        %v1449 = vsel %vm1441, %v1428, %v1431
        %v1450 = vsel %vm1444, %v1437, 920167782
        %v1451 = vsel %vm1443, %v1434, %v1450
        %v1452 = vsel %vm1442, %v1449, %v1451
        %v1453 = vsel %vm1441, %v1431, %v1434
        %v1454 = vsel %vm1444, %v1440, 1326507024
        %v1455 = vsel %vm1443, %v1437, %v1454
        %v1456 = vsel %vm1442, %v1453, %v1455
        %v1457 = vshll.u32 %v1417, 8
        %v1458 = vmul.u32.u64.compose %v1457, %v1456
        %v1459 = vextract.low.u32 %v1458
        %v1460 = vextract.high.u32 %v1458
        %v1461 = vmul.u32.u64.compose %v1457, %v1452
        %v1462 = vextract.low.u32 %v1461
        %v1463 = vextract.high.u32 %v1461
        %v1464 = vmul.u32 %v1457, %v1448
        %v1465 = vadd.s32 %v1460, %v1462
        %vm1466 = vc.u32 %v1460, %v1462
        %v1467 = vadd.s32 %v1463, 1
        %v1468 = vsel %vm1466, %v1467, %v1463
        %v1469 = vadd.s32 %v1464, %v1468
        %v1470 = vadd.s32 %v1469, 536870912
        %v1471 = vshrl.u32 %v1470, 30
        %v1472 = vshll.u32 %v1471, 30
        %v1473 = vsub.s32 %v1469, %v1472
        %vm1474 = vcmp.lt.s32.totalorder %v1473, 0
        %v1475 = vsub.s32 0, %v1473
        %v1476 = vsel %vm1474, %v1475, %v1473
        %v1477 = vclz %v1476
        %v1478 = vsub.s32 %v1477, 2
        %vm1479 = vcmp.gt.s32.totalorder 0, %v1478
        %v1480 = vsel %vm1479, 0, %v1478
        %v1481 = vsub.s32 32, %v1480
        %v1482 = vshll.u32 %v1473, %v1480
        %v1483 = vshrl.u32 %v1465, %v1481
        %v1484 = vor.u32 %v1482, %v1483
        %v1485 = vsub.s32 4294967266, %v1480
        %v1486 = vadd.s32 %v1485, 127
        %v1487 = vshll.u32 %v1486, 23
        %v1488 = vor.u32 4788187, %v1487
        %v1489 = vand.u32 2147483647, %v1488
        %v1491 = vcvt.s32.f32 %v1484
        %v1492 = vmul.f32 %v1491, %v1489
        %v1493 = vxor.u32 %v1492, 2147483648
        %v1494 = vsel %vm1411, %v1493, %v1492
        %v1495 = vsub.s32 4, %v1471
        %v1496 = vsel %vm1411, %v1495, %v1471
        %v1497 = vsel %vm1410, %v887, %v1494
        %v1498 = vsel %vm1410, 0, %v1496
        %v1499 = vcosq.f32.pop %v1497
        %v1500 = vsinq.f32.pop %v1497
        %vm1501 = vweird.f32 %v887
        %v1502 = vadd.s32 %v1498, 3
        %v1503 = vand.u32 %v1502, 3
        %vm1504 = vcmp.lt.s32.totalorder %v1503, 2
        %vm1505 = vcmp.eq.s32.totalorder %v1503, 0
        %v1506 = vxor.u32 %v1500, 2147483648
        %v1507 = vsel %vm1505, %v1499, %v1506
        %vm1508 = vcmp.eq.s32.totalorder %v1503, 2
        %v1509 = vxor.u32 %v1499, 2147483648
        %v1510 = vsel %vm1508, %v1509, %v1500
        %v1511 = vsel %vm1504, %v1507, %v1510
        %v1512 = vsel %vm1501, nan, %v1511
        %v1513 = vand.u32 2147483647, %v888
        %vm1514 = vcmp.le.f32.partialorder %v1513, 0.7853982
        %vm1515 = vcmp.lt.s32.totalorder %v888, 0
        %v1516 = vand.u32 %v888, 2139095040
        %v1517 = vshrl.u32 %v1516, 23
        %v1518 = vsub.s32 %v1517, 127
        %v1519 = vand.u32 2147483647, %v888
        %v1520 = vand.u32 %v1519, 8388607
        %v1521 = vor.u32 %v1520, 8388608
        %v1522 = vsub.s32 0, %v1521
        %v1523 = vadd.s32 %v1518, 1
        %vm1524 = vcmp.gt.s32.totalorder %v1523, 0
        %v1525 = vsel %vm1524, %v1523, 0
        %v1526 = vshrl.u32 %v1525, 5
        %v1527 = vand.u32 %v1525, 31
        %v1528 = vsub.s32 32, %v1527
        %v1529 = vshrl.u32 683565275, %v1528
        %v1530 = vshll.u32 683565275, %v1527
        %v1531 = vshrl.u32 2475754826, %v1528
        %v1532 = vor.u32 %v1530, %v1531
        %v1533 = vshll.u32 2475754826, %v1527
        %v1534 = vshrl.u32 2131351028, %v1528
        %v1535 = vor.u32 %v1533, %v1534
        %v1536 = vshll.u32 2131351028, %v1527
        %v1537 = vshrl.u32 2102212464, %v1528
        %v1538 = vor.u32 %v1536, %v1537
        %v1539 = vshll.u32 2102212464, %v1527
        %v1540 = vshrl.u32 920167782, %v1528
        %v1541 = vor.u32 %v1539, %v1540
        %v1542 = vshll.u32 920167782, %v1527
        %v1543 = vshrl.u32 1326507024, %v1528
        %v1544 = vor.u32 %v1542, %v1543
        %vm1545 = vcmp.lt.s32.totalorder %v1526, 1
        %vm1546 = vcmp.lt.s32.totalorder %v1526, 2
        %vm1547 = vcmp.lt.s32.totalorder %v1526, 3
        %vm1548 = vcmp.lt.s32.totalorder %v1526, 4
        %v1549 = vsel %vm1545, %v1529, %v1532
        %v1550 = vsel %vm1548, %v1538, 2102212464
        %v1551 = vsel %vm1547, %v1535, %v1550
        %v1552 = vsel %vm1546, %v1549, %v1551
        %v1553 = vsel %vm1545, %v1532, %v1535
        %v1554 = vsel %vm1548, %v1541, 920167782
        %v1555 = vsel %vm1547, %v1538, %v1554
        %v1556 = vsel %vm1546, %v1553, %v1555
        %v1557 = vsel %vm1545, %v1535, %v1538
        %v1558 = vsel %vm1548, %v1544, 1326507024
        %v1559 = vsel %vm1547, %v1541, %v1558
        %v1560 = vsel %vm1546, %v1557, %v1559
        %v1561 = vshll.u32 %v1521, 8
        %v1562 = vmul.u32.u64.compose %v1561, %v1560
        %v1563 = vextract.low.u32 %v1562
        %v1564 = vextract.high.u32 %v1562
        %v1565 = vmul.u32.u64.compose %v1561, %v1556
        %v1566 = vextract.low.u32 %v1565
        %v1567 = vextract.high.u32 %v1565
        %v1568 = vmul.u32 %v1561, %v1552
        %v1569 = vadd.s32 %v1564, %v1566
        %vm1570 = vc.u32 %v1564, %v1566
        %v1571 = vadd.s32 %v1567, 1
        %v1572 = vsel %vm1570, %v1571, %v1567
        %v1573 = vadd.s32 %v1568, %v1572
        %v1574 = vadd.s32 %v1573, 536870912
        %v1575 = vshrl.u32 %v1574, 30
        %v1576 = vshll.u32 %v1575, 30
        %v1577 = vsub.s32 %v1573, %v1576
        %vm1578 = vcmp.lt.s32.totalorder %v1577, 0
        %v1579 = vsub.s32 0, %v1577
        %v1580 = vsel %vm1578, %v1579, %v1577
        %v1581 = vclz %v1580
        %v1582 = vsub.s32 %v1581, 2
        %vm1583 = vcmp.gt.s32.totalorder 0, %v1582
        %v1584 = vsel %vm1583, 0, %v1582
        %v1585 = vsub.s32 32, %v1584
        %v1586 = vshll.u32 %v1577, %v1584
        %v1587 = vshrl.u32 %v1569, %v1585
        %v1588 = vor.u32 %v1586, %v1587
        %v1589 = vsub.s32 4294967266, %v1584
        %v1590 = vadd.s32 %v1589, 127
        %v1591 = vshll.u32 %v1590, 23
        %v1592 = vor.u32 4788187, %v1591
        %v1593 = vand.u32 2147483647, %v1592
        %v1595 = vcvt.s32.f32 %v1588
        %v1596 = vmul.f32 %v1595, %v1593
        %v1597 = vxor.u32 %v1596, 2147483648
        %v1598 = vsel %vm1515, %v1597, %v1596
        %v1599 = vsub.s32 4, %v1575
        %v1600 = vsel %vm1515, %v1599, %v1575
        %v1601 = vsel %vm1514, %v888, %v1598
        %v1602 = vsel %vm1514, 0, %v1600
        %v1603 = vcosq.f32.pop %v1601
        %v1604 = vsinq.f32.pop %v1601
        %vm1605 = vweird.f32 %v888
        %v1606 = vadd.s32 %v1602, 3
        %v1607 = vand.u32 %v1606, 3
        %vm1608 = vcmp.lt.s32.totalorder %v1607, 2
        %vm1609 = vcmp.eq.s32.totalorder %v1607, 0
        %v1610 = vxor.u32 %v1604, 2147483648
        %v1611 = vsel %vm1609, %v1603, %v1610
        %vm1612 = vcmp.eq.s32.totalorder %v1607, 2
        %v1613 = vxor.u32 %v1603, 2147483648
        %v1614 = vsel %vm1612, %v1613, %v1604
        %v1615 = vsel %vm1608, %v1611, %v1614
        %v1616 = vsel %vm1605, nan, %v1615
        %v1617 = vand.u32 2147483647, %v889
        %vm1618 = vcmp.le.f32.partialorder %v1617, 0.7853982
        %vm1619 = vcmp.lt.s32.totalorder %v889, 0
        %v1620 = vand.u32 %v889, 2139095040
        %v1621 = vshrl.u32 %v1620, 23
        %v1622 = vsub.s32 %v1621, 127
        %v1623 = vand.u32 2147483647, %v889
        %v1624 = vand.u32 %v1623, 8388607
        %v1625 = vor.u32 %v1624, 8388608
        %v1626 = vsub.s32 0, %v1625
        %v1627 = vadd.s32 %v1622, 1
        %vm1628 = vcmp.gt.s32.totalorder %v1627, 0
        %v1629 = vsel %vm1628, %v1627, 0
        %v1630 = vshrl.u32 %v1629, 5
        %v1631 = vand.u32 %v1629, 31
        %v1632 = vsub.s32 32, %v1631
        %v1633 = vshrl.u32 683565275, %v1632
        %v1634 = vshll.u32 683565275, %v1631
        %v1635 = vshrl.u32 2475754826, %v1632
        %v1636 = vor.u32 %v1634, %v1635
        %v1637 = vshll.u32 2475754826, %v1631
        %v1638 = vshrl.u32 2131351028, %v1632
        %v1639 = vor.u32 %v1637, %v1638
        %v1640 = vshll.u32 2131351028, %v1631
        %v1641 = vshrl.u32 2102212464, %v1632
        %v1642 = vor.u32 %v1640, %v1641
        %v1643 = vshll.u32 2102212464, %v1631
        %v1644 = vshrl.u32 920167782, %v1632
        %v1645 = vor.u32 %v1643, %v1644
        %v1646 = vshll.u32 920167782, %v1631
        %v1647 = vshrl.u32 1326507024, %v1632
        %v1648 = vor.u32 %v1646, %v1647
        %vm1649 = vcmp.lt.s32.totalorder %v1630, 1
        %vm1650 = vcmp.lt.s32.totalorder %v1630, 2
        %vm1651 = vcmp.lt.s32.totalorder %v1630, 3
        %vm1652 = vcmp.lt.s32.totalorder %v1630, 4
        %v1653 = vsel %vm1649, %v1633, %v1636
        %v1654 = vsel %vm1652, %v1642, 2102212464
        %v1655 = vsel %vm1651, %v1639, %v1654
        %v1656 = vsel %vm1650, %v1653, %v1655
        %v1657 = vsel %vm1649, %v1636, %v1639
        %v1658 = vsel %vm1652, %v1645, 920167782
        %v1659 = vsel %vm1651, %v1642, %v1658
        %v1660 = vsel %vm1650, %v1657, %v1659
        %v1661 = vsel %vm1649, %v1639, %v1642
        %v1662 = vsel %vm1652, %v1648, 1326507024
        %v1663 = vsel %vm1651, %v1645, %v1662
        %v1664 = vsel %vm1650, %v1661, %v1663
        %v1665 = vshll.u32 %v1625, 8
        %v1666 = vmul.u32.u64.compose %v1665, %v1664
        %v1667 = vextract.low.u32 %v1666
        %v1668 = vextract.high.u32 %v1666
        %v1669 = vmul.u32.u64.compose %v1665, %v1660
        %v1670 = vextract.low.u32 %v1669
        %v1671 = vextract.high.u32 %v1669
        %v1672 = vmul.u32 %v1665, %v1656
        %v1673 = vadd.s32 %v1668, %v1670
        %vm1674 = vc.u32 %v1668, %v1670
        %v1675 = vadd.s32 %v1671, 1
        %v1676 = vsel %vm1674, %v1675, %v1671
        %v1677 = vadd.s32 %v1672, %v1676
        %v1678 = vadd.s32 %v1677, 536870912
        %v1679 = vshrl.u32 %v1678, 30
        %v1680 = vshll.u32 %v1679, 30
        %v1681 = vsub.s32 %v1677, %v1680
        %vm1682 = vcmp.lt.s32.totalorder %v1681, 0
        %v1683 = vsub.s32 0, %v1681
        %v1684 = vsel %vm1682, %v1683, %v1681
        %v1685 = vclz %v1684
        %v1686 = vsub.s32 %v1685, 2
        %vm1687 = vcmp.gt.s32.totalorder 0, %v1686
        %v1688 = vsel %vm1687, 0, %v1686
        %v1689 = vsub.s32 32, %v1688
        %v1690 = vshll.u32 %v1681, %v1688
        %v1691 = vshrl.u32 %v1673, %v1689
        %v1692 = vor.u32 %v1690, %v1691
        %v1693 = vsub.s32 4294967266, %v1688
        %v1694 = vadd.s32 %v1693, 127
        %v1695 = vshll.u32 %v1694, 23
        %v1696 = vor.u32 4788187, %v1695
        %v1697 = vand.u32 2147483647, %v1696
        %v1699 = vcvt.s32.f32 %v1692
        %v1700 = vmul.f32 %v1699, %v1697
        %v1701 = vxor.u32 %v1700, 2147483648
        %v1702 = vsel %vm1619, %v1701, %v1700
        %v1703 = vsub.s32 4, %v1679
        %v1704 = vsel %vm1619, %v1703, %v1679
        %v1705 = vsel %vm1618, %v889, %v1702
        %v1706 = vsel %vm1618, 0, %v1704
        %v1707 = vcosq.f32.pop %v1705
        %v1708 = vsinq.f32.pop %v1705
        %vm1709 = vweird.f32 %v889
        %v1710 = vadd.s32 %v1706, 3
        %v1711 = vand.u32 %v1710, 3
        %vm1712 = vcmp.lt.s32.totalorder %v1711, 2
        %vm1713 = vcmp.eq.s32.totalorder %v1711, 0
        %v1714 = vxor.u32 %v1708, 2147483648
        %v1715 = vsel %vm1713, %v1707, %v1714
        %vm1716 = vcmp.eq.s32.totalorder %v1711, 2
        %v1717 = vxor.u32 %v1707, 2147483648
        %v1718 = vsel %vm1716, %v1717, %v1708
        %v1719 = vsel %vm1712, %v1715, %v1718
        %v1720 = vsel %vm1709, nan, %v1719
        %v1721 = vand.u32 2147483647, %v890
        %vm1722 = vcmp.le.f32.partialorder %v1721, 0.7853982
        %vm1723 = vcmp.lt.s32.totalorder %v890, 0
        %v1724 = vand.u32 %v890, 2139095040
        %v1725 = vshrl.u32 %v1724, 23
        %v1726 = vsub.s32 %v1725, 127
        %v1727 = vand.u32 2147483647, %v890
        %v1728 = vand.u32 %v1727, 8388607
        %v1729 = vor.u32 %v1728, 8388608
        %v1730 = vsub.s32 0, %v1729
        %v1731 = vadd.s32 %v1726, 1
        %vm1732 = vcmp.gt.s32.totalorder %v1731, 0
        %v1733 = vsel %vm1732, %v1731, 0
        %v1734 = vshrl.u32 %v1733, 5
        %v1735 = vand.u32 %v1733, 31
        %v1736 = vsub.s32 32, %v1735
        %v1737 = vshrl.u32 683565275, %v1736
        %v1738 = vshll.u32 683565275, %v1735
        %v1739 = vshrl.u32 2475754826, %v1736
        %v1740 = vor.u32 %v1738, %v1739
        %v1741 = vshll.u32 2475754826, %v1735
        %v1742 = vshrl.u32 2131351028, %v1736
        %v1743 = vor.u32 %v1741, %v1742
        %v1744 = vshll.u32 2131351028, %v1735
        %v1745 = vshrl.u32 2102212464, %v1736
        %v1746 = vor.u32 %v1744, %v1745
        %v1747 = vshll.u32 2102212464, %v1735
        %v1748 = vshrl.u32 920167782, %v1736
        %v1749 = vor.u32 %v1747, %v1748
        %v1750 = vshll.u32 920167782, %v1735
        %v1751 = vshrl.u32 1326507024, %v1736
        %v1752 = vor.u32 %v1750, %v1751
        %vm1753 = vcmp.lt.s32.totalorder %v1734, 1
        %vm1754 = vcmp.lt.s32.totalorder %v1734, 2
        %vm1755 = vcmp.lt.s32.totalorder %v1734, 3
        %vm1756 = vcmp.lt.s32.totalorder %v1734, 4
        %v1757 = vsel %vm1753, %v1737, %v1740
        %v1758 = vsel %vm1756, %v1746, 2102212464
        %v1759 = vsel %vm1755, %v1743, %v1758
        %v1760 = vsel %vm1754, %v1757, %v1759
        %v1761 = vsel %vm1753, %v1740, %v1743
        %v1762 = vsel %vm1756, %v1749, 920167782
        %v1763 = vsel %vm1755, %v1746, %v1762
        %v1764 = vsel %vm1754, %v1761, %v1763
        %v1765 = vsel %vm1753, %v1743, %v1746
        %v1766 = vsel %vm1756, %v1752, 1326507024
        %v1767 = vsel %vm1755, %v1749, %v1766
        %v1768 = vsel %vm1754, %v1765, %v1767
        %v1769 = vshll.u32 %v1729, 8
        %v1770 = vmul.u32.u64.compose %v1769, %v1768
        %v1771 = vextract.low.u32 %v1770
        %v1772 = vextract.high.u32 %v1770
        %v1773 = vmul.u32.u64.compose %v1769, %v1764
        %v1774 = vextract.low.u32 %v1773
        %v1775 = vextract.high.u32 %v1773
        %v1776 = vmul.u32 %v1769, %v1760
        %v1777 = vadd.s32 %v1772, %v1774
        %vm1778 = vc.u32 %v1772, %v1774
        %v1779 = vadd.s32 %v1775, 1
        %v1780 = vsel %vm1778, %v1779, %v1775
        %v1781 = vadd.s32 %v1776, %v1780
        %v1782 = vadd.s32 %v1781, 536870912
        %v1783 = vshrl.u32 %v1782, 30
        %v1784 = vshll.u32 %v1783, 30
        %v1785 = vsub.s32 %v1781, %v1784
        %vm1786 = vcmp.lt.s32.totalorder %v1785, 0
        %v1787 = vsub.s32 0, %v1785
        %v1788 = vsel %vm1786, %v1787, %v1785
        %v1789 = vclz %v1788
        %v1790 = vsub.s32 %v1789, 2
        %vm1791 = vcmp.gt.s32.totalorder 0, %v1790
        %v1792 = vsel %vm1791, 0, %v1790
        %v1793 = vsub.s32 32, %v1792
        %v1794 = vshll.u32 %v1785, %v1792
        %v1795 = vshrl.u32 %v1777, %v1793
        %v1796 = vor.u32 %v1794, %v1795
        %v1797 = vsub.s32 4294967266, %v1792
        %v1798 = vadd.s32 %v1797, 127
        %v1799 = vshll.u32 %v1798, 23
        %v1800 = vor.u32 4788187, %v1799
        %v1801 = vand.u32 2147483647, %v1800
        %v1803 = vcvt.s32.f32 %v1796
        %v1804 = vmul.f32 %v1803, %v1801
        %v1805 = vxor.u32 %v1804, 2147483648
        %v1806 = vsel %vm1723, %v1805, %v1804
        %v1807 = vsub.s32 4, %v1783
        %v1808 = vsel %vm1723, %v1807, %v1783
        %v1809 = vsel %vm1722, %v890, %v1806
        %v1810 = vsel %vm1722, 0, %v1808
        %v1811 = vcosq.f32.pop %v1809
        %v1812 = vsinq.f32.pop %v1809
        %vm1813 = vweird.f32 %v890
        %v1814 = vadd.s32 %v1810, 3
        %v1815 = vand.u32 %v1814, 3
        %vm1816 = vcmp.lt.s32.totalorder %v1815, 2
        %vm1817 = vcmp.eq.s32.totalorder %v1815, 0
        %v1818 = vxor.u32 %v1812, 2147483648
        %v1819 = vsel %vm1817, %v1811, %v1818
        %vm1820 = vcmp.eq.s32.totalorder %v1815, 2
        %v1821 = vxor.u32 %v1811, 2147483648
        %v1822 = vsel %vm1820, %v1821, %v1812
        %v1823 = vsel %vm1816, %v1819, %v1822
        %v1824 = vsel %vm1813, nan, %v1823
        %v1825 = vand.u32 2147483647, %v891
        %vm1826 = vcmp.le.f32.partialorder %v1825, 0.7853982
        %vm1827 = vcmp.lt.s32.totalorder %v891, 0
        %v1828 = vand.u32 %v891, 2139095040
        %v1829 = vshrl.u32 %v1828, 23
        %v1830 = vsub.s32 %v1829, 127
        %v1831 = vand.u32 2147483647, %v891
        %v1832 = vand.u32 %v1831, 8388607
        %v1833 = vor.u32 %v1832, 8388608
        %v1834 = vsub.s32 0, %v1833
        %v1835 = vadd.s32 %v1830, 1
        %vm1836 = vcmp.gt.s32.totalorder %v1835, 0
        %v1837 = vsel %vm1836, %v1835, 0
        %v1838 = vshrl.u32 %v1837, 5
        %v1839 = vand.u32 %v1837, 31
        %v1840 = vsub.s32 32, %v1839
        %v1841 = vshrl.u32 683565275, %v1840
        %v1842 = vshll.u32 683565275, %v1839
        %v1843 = vshrl.u32 2475754826, %v1840
        %v1844 = vor.u32 %v1842, %v1843
        %v1845 = vshll.u32 2475754826, %v1839
        %v1846 = vshrl.u32 2131351028, %v1840
        %v1847 = vor.u32 %v1845, %v1846
        %v1848 = vshll.u32 2131351028, %v1839
        %v1849 = vshrl.u32 2102212464, %v1840
        %v1850 = vor.u32 %v1848, %v1849
        %v1851 = vshll.u32 2102212464, %v1839
        %v1852 = vshrl.u32 920167782, %v1840
        %v1853 = vor.u32 %v1851, %v1852
        %v1854 = vshll.u32 920167782, %v1839
        %v1855 = vshrl.u32 1326507024, %v1840
        %v1856 = vor.u32 %v1854, %v1855
        %vm1857 = vcmp.lt.s32.totalorder %v1838, 1
        %vm1858 = vcmp.lt.s32.totalorder %v1838, 2
        %vm1859 = vcmp.lt.s32.totalorder %v1838, 3
        %vm1860 = vcmp.lt.s32.totalorder %v1838, 4
        %v1861 = vsel %vm1857, %v1841, %v1844
        %v1862 = vsel %vm1860, %v1850, 2102212464
        %v1863 = vsel %vm1859, %v1847, %v1862
        %v1864 = vsel %vm1858, %v1861, %v1863
        %v1865 = vsel %vm1857, %v1844, %v1847
        %v1866 = vsel %vm1860, %v1853, 920167782
        %v1867 = vsel %vm1859, %v1850, %v1866
        %v1868 = vsel %vm1858, %v1865, %v1867
        %v1869 = vsel %vm1857, %v1847, %v1850
        %v1870 = vsel %vm1860, %v1856, 1326507024
        %v1871 = vsel %vm1859, %v1853, %v1870
        %v1872 = vsel %vm1858, %v1869, %v1871
        %v1873 = vshll.u32 %v1833, 8
        %v1874 = vmul.u32.u64.compose %v1873, %v1872
        %v1875 = vextract.low.u32 %v1874
        %v1876 = vextract.high.u32 %v1874
        %v1877 = vmul.u32.u64.compose %v1873, %v1868
        %v1878 = vextract.low.u32 %v1877
        %v1879 = vextract.high.u32 %v1877
        %v1880 = vmul.u32 %v1873, %v1864
        %v1881 = vadd.s32 %v1876, %v1878
        %vm1882 = vc.u32 %v1876, %v1878
        %v1883 = vadd.s32 %v1879, 1
        %v1884 = vsel %vm1882, %v1883, %v1879
        %v1885 = vadd.s32 %v1880, %v1884
        %v1886 = vadd.s32 %v1885, 536870912
        %v1887 = vshrl.u32 %v1886, 30
        %v1888 = vshll.u32 %v1887, 30
        %v1889 = vsub.s32 %v1885, %v1888
        %vm1890 = vcmp.lt.s32.totalorder %v1889, 0
        %v1891 = vsub.s32 0, %v1889
        %v1892 = vsel %vm1890, %v1891, %v1889
        %v1893 = vclz %v1892
        %v1894 = vsub.s32 %v1893, 2
        %vm1895 = vcmp.gt.s32.totalorder 0, %v1894
        %v1896 = vsel %vm1895, 0, %v1894
        %v1897 = vsub.s32 32, %v1896
        %v1898 = vshll.u32 %v1889, %v1896
        %v1899 = vshrl.u32 %v1881, %v1897
        %v1900 = vor.u32 %v1898, %v1899
        %v1901 = vsub.s32 4294967266, %v1896
        %v1902 = vadd.s32 %v1901, 127
        %v1903 = vshll.u32 %v1902, 23
        %v1904 = vor.u32 4788187, %v1903
        %v1905 = vand.u32 2147483647, %v1904
        %v1907 = vcvt.s32.f32 %v1900
        %v1908 = vmul.f32 %v1907, %v1905
        %v1909 = vxor.u32 %v1908, 2147483648
        %v1910 = vsel %vm1827, %v1909, %v1908
        %v1911 = vsub.s32 4, %v1887
        %v1912 = vsel %vm1827, %v1911, %v1887
        %v1913 = vsel %vm1826, %v891, %v1910
        %v1914 = vsel %vm1826, 0, %v1912
        %v1915 = vcosq.f32.pop %v1913
        %v1916 = vsinq.f32.pop %v1913
        %vm1917 = vweird.f32 %v891
        %v1918 = vadd.s32 %v1914, 3
        %v1919 = vand.u32 %v1918, 3
        %vm1920 = vcmp.lt.s32.totalorder %v1919, 2
        %vm1921 = vcmp.eq.s32.totalorder %v1919, 0
        %v1922 = vxor.u32 %v1916, 2147483648
        %v1923 = vsel %vm1921, %v1915, %v1922
        %vm1924 = vcmp.eq.s32.totalorder %v1919, 2
        %v1925 = vxor.u32 %v1915, 2147483648
        %v1926 = vsel %vm1924, %v1925, %v1916
        %v1927 = vsel %vm1920, %v1923, %v1926
        %v1928 = vsel %vm1917, nan, %v1927
        %v1929 = vand.u32 2147483647, %v892
        %vm1930 = vcmp.le.f32.partialorder %v1929, 0.7853982
        %vm1931 = vcmp.lt.s32.totalorder %v892, 0
        %v1932 = vand.u32 %v892, 2139095040
        %v1933 = vshrl.u32 %v1932, 23
        %v1934 = vsub.s32 %v1933, 127
        %v1935 = vand.u32 2147483647, %v892
        %v1936 = vand.u32 %v1935, 8388607
        %v1937 = vor.u32 %v1936, 8388608
        %v1938 = vsub.s32 0, %v1937
        %v1939 = vadd.s32 %v1934, 1
        %vm1940 = vcmp.gt.s32.totalorder %v1939, 0
        %v1941 = vsel %vm1940, %v1939, 0
        %v1942 = vshrl.u32 %v1941, 5
        %v1943 = vand.u32 %v1941, 31
        %v1944 = vsub.s32 32, %v1943
        %v1945 = vshrl.u32 683565275, %v1944
        %v1946 = vshll.u32 683565275, %v1943
        %v1947 = vshrl.u32 2475754826, %v1944
        %v1948 = vor.u32 %v1946, %v1947
        %v1949 = vshll.u32 2475754826, %v1943
        %v1950 = vshrl.u32 2131351028, %v1944
        %v1951 = vor.u32 %v1949, %v1950
        %v1952 = vshll.u32 2131351028, %v1943
        %v1953 = vshrl.u32 2102212464, %v1944
        %v1954 = vor.u32 %v1952, %v1953
        %v1955 = vshll.u32 2102212464, %v1943
        %v1956 = vshrl.u32 920167782, %v1944
        %v1957 = vor.u32 %v1955, %v1956
        %v1958 = vshll.u32 920167782, %v1943
        %v1959 = vshrl.u32 1326507024, %v1944
        %v1960 = vor.u32 %v1958, %v1959
        %vm1961 = vcmp.lt.s32.totalorder %v1942, 1
        %vm1962 = vcmp.lt.s32.totalorder %v1942, 2
        %vm1963 = vcmp.lt.s32.totalorder %v1942, 3
        %vm1964 = vcmp.lt.s32.totalorder %v1942, 4
        %v1965 = vsel %vm1961, %v1945, %v1948
        %v1966 = vsel %vm1964, %v1954, 2102212464
        %v1967 = vsel %vm1963, %v1951, %v1966
        %v1968 = vsel %vm1962, %v1965, %v1967
        %v1969 = vsel %vm1961, %v1948, %v1951
        %v1970 = vsel %vm1964, %v1957, 920167782
        %v1971 = vsel %vm1963, %v1954, %v1970
        %v1972 = vsel %vm1962, %v1969, %v1971
        %v1973 = vsel %vm1961, %v1951, %v1954
        %v1974 = vsel %vm1964, %v1960, 1326507024
        %v1975 = vsel %vm1963, %v1957, %v1974
        %v1976 = vsel %vm1962, %v1973, %v1975
        %v1977 = vshll.u32 %v1937, 8
        %v1978 = vmul.u32.u64.compose %v1977, %v1976
        %v1979 = vextract.low.u32 %v1978
        %v1980 = vextract.high.u32 %v1978
        %v1981 = vmul.u32.u64.compose %v1977, %v1972
        %v1982 = vextract.low.u32 %v1981
        %v1983 = vextract.high.u32 %v1981
        %v1984 = vmul.u32 %v1977, %v1968
        %v1985 = vadd.s32 %v1980, %v1982
        %vm1986 = vc.u32 %v1980, %v1982
        %v1987 = vadd.s32 %v1983, 1
        %v1988 = vsel %vm1986, %v1987, %v1983
        %v1989 = vadd.s32 %v1984, %v1988
        %v1990 = vadd.s32 %v1989, 536870912
        %v1991 = vshrl.u32 %v1990, 30
        %v1992 = vshll.u32 %v1991, 30
        %v1993 = vsub.s32 %v1989, %v1992
        %vm1994 = vcmp.lt.s32.totalorder %v1993, 0
        %v1995 = vsub.s32 0, %v1993
        %v1996 = vsel %vm1994, %v1995, %v1993
        %v1997 = vclz %v1996
        %v1998 = vsub.s32 %v1997, 2
        %vm1999 = vcmp.gt.s32.totalorder 0, %v1998
        %v2000 = vsel %vm1999, 0, %v1998
        %v2001 = vsub.s32 32, %v2000
        %v2002 = vshll.u32 %v1993, %v2000
        %v2003 = vshrl.u32 %v1985, %v2001
        %v2004 = vor.u32 %v2002, %v2003
        %v2005 = vsub.s32 4294967266, %v2000
        %v2006 = vadd.s32 %v2005, 127
        %v2007 = vshll.u32 %v2006, 23
        %v2008 = vor.u32 4788187, %v2007
        %v2009 = vand.u32 2147483647, %v2008
        %v2011 = vcvt.s32.f32 %v2004
        %v2012 = vmul.f32 %v2011, %v2009
        %v2013 = vxor.u32 %v2012, 2147483648
        %v2014 = vsel %vm1931, %v2013, %v2012
        %v2015 = vsub.s32 4, %v1991
        %v2016 = vsel %vm1931, %v2015, %v1991
        %v2017 = vsel %vm1930, %v892, %v2014
        %v2018 = vsel %vm1930, 0, %v2016
        %v2019 = vcosq.f32.pop %v2017
        %v2020 = vsinq.f32.pop %v2017
        %vm2021 = vweird.f32 %v892
        %v2022 = vadd.s32 %v2018, 3
        %v2023 = vand.u32 %v2022, 3
        %vm2024 = vcmp.lt.s32.totalorder %v2023, 2
        %vm2025 = vcmp.eq.s32.totalorder %v2023, 0
        %v2026 = vxor.u32 %v2020, 2147483648
        %v2027 = vsel %vm2025, %v2019, %v2026
        %vm2028 = vcmp.eq.s32.totalorder %v2023, 2
        %v2029 = vxor.u32 %v2019, 2147483648
        %v2030 = vsel %vm2028, %v2029, %v2020
        %v2031 = vsel %vm2024, %v2027, %v2030
        %v2032 = vsel %vm2021, nan, %v2031
        %v2033 = vand.u32 2147483647, %v893
        %vm2034 = vcmp.le.f32.partialorder %v2033, 0.7853982
        %vm2035 = vcmp.lt.s32.totalorder %v893, 0
        %v2036 = vand.u32 %v893, 2139095040
        %v2037 = vshrl.u32 %v2036, 23
        %v2038 = vsub.s32 %v2037, 127
        %v2039 = vand.u32 2147483647, %v893
        %v2040 = vand.u32 %v2039, 8388607
        %v2041 = vor.u32 %v2040, 8388608
        %v2042 = vsub.s32 0, %v2041
        %v2043 = vadd.s32 %v2038, 1
        %vm2044 = vcmp.gt.s32.totalorder %v2043, 0
        %v2045 = vsel %vm2044, %v2043, 0
        %v2046 = vshrl.u32 %v2045, 5
        %v2047 = vand.u32 %v2045, 31
        %v2048 = vsub.s32 32, %v2047
        %v2049 = vshrl.u32 683565275, %v2048
        %v2050 = vshll.u32 683565275, %v2047
        %v2051 = vshrl.u32 2475754826, %v2048
        %v2052 = vor.u32 %v2050, %v2051
        %v2053 = vshll.u32 2475754826, %v2047
        %v2054 = vshrl.u32 2131351028, %v2048
        %v2055 = vor.u32 %v2053, %v2054
        %v2056 = vshll.u32 2131351028, %v2047
        %v2057 = vshrl.u32 2102212464, %v2048
        %v2058 = vor.u32 %v2056, %v2057
        %v2059 = vshll.u32 2102212464, %v2047
        %v2060 = vshrl.u32 920167782, %v2048
        %v2061 = vor.u32 %v2059, %v2060
        %v2062 = vshll.u32 920167782, %v2047
        %v2063 = vshrl.u32 1326507024, %v2048
        %v2064 = vor.u32 %v2062, %v2063
        %vm2065 = vcmp.lt.s32.totalorder %v2046, 1
        %vm2066 = vcmp.lt.s32.totalorder %v2046, 2
        %vm2067 = vcmp.lt.s32.totalorder %v2046, 3
        %vm2068 = vcmp.lt.s32.totalorder %v2046, 4
        %v2069 = vsel %vm2065, %v2049, %v2052
        %v2070 = vsel %vm2068, %v2058, 2102212464
        %v2071 = vsel %vm2067, %v2055, %v2070
        %v2072 = vsel %vm2066, %v2069, %v2071
        %v2073 = vsel %vm2065, %v2052, %v2055
        %v2074 = vsel %vm2068, %v2061, 920167782
        %v2075 = vsel %vm2067, %v2058, %v2074
        %v2076 = vsel %vm2066, %v2073, %v2075
        %v2077 = vsel %vm2065, %v2055, %v2058
        %v2078 = vsel %vm2068, %v2064, 1326507024
        %v2079 = vsel %vm2067, %v2061, %v2078
        %v2080 = vsel %vm2066, %v2077, %v2079
        %v2081 = vshll.u32 %v2041, 8
        %v2082 = vmul.u32.u64.compose %v2081, %v2080
        %v2083 = vextract.low.u32 %v2082
        %v2084 = vextract.high.u32 %v2082
        %v2085 = vmul.u32.u64.compose %v2081, %v2076
        %v2086 = vextract.low.u32 %v2085
        %v2087 = vextract.high.u32 %v2085
        %v2088 = vmul.u32 %v2081, %v2072
        %v2089 = vadd.s32 %v2084, %v2086
        %vm2090 = vc.u32 %v2084, %v2086
        %v2091 = vadd.s32 %v2087, 1
        %v2092 = vsel %vm2090, %v2091, %v2087
        %v2093 = vadd.s32 %v2088, %v2092
        %v2094 = vadd.s32 %v2093, 536870912
        %v2095 = vshrl.u32 %v2094, 30
        %v2096 = vshll.u32 %v2095, 30
        %v2097 = vsub.s32 %v2093, %v2096
        %vm2098 = vcmp.lt.s32.totalorder %v2097, 0
        %v2099 = vsub.s32 0, %v2097
        %v2100 = vsel %vm2098, %v2099, %v2097
        %v2101 = vclz %v2100
        %v2102 = vsub.s32 %v2101, 2
        %vm2103 = vcmp.gt.s32.totalorder 0, %v2102
        %v2104 = vsel %vm2103, 0, %v2102
        %v2105 = vsub.s32 32, %v2104
        %v2106 = vshll.u32 %v2097, %v2104
        %v2107 = vshrl.u32 %v2089, %v2105
        %v2108 = vor.u32 %v2106, %v2107
        %v2109 = vsub.s32 4294967266, %v2104
        %v2110 = vadd.s32 %v2109, 127
        %v2111 = vshll.u32 %v2110, 23
        %v2112 = vor.u32 4788187, %v2111
        %v2113 = vand.u32 2147483647, %v2112
        %v2115 = vcvt.s32.f32 %v2108
        %v2116 = vmul.f32 %v2115, %v2113
        %v2117 = vxor.u32 %v2116, 2147483648
        %v2118 = vsel %vm2035, %v2117, %v2116
        %v2119 = vsub.s32 4, %v2095
        %v2120 = vsel %vm2035, %v2119, %v2095
        %v2121 = vsel %vm2034, %v893, %v2118
        %v2122 = vsel %vm2034, 0, %v2120
        %v2123 = vcosq.f32.pop %v2121
        %v2124 = vsinq.f32.pop %v2121
        %vm2125 = vweird.f32 %v893
        %v2126 = vadd.s32 %v2122, 3
        %v2127 = vand.u32 %v2126, 3
        %vm2128 = vcmp.lt.s32.totalorder %v2127, 2
        %vm2129 = vcmp.eq.s32.totalorder %v2127, 0
        %v2130 = vxor.u32 %v2124, 2147483648
        %v2131 = vsel %vm2129, %v2123, %v2130
        %vm2132 = vcmp.eq.s32.totalorder %v2127, 2
        %v2133 = vxor.u32 %v2123, 2147483648
        %v2134 = vsel %vm2132, %v2133, %v2124
        %v2135 = vsel %vm2128, %v2131, %v2134
        %v2136 = vsel %vm2125, nan, %v2135
        %v2137 = vand.u32 2147483647, %v894
        %vm2138 = vcmp.le.f32.partialorder %v2137, 0.7853982
        %vm2139 = vcmp.lt.s32.totalorder %v894, 0
        %v2140 = vand.u32 %v894, 2139095040
        %v2141 = vshrl.u32 %v2140, 23
        %v2142 = vsub.s32 %v2141, 127
        %v2143 = vand.u32 2147483647, %v894
        %v2144 = vand.u32 %v2143, 8388607
        %v2145 = vor.u32 %v2144, 8388608
        %v2146 = vsub.s32 0, %v2145
        %v2147 = vadd.s32 %v2142, 1
        %vm2148 = vcmp.gt.s32.totalorder %v2147, 0
        %v2149 = vsel %vm2148, %v2147, 0
        %v2150 = vshrl.u32 %v2149, 5
        %v2151 = vand.u32 %v2149, 31
        %v2152 = vsub.s32 32, %v2151
        %v2153 = vshrl.u32 683565275, %v2152
        %v2154 = vshll.u32 683565275, %v2151
        %v2155 = vshrl.u32 2475754826, %v2152
        %v2156 = vor.u32 %v2154, %v2155
        %v2157 = vshll.u32 2475754826, %v2151
        %v2158 = vshrl.u32 2131351028, %v2152
        %v2159 = vor.u32 %v2157, %v2158
        %v2160 = vshll.u32 2131351028, %v2151
        %v2161 = vshrl.u32 2102212464, %v2152
        %v2162 = vor.u32 %v2160, %v2161
        %v2163 = vshll.u32 2102212464, %v2151
        %v2164 = vshrl.u32 920167782, %v2152
        %v2165 = vor.u32 %v2163, %v2164
        %v2166 = vshll.u32 920167782, %v2151
        %v2167 = vshrl.u32 1326507024, %v2152
        %v2168 = vor.u32 %v2166, %v2167
        %vm2169 = vcmp.lt.s32.totalorder %v2150, 1
        %vm2170 = vcmp.lt.s32.totalorder %v2150, 2
        %vm2171 = vcmp.lt.s32.totalorder %v2150, 3
        %vm2172 = vcmp.lt.s32.totalorder %v2150, 4
        %v2173 = vsel %vm2169, %v2153, %v2156
        %v2174 = vsel %vm2172, %v2162, 2102212464
        %v2175 = vsel %vm2171, %v2159, %v2174
        %v2176 = vsel %vm2170, %v2173, %v2175
        %v2177 = vsel %vm2169, %v2156, %v2159
        %v2178 = vsel %vm2172, %v2165, 920167782
        %v2179 = vsel %vm2171, %v2162, %v2178
        %v2180 = vsel %vm2170, %v2177, %v2179
        %v2181 = vsel %vm2169, %v2159, %v2162
        %v2182 = vsel %vm2172, %v2168, 1326507024
        %v2183 = vsel %vm2171, %v2165, %v2182
        %v2184 = vsel %vm2170, %v2181, %v2183
        %v2185 = vshll.u32 %v2145, 8
        %v2186 = vmul.u32.u64.compose %v2185, %v2184
        %v2187 = vextract.low.u32 %v2186
        %v2188 = vextract.high.u32 %v2186
        %v2189 = vmul.u32.u64.compose %v2185, %v2180
        %v2190 = vextract.low.u32 %v2189
        %v2191 = vextract.high.u32 %v2189
        %v2192 = vmul.u32 %v2185, %v2176
        %v2193 = vadd.s32 %v2188, %v2190
        %vm2194 = vc.u32 %v2188, %v2190
        %v2195 = vadd.s32 %v2191, 1
        %v2196 = vsel %vm2194, %v2195, %v2191
        %v2197 = vadd.s32 %v2192, %v2196
        %v2198 = vadd.s32 %v2197, 536870912
        %v2199 = vshrl.u32 %v2198, 30
        %v2200 = vshll.u32 %v2199, 30
        %v2201 = vsub.s32 %v2197, %v2200
        %vm2202 = vcmp.lt.s32.totalorder %v2201, 0
        %v2203 = vsub.s32 0, %v2201
        %v2204 = vsel %vm2202, %v2203, %v2201
        %v2205 = vclz %v2204
        %v2206 = vsub.s32 %v2205, 2
        %vm2207 = vcmp.gt.s32.totalorder 0, %v2206
        %v2208 = vsel %vm2207, 0, %v2206
        %v2209 = vsub.s32 32, %v2208
        %v2210 = vshll.u32 %v2201, %v2208
        %v2211 = vshrl.u32 %v2193, %v2209
        %v2212 = vor.u32 %v2210, %v2211
        %v2213 = vsub.s32 4294967266, %v2208
        %v2214 = vadd.s32 %v2213, 127
        %v2215 = vshll.u32 %v2214, 23
        %v2216 = vor.u32 4788187, %v2215
        %v2217 = vand.u32 2147483647, %v2216
        %v2219 = vcvt.s32.f32 %v2212
        %v2220 = vmul.f32 %v2219, %v2217
        %v2221 = vxor.u32 %v2220, 2147483648
        %v2222 = vsel %vm2139, %v2221, %v2220
        %v2223 = vsub.s32 4, %v2199
        %v2224 = vsel %vm2139, %v2223, %v2199
        %v2225 = vsel %vm2138, %v894, %v2222
        %v2226 = vsel %vm2138, 0, %v2224
        %v2227 = vcosq.f32.pop %v2225
        %v2228 = vsinq.f32.pop %v2225
        %vm2229 = vweird.f32 %v894
        %v2230 = vadd.s32 %v2226, 3
        %v2231 = vand.u32 %v2230, 3
        %vm2232 = vcmp.lt.s32.totalorder %v2231, 2
        %vm2233 = vcmp.eq.s32.totalorder %v2231, 0
        %v2234 = vxor.u32 %v2228, 2147483648
        %v2235 = vsel %vm2233, %v2227, %v2234
        %vm2236 = vcmp.eq.s32.totalorder %v2231, 2
        %v2237 = vxor.u32 %v2227, 2147483648
        %v2238 = vsel %vm2236, %v2237, %v2228
        %v2239 = vsel %vm2232, %v2235, %v2238
        %v2240 = vsel %vm2229, nan, %v2239
        %v2241 = vand.u32 2147483647, %v895
        %vm2242 = vcmp.le.f32.partialorder %v2241, 0.7853982
        %vm2243 = vcmp.lt.s32.totalorder %v895, 0
        %v2244 = vand.u32 %v895, 2139095040
        %v2245 = vshrl.u32 %v2244, 23
        %v2246 = vsub.s32 %v2245, 127
        %v2247 = vand.u32 2147483647, %v895
        %v2248 = vand.u32 %v2247, 8388607
        %v2249 = vor.u32 %v2248, 8388608
        %v2250 = vsub.s32 0, %v2249
        %v2251 = vadd.s32 %v2246, 1
        %vm2252 = vcmp.gt.s32.totalorder %v2251, 0
        %v2253 = vsel %vm2252, %v2251, 0
        %v2254 = vshrl.u32 %v2253, 5
        %v2255 = vand.u32 %v2253, 31
        %v2256 = vsub.s32 32, %v2255
        %v2257 = vshrl.u32 683565275, %v2256
        %v2258 = vshll.u32 683565275, %v2255
        %v2259 = vshrl.u32 2475754826, %v2256
        %v2260 = vor.u32 %v2258, %v2259
        %v2261 = vshll.u32 2475754826, %v2255
        %v2262 = vshrl.u32 2131351028, %v2256
        %v2263 = vor.u32 %v2261, %v2262
        %v2264 = vshll.u32 2131351028, %v2255
        %v2265 = vshrl.u32 2102212464, %v2256
        %v2266 = vor.u32 %v2264, %v2265
        %v2267 = vshll.u32 2102212464, %v2255
        %v2268 = vshrl.u32 920167782, %v2256
        %v2269 = vor.u32 %v2267, %v2268
        %v2270 = vshll.u32 920167782, %v2255
        %v2271 = vshrl.u32 1326507024, %v2256
        %v2272 = vor.u32 %v2270, %v2271
        %vm2273 = vcmp.lt.s32.totalorder %v2254, 1
        %vm2274 = vcmp.lt.s32.totalorder %v2254, 2
        %vm2275 = vcmp.lt.s32.totalorder %v2254, 3
        %vm2276 = vcmp.lt.s32.totalorder %v2254, 4
        %v2277 = vsel %vm2273, %v2257, %v2260
        %v2278 = vsel %vm2276, %v2266, 2102212464
        %v2279 = vsel %vm2275, %v2263, %v2278
        %v2280 = vsel %vm2274, %v2277, %v2279
        %v2281 = vsel %vm2273, %v2260, %v2263
        %v2282 = vsel %vm2276, %v2269, 920167782
        %v2283 = vsel %vm2275, %v2266, %v2282
        %v2284 = vsel %vm2274, %v2281, %v2283
        %v2285 = vsel %vm2273, %v2263, %v2266
        %v2286 = vsel %vm2276, %v2272, 1326507024
        %v2287 = vsel %vm2275, %v2269, %v2286
        %v2288 = vsel %vm2274, %v2285, %v2287
        %v2289 = vshll.u32 %v2249, 8
        %v2290 = vmul.u32.u64.compose %v2289, %v2288
        %v2291 = vextract.low.u32 %v2290
        %v2292 = vextract.high.u32 %v2290
        %v2293 = vmul.u32.u64.compose %v2289, %v2284
        %v2294 = vextract.low.u32 %v2293
        %v2295 = vextract.high.u32 %v2293
        %v2296 = vmul.u32 %v2289, %v2280
        %v2297 = vadd.s32 %v2292, %v2294
        %vm2298 = vc.u32 %v2292, %v2294
        %v2299 = vadd.s32 %v2295, 1
        %v2300 = vsel %vm2298, %v2299, %v2295
        %v2301 = vadd.s32 %v2296, %v2300
        %v2302 = vadd.s32 %v2301, 536870912
        %v2303 = vshrl.u32 %v2302, 30
        %v2304 = vshll.u32 %v2303, 30
        %v2305 = vsub.s32 %v2301, %v2304
        %vm2306 = vcmp.lt.s32.totalorder %v2305, 0
        %v2307 = vsub.s32 0, %v2305
        %v2308 = vsel %vm2306, %v2307, %v2305
        %v2309 = vclz %v2308
        %v2310 = vsub.s32 %v2309, 2
        %vm2311 = vcmp.gt.s32.totalorder 0, %v2310
        %v2312 = vsel %vm2311, 0, %v2310
        %v2313 = vsub.s32 32, %v2312
        %v2314 = vshll.u32 %v2305, %v2312
        %v2315 = vshrl.u32 %v2297, %v2313
        %v2316 = vor.u32 %v2314, %v2315
        %v2317 = vsub.s32 4294967266, %v2312
        %v2318 = vadd.s32 %v2317, 127
        %v2319 = vshll.u32 %v2318, 23
        %v2320 = vor.u32 4788187, %v2319
        %v2321 = vand.u32 2147483647, %v2320
        %v2323 = vcvt.s32.f32 %v2316
        %v2324 = vmul.f32 %v2323, %v2321
        %v2325 = vxor.u32 %v2324, 2147483648
        %v2326 = vsel %vm2243, %v2325, %v2324
        %v2327 = vsub.s32 4, %v2303
        %v2328 = vsel %vm2243, %v2327, %v2303
        %v2329 = vsel %vm2242, %v895, %v2326
        %v2330 = vsel %vm2242, 0, %v2328
        %v2331 = vcosq.f32.pop %v2329
        %v2332 = vsinq.f32.pop %v2329
        %vm2333 = vweird.f32 %v895
        %v2334 = vadd.s32 %v2330, 3
        %v2335 = vand.u32 %v2334, 3
        %vm2336 = vcmp.lt.s32.totalorder %v2335, 2
        %vm2337 = vcmp.eq.s32.totalorder %v2335, 0
        %v2338 = vxor.u32 %v2332, 2147483648
        %v2339 = vsel %vm2337, %v2331, %v2338
        %vm2340 = vcmp.eq.s32.totalorder %v2335, 2
        %v2341 = vxor.u32 %v2331, 2147483648
        %v2342 = vsel %vm2340, %v2341, %v2332
        %v2343 = vsel %vm2336, %v2339, %v2342
        %v2344 = vsel %vm2333, nan, %v2343
        %v2345 = vand.u32 2147483647, %v896
        %vm2346 = vcmp.le.f32.partialorder %v2345, 0.7853982
        %vm2347 = vcmp.lt.s32.totalorder %v896, 0
        %v2348 = vand.u32 %v896, 2139095040
        %v2349 = vshrl.u32 %v2348, 23
        %v2350 = vsub.s32 %v2349, 127
        %v2351 = vand.u32 2147483647, %v896
        %v2352 = vand.u32 %v2351, 8388607
        %v2353 = vor.u32 %v2352, 8388608
        %v2354 = vsub.s32 0, %v2353
        %v2355 = vadd.s32 %v2350, 1
        %vm2356 = vcmp.gt.s32.totalorder %v2355, 0
        %v2357 = vsel %vm2356, %v2355, 0
        %v2358 = vshrl.u32 %v2357, 5
        %v2359 = vand.u32 %v2357, 31
        %v2360 = vsub.s32 32, %v2359
        %v2361 = vshrl.u32 683565275, %v2360
        %v2362 = vshll.u32 683565275, %v2359
        %v2363 = vshrl.u32 2475754826, %v2360
        %v2364 = vor.u32 %v2362, %v2363
        %v2365 = vshll.u32 2475754826, %v2359
        %v2366 = vshrl.u32 2131351028, %v2360
        %v2367 = vor.u32 %v2365, %v2366
        %v2368 = vshll.u32 2131351028, %v2359
        %v2369 = vshrl.u32 2102212464, %v2360
        %v2370 = vor.u32 %v2368, %v2369
        %v2371 = vshll.u32 2102212464, %v2359
        %v2372 = vshrl.u32 920167782, %v2360
        %v2373 = vor.u32 %v2371, %v2372
        %v2374 = vshll.u32 920167782, %v2359
        %v2375 = vshrl.u32 1326507024, %v2360
        %v2376 = vor.u32 %v2374, %v2375
        %vm2377 = vcmp.lt.s32.totalorder %v2358, 1
        %vm2378 = vcmp.lt.s32.totalorder %v2358, 2
        %vm2379 = vcmp.lt.s32.totalorder %v2358, 3
        %vm2380 = vcmp.lt.s32.totalorder %v2358, 4
        %v2381 = vsel %vm2377, %v2361, %v2364
        %v2382 = vsel %vm2380, %v2370, 2102212464
        %v2383 = vsel %vm2379, %v2367, %v2382
        %v2384 = vsel %vm2378, %v2381, %v2383
        %v2385 = vsel %vm2377, %v2364, %v2367
        %v2386 = vsel %vm2380, %v2373, 920167782
        %v2387 = vsel %vm2379, %v2370, %v2386
        %v2388 = vsel %vm2378, %v2385, %v2387
        %v2389 = vsel %vm2377, %v2367, %v2370
        %v2390 = vsel %vm2380, %v2376, 1326507024
        %v2391 = vsel %vm2379, %v2373, %v2390
        %v2392 = vsel %vm2378, %v2389, %v2391
        %v2393 = vshll.u32 %v2353, 8
        %v2394 = vmul.u32.u64.compose %v2393, %v2392
        %v2395 = vextract.low.u32 %v2394
        %v2396 = vextract.high.u32 %v2394
        %v2397 = vmul.u32.u64.compose %v2393, %v2388
        %v2398 = vextract.low.u32 %v2397
        %v2399 = vextract.high.u32 %v2397
        %v2400 = vmul.u32 %v2393, %v2384
        %v2401 = vadd.s32 %v2396, %v2398
        %vm2402 = vc.u32 %v2396, %v2398
        %v2403 = vadd.s32 %v2399, 1
        %v2404 = vsel %vm2402, %v2403, %v2399
        %v2405 = vadd.s32 %v2400, %v2404
        %v2406 = vadd.s32 %v2405, 536870912
        %v2407 = vshrl.u32 %v2406, 30
        %v2408 = vshll.u32 %v2407, 30
        %v2409 = vsub.s32 %v2405, %v2408
        %vm2410 = vcmp.lt.s32.totalorder %v2409, 0
        %v2411 = vsub.s32 0, %v2409
        %v2412 = vsel %vm2410, %v2411, %v2409
        %v2413 = vclz %v2412
        %v2414 = vsub.s32 %v2413, 2
        %vm2415 = vcmp.gt.s32.totalorder 0, %v2414
        %v2416 = vsel %vm2415, 0, %v2414
        %v2417 = vsub.s32 32, %v2416
        %v2418 = vshll.u32 %v2409, %v2416
        %v2419 = vshrl.u32 %v2401, %v2417
        %v2420 = vor.u32 %v2418, %v2419
        %v2421 = vsub.s32 4294967266, %v2416
        %v2422 = vadd.s32 %v2421, 127
        %v2423 = vshll.u32 %v2422, 23
        %v2424 = vor.u32 4788187, %v2423
        %v2425 = vand.u32 2147483647, %v2424
        %v2427 = vcvt.s32.f32 %v2420
        %v2428 = vmul.f32 %v2427, %v2425
        %v2429 = vxor.u32 %v2428, 2147483648
        %v2430 = vsel %vm2347, %v2429, %v2428
        %v2431 = vsub.s32 4, %v2407
        %v2432 = vsel %vm2347, %v2431, %v2407
        %v2433 = vsel %vm2346, %v896, %v2430
        %v2434 = vsel %vm2346, 0, %v2432
        %v2435 = vcosq.f32.pop %v2433
        %v2436 = vsinq.f32.pop %v2433
        %vm2437 = vweird.f32 %v896
        %v2438 = vadd.s32 %v2434, 3
        %v2439 = vand.u32 %v2438, 3
        %vm2440 = vcmp.lt.s32.totalorder %v2439, 2
        %vm2441 = vcmp.eq.s32.totalorder %v2439, 0
        %v2442 = vxor.u32 %v2436, 2147483648
        %v2443 = vsel %vm2441, %v2435, %v2442
        %vm2444 = vcmp.eq.s32.totalorder %v2439, 2
        %v2445 = vxor.u32 %v2435, 2147483648
        %v2446 = vsel %vm2444, %v2445, %v2436
        %v2447 = vsel %vm2440, %v2443, %v2446
        %v2448 = vsel %vm2437, nan, %v2447
        %v2449 = vand.u32 2147483647, %v897
        %vm2450 = vcmp.le.f32.partialorder %v2449, 0.7853982
        %vm2451 = vcmp.lt.s32.totalorder %v897, 0
        %v2452 = vand.u32 %v897, 2139095040
        %v2453 = vshrl.u32 %v2452, 23
        %v2454 = vsub.s32 %v2453, 127
        %v2455 = vand.u32 2147483647, %v897
        %v2456 = vand.u32 %v2455, 8388607
        %v2457 = vor.u32 %v2456, 8388608
        %v2458 = vsub.s32 0, %v2457
        %v2459 = vadd.s32 %v2454, 1
        %vm2460 = vcmp.gt.s32.totalorder %v2459, 0
        %v2461 = vsel %vm2460, %v2459, 0
        %v2462 = vshrl.u32 %v2461, 5
        %v2463 = vand.u32 %v2461, 31
        %v2464 = vsub.s32 32, %v2463
        %v2465 = vshrl.u32 683565275, %v2464
        %v2466 = vshll.u32 683565275, %v2463
        %v2467 = vshrl.u32 2475754826, %v2464
        %v2468 = vor.u32 %v2466, %v2467
        %v2469 = vshll.u32 2475754826, %v2463
        %v2470 = vshrl.u32 2131351028, %v2464
        %v2471 = vor.u32 %v2469, %v2470
        %v2472 = vshll.u32 2131351028, %v2463
        %v2473 = vshrl.u32 2102212464, %v2464
        %v2474 = vor.u32 %v2472, %v2473
        %v2475 = vshll.u32 2102212464, %v2463
        %v2476 = vshrl.u32 920167782, %v2464
        %v2477 = vor.u32 %v2475, %v2476
        %v2478 = vshll.u32 920167782, %v2463
        %v2479 = vshrl.u32 1326507024, %v2464
        %v2480 = vor.u32 %v2478, %v2479
        %vm2481 = vcmp.lt.s32.totalorder %v2462, 1
        %vm2482 = vcmp.lt.s32.totalorder %v2462, 2
        %vm2483 = vcmp.lt.s32.totalorder %v2462, 3
        %vm2484 = vcmp.lt.s32.totalorder %v2462, 4
        %v2485 = vsel %vm2481, %v2465, %v2468
        %v2486 = vsel %vm2484, %v2474, 2102212464
        %v2487 = vsel %vm2483, %v2471, %v2486
        %v2488 = vsel %vm2482, %v2485, %v2487
        %v2489 = vsel %vm2481, %v2468, %v2471
        %v2490 = vsel %vm2484, %v2477, 920167782
        %v2491 = vsel %vm2483, %v2474, %v2490
        %v2492 = vsel %vm2482, %v2489, %v2491
        %v2493 = vsel %vm2481, %v2471, %v2474
        %v2494 = vsel %vm2484, %v2480, 1326507024
        %v2495 = vsel %vm2483, %v2477, %v2494
        %v2496 = vsel %vm2482, %v2493, %v2495
        %v2497 = vshll.u32 %v2457, 8
        %v2498 = vmul.u32.u64.compose %v2497, %v2496
        %v2499 = vextract.low.u32 %v2498
        %v2500 = vextract.high.u32 %v2498
        %v2501 = vmul.u32.u64.compose %v2497, %v2492
        %v2502 = vextract.low.u32 %v2501
        %v2503 = vextract.high.u32 %v2501
        %v2504 = vmul.u32 %v2497, %v2488
        %v2505 = vadd.s32 %v2500, %v2502
        %vm2506 = vc.u32 %v2500, %v2502
        %v2507 = vadd.s32 %v2503, 1
        %v2508 = vsel %vm2506, %v2507, %v2503
        %v2509 = vadd.s32 %v2504, %v2508
        %v2510 = vadd.s32 %v2509, 536870912
        %v2511 = vshrl.u32 %v2510, 30
        %v2512 = vshll.u32 %v2511, 30
        %v2513 = vsub.s32 %v2509, %v2512
        %vm2514 = vcmp.lt.s32.totalorder %v2513, 0
        %v2515 = vsub.s32 0, %v2513
        %v2516 = vsel %vm2514, %v2515, %v2513
        %v2517 = vclz %v2516
        %v2518 = vsub.s32 %v2517, 2
        %vm2519 = vcmp.gt.s32.totalorder 0, %v2518
        %v2520 = vsel %vm2519, 0, %v2518
        %v2521 = vsub.s32 32, %v2520
        %v2522 = vshll.u32 %v2513, %v2520
        %v2523 = vshrl.u32 %v2505, %v2521
        %v2524 = vor.u32 %v2522, %v2523
        %v2525 = vsub.s32 4294967266, %v2520
        %v2526 = vadd.s32 %v2525, 127
        %v2527 = vshll.u32 %v2526, 23
        %v2528 = vor.u32 4788187, %v2527
        %v2529 = vand.u32 2147483647, %v2528
        %v2531 = vcvt.s32.f32 %v2524
        %v2532 = vmul.f32 %v2531, %v2529
        %v2533 = vxor.u32 %v2532, 2147483648
        %v2534 = vsel %vm2451, %v2533, %v2532
        %v2535 = vsub.s32 4, %v2511
        %v2536 = vsel %vm2451, %v2535, %v2511
        %v2537 = vsel %vm2450, %v897, %v2534
        %v2538 = vsel %vm2450, 0, %v2536
        %v2539 = vcosq.f32.pop %v2537
        %v2540 = vsinq.f32.pop %v2537
        %vm2541 = vweird.f32 %v897
        %v2542 = vadd.s32 %v2538, 3
        %v2543 = vand.u32 %v2542, 3
        %vm2544 = vcmp.lt.s32.totalorder %v2543, 2
        %vm2545 = vcmp.eq.s32.totalorder %v2543, 0
        %v2546 = vxor.u32 %v2540, 2147483648
        %v2547 = vsel %vm2545, %v2539, %v2546
        %vm2548 = vcmp.eq.s32.totalorder %v2543, 2
        %v2549 = vxor.u32 %v2539, 2147483648
        %v2550 = vsel %vm2548, %v2549, %v2540
        %v2551 = vsel %vm2544, %v2547, %v2550
        %v2552 = vsel %vm2541, nan, %v2551
        %v2553 = vand.u32 2147483647, %v898
        %vm2554 = vcmp.le.f32.partialorder %v2553, 0.7853982
        %vm2555 = vcmp.lt.s32.totalorder %v898, 0
        %v2556 = vand.u32 %v898, 2139095040
        %v2557 = vshrl.u32 %v2556, 23
        %v2558 = vsub.s32 %v2557, 127
        %v2559 = vand.u32 2147483647, %v898
        %v2560 = vand.u32 %v2559, 8388607
        %v2561 = vor.u32 %v2560, 8388608
        %v2562 = vsub.s32 0, %v2561
        %v2563 = vadd.s32 %v2558, 1
        %vm2564 = vcmp.gt.s32.totalorder %v2563, 0
        %v2565 = vsel %vm2564, %v2563, 0
        %v2566 = vshrl.u32 %v2565, 5
        %v2567 = vand.u32 %v2565, 31
        %v2568 = vsub.s32 32, %v2567
        %v2569 = vshrl.u32 683565275, %v2568
        %v2570 = vshll.u32 683565275, %v2567
        %v2571 = vshrl.u32 2475754826, %v2568
        %v2572 = vor.u32 %v2570, %v2571
        %v2573 = vshll.u32 2475754826, %v2567
        %v2574 = vshrl.u32 2131351028, %v2568
        %v2575 = vor.u32 %v2573, %v2574
        %v2576 = vshll.u32 2131351028, %v2567
        %v2577 = vshrl.u32 2102212464, %v2568
        %v2578 = vor.u32 %v2576, %v2577
        %v2579 = vshll.u32 2102212464, %v2567
        %v2580 = vshrl.u32 920167782, %v2568
        %v2581 = vor.u32 %v2579, %v2580
        %v2582 = vshll.u32 920167782, %v2567
        %v2583 = vshrl.u32 1326507024, %v2568
        %v2584 = vor.u32 %v2582, %v2583
        %vm2585 = vcmp.lt.s32.totalorder %v2566, 1
        %vm2586 = vcmp.lt.s32.totalorder %v2566, 2
        %vm2587 = vcmp.lt.s32.totalorder %v2566, 3
        %vm2588 = vcmp.lt.s32.totalorder %v2566, 4
        %v2589 = vsel %vm2585, %v2569, %v2572
        %v2590 = vsel %vm2588, %v2578, 2102212464
        %v2591 = vsel %vm2587, %v2575, %v2590
        %v2592 = vsel %vm2586, %v2589, %v2591
        %v2593 = vsel %vm2585, %v2572, %v2575
        %v2594 = vsel %vm2588, %v2581, 920167782
        %v2595 = vsel %vm2587, %v2578, %v2594
        %v2596 = vsel %vm2586, %v2593, %v2595
        %v2597 = vsel %vm2585, %v2575, %v2578
        %v2598 = vsel %vm2588, %v2584, 1326507024
        %v2599 = vsel %vm2587, %v2581, %v2598
        %v2600 = vsel %vm2586, %v2597, %v2599
        %v2601 = vshll.u32 %v2561, 8
        %v2602 = vmul.u32.u64.compose %v2601, %v2600
        %v2603 = vextract.low.u32 %v2602
        %v2604 = vextract.high.u32 %v2602
        %v2605 = vmul.u32.u64.compose %v2601, %v2596
        %v2606 = vextract.low.u32 %v2605
        %v2607 = vextract.high.u32 %v2605
        %v2608 = vmul.u32 %v2601, %v2592
        %v2609 = vadd.s32 %v2604, %v2606
        %vm2610 = vc.u32 %v2604, %v2606
        %v2611 = vadd.s32 %v2607, 1
        %v2612 = vsel %vm2610, %v2611, %v2607
        %v2613 = vadd.s32 %v2608, %v2612
        %v2614 = vadd.s32 %v2613, 536870912
        %v2615 = vshrl.u32 %v2614, 30
        %v2616 = vshll.u32 %v2615, 30
        %v2617 = vsub.s32 %v2613, %v2616
        %vm2618 = vcmp.lt.s32.totalorder %v2617, 0
        %v2619 = vsub.s32 0, %v2617
        %v2620 = vsel %vm2618, %v2619, %v2617
        %v2621 = vclz %v2620
        %v2622 = vsub.s32 %v2621, 2
        %vm2623 = vcmp.gt.s32.totalorder 0, %v2622
        %v2624 = vsel %vm2623, 0, %v2622
        %v2625 = vsub.s32 32, %v2624
        %v2626 = vshll.u32 %v2617, %v2624
        %v2627 = vshrl.u32 %v2609, %v2625
        %v2628 = vor.u32 %v2626, %v2627
        %v2629 = vsub.s32 4294967266, %v2624
        %v2630 = vadd.s32 %v2629, 127
        %v2631 = vshll.u32 %v2630, 23
        %v2632 = vor.u32 4788187, %v2631
        %v2633 = vand.u32 2147483647, %v2632
        %v2635 = vcvt.s32.f32 %v2628
        %v2636 = vmul.f32 %v2635, %v2633
        %v2637 = vxor.u32 %v2636, 2147483648
        %v2638 = vsel %vm2555, %v2637, %v2636
        %v2639 = vsub.s32 4, %v2615
        %v2640 = vsel %vm2555, %v2639, %v2615
        %v2641 = vsel %vm2554, %v898, %v2638
        %v2642 = vsel %vm2554, 0, %v2640
        %v2643 = vcosq.f32.pop %v2641
        %v2644 = vsinq.f32.pop %v2641
        %vm2645 = vweird.f32 %v898
        %v2646 = vadd.s32 %v2642, 3
        %v2647 = vand.u32 %v2646, 3
        %vm2648 = vcmp.lt.s32.totalorder %v2647, 2
        %vm2649 = vcmp.eq.s32.totalorder %v2647, 0
        %v2650 = vxor.u32 %v2644, 2147483648
        %v2651 = vsel %vm2649, %v2643, %v2650
        %vm2652 = vcmp.eq.s32.totalorder %v2647, 2
        %v2653 = vxor.u32 %v2643, 2147483648
        %v2654 = vsel %vm2652, %v2653, %v2644
        %v2655 = vsel %vm2648, %v2651, %v2654
        %v2656 = vsel %vm2645, nan, %v2655
        %v2657 = vand.u32 2147483647, %v899
        %vm2658 = vcmp.le.f32.partialorder %v2657, 0.7853982
        %vm2659 = vcmp.lt.s32.totalorder %v899, 0
        %v2660 = vand.u32 %v899, 2139095040
        %v2661 = vshrl.u32 %v2660, 23
        %v2662 = vsub.s32 %v2661, 127
        %v2663 = vand.u32 2147483647, %v899
        %v2664 = vand.u32 %v2663, 8388607
        %v2665 = vor.u32 %v2664, 8388608
        %v2666 = vsub.s32 0, %v2665
        %v2667 = vadd.s32 %v2662, 1
        %vm2668 = vcmp.gt.s32.totalorder %v2667, 0
        %v2669 = vsel %vm2668, %v2667, 0
        %v2670 = vshrl.u32 %v2669, 5
        %v2671 = vand.u32 %v2669, 31
        %v2672 = vsub.s32 32, %v2671
        %v2673 = vshrl.u32 683565275, %v2672
        %v2674 = vshll.u32 683565275, %v2671
        %v2675 = vshrl.u32 2475754826, %v2672
        %v2676 = vor.u32 %v2674, %v2675
        %v2677 = vshll.u32 2475754826, %v2671
        %v2678 = vshrl.u32 2131351028, %v2672
        %v2679 = vor.u32 %v2677, %v2678
        %v2680 = vshll.u32 2131351028, %v2671
        %v2681 = vshrl.u32 2102212464, %v2672
        %v2682 = vor.u32 %v2680, %v2681
        %v2683 = vshll.u32 2102212464, %v2671
        %v2684 = vshrl.u32 920167782, %v2672
        %v2685 = vor.u32 %v2683, %v2684
        %v2686 = vshll.u32 920167782, %v2671
        %v2687 = vshrl.u32 1326507024, %v2672
        %v2688 = vor.u32 %v2686, %v2687
        %vm2689 = vcmp.lt.s32.totalorder %v2670, 1
        %vm2690 = vcmp.lt.s32.totalorder %v2670, 2
        %vm2691 = vcmp.lt.s32.totalorder %v2670, 3
        %vm2692 = vcmp.lt.s32.totalorder %v2670, 4
        %v2693 = vsel %vm2689, %v2673, %v2676
        %v2694 = vsel %vm2692, %v2682, 2102212464
        %v2695 = vsel %vm2691, %v2679, %v2694
        %v2696 = vsel %vm2690, %v2693, %v2695
        %v2697 = vsel %vm2689, %v2676, %v2679
        %v2698 = vsel %vm2692, %v2685, 920167782
        %v2699 = vsel %vm2691, %v2682, %v2698
        %v2700 = vsel %vm2690, %v2697, %v2699
        %v2701 = vsel %vm2689, %v2679, %v2682
        %v2702 = vsel %vm2692, %v2688, 1326507024
        %v2703 = vsel %vm2691, %v2685, %v2702
        %v2704 = vsel %vm2690, %v2701, %v2703
        %v2705 = vshll.u32 %v2665, 8
        %v2706 = vmul.u32.u64.compose %v2705, %v2704
        %v2707 = vextract.low.u32 %v2706
        %v2708 = vextract.high.u32 %v2706
        %v2709 = vmul.u32.u64.compose %v2705, %v2700
        %v2710 = vextract.low.u32 %v2709
        %v2711 = vextract.high.u32 %v2709
        %v2712 = vmul.u32 %v2705, %v2696
        %v2713 = vadd.s32 %v2708, %v2710
        %vm2714 = vc.u32 %v2708, %v2710
        %v2715 = vadd.s32 %v2711, 1
        %v2716 = vsel %vm2714, %v2715, %v2711
        %v2717 = vadd.s32 %v2712, %v2716
        %v2718 = vadd.s32 %v2717, 536870912
        %v2719 = vshrl.u32 %v2718, 30
        %v2720 = vshll.u32 %v2719, 30
        %v2721 = vsub.s32 %v2717, %v2720
        %vm2722 = vcmp.lt.s32.totalorder %v2721, 0
        %v2723 = vsub.s32 0, %v2721
        %v2724 = vsel %vm2722, %v2723, %v2721
        %v2725 = vclz %v2724
        %v2726 = vsub.s32 %v2725, 2
        %vm2727 = vcmp.gt.s32.totalorder 0, %v2726
        %v2728 = vsel %vm2727, 0, %v2726
        %v2729 = vsub.s32 32, %v2728
        %v2730 = vshll.u32 %v2721, %v2728
        %v2731 = vshrl.u32 %v2713, %v2729
        %v2732 = vor.u32 %v2730, %v2731
        %v2733 = vsub.s32 4294967266, %v2728
        %v2734 = vadd.s32 %v2733, 127
        %v2735 = vshll.u32 %v2734, 23
        %v2736 = vor.u32 4788187, %v2735
        %v2737 = vand.u32 2147483647, %v2736
        %v2739 = vcvt.s32.f32 %v2732
        %v2740 = vmul.f32 %v2739, %v2737
        %v2741 = vxor.u32 %v2740, 2147483648
        %v2742 = vsel %vm2659, %v2741, %v2740
        %v2743 = vsub.s32 4, %v2719
        %v2744 = vsel %vm2659, %v2743, %v2719
        %v2745 = vsel %vm2658, %v899, %v2742
        %v2746 = vsel %vm2658, 0, %v2744
        %v2747 = vcosq.f32.pop %v2745
        %v2748 = vsinq.f32.pop %v2745
        %vm2749 = vweird.f32 %v899
        %v2750 = vadd.s32 %v2746, 3
        %v2751 = vand.u32 %v2750, 3
        %vm2752 = vcmp.lt.s32.totalorder %v2751, 2
        %vm2753 = vcmp.eq.s32.totalorder %v2751, 0
        %v2754 = vxor.u32 %v2748, 2147483648
        %v2755 = vsel %vm2753, %v2747, %v2754
        %vm2756 = vcmp.eq.s32.totalorder %v2751, 2
        %v2757 = vxor.u32 %v2747, 2147483648
        %v2758 = vsel %vm2756, %v2757, %v2748
        %v2759 = vsel %vm2752, %v2755, %v2758
        %v2760 = vsel %vm2749, nan, %v2759
        %v2761 = vand.u32 2147483647, %v900
        %vm2762 = vcmp.le.f32.partialorder %v2761, 0.7853982
        %vm2763 = vcmp.lt.s32.totalorder %v900, 0
        %v2764 = vand.u32 %v900, 2139095040
        %v2765 = vshrl.u32 %v2764, 23
        %v2766 = vsub.s32 %v2765, 127
        %v2767 = vand.u32 2147483647, %v900
        %v2768 = vand.u32 %v2767, 8388607
        %v2769 = vor.u32 %v2768, 8388608
        %v2770 = vsub.s32 0, %v2769
        %v2771 = vadd.s32 %v2766, 1
        %vm2772 = vcmp.gt.s32.totalorder %v2771, 0
        %v2773 = vsel %vm2772, %v2771, 0
        %v2774 = vshrl.u32 %v2773, 5
        %v2775 = vand.u32 %v2773, 31
        %v2776 = vsub.s32 32, %v2775
        %v2777 = vshrl.u32 683565275, %v2776
        %v2778 = vshll.u32 683565275, %v2775
        %v2779 = vshrl.u32 2475754826, %v2776
        %v2780 = vor.u32 %v2778, %v2779
        %v2781 = vshll.u32 2475754826, %v2775
        %v2782 = vshrl.u32 2131351028, %v2776
        %v2783 = vor.u32 %v2781, %v2782
        %v2784 = vshll.u32 2131351028, %v2775
        %v2785 = vshrl.u32 2102212464, %v2776
        %v2786 = vor.u32 %v2784, %v2785
        %v2787 = vshll.u32 2102212464, %v2775
        %v2788 = vshrl.u32 920167782, %v2776
        %v2789 = vor.u32 %v2787, %v2788
        %v2790 = vshll.u32 920167782, %v2775
        %v2791 = vshrl.u32 1326507024, %v2776
        %v2792 = vor.u32 %v2790, %v2791
        %vm2793 = vcmp.lt.s32.totalorder %v2774, 1
        %vm2794 = vcmp.lt.s32.totalorder %v2774, 2
        %vm2795 = vcmp.lt.s32.totalorder %v2774, 3
        %vm2796 = vcmp.lt.s32.totalorder %v2774, 4
        %v2797 = vsel %vm2793, %v2777, %v2780
        %v2798 = vsel %vm2796, %v2786, 2102212464
        %v2799 = vsel %vm2795, %v2783, %v2798
        %v2800 = vsel %vm2794, %v2797, %v2799
        %v2801 = vsel %vm2793, %v2780, %v2783
        %v2802 = vsel %vm2796, %v2789, 920167782
        %v2803 = vsel %vm2795, %v2786, %v2802
        %v2804 = vsel %vm2794, %v2801, %v2803
        %v2805 = vsel %vm2793, %v2783, %v2786
        %v2806 = vsel %vm2796, %v2792, 1326507024
        %v2807 = vsel %vm2795, %v2789, %v2806
        %v2808 = vsel %vm2794, %v2805, %v2807
        %v2809 = vshll.u32 %v2769, 8
        %v2810 = vmul.u32.u64.compose %v2809, %v2808
        %v2811 = vextract.low.u32 %v2810
        %v2812 = vextract.high.u32 %v2810
        %v2813 = vmul.u32.u64.compose %v2809, %v2804
        %v2814 = vextract.low.u32 %v2813
        %v2815 = vextract.high.u32 %v2813
        %v2816 = vmul.u32 %v2809, %v2800
        %v2817 = vadd.s32 %v2812, %v2814
        %vm2818 = vc.u32 %v2812, %v2814
        %v2819 = vadd.s32 %v2815, 1
        %v2820 = vsel %vm2818, %v2819, %v2815
        %v2821 = vadd.s32 %v2816, %v2820
        %v2822 = vadd.s32 %v2821, 536870912
        %v2823 = vshrl.u32 %v2822, 30
        %v2824 = vshll.u32 %v2823, 30
        %v2825 = vsub.s32 %v2821, %v2824
        %vm2826 = vcmp.lt.s32.totalorder %v2825, 0
        %v2827 = vsub.s32 0, %v2825
        %v2828 = vsel %vm2826, %v2827, %v2825
        %v2829 = vclz %v2828
        %v2830 = vsub.s32 %v2829, 2
        %vm2831 = vcmp.gt.s32.totalorder 0, %v2830
        %v2832 = vsel %vm2831, 0, %v2830
        %v2833 = vsub.s32 32, %v2832
        %v2834 = vshll.u32 %v2825, %v2832
        %v2835 = vshrl.u32 %v2817, %v2833
        %v2836 = vor.u32 %v2834, %v2835
        %v2837 = vsub.s32 4294967266, %v2832
        %v2838 = vadd.s32 %v2837, 127
        %v2839 = vshll.u32 %v2838, 23
        %v2840 = vor.u32 4788187, %v2839
        %v2841 = vand.u32 2147483647, %v2840
        %v2843 = vcvt.s32.f32 %v2836
        %v2844 = vmul.f32 %v2843, %v2841
        %v2845 = vxor.u32 %v2844, 2147483648
        %v2846 = vsel %vm2763, %v2845, %v2844
        %v2847 = vsub.s32 4, %v2823
        %v2848 = vsel %vm2763, %v2847, %v2823
        %v2849 = vsel %vm2762, %v900, %v2846
        %v2850 = vsel %vm2762, 0, %v2848
        %v2851 = vcosq.f32.pop %v2849
        %v2852 = vsinq.f32.pop %v2849
        %vm2853 = vweird.f32 %v900
        %v2854 = vadd.s32 %v2850, 3
        %v2855 = vand.u32 %v2854, 3
        %vm2856 = vcmp.lt.s32.totalorder %v2855, 2
        %vm2857 = vcmp.eq.s32.totalorder %v2855, 0
        %v2858 = vxor.u32 %v2852, 2147483648
        %v2859 = vsel %vm2857, %v2851, %v2858
        %vm2860 = vcmp.eq.s32.totalorder %v2855, 2
        %v2861 = vxor.u32 %v2851, 2147483648
        %v2862 = vsel %vm2860, %v2861, %v2852
        %v2863 = vsel %vm2856, %v2859, %v2862
        %v2864 = vsel %vm2853, nan, %v2863
        %v2865 = vand.u32 2147483647, %v901
        %vm2866 = vcmp.le.f32.partialorder %v2865, 0.7853982
        %vm2867 = vcmp.lt.s32.totalorder %v901, 0
        %v2868 = vand.u32 %v901, 2139095040
        %v2869 = vshrl.u32 %v2868, 23
        %v2870 = vsub.s32 %v2869, 127
        %v2871 = vand.u32 2147483647, %v901
        %v2872 = vand.u32 %v2871, 8388607
        %v2873 = vor.u32 %v2872, 8388608
        %v2874 = vsub.s32 0, %v2873
        %v2875 = vadd.s32 %v2870, 1
        %vm2876 = vcmp.gt.s32.totalorder %v2875, 0
        %v2877 = vsel %vm2876, %v2875, 0
        %v2878 = vshrl.u32 %v2877, 5
        %v2879 = vand.u32 %v2877, 31
        %v2880 = vsub.s32 32, %v2879
        %v2881 = vshrl.u32 683565275, %v2880
        %v2882 = vshll.u32 683565275, %v2879
        %v2883 = vshrl.u32 2475754826, %v2880
        %v2884 = vor.u32 %v2882, %v2883
        %v2885 = vshll.u32 2475754826, %v2879
        %v2886 = vshrl.u32 2131351028, %v2880
        %v2887 = vor.u32 %v2885, %v2886
        %v2888 = vshll.u32 2131351028, %v2879
        %v2889 = vshrl.u32 2102212464, %v2880
        %v2890 = vor.u32 %v2888, %v2889
        %v2891 = vshll.u32 2102212464, %v2879
        %v2892 = vshrl.u32 920167782, %v2880
        %v2893 = vor.u32 %v2891, %v2892
        %v2894 = vshll.u32 920167782, %v2879
        %v2895 = vshrl.u32 1326507024, %v2880
        %v2896 = vor.u32 %v2894, %v2895
        %vm2897 = vcmp.lt.s32.totalorder %v2878, 1
        %vm2898 = vcmp.lt.s32.totalorder %v2878, 2
        %vm2899 = vcmp.lt.s32.totalorder %v2878, 3
        %vm2900 = vcmp.lt.s32.totalorder %v2878, 4
        %v2901 = vsel %vm2897, %v2881, %v2884
        %v2902 = vsel %vm2900, %v2890, 2102212464
        %v2903 = vsel %vm2899, %v2887, %v2902
        %v2904 = vsel %vm2898, %v2901, %v2903
        %v2905 = vsel %vm2897, %v2884, %v2887
        %v2906 = vsel %vm2900, %v2893, 920167782
        %v2907 = vsel %vm2899, %v2890, %v2906
        %v2908 = vsel %vm2898, %v2905, %v2907
        %v2909 = vsel %vm2897, %v2887, %v2890
        %v2910 = vsel %vm2900, %v2896, 1326507024
        %v2911 = vsel %vm2899, %v2893, %v2910
        %v2912 = vsel %vm2898, %v2909, %v2911
        %v2913 = vshll.u32 %v2873, 8
        %v2914 = vmul.u32.u64.compose %v2913, %v2912
        %v2915 = vextract.low.u32 %v2914
        %v2916 = vextract.high.u32 %v2914
        %v2917 = vmul.u32.u64.compose %v2913, %v2908
        %v2918 = vextract.low.u32 %v2917
        %v2919 = vextract.high.u32 %v2917
        %v2920 = vmul.u32 %v2913, %v2904
        %v2921 = vadd.s32 %v2916, %v2918
        %vm2922 = vc.u32 %v2916, %v2918
        %v2923 = vadd.s32 %v2919, 1
        %v2924 = vsel %vm2922, %v2923, %v2919
        %v2925 = vadd.s32 %v2920, %v2924
        %v2926 = vadd.s32 %v2925, 536870912
        %v2927 = vshrl.u32 %v2926, 30
        %v2928 = vshll.u32 %v2927, 30
        %v2929 = vsub.s32 %v2925, %v2928
        %vm2930 = vcmp.lt.s32.totalorder %v2929, 0
        %v2931 = vsub.s32 0, %v2929
        %v2932 = vsel %vm2930, %v2931, %v2929
        %v2933 = vclz %v2932
        %v2934 = vsub.s32 %v2933, 2
        %vm2935 = vcmp.gt.s32.totalorder 0, %v2934
        %v2936 = vsel %vm2935, 0, %v2934
        %v2937 = vsub.s32 32, %v2936
        %v2938 = vshll.u32 %v2929, %v2936
        %v2939 = vshrl.u32 %v2921, %v2937
        %v2940 = vor.u32 %v2938, %v2939
        %v2941 = vsub.s32 4294967266, %v2936
        %v2942 = vadd.s32 %v2941, 127
        %v2943 = vshll.u32 %v2942, 23
        %v2944 = vor.u32 4788187, %v2943
        %v2945 = vand.u32 2147483647, %v2944
        %v2947 = vcvt.s32.f32 %v2940
        %v2948 = vmul.f32 %v2947, %v2945
        %v2949 = vxor.u32 %v2948, 2147483648
        %v2950 = vsel %vm2867, %v2949, %v2948
        %v2951 = vsub.s32 4, %v2927
        %v2952 = vsel %vm2867, %v2951, %v2927
        %v2953 = vsel %vm2866, %v901, %v2950
        %v2954 = vsel %vm2866, 0, %v2952
        %v2955 = vcosq.f32.pop %v2953
        %v2956 = vsinq.f32.pop %v2953
        %vm2957 = vweird.f32 %v901
        %v2958 = vadd.s32 %v2954, 3
        %v2959 = vand.u32 %v2958, 3
        %vm2960 = vcmp.lt.s32.totalorder %v2959, 2
        %vm2961 = vcmp.eq.s32.totalorder %v2959, 0
        %v2962 = vxor.u32 %v2956, 2147483648
        %v2963 = vsel %vm2961, %v2955, %v2962
        %vm2964 = vcmp.eq.s32.totalorder %v2959, 2
        %v2965 = vxor.u32 %v2955, 2147483648
        %v2966 = vsel %vm2964, %v2965, %v2956
        %v2967 = vsel %vm2960, %v2963, %v2966
        %v2968 = vsel %vm2957, nan, %v2967
        %v2969 = vand.u32 2147483647, %v902
        %vm2970 = vcmp.le.f32.partialorder %v2969, 0.7853982
        %vm2971 = vcmp.lt.s32.totalorder %v902, 0
        %v2972 = vand.u32 %v902, 2139095040
        %v2973 = vshrl.u32 %v2972, 23
        %v2974 = vsub.s32 %v2973, 127
        %v2975 = vand.u32 2147483647, %v902
        %v2976 = vand.u32 %v2975, 8388607
        %v2977 = vor.u32 %v2976, 8388608
        %v2978 = vsub.s32 0, %v2977
        %v2979 = vadd.s32 %v2974, 1
        %vm2980 = vcmp.gt.s32.totalorder %v2979, 0
        %v2981 = vsel %vm2980, %v2979, 0
        %v2982 = vshrl.u32 %v2981, 5
        %v2983 = vand.u32 %v2981, 31
        %v2984 = vsub.s32 32, %v2983
        %v2985 = vshrl.u32 683565275, %v2984
        %v2986 = vshll.u32 683565275, %v2983
        %v2987 = vshrl.u32 2475754826, %v2984
        %v2988 = vor.u32 %v2986, %v2987
        %v2989 = vshll.u32 2475754826, %v2983
        %v2990 = vshrl.u32 2131351028, %v2984
        %v2991 = vor.u32 %v2989, %v2990
        %v2992 = vshll.u32 2131351028, %v2983
        %v2993 = vshrl.u32 2102212464, %v2984
        %v2994 = vor.u32 %v2992, %v2993
        %v2995 = vshll.u32 2102212464, %v2983
        %v2996 = vshrl.u32 920167782, %v2984
        %v2997 = vor.u32 %v2995, %v2996
        %v2998 = vshll.u32 920167782, %v2983
        %v2999 = vshrl.u32 1326507024, %v2984
        %v3000 = vor.u32 %v2998, %v2999
        %vm3001 = vcmp.lt.s32.totalorder %v2982, 1
        %vm3002 = vcmp.lt.s32.totalorder %v2982, 2
        %vm3003 = vcmp.lt.s32.totalorder %v2982, 3
        %vm3004 = vcmp.lt.s32.totalorder %v2982, 4
        %v3005 = vsel %vm3001, %v2985, %v2988
        %v3006 = vsel %vm3004, %v2994, 2102212464
        %v3007 = vsel %vm3003, %v2991, %v3006
        %v3008 = vsel %vm3002, %v3005, %v3007
        %v3009 = vsel %vm3001, %v2988, %v2991
        %v3010 = vsel %vm3004, %v2997, 920167782
        %v3011 = vsel %vm3003, %v2994, %v3010
        %v3012 = vsel %vm3002, %v3009, %v3011
        %v3013 = vsel %vm3001, %v2991, %v2994
        %v3014 = vsel %vm3004, %v3000, 1326507024
        %v3015 = vsel %vm3003, %v2997, %v3014
        %v3016 = vsel %vm3002, %v3013, %v3015
        %v3017 = vshll.u32 %v2977, 8
        %v3018 = vmul.u32.u64.compose %v3017, %v3016
        %v3019 = vextract.low.u32 %v3018
        %v3020 = vextract.high.u32 %v3018
        %v3021 = vmul.u32.u64.compose %v3017, %v3012
        %v3022 = vextract.low.u32 %v3021
        %v3023 = vextract.high.u32 %v3021
        %v3024 = vmul.u32 %v3017, %v3008
        %v3025 = vadd.s32 %v3020, %v3022
        %vm3026 = vc.u32 %v3020, %v3022
        %v3027 = vadd.s32 %v3023, 1
        %v3028 = vsel %vm3026, %v3027, %v3023
        %v3029 = vadd.s32 %v3024, %v3028
        %v3030 = vadd.s32 %v3029, 536870912
        %v3031 = vshrl.u32 %v3030, 30
        %v3032 = vshll.u32 %v3031, 30
        %v3033 = vsub.s32 %v3029, %v3032
        %vm3034 = vcmp.lt.s32.totalorder %v3033, 0
        %v3035 = vsub.s32 0, %v3033
        %v3036 = vsel %vm3034, %v3035, %v3033
        %v3037 = vclz %v3036
        %v3038 = vsub.s32 %v3037, 2
        %vm3039 = vcmp.gt.s32.totalorder 0, %v3038
        %v3040 = vsel %vm3039, 0, %v3038
        %v3041 = vsub.s32 32, %v3040
        %v3042 = vshll.u32 %v3033, %v3040
        %v3043 = vshrl.u32 %v3025, %v3041
        %v3044 = vor.u32 %v3042, %v3043
        %v3045 = vsub.s32 4294967266, %v3040
        %v3046 = vadd.s32 %v3045, 127
        %v3047 = vshll.u32 %v3046, 23
        %v3048 = vor.u32 4788187, %v3047
        %v3049 = vand.u32 2147483647, %v3048
        %v3051 = vcvt.s32.f32 %v3044
        %v3052 = vmul.f32 %v3051, %v3049
        %v3053 = vxor.u32 %v3052, 2147483648
        %v3054 = vsel %vm2971, %v3053, %v3052
        %v3055 = vsub.s32 4, %v3031
        %v3056 = vsel %vm2971, %v3055, %v3031
        %v3057 = vsel %vm2970, %v902, %v3054
        %v3058 = vsel %vm2970, 0, %v3056
        %v3059 = vcosq.f32.pop %v3057
        %v3060 = vsinq.f32.pop %v3057
        %vm3061 = vweird.f32 %v902
        %v3062 = vadd.s32 %v3058, 3
        %v3063 = vand.u32 %v3062, 3
        %vm3064 = vcmp.lt.s32.totalorder %v3063, 2
        %vm3065 = vcmp.eq.s32.totalorder %v3063, 0
        %v3066 = vxor.u32 %v3060, 2147483648
        %v3067 = vsel %vm3065, %v3059, %v3066
        %vm3068 = vcmp.eq.s32.totalorder %v3063, 2
        %v3069 = vxor.u32 %v3059, 2147483648
        %v3070 = vsel %vm3068, %v3069, %v3060
        %v3071 = vsel %vm3064, %v3067, %v3070
        %v3072 = vsel %vm3061, nan, %v3071
        %v3073 = vand.u32 2147483647, %v903
        %vm3074 = vcmp.le.f32.partialorder %v3073, 0.7853982
        %vm3075 = vcmp.lt.s32.totalorder %v903, 0
        %v3076 = vand.u32 %v903, 2139095040
        %v3077 = vshrl.u32 %v3076, 23
        %v3078 = vsub.s32 %v3077, 127
        %v3079 = vand.u32 2147483647, %v903
        %v3080 = vand.u32 %v3079, 8388607
        %v3081 = vor.u32 %v3080, 8388608
        %v3082 = vsub.s32 0, %v3081
        %v3083 = vadd.s32 %v3078, 1
        %vm3084 = vcmp.gt.s32.totalorder %v3083, 0
        %v3085 = vsel %vm3084, %v3083, 0
        %v3086 = vshrl.u32 %v3085, 5
        %v3087 = vand.u32 %v3085, 31
        %v3088 = vsub.s32 32, %v3087
        %v3089 = vshrl.u32 683565275, %v3088
        %v3090 = vshll.u32 683565275, %v3087
        %v3091 = vshrl.u32 2475754826, %v3088
        %v3092 = vor.u32 %v3090, %v3091
        %v3093 = vshll.u32 2475754826, %v3087
        %v3094 = vshrl.u32 2131351028, %v3088
        %v3095 = vor.u32 %v3093, %v3094
        %v3096 = vshll.u32 2131351028, %v3087
        %v3097 = vshrl.u32 2102212464, %v3088
        %v3098 = vor.u32 %v3096, %v3097
        %v3099 = vshll.u32 2102212464, %v3087
        %v3100 = vshrl.u32 920167782, %v3088
        %v3101 = vor.u32 %v3099, %v3100
        %v3102 = vshll.u32 920167782, %v3087
        %v3103 = vshrl.u32 1326507024, %v3088
        %v3104 = vor.u32 %v3102, %v3103
        %vm3105 = vcmp.lt.s32.totalorder %v3086, 1
        %vm3106 = vcmp.lt.s32.totalorder %v3086, 2
        %vm3107 = vcmp.lt.s32.totalorder %v3086, 3
        %vm3108 = vcmp.lt.s32.totalorder %v3086, 4
        %v3109 = vsel %vm3105, %v3089, %v3092
        %v3110 = vsel %vm3108, %v3098, 2102212464
        %v3111 = vsel %vm3107, %v3095, %v3110
        %v3112 = vsel %vm3106, %v3109, %v3111
        %v3113 = vsel %vm3105, %v3092, %v3095
        %v3114 = vsel %vm3108, %v3101, 920167782
        %v3115 = vsel %vm3107, %v3098, %v3114
        %v3116 = vsel %vm3106, %v3113, %v3115
        %v3117 = vsel %vm3105, %v3095, %v3098
        %v3118 = vsel %vm3108, %v3104, 1326507024
        %v3119 = vsel %vm3107, %v3101, %v3118
        %v3120 = vsel %vm3106, %v3117, %v3119
        %v3121 = vshll.u32 %v3081, 8
        %v3122 = vmul.u32.u64.compose %v3121, %v3120
        %v3123 = vextract.low.u32 %v3122
        %v3124 = vextract.high.u32 %v3122
        %v3125 = vmul.u32.u64.compose %v3121, %v3116
        %v3126 = vextract.low.u32 %v3125
        %v3127 = vextract.high.u32 %v3125
        %v3128 = vmul.u32 %v3121, %v3112
        %v3129 = vadd.s32 %v3124, %v3126
        %vm3130 = vc.u32 %v3124, %v3126
        %v3131 = vadd.s32 %v3127, 1
        %v3132 = vsel %vm3130, %v3131, %v3127
        %v3133 = vadd.s32 %v3128, %v3132
        %v3134 = vadd.s32 %v3133, 536870912
        %v3135 = vshrl.u32 %v3134, 30
        %v3136 = vshll.u32 %v3135, 30
        %v3137 = vsub.s32 %v3133, %v3136
        %vm3138 = vcmp.lt.s32.totalorder %v3137, 0
        %v3139 = vsub.s32 0, %v3137
        %v3140 = vsel %vm3138, %v3139, %v3137
        %v3141 = vclz %v3140
        %v3142 = vsub.s32 %v3141, 2
        %vm3143 = vcmp.gt.s32.totalorder 0, %v3142
        %v3144 = vsel %vm3143, 0, %v3142
        %v3145 = vsub.s32 32, %v3144
        %v3146 = vshll.u32 %v3137, %v3144
        %v3147 = vshrl.u32 %v3129, %v3145
        %v3148 = vor.u32 %v3146, %v3147
        %v3149 = vsub.s32 4294967266, %v3144
        %v3150 = vadd.s32 %v3149, 127
        %v3151 = vshll.u32 %v3150, 23
        %v3152 = vor.u32 4788187, %v3151
        %v3153 = vand.u32 2147483647, %v3152
        %v3155 = vcvt.s32.f32 %v3148
        %v3156 = vmul.f32 %v3155, %v3153
        %v3157 = vxor.u32 %v3156, 2147483648
        %v3158 = vsel %vm3075, %v3157, %v3156
        %v3159 = vsub.s32 4, %v3135
        %v3160 = vsel %vm3075, %v3159, %v3135
        %v3161 = vsel %vm3074, %v903, %v3158
        %v3162 = vsel %vm3074, 0, %v3160
        %v3163 = vcosq.f32.pop %v3161
        %v3164 = vsinq.f32.pop %v3161
        %vm3165 = vweird.f32 %v903
        %v3166 = vadd.s32 %v3162, 3
        %v3167 = vand.u32 %v3166, 3
        %vm3168 = vcmp.lt.s32.totalorder %v3167, 2
        %vm3169 = vcmp.eq.s32.totalorder %v3167, 0
        %v3170 = vxor.u32 %v3164, 2147483648
        %v3171 = vsel %vm3169, %v3163, %v3170
        %vm3172 = vcmp.eq.s32.totalorder %v3167, 2
        %v3173 = vxor.u32 %v3163, 2147483648
        %v3174 = vsel %vm3172, %v3173, %v3164
        %v3175 = vsel %vm3168, %v3171, %v3174
        %v3176 = vsel %vm3165, nan, %v3175
        %v3177 = vand.u32 2147483647, %v904
        %vm3178 = vcmp.le.f32.partialorder %v3177, 0.7853982
        %vm3179 = vcmp.lt.s32.totalorder %v904, 0
        %v3180 = vand.u32 %v904, 2139095040
        %v3181 = vshrl.u32 %v3180, 23
        %v3182 = vsub.s32 %v3181, 127
        %v3183 = vand.u32 2147483647, %v904
        %v3184 = vand.u32 %v3183, 8388607
        %v3185 = vor.u32 %v3184, 8388608
        %v3186 = vsub.s32 0, %v3185
        %v3187 = vadd.s32 %v3182, 1
        %vm3188 = vcmp.gt.s32.totalorder %v3187, 0
        %v3189 = vsel %vm3188, %v3187, 0
        %v3190 = vshrl.u32 %v3189, 5
        %v3191 = vand.u32 %v3189, 31
        %v3192 = vsub.s32 32, %v3191
        %v3193 = vshrl.u32 683565275, %v3192
        %v3194 = vshll.u32 683565275, %v3191
        %v3195 = vshrl.u32 2475754826, %v3192
        %v3196 = vor.u32 %v3194, %v3195
        %v3197 = vshll.u32 2475754826, %v3191
        %v3198 = vshrl.u32 2131351028, %v3192
        %v3199 = vor.u32 %v3197, %v3198
        %v3200 = vshll.u32 2131351028, %v3191
        %v3201 = vshrl.u32 2102212464, %v3192
        %v3202 = vor.u32 %v3200, %v3201
        %v3203 = vshll.u32 2102212464, %v3191
        %v3204 = vshrl.u32 920167782, %v3192
        %v3205 = vor.u32 %v3203, %v3204
        %v3206 = vshll.u32 920167782, %v3191
        %v3207 = vshrl.u32 1326507024, %v3192
        %v3208 = vor.u32 %v3206, %v3207
        %vm3209 = vcmp.lt.s32.totalorder %v3190, 1
        %vm3210 = vcmp.lt.s32.totalorder %v3190, 2
        %vm3211 = vcmp.lt.s32.totalorder %v3190, 3
        %vm3212 = vcmp.lt.s32.totalorder %v3190, 4
        %v3213 = vsel %vm3209, %v3193, %v3196
        %v3214 = vsel %vm3212, %v3202, 2102212464
        %v3215 = vsel %vm3211, %v3199, %v3214
        %v3216 = vsel %vm3210, %v3213, %v3215
        %v3217 = vsel %vm3209, %v3196, %v3199
        %v3218 = vsel %vm3212, %v3205, 920167782
        %v3219 = vsel %vm3211, %v3202, %v3218
        %v3220 = vsel %vm3210, %v3217, %v3219
        %v3221 = vsel %vm3209, %v3199, %v3202
        %v3222 = vsel %vm3212, %v3208, 1326507024
        %v3223 = vsel %vm3211, %v3205, %v3222
        %v3224 = vsel %vm3210, %v3221, %v3223
        %v3225 = vshll.u32 %v3185, 8
        %v3226 = vmul.u32.u64.compose %v3225, %v3224
        %v3227 = vextract.low.u32 %v3226
        %v3228 = vextract.high.u32 %v3226
        %v3229 = vmul.u32.u64.compose %v3225, %v3220
        %v3230 = vextract.low.u32 %v3229
        %v3231 = vextract.high.u32 %v3229
        %v3232 = vmul.u32 %v3225, %v3216
        %v3233 = vadd.s32 %v3228, %v3230
        %vm3234 = vc.u32 %v3228, %v3230
        %v3235 = vadd.s32 %v3231, 1
        %v3236 = vsel %vm3234, %v3235, %v3231
        %v3237 = vadd.s32 %v3232, %v3236
        %v3238 = vadd.s32 %v3237, 536870912
        %v3239 = vshrl.u32 %v3238, 30
        %v3240 = vshll.u32 %v3239, 30
        %v3241 = vsub.s32 %v3237, %v3240
        %vm3242 = vcmp.lt.s32.totalorder %v3241, 0
        %v3243 = vsub.s32 0, %v3241
        %v3244 = vsel %vm3242, %v3243, %v3241
        %v3245 = vclz %v3244
        %v3246 = vsub.s32 %v3245, 2
        %vm3247 = vcmp.gt.s32.totalorder 0, %v3246
        %v3248 = vsel %vm3247, 0, %v3246
        %v3249 = vsub.s32 32, %v3248
        %v3250 = vshll.u32 %v3241, %v3248
        %v3251 = vshrl.u32 %v3233, %v3249
        %v3252 = vor.u32 %v3250, %v3251
        %v3253 = vsub.s32 4294967266, %v3248
        %v3254 = vadd.s32 %v3253, 127
        %v3255 = vshll.u32 %v3254, 23
        %v3256 = vor.u32 4788187, %v3255
        %v3257 = vand.u32 2147483647, %v3256
        %v3259 = vcvt.s32.f32 %v3252
        %v3260 = vmul.f32 %v3259, %v3257
        %v3261 = vxor.u32 %v3260, 2147483648
        %v3262 = vsel %vm3179, %v3261, %v3260
        %v3263 = vsub.s32 4, %v3239
        %v3264 = vsel %vm3179, %v3263, %v3239
        %v3265 = vsel %vm3178, %v904, %v3262
        %v3266 = vsel %vm3178, 0, %v3264
        %v3267 = vcosq.f32.pop %v3265
        %v3268 = vsinq.f32.pop %v3265
        %vm3269 = vweird.f32 %v904
        %v3270 = vadd.s32 %v3266, 3
        %v3271 = vand.u32 %v3270, 3
        %vm3272 = vcmp.lt.s32.totalorder %v3271, 2
        %vm3273 = vcmp.eq.s32.totalorder %v3271, 0
        %v3274 = vxor.u32 %v3268, 2147483648
        %v3275 = vsel %vm3273, %v3267, %v3274
        %vm3276 = vcmp.eq.s32.totalorder %v3271, 2
        %v3277 = vxor.u32 %v3267, 2147483648
        %v3278 = vsel %vm3276, %v3277, %v3268
        %v3279 = vsel %vm3272, %v3275, %v3278
        %v3280 = vsel %vm3269, nan, %v3279
        %v3281 = vand.u32 2147483647, %v905
        %vm3282 = vcmp.le.f32.partialorder %v3281, 0.7853982
        %vm3283 = vcmp.lt.s32.totalorder %v905, 0
        %v3284 = vand.u32 %v905, 2139095040
        %v3285 = vshrl.u32 %v3284, 23
        %v3286 = vsub.s32 %v3285, 127
        %v3287 = vand.u32 2147483647, %v905
        %v3288 = vand.u32 %v3287, 8388607
        %v3289 = vor.u32 %v3288, 8388608
        %v3290 = vsub.s32 0, %v3289
        %v3291 = vadd.s32 %v3286, 1
        %vm3292 = vcmp.gt.s32.totalorder %v3291, 0
        %v3293 = vsel %vm3292, %v3291, 0
        %v3294 = vshrl.u32 %v3293, 5
        %v3295 = vand.u32 %v3293, 31
        %v3296 = vsub.s32 32, %v3295
        %v3297 = vshrl.u32 683565275, %v3296
        %v3298 = vshll.u32 683565275, %v3295
        %v3299 = vshrl.u32 2475754826, %v3296
        %v3300 = vor.u32 %v3298, %v3299
        %v3301 = vshll.u32 2475754826, %v3295
        %v3302 = vshrl.u32 2131351028, %v3296
        %v3303 = vor.u32 %v3301, %v3302
        %v3304 = vshll.u32 2131351028, %v3295
        %v3305 = vshrl.u32 2102212464, %v3296
        %v3306 = vor.u32 %v3304, %v3305
        %v3307 = vshll.u32 2102212464, %v3295
        %v3308 = vshrl.u32 920167782, %v3296
        %v3309 = vor.u32 %v3307, %v3308
        %v3310 = vshll.u32 920167782, %v3295
        %v3311 = vshrl.u32 1326507024, %v3296
        %v3312 = vor.u32 %v3310, %v3311
        %vm3313 = vcmp.lt.s32.totalorder %v3294, 1
        %vm3314 = vcmp.lt.s32.totalorder %v3294, 2
        %vm3315 = vcmp.lt.s32.totalorder %v3294, 3
        %vm3316 = vcmp.lt.s32.totalorder %v3294, 4
        %v3317 = vsel %vm3313, %v3297, %v3300
        %v3318 = vsel %vm3316, %v3306, 2102212464
        %v3319 = vsel %vm3315, %v3303, %v3318
        %v3320 = vsel %vm3314, %v3317, %v3319
        %v3321 = vsel %vm3313, %v3300, %v3303
        %v3322 = vsel %vm3316, %v3309, 920167782
        %v3323 = vsel %vm3315, %v3306, %v3322
        %v3324 = vsel %vm3314, %v3321, %v3323
        %v3325 = vsel %vm3313, %v3303, %v3306
        %v3326 = vsel %vm3316, %v3312, 1326507024
        %v3327 = vsel %vm3315, %v3309, %v3326
        %v3328 = vsel %vm3314, %v3325, %v3327
        %v3329 = vshll.u32 %v3289, 8
        %v3330 = vmul.u32.u64.compose %v3329, %v3328
        %v3331 = vextract.low.u32 %v3330
        %v3332 = vextract.high.u32 %v3330
        %v3333 = vmul.u32.u64.compose %v3329, %v3324
        %v3334 = vextract.low.u32 %v3333
        %v3335 = vextract.high.u32 %v3333
        %v3336 = vmul.u32 %v3329, %v3320
        %v3337 = vadd.s32 %v3332, %v3334
        %vm3338 = vc.u32 %v3332, %v3334
        %v3339 = vadd.s32 %v3335, 1
        %v3340 = vsel %vm3338, %v3339, %v3335
        %v3341 = vadd.s32 %v3336, %v3340
        %v3342 = vadd.s32 %v3341, 536870912
        %v3343 = vshrl.u32 %v3342, 30
        %v3344 = vshll.u32 %v3343, 30
        %v3345 = vsub.s32 %v3341, %v3344
        %vm3346 = vcmp.lt.s32.totalorder %v3345, 0
        %v3347 = vsub.s32 0, %v3345
        %v3348 = vsel %vm3346, %v3347, %v3345
        %v3349 = vclz %v3348
        %v3350 = vsub.s32 %v3349, 2
        %vm3351 = vcmp.gt.s32.totalorder 0, %v3350
        %v3352 = vsel %vm3351, 0, %v3350
        %v3353 = vsub.s32 32, %v3352
        %v3354 = vshll.u32 %v3345, %v3352
        %v3355 = vshrl.u32 %v3337, %v3353
        %v3356 = vor.u32 %v3354, %v3355
        %v3357 = vsub.s32 4294967266, %v3352
        %v3358 = vadd.s32 %v3357, 127
        %v3359 = vshll.u32 %v3358, 23
        %v3360 = vor.u32 4788187, %v3359
        %v3361 = vand.u32 2147483647, %v3360
        %v3363 = vcvt.s32.f32 %v3356
        %v3364 = vmul.f32 %v3363, %v3361
        %v3365 = vxor.u32 %v3364, 2147483648
        %v3366 = vsel %vm3283, %v3365, %v3364
        %v3367 = vsub.s32 4, %v3343
        %v3368 = vsel %vm3283, %v3367, %v3343
        %v3369 = vsel %vm3282, %v905, %v3366
        %v3370 = vsel %vm3282, 0, %v3368
        %v3371 = vcosq.f32.pop %v3369
        %v3372 = vsinq.f32.pop %v3369
        %vm3373 = vweird.f32 %v905
        %v3374 = vadd.s32 %v3370, 3
        %v3375 = vand.u32 %v3374, 3
        %vm3376 = vcmp.lt.s32.totalorder %v3375, 2
        %vm3377 = vcmp.eq.s32.totalorder %v3375, 0
        %v3378 = vxor.u32 %v3372, 2147483648
        %v3379 = vsel %vm3377, %v3371, %v3378
        %vm3380 = vcmp.eq.s32.totalorder %v3375, 2
        %v3381 = vxor.u32 %v3371, 2147483648
        %v3382 = vsel %vm3380, %v3381, %v3372
        %v3383 = vsel %vm3376, %v3379, %v3382
        %v3384 = vsel %vm3373, nan, %v3383
        %v3385 = vand.u32 2147483647, %v906
        %vm3386 = vcmp.le.f32.partialorder %v3385, 0.7853982
        %vm3387 = vcmp.lt.s32.totalorder %v906, 0
        %v3388 = vand.u32 %v906, 2139095040
        %v3389 = vshrl.u32 %v3388, 23
        %v3390 = vsub.s32 %v3389, 127
        %v3391 = vand.u32 2147483647, %v906
        %v3392 = vand.u32 %v3391, 8388607
        %v3393 = vor.u32 %v3392, 8388608
        %v3394 = vsub.s32 0, %v3393
        %v3395 = vadd.s32 %v3390, 1
        %vm3396 = vcmp.gt.s32.totalorder %v3395, 0
        %v3397 = vsel %vm3396, %v3395, 0
        %v3398 = vshrl.u32 %v3397, 5
        %v3399 = vand.u32 %v3397, 31
        %v3400 = vsub.s32 32, %v3399
        %v3401 = vshrl.u32 683565275, %v3400
        %v3402 = vshll.u32 683565275, %v3399
        %v3403 = vshrl.u32 2475754826, %v3400
        %v3404 = vor.u32 %v3402, %v3403
        %v3405 = vshll.u32 2475754826, %v3399
        %v3406 = vshrl.u32 2131351028, %v3400
        %v3407 = vor.u32 %v3405, %v3406
        %v3408 = vshll.u32 2131351028, %v3399
        %v3409 = vshrl.u32 2102212464, %v3400
        %v3410 = vor.u32 %v3408, %v3409
        %v3411 = vshll.u32 2102212464, %v3399
        %v3412 = vshrl.u32 920167782, %v3400
        %v3413 = vor.u32 %v3411, %v3412
        %v3414 = vshll.u32 920167782, %v3399
        %v3415 = vshrl.u32 1326507024, %v3400
        %v3416 = vor.u32 %v3414, %v3415
        %vm3417 = vcmp.lt.s32.totalorder %v3398, 1
        %vm3418 = vcmp.lt.s32.totalorder %v3398, 2
        %vm3419 = vcmp.lt.s32.totalorder %v3398, 3
        %vm3420 = vcmp.lt.s32.totalorder %v3398, 4
        %v3421 = vsel %vm3417, %v3401, %v3404
        %v3422 = vsel %vm3420, %v3410, 2102212464
        %v3423 = vsel %vm3419, %v3407, %v3422
        %v3424 = vsel %vm3418, %v3421, %v3423
        %v3425 = vsel %vm3417, %v3404, %v3407
        %v3426 = vsel %vm3420, %v3413, 920167782
        %v3427 = vsel %vm3419, %v3410, %v3426
        %v3428 = vsel %vm3418, %v3425, %v3427
        %v3429 = vsel %vm3417, %v3407, %v3410
        %v3430 = vsel %vm3420, %v3416, 1326507024
        %v3431 = vsel %vm3419, %v3413, %v3430
        %v3432 = vsel %vm3418, %v3429, %v3431
        %v3433 = vshll.u32 %v3393, 8
        %v3434 = vmul.u32.u64.compose %v3433, %v3432
        %v3435 = vextract.low.u32 %v3434
        %v3436 = vextract.high.u32 %v3434
        %v3437 = vmul.u32.u64.compose %v3433, %v3428
        %v3438 = vextract.low.u32 %v3437
        %v3439 = vextract.high.u32 %v3437
        %v3440 = vmul.u32 %v3433, %v3424
        %v3441 = vadd.s32 %v3436, %v3438
        %vm3442 = vc.u32 %v3436, %v3438
        %v3443 = vadd.s32 %v3439, 1
        %v3444 = vsel %vm3442, %v3443, %v3439
        %v3445 = vadd.s32 %v3440, %v3444
        %v3446 = vadd.s32 %v3445, 536870912
        %v3447 = vshrl.u32 %v3446, 30
        %v3448 = vshll.u32 %v3447, 30
        %v3449 = vsub.s32 %v3445, %v3448
        %vm3450 = vcmp.lt.s32.totalorder %v3449, 0
        %v3451 = vsub.s32 0, %v3449
        %v3452 = vsel %vm3450, %v3451, %v3449
        %v3453 = vclz %v3452
        %v3454 = vsub.s32 %v3453, 2
        %vm3455 = vcmp.gt.s32.totalorder 0, %v3454
        %v3456 = vsel %vm3455, 0, %v3454
        %v3457 = vsub.s32 32, %v3456
        %v3458 = vshll.u32 %v3449, %v3456
        %v3459 = vshrl.u32 %v3441, %v3457
        %v3460 = vor.u32 %v3458, %v3459
        %v3461 = vsub.s32 4294967266, %v3456
        %v3462 = vadd.s32 %v3461, 127
        %v3463 = vshll.u32 %v3462, 23
        %v3464 = vor.u32 4788187, %v3463
        %v3465 = vand.u32 2147483647, %v3464
        %v3467 = vcvt.s32.f32 %v3460
        %v3468 = vmul.f32 %v3467, %v3465
        %v3469 = vxor.u32 %v3468, 2147483648
        %v3470 = vsel %vm3387, %v3469, %v3468
        %v3471 = vsub.s32 4, %v3447
        %v3472 = vsel %vm3387, %v3471, %v3447
        %v3473 = vsel %vm3386, %v906, %v3470
        %v3474 = vsel %vm3386, 0, %v3472
        %v3475 = vcosq.f32.pop %v3473
        %v3476 = vsinq.f32.pop %v3473
        %vm3477 = vweird.f32 %v906
        %v3478 = vadd.s32 %v3474, 3
        %v3479 = vand.u32 %v3478, 3
        %vm3480 = vcmp.lt.s32.totalorder %v3479, 2
        %vm3481 = vcmp.eq.s32.totalorder %v3479, 0
        %v3482 = vxor.u32 %v3476, 2147483648
        %v3483 = vsel %vm3481, %v3475, %v3482
        %vm3484 = vcmp.eq.s32.totalorder %v3479, 2
        %v3485 = vxor.u32 %v3475, 2147483648
        %v3486 = vsel %vm3484, %v3485, %v3476
        %v3487 = vsel %vm3480, %v3483, %v3486
        %v3488 = vsel %vm3477, nan, %v3487
        %v3489 = vand.u32 2147483647, %v907
        %vm3490 = vcmp.le.f32.partialorder %v3489, 0.7853982
        %vm3491 = vcmp.lt.s32.totalorder %v907, 0
        %v3492 = vand.u32 %v907, 2139095040
        %v3493 = vshrl.u32 %v3492, 23
        %v3494 = vsub.s32 %v3493, 127
        %v3495 = vand.u32 2147483647, %v907
        %v3496 = vand.u32 %v3495, 8388607
        %v3497 = vor.u32 %v3496, 8388608
        %v3498 = vsub.s32 0, %v3497
        %v3499 = vadd.s32 %v3494, 1
        %vm3500 = vcmp.gt.s32.totalorder %v3499, 0
        %v3501 = vsel %vm3500, %v3499, 0
        %v3502 = vshrl.u32 %v3501, 5
        %v3503 = vand.u32 %v3501, 31
        %v3504 = vsub.s32 32, %v3503
        %v3505 = vshrl.u32 683565275, %v3504
        %v3506 = vshll.u32 683565275, %v3503
        %v3507 = vshrl.u32 2475754826, %v3504
        %v3508 = vor.u32 %v3506, %v3507
        %v3509 = vshll.u32 2475754826, %v3503
        %v3510 = vshrl.u32 2131351028, %v3504
        %v3511 = vor.u32 %v3509, %v3510
        %v3512 = vshll.u32 2131351028, %v3503
        %v3513 = vshrl.u32 2102212464, %v3504
        %v3514 = vor.u32 %v3512, %v3513
        %v3515 = vshll.u32 2102212464, %v3503
        %v3516 = vshrl.u32 920167782, %v3504
        %v3517 = vor.u32 %v3515, %v3516
        %v3518 = vshll.u32 920167782, %v3503
        %v3519 = vshrl.u32 1326507024, %v3504
        %v3520 = vor.u32 %v3518, %v3519
        %vm3521 = vcmp.lt.s32.totalorder %v3502, 1
        %vm3522 = vcmp.lt.s32.totalorder %v3502, 2
        %vm3523 = vcmp.lt.s32.totalorder %v3502, 3
        %vm3524 = vcmp.lt.s32.totalorder %v3502, 4
        %v3525 = vsel %vm3521, %v3505, %v3508
        %v3526 = vsel %vm3524, %v3514, 2102212464
        %v3527 = vsel %vm3523, %v3511, %v3526
        %v3528 = vsel %vm3522, %v3525, %v3527
        %v3529 = vsel %vm3521, %v3508, %v3511
        %v3530 = vsel %vm3524, %v3517, 920167782
        %v3531 = vsel %vm3523, %v3514, %v3530
        %v3532 = vsel %vm3522, %v3529, %v3531
        %v3533 = vsel %vm3521, %v3511, %v3514
        %v3534 = vsel %vm3524, %v3520, 1326507024
        %v3535 = vsel %vm3523, %v3517, %v3534
        %v3536 = vsel %vm3522, %v3533, %v3535
        %v3537 = vshll.u32 %v3497, 8
        %v3538 = vmul.u32.u64.compose %v3537, %v3536
        %v3539 = vextract.low.u32 %v3538
        %v3540 = vextract.high.u32 %v3538
        %v3541 = vmul.u32.u64.compose %v3537, %v3532
        %v3542 = vextract.low.u32 %v3541
        %v3543 = vextract.high.u32 %v3541
        %v3544 = vmul.u32 %v3537, %v3528
        %v3545 = vadd.s32 %v3540, %v3542
        %vm3546 = vc.u32 %v3540, %v3542
        %v3547 = vadd.s32 %v3543, 1
        %v3548 = vsel %vm3546, %v3547, %v3543
        %v3549 = vadd.s32 %v3544, %v3548
        %v3550 = vadd.s32 %v3549, 536870912
        %v3551 = vshrl.u32 %v3550, 30
        %v3552 = vshll.u32 %v3551, 30
        %v3553 = vsub.s32 %v3549, %v3552
        %vm3554 = vcmp.lt.s32.totalorder %v3553, 0
        %v3555 = vsub.s32 0, %v3553
        %v3556 = vsel %vm3554, %v3555, %v3553
        %v3557 = vclz %v3556
        %v3558 = vsub.s32 %v3557, 2
        %vm3559 = vcmp.gt.s32.totalorder 0, %v3558
        %v3560 = vsel %vm3559, 0, %v3558
        %v3561 = vsub.s32 32, %v3560
        %v3562 = vshll.u32 %v3553, %v3560
        %v3563 = vshrl.u32 %v3545, %v3561
        %v3564 = vor.u32 %v3562, %v3563
        %v3565 = vsub.s32 4294967266, %v3560
        %v3566 = vadd.s32 %v3565, 127
        %v3567 = vshll.u32 %v3566, 23
        %v3568 = vor.u32 4788187, %v3567
        %v3569 = vand.u32 2147483647, %v3568
        %v3571 = vcvt.s32.f32 %v3564
        %v3572 = vmul.f32 %v3571, %v3569
        %v3573 = vxor.u32 %v3572, 2147483648
        %v3574 = vsel %vm3491, %v3573, %v3572
        %v3575 = vsub.s32 4, %v3551
        %v3576 = vsel %vm3491, %v3575, %v3551
        %v3577 = vsel %vm3490, %v907, %v3574
        %v3578 = vsel %vm3490, 0, %v3576
        %v3579 = vcosq.f32.pop %v3577
        %v3580 = vsinq.f32.pop %v3577
        %vm3581 = vweird.f32 %v907
        %v3582 = vadd.s32 %v3578, 3
        %v3583 = vand.u32 %v3582, 3
        %vm3584 = vcmp.lt.s32.totalorder %v3583, 2
        %vm3585 = vcmp.eq.s32.totalorder %v3583, 0
        %v3586 = vxor.u32 %v3580, 2147483648
        %v3587 = vsel %vm3585, %v3579, %v3586
        %vm3588 = vcmp.eq.s32.totalorder %v3583, 2
        %v3589 = vxor.u32 %v3579, 2147483648
        %v3590 = vsel %vm3588, %v3589, %v3580
        %v3591 = vsel %vm3584, %v3587, %v3590
        %v3592 = vsel %vm3581, nan, %v3591
        %v3593 = vand.u32 2147483647, %v908
        %vm3594 = vcmp.le.f32.partialorder %v3593, 0.7853982
        %vm3595 = vcmp.lt.s32.totalorder %v908, 0
        %v3596 = vand.u32 %v908, 2139095040
        %v3597 = vshrl.u32 %v3596, 23
        %v3598 = vsub.s32 %v3597, 127
        %v3599 = vand.u32 2147483647, %v908
        %v3600 = vand.u32 %v3599, 8388607
        %v3601 = vor.u32 %v3600, 8388608
        %v3602 = vsub.s32 0, %v3601
        %v3603 = vadd.s32 %v3598, 1
        %vm3604 = vcmp.gt.s32.totalorder %v3603, 0
        %v3605 = vsel %vm3604, %v3603, 0
        %v3606 = vshrl.u32 %v3605, 5
        %v3607 = vand.u32 %v3605, 31
        %v3608 = vsub.s32 32, %v3607
        %v3609 = vshrl.u32 683565275, %v3608
        %v3610 = vshll.u32 683565275, %v3607
        %v3611 = vshrl.u32 2475754826, %v3608
        %v3612 = vor.u32 %v3610, %v3611
        %v3613 = vshll.u32 2475754826, %v3607
        %v3614 = vshrl.u32 2131351028, %v3608
        %v3615 = vor.u32 %v3613, %v3614
        %v3616 = vshll.u32 2131351028, %v3607
        %v3617 = vshrl.u32 2102212464, %v3608
        %v3618 = vor.u32 %v3616, %v3617
        %v3619 = vshll.u32 2102212464, %v3607
        %v3620 = vshrl.u32 920167782, %v3608
        %v3621 = vor.u32 %v3619, %v3620
        %v3622 = vshll.u32 920167782, %v3607
        %v3623 = vshrl.u32 1326507024, %v3608
        %v3624 = vor.u32 %v3622, %v3623
        %vm3625 = vcmp.lt.s32.totalorder %v3606, 1
        %vm3626 = vcmp.lt.s32.totalorder %v3606, 2
        %vm3627 = vcmp.lt.s32.totalorder %v3606, 3
        %vm3628 = vcmp.lt.s32.totalorder %v3606, 4
        %v3629 = vsel %vm3625, %v3609, %v3612
        %v3630 = vsel %vm3628, %v3618, 2102212464
        %v3631 = vsel %vm3627, %v3615, %v3630
        %v3632 = vsel %vm3626, %v3629, %v3631
        %v3633 = vsel %vm3625, %v3612, %v3615
        %v3634 = vsel %vm3628, %v3621, 920167782
        %v3635 = vsel %vm3627, %v3618, %v3634
        %v3636 = vsel %vm3626, %v3633, %v3635
        %v3637 = vsel %vm3625, %v3615, %v3618
        %v3638 = vsel %vm3628, %v3624, 1326507024
        %v3639 = vsel %vm3627, %v3621, %v3638
        %v3640 = vsel %vm3626, %v3637, %v3639
        %v3641 = vshll.u32 %v3601, 8
        %v3642 = vmul.u32.u64.compose %v3641, %v3640
        %v3643 = vextract.low.u32 %v3642
        %v3644 = vextract.high.u32 %v3642
        %v3645 = vmul.u32.u64.compose %v3641, %v3636
        %v3646 = vextract.low.u32 %v3645
        %v3647 = vextract.high.u32 %v3645
        %v3648 = vmul.u32 %v3641, %v3632
        %v3649 = vadd.s32 %v3644, %v3646
        %vm3650 = vc.u32 %v3644, %v3646
        %v3651 = vadd.s32 %v3647, 1
        %v3652 = vsel %vm3650, %v3651, %v3647
        %v3653 = vadd.s32 %v3648, %v3652
        %v3654 = vadd.s32 %v3653, 536870912
        %v3655 = vshrl.u32 %v3654, 30
        %v3656 = vshll.u32 %v3655, 30
        %v3657 = vsub.s32 %v3653, %v3656
        %vm3658 = vcmp.lt.s32.totalorder %v3657, 0
        %v3659 = vsub.s32 0, %v3657
        %v3660 = vsel %vm3658, %v3659, %v3657
        %v3661 = vclz %v3660
        %v3662 = vsub.s32 %v3661, 2
        %vm3663 = vcmp.gt.s32.totalorder 0, %v3662
        %v3664 = vsel %vm3663, 0, %v3662
        %v3665 = vsub.s32 32, %v3664
        %v3666 = vshll.u32 %v3657, %v3664
        %v3667 = vshrl.u32 %v3649, %v3665
        %v3668 = vor.u32 %v3666, %v3667
        %v3669 = vsub.s32 4294967266, %v3664
        %v3670 = vadd.s32 %v3669, 127
        %v3671 = vshll.u32 %v3670, 23
        %v3672 = vor.u32 4788187, %v3671
        %v3673 = vand.u32 2147483647, %v3672
        %v3675 = vcvt.s32.f32 %v3668
        %v3676 = vmul.f32 %v3675, %v3673
        %v3677 = vxor.u32 %v3676, 2147483648
        %v3678 = vsel %vm3595, %v3677, %v3676
        %v3679 = vsub.s32 4, %v3655
        %v3680 = vsel %vm3595, %v3679, %v3655
        %v3681 = vsel %vm3594, %v908, %v3678
        %v3682 = vsel %vm3594, 0, %v3680
        %v3683 = vcosq.f32.pop %v3681
        %v3684 = vsinq.f32.pop %v3681
        %vm3685 = vweird.f32 %v908
        %v3686 = vadd.s32 %v3682, 3
        %v3687 = vand.u32 %v3686, 3
        %vm3688 = vcmp.lt.s32.totalorder %v3687, 2
        %vm3689 = vcmp.eq.s32.totalorder %v3687, 0
        %v3690 = vxor.u32 %v3684, 2147483648
        %v3691 = vsel %vm3689, %v3683, %v3690
        %vm3692 = vcmp.eq.s32.totalorder %v3687, 2
        %v3693 = vxor.u32 %v3683, 2147483648
        %v3694 = vsel %vm3692, %v3693, %v3684
        %v3695 = vsel %vm3688, %v3691, %v3694
        %v3696 = vsel %vm3685, nan, %v3695
        %v3697 = vand.u32 2147483647, %v909
        %vm3698 = vcmp.le.f32.partialorder %v3697, 0.7853982
        %vm3699 = vcmp.lt.s32.totalorder %v909, 0
        %v3700 = vand.u32 %v909, 2139095040
        %v3701 = vshrl.u32 %v3700, 23
        %v3702 = vsub.s32 %v3701, 127
        %v3703 = vand.u32 2147483647, %v909
        %v3704 = vand.u32 %v3703, 8388607
        %v3705 = vor.u32 %v3704, 8388608
        %v3706 = vsub.s32 0, %v3705
        %v3707 = vadd.s32 %v3702, 1
        %vm3708 = vcmp.gt.s32.totalorder %v3707, 0
        %v3709 = vsel %vm3708, %v3707, 0
        %v3710 = vshrl.u32 %v3709, 5
        %v3711 = vand.u32 %v3709, 31
        %v3712 = vsub.s32 32, %v3711
        %v3713 = vshrl.u32 683565275, %v3712
        %v3714 = vshll.u32 683565275, %v3711
        %v3715 = vshrl.u32 2475754826, %v3712
        %v3716 = vor.u32 %v3714, %v3715
        %v3717 = vshll.u32 2475754826, %v3711
        %v3718 = vshrl.u32 2131351028, %v3712
        %v3719 = vor.u32 %v3717, %v3718
        %v3720 = vshll.u32 2131351028, %v3711
        %v3721 = vshrl.u32 2102212464, %v3712
        %v3722 = vor.u32 %v3720, %v3721
        %v3723 = vshll.u32 2102212464, %v3711
        %v3724 = vshrl.u32 920167782, %v3712
        %v3725 = vor.u32 %v3723, %v3724
        %v3726 = vshll.u32 920167782, %v3711
        %v3727 = vshrl.u32 1326507024, %v3712
        %v3728 = vor.u32 %v3726, %v3727
        %vm3729 = vcmp.lt.s32.totalorder %v3710, 1
        %vm3730 = vcmp.lt.s32.totalorder %v3710, 2
        %vm3731 = vcmp.lt.s32.totalorder %v3710, 3
        %vm3732 = vcmp.lt.s32.totalorder %v3710, 4
        %v3733 = vsel %vm3729, %v3713, %v3716
        %v3734 = vsel %vm3732, %v3722, 2102212464
        %v3735 = vsel %vm3731, %v3719, %v3734
        %v3736 = vsel %vm3730, %v3733, %v3735
        %v3737 = vsel %vm3729, %v3716, %v3719
        %v3738 = vsel %vm3732, %v3725, 920167782
        %v3739 = vsel %vm3731, %v3722, %v3738
        %v3740 = vsel %vm3730, %v3737, %v3739
        %v3741 = vsel %vm3729, %v3719, %v3722
        %v3742 = vsel %vm3732, %v3728, 1326507024
        %v3743 = vsel %vm3731, %v3725, %v3742
        %v3744 = vsel %vm3730, %v3741, %v3743
        %v3745 = vshll.u32 %v3705, 8
        %v3746 = vmul.u32.u64.compose %v3745, %v3744
        %v3747 = vextract.low.u32 %v3746
        %v3748 = vextract.high.u32 %v3746
        %v3749 = vmul.u32.u64.compose %v3745, %v3740
        %v3750 = vextract.low.u32 %v3749
        %v3751 = vextract.high.u32 %v3749
        %v3752 = vmul.u32 %v3745, %v3736
        %v3753 = vadd.s32 %v3748, %v3750
        %vm3754 = vc.u32 %v3748, %v3750
        %v3755 = vadd.s32 %v3751, 1
        %v3756 = vsel %vm3754, %v3755, %v3751
        %v3757 = vadd.s32 %v3752, %v3756
        %v3758 = vadd.s32 %v3757, 536870912
        %v3759 = vshrl.u32 %v3758, 30
        %v3760 = vshll.u32 %v3759, 30
        %v3761 = vsub.s32 %v3757, %v3760
        %vm3762 = vcmp.lt.s32.totalorder %v3761, 0
        %v3763 = vsub.s32 0, %v3761
        %v3764 = vsel %vm3762, %v3763, %v3761
        %v3765 = vclz %v3764
        %v3766 = vsub.s32 %v3765, 2
        %vm3767 = vcmp.gt.s32.totalorder 0, %v3766
        %v3768 = vsel %vm3767, 0, %v3766
        %v3769 = vsub.s32 32, %v3768
        %v3770 = vshll.u32 %v3761, %v3768
        %v3771 = vshrl.u32 %v3753, %v3769
        %v3772 = vor.u32 %v3770, %v3771
        %v3773 = vsub.s32 4294967266, %v3768
        %v3774 = vadd.s32 %v3773, 127
        %v3775 = vshll.u32 %v3774, 23
        %v3776 = vor.u32 4788187, %v3775
        %v3777 = vand.u32 2147483647, %v3776
        %v3779 = vcvt.s32.f32 %v3772
        %v3780 = vmul.f32 %v3779, %v3777
        %v3781 = vxor.u32 %v3780, 2147483648
        %v3782 = vsel %vm3699, %v3781, %v3780
        %v3783 = vsub.s32 4, %v3759
        %v3784 = vsel %vm3699, %v3783, %v3759
        %v3785 = vsel %vm3698, %v909, %v3782
        %v3786 = vsel %vm3698, 0, %v3784
        %v3787 = vcosq.f32.pop %v3785
        %v3788 = vsinq.f32.pop %v3785
        %vm3789 = vweird.f32 %v909
        %v3790 = vadd.s32 %v3786, 3
        %v3791 = vand.u32 %v3790, 3
        %vm3792 = vcmp.lt.s32.totalorder %v3791, 2
        %vm3793 = vcmp.eq.s32.totalorder %v3791, 0
        %v3794 = vxor.u32 %v3788, 2147483648
        %v3795 = vsel %vm3793, %v3787, %v3794
        %vm3796 = vcmp.eq.s32.totalorder %v3791, 2
        %v3797 = vxor.u32 %v3787, 2147483648
        %v3798 = vsel %vm3796, %v3797, %v3788
        %v3799 = vsel %vm3792, %v3795, %v3798
        %v3800 = vsel %vm3789, nan, %v3799
        %v3801 = vand.u32 2147483647, %v910
        %vm3802 = vcmp.le.f32.partialorder %v3801, 0.7853982
        %vm3803 = vcmp.lt.s32.totalorder %v910, 0
        %v3804 = vand.u32 %v910, 2139095040
        %v3805 = vshrl.u32 %v3804, 23
        %v3806 = vsub.s32 %v3805, 127
        %v3807 = vand.u32 2147483647, %v910
        %v3808 = vand.u32 %v3807, 8388607
        %v3809 = vor.u32 %v3808, 8388608
        %v3810 = vsub.s32 0, %v3809
        %v3811 = vadd.s32 %v3806, 1
        %vm3812 = vcmp.gt.s32.totalorder %v3811, 0
        %v3813 = vsel %vm3812, %v3811, 0
        %v3814 = vshrl.u32 %v3813, 5
        %v3815 = vand.u32 %v3813, 31
        %v3816 = vsub.s32 32, %v3815
        %v3817 = vshrl.u32 683565275, %v3816
        %v3818 = vshll.u32 683565275, %v3815
        %v3819 = vshrl.u32 2475754826, %v3816
        %v3820 = vor.u32 %v3818, %v3819
        %v3821 = vshll.u32 2475754826, %v3815
        %v3822 = vshrl.u32 2131351028, %v3816
        %v3823 = vor.u32 %v3821, %v3822
        %v3824 = vshll.u32 2131351028, %v3815
        %v3825 = vshrl.u32 2102212464, %v3816
        %v3826 = vor.u32 %v3824, %v3825
        %v3827 = vshll.u32 2102212464, %v3815
        %v3828 = vshrl.u32 920167782, %v3816
        %v3829 = vor.u32 %v3827, %v3828
        %v3830 = vshll.u32 920167782, %v3815
        %v3831 = vshrl.u32 1326507024, %v3816
        %v3832 = vor.u32 %v3830, %v3831
        %vm3833 = vcmp.lt.s32.totalorder %v3814, 1
        %vm3834 = vcmp.lt.s32.totalorder %v3814, 2
        %vm3835 = vcmp.lt.s32.totalorder %v3814, 3
        %vm3836 = vcmp.lt.s32.totalorder %v3814, 4
        %v3837 = vsel %vm3833, %v3817, %v3820
        %v3838 = vsel %vm3836, %v3826, 2102212464
        %v3839 = vsel %vm3835, %v3823, %v3838
        %v3840 = vsel %vm3834, %v3837, %v3839
        %v3841 = vsel %vm3833, %v3820, %v3823
        %v3842 = vsel %vm3836, %v3829, 920167782
        %v3843 = vsel %vm3835, %v3826, %v3842
        %v3844 = vsel %vm3834, %v3841, %v3843
        %v3845 = vsel %vm3833, %v3823, %v3826
        %v3846 = vsel %vm3836, %v3832, 1326507024
        %v3847 = vsel %vm3835, %v3829, %v3846
        %v3848 = vsel %vm3834, %v3845, %v3847
        %v3849 = vshll.u32 %v3809, 8
        %v3850 = vmul.u32.u64.compose %v3849, %v3848
        %v3851 = vextract.low.u32 %v3850
        %v3852 = vextract.high.u32 %v3850
        %v3853 = vmul.u32.u64.compose %v3849, %v3844
        %v3854 = vextract.low.u32 %v3853
        %v3855 = vextract.high.u32 %v3853
        %v3856 = vmul.u32 %v3849, %v3840
        %v3857 = vadd.s32 %v3852, %v3854
        %vm3858 = vc.u32 %v3852, %v3854
        %v3859 = vadd.s32 %v3855, 1
        %v3860 = vsel %vm3858, %v3859, %v3855
        %v3861 = vadd.s32 %v3856, %v3860
        %v3862 = vadd.s32 %v3861, 536870912
        %v3863 = vshrl.u32 %v3862, 30
        %v3864 = vshll.u32 %v3863, 30
        %v3865 = vsub.s32 %v3861, %v3864
        %vm3866 = vcmp.lt.s32.totalorder %v3865, 0
        %v3867 = vsub.s32 0, %v3865
        %v3868 = vsel %vm3866, %v3867, %v3865
        %v3869 = vclz %v3868
        %v3870 = vsub.s32 %v3869, 2
        %vm3871 = vcmp.gt.s32.totalorder 0, %v3870
        %v3872 = vsel %vm3871, 0, %v3870
        %v3873 = vsub.s32 32, %v3872
        %v3874 = vshll.u32 %v3865, %v3872
        %v3875 = vshrl.u32 %v3857, %v3873
        %v3876 = vor.u32 %v3874, %v3875
        %v3877 = vsub.s32 4294967266, %v3872
        %v3878 = vadd.s32 %v3877, 127
        %v3879 = vshll.u32 %v3878, 23
        %v3880 = vor.u32 4788187, %v3879
        %v3881 = vand.u32 2147483647, %v3880
        %v3883 = vcvt.s32.f32 %v3876
        %v3884 = vmul.f32 %v3883, %v3881
        %v3885 = vxor.u32 %v3884, 2147483648
        %v3886 = vsel %vm3803, %v3885, %v3884
        %v3887 = vsub.s32 4, %v3863
        %v3888 = vsel %vm3803, %v3887, %v3863
        %v3889 = vsel %vm3802, %v910, %v3886
        %v3890 = vsel %vm3802, 0, %v3888
        %v3891 = vcosq.f32.pop %v3889
        %v3892 = vsinq.f32.pop %v3889
        %vm3893 = vweird.f32 %v910
        %v3894 = vadd.s32 %v3890, 3
        %v3895 = vand.u32 %v3894, 3
        %vm3896 = vcmp.lt.s32.totalorder %v3895, 2
        %vm3897 = vcmp.eq.s32.totalorder %v3895, 0
        %v3898 = vxor.u32 %v3892, 2147483648
        %v3899 = vsel %vm3897, %v3891, %v3898
        %vm3900 = vcmp.eq.s32.totalorder %v3895, 2
        %v3901 = vxor.u32 %v3891, 2147483648
        %v3902 = vsel %vm3900, %v3901, %v3892
        %v3903 = vsel %vm3896, %v3899, %v3902
        %v3904 = vsel %vm3893, nan, %v3903
        %v3905 = vand.u32 2147483647, %v911
        %vm3906 = vcmp.le.f32.partialorder %v3905, 0.7853982
        %vm3907 = vcmp.lt.s32.totalorder %v911, 0
        %v3908 = vand.u32 %v911, 2139095040
        %v3909 = vshrl.u32 %v3908, 23
        %v3910 = vsub.s32 %v3909, 127
        %v3911 = vand.u32 2147483647, %v911
        %v3912 = vand.u32 %v3911, 8388607
        %v3913 = vor.u32 %v3912, 8388608
        %v3914 = vsub.s32 0, %v3913
        %v3915 = vadd.s32 %v3910, 1
        %vm3916 = vcmp.gt.s32.totalorder %v3915, 0
        %v3917 = vsel %vm3916, %v3915, 0
        %v3918 = vshrl.u32 %v3917, 5
        %v3919 = vand.u32 %v3917, 31
        %v3920 = vsub.s32 32, %v3919
        %v3921 = vshrl.u32 683565275, %v3920
        %v3922 = vshll.u32 683565275, %v3919
        %v3923 = vshrl.u32 2475754826, %v3920
        %v3924 = vor.u32 %v3922, %v3923
        %v3925 = vshll.u32 2475754826, %v3919
        %v3926 = vshrl.u32 2131351028, %v3920
        %v3927 = vor.u32 %v3925, %v3926
        %v3928 = vshll.u32 2131351028, %v3919
        %v3929 = vshrl.u32 2102212464, %v3920
        %v3930 = vor.u32 %v3928, %v3929
        %v3931 = vshll.u32 2102212464, %v3919
        %v3932 = vshrl.u32 920167782, %v3920
        %v3933 = vor.u32 %v3931, %v3932
        %v3934 = vshll.u32 920167782, %v3919
        %v3935 = vshrl.u32 1326507024, %v3920
        %v3936 = vor.u32 %v3934, %v3935
        %vm3937 = vcmp.lt.s32.totalorder %v3918, 1
        %vm3938 = vcmp.lt.s32.totalorder %v3918, 2
        %vm3939 = vcmp.lt.s32.totalorder %v3918, 3
        %vm3940 = vcmp.lt.s32.totalorder %v3918, 4
        %v3941 = vsel %vm3937, %v3921, %v3924
        %v3942 = vsel %vm3940, %v3930, 2102212464
        %v3943 = vsel %vm3939, %v3927, %v3942
        %v3944 = vsel %vm3938, %v3941, %v3943
        %v3945 = vsel %vm3937, %v3924, %v3927
        %v3946 = vsel %vm3940, %v3933, 920167782
        %v3947 = vsel %vm3939, %v3930, %v3946
        %v3948 = vsel %vm3938, %v3945, %v3947
        %v3949 = vsel %vm3937, %v3927, %v3930
        %v3950 = vsel %vm3940, %v3936, 1326507024
        %v3951 = vsel %vm3939, %v3933, %v3950
        %v3952 = vsel %vm3938, %v3949, %v3951
        %v3953 = vshll.u32 %v3913, 8
        %v3954 = vmul.u32.u64.compose %v3953, %v3952
        %v3955 = vextract.low.u32 %v3954
        %v3956 = vextract.high.u32 %v3954
        %v3957 = vmul.u32.u64.compose %v3953, %v3948
        %v3958 = vextract.low.u32 %v3957
        %v3959 = vextract.high.u32 %v3957
        %v3960 = vmul.u32 %v3953, %v3944
        %v3961 = vadd.s32 %v3956, %v3958
        %vm3962 = vc.u32 %v3956, %v3958
        %v3963 = vadd.s32 %v3959, 1
        %v3964 = vsel %vm3962, %v3963, %v3959
        %v3965 = vadd.s32 %v3960, %v3964
        %v3966 = vadd.s32 %v3965, 536870912
        %v3967 = vshrl.u32 %v3966, 30
        %v3968 = vshll.u32 %v3967, 30
        %v3969 = vsub.s32 %v3965, %v3968
        %vm3970 = vcmp.lt.s32.totalorder %v3969, 0
        %v3971 = vsub.s32 0, %v3969
        %v3972 = vsel %vm3970, %v3971, %v3969
        %v3973 = vclz %v3972
        %v3974 = vsub.s32 %v3973, 2
        %vm3975 = vcmp.gt.s32.totalorder 0, %v3974
        %v3976 = vsel %vm3975, 0, %v3974
        %v3977 = vsub.s32 32, %v3976
        %v3978 = vshll.u32 %v3969, %v3976
        %v3979 = vshrl.u32 %v3961, %v3977
        %v3980 = vor.u32 %v3978, %v3979
        %v3981 = vsub.s32 4294967266, %v3976
        %v3982 = vadd.s32 %v3981, 127
        %v3983 = vshll.u32 %v3982, 23
        %v3984 = vor.u32 4788187, %v3983
        %v3985 = vand.u32 2147483647, %v3984
        %v3987 = vcvt.s32.f32 %v3980
        %v3988 = vmul.f32 %v3987, %v3985
        %v3989 = vxor.u32 %v3988, 2147483648
        %v3990 = vsel %vm3907, %v3989, %v3988
        %v3991 = vsub.s32 4, %v3967
        %v3992 = vsel %vm3907, %v3991, %v3967
        %v3993 = vsel %vm3906, %v911, %v3990
        %v3994 = vsel %vm3906, 0, %v3992
        %v3995 = vcosq.f32.pop %v3993
        %v3996 = vsinq.f32.pop %v3993
        %vm3997 = vweird.f32 %v911
        %v3998 = vadd.s32 %v3994, 3
        %v3999 = vand.u32 %v3998, 3
        %vm4000 = vcmp.lt.s32.totalorder %v3999, 2
        %vm4001 = vcmp.eq.s32.totalorder %v3999, 0
        %v4002 = vxor.u32 %v3996, 2147483648
        %v4003 = vsel %vm4001, %v3995, %v4002
        %vm4004 = vcmp.eq.s32.totalorder %v3999, 2
        %v4005 = vxor.u32 %v3995, 2147483648
        %v4006 = vsel %vm4004, %v4005, %v3996
        %v4007 = vsel %vm4000, %v4003, %v4006
        %v4008 = vsel %vm3997, nan, %v4007
        %v4009 = vand.u32 2147483647, %v912
        %vm4010 = vcmp.le.f32.partialorder %v4009, 0.7853982
        %vm4011 = vcmp.lt.s32.totalorder %v912, 0
        %v4012 = vand.u32 %v912, 2139095040
        %v4013 = vshrl.u32 %v4012, 23
        %v4014 = vsub.s32 %v4013, 127
        %v4015 = vand.u32 2147483647, %v912
        %v4016 = vand.u32 %v4015, 8388607
        %v4017 = vor.u32 %v4016, 8388608
        %v4018 = vsub.s32 0, %v4017
        %v4019 = vadd.s32 %v4014, 1
        %vm4020 = vcmp.gt.s32.totalorder %v4019, 0
        %v4021 = vsel %vm4020, %v4019, 0
        %v4022 = vshrl.u32 %v4021, 5
        %v4023 = vand.u32 %v4021, 31
        %v4024 = vsub.s32 32, %v4023
        %v4025 = vshrl.u32 683565275, %v4024
        %v4026 = vshll.u32 683565275, %v4023
        %v4027 = vshrl.u32 2475754826, %v4024
        %v4028 = vor.u32 %v4026, %v4027
        %v4029 = vshll.u32 2475754826, %v4023
        %v4030 = vshrl.u32 2131351028, %v4024
        %v4031 = vor.u32 %v4029, %v4030
        %v4032 = vshll.u32 2131351028, %v4023
        %v4033 = vshrl.u32 2102212464, %v4024
        %v4034 = vor.u32 %v4032, %v4033
        %v4035 = vshll.u32 2102212464, %v4023
        %v4036 = vshrl.u32 920167782, %v4024
        %v4037 = vor.u32 %v4035, %v4036
        %v4038 = vshll.u32 920167782, %v4023
        %v4039 = vshrl.u32 1326507024, %v4024
        %v4040 = vor.u32 %v4038, %v4039
        %vm4041 = vcmp.lt.s32.totalorder %v4022, 1
        %vm4042 = vcmp.lt.s32.totalorder %v4022, 2
        %vm4043 = vcmp.lt.s32.totalorder %v4022, 3
        %vm4044 = vcmp.lt.s32.totalorder %v4022, 4
        %v4045 = vsel %vm4041, %v4025, %v4028
        %v4046 = vsel %vm4044, %v4034, 2102212464
        %v4047 = vsel %vm4043, %v4031, %v4046
        %v4048 = vsel %vm4042, %v4045, %v4047
        %v4049 = vsel %vm4041, %v4028, %v4031
        %v4050 = vsel %vm4044, %v4037, 920167782
        %v4051 = vsel %vm4043, %v4034, %v4050
        %v4052 = vsel %vm4042, %v4049, %v4051
        %v4053 = vsel %vm4041, %v4031, %v4034
        %v4054 = vsel %vm4044, %v4040, 1326507024
        %v4055 = vsel %vm4043, %v4037, %v4054
        %v4056 = vsel %vm4042, %v4053, %v4055
        %v4057 = vshll.u32 %v4017, 8
        %v4058 = vmul.u32.u64.compose %v4057, %v4056
        %v4059 = vextract.low.u32 %v4058
        %v4060 = vextract.high.u32 %v4058
        %v4061 = vmul.u32.u64.compose %v4057, %v4052
        %v4062 = vextract.low.u32 %v4061
        %v4063 = vextract.high.u32 %v4061
        %v4064 = vmul.u32 %v4057, %v4048
        %v4065 = vadd.s32 %v4060, %v4062
        %vm4066 = vc.u32 %v4060, %v4062
        %v4067 = vadd.s32 %v4063, 1
        %v4068 = vsel %vm4066, %v4067, %v4063
        %v4069 = vadd.s32 %v4064, %v4068
        %v4070 = vadd.s32 %v4069, 536870912
        %v4071 = vshrl.u32 %v4070, 30
        %v4072 = vshll.u32 %v4071, 30
        %v4073 = vsub.s32 %v4069, %v4072
        %vm4074 = vcmp.lt.s32.totalorder %v4073, 0
        %v4075 = vsub.s32 0, %v4073
        %v4076 = vsel %vm4074, %v4075, %v4073
        %v4077 = vclz %v4076
        %v4078 = vsub.s32 %v4077, 2
        %vm4079 = vcmp.gt.s32.totalorder 0, %v4078
        %v4080 = vsel %vm4079, 0, %v4078
        %v4081 = vsub.s32 32, %v4080
        %v4082 = vshll.u32 %v4073, %v4080
        %v4083 = vshrl.u32 %v4065, %v4081
        %v4084 = vor.u32 %v4082, %v4083
        %v4085 = vsub.s32 4294967266, %v4080
        %v4086 = vadd.s32 %v4085, 127
        %v4087 = vshll.u32 %v4086, 23
        %v4088 = vor.u32 4788187, %v4087
        %v4089 = vand.u32 2147483647, %v4088
        %v4091 = vcvt.s32.f32 %v4084
        %v4092 = vmul.f32 %v4091, %v4089
        %v4093 = vxor.u32 %v4092, 2147483648
        %v4094 = vsel %vm4011, %v4093, %v4092
        %v4095 = vsub.s32 4, %v4071
        %v4096 = vsel %vm4011, %v4095, %v4071
        %v4097 = vsel %vm4010, %v912, %v4094
        %v4098 = vsel %vm4010, 0, %v4096
        %v4099 = vcosq.f32.pop %v4097
        %v4100 = vsinq.f32.pop %v4097
        %vm4101 = vweird.f32 %v912
        %v4102 = vadd.s32 %v4098, 3
        %v4103 = vand.u32 %v4102, 3
        %vm4104 = vcmp.lt.s32.totalorder %v4103, 2
        %vm4105 = vcmp.eq.s32.totalorder %v4103, 0
        %v4106 = vxor.u32 %v4100, 2147483648
        %v4107 = vsel %vm4105, %v4099, %v4106
        %vm4108 = vcmp.eq.s32.totalorder %v4103, 2
        %v4109 = vxor.u32 %v4099, 2147483648
        %v4110 = vsel %vm4108, %v4109, %v4100
        %v4111 = vsel %vm4104, %v4107, %v4110
        %v4112 = vsel %vm4101, nan, %v4111
        %v4113 = vand.u32 2147483647, %v913
        %vm4114 = vcmp.le.f32.partialorder %v4113, 0.7853982
        %vm4115 = vcmp.lt.s32.totalorder %v913, 0
        %v4116 = vand.u32 %v913, 2139095040
        %v4117 = vshrl.u32 %v4116, 23
        %v4118 = vsub.s32 %v4117, 127
        %v4119 = vand.u32 2147483647, %v913
        %v4120 = vand.u32 %v4119, 8388607
        %v4121 = vor.u32 %v4120, 8388608
        %v4122 = vsub.s32 0, %v4121
        %v4123 = vadd.s32 %v4118, 1
        %vm4124 = vcmp.gt.s32.totalorder %v4123, 0
        %v4125 = vsel %vm4124, %v4123, 0
        %v4126 = vshrl.u32 %v4125, 5
        %v4127 = vand.u32 %v4125, 31
        %v4128 = vsub.s32 32, %v4127
        %v4129 = vshrl.u32 683565275, %v4128
        %v4130 = vshll.u32 683565275, %v4127
        %v4131 = vshrl.u32 2475754826, %v4128
        %v4132 = vor.u32 %v4130, %v4131
        %v4133 = vshll.u32 2475754826, %v4127
        %v4134 = vshrl.u32 2131351028, %v4128
        %v4135 = vor.u32 %v4133, %v4134
        %v4136 = vshll.u32 2131351028, %v4127
        %v4137 = vshrl.u32 2102212464, %v4128
        %v4138 = vor.u32 %v4136, %v4137
        %v4139 = vshll.u32 2102212464, %v4127
        %v4140 = vshrl.u32 920167782, %v4128
        %v4141 = vor.u32 %v4139, %v4140
        %v4142 = vshll.u32 920167782, %v4127
        %v4143 = vshrl.u32 1326507024, %v4128
        %v4144 = vor.u32 %v4142, %v4143
        %vm4145 = vcmp.lt.s32.totalorder %v4126, 1
        %vm4146 = vcmp.lt.s32.totalorder %v4126, 2
        %vm4147 = vcmp.lt.s32.totalorder %v4126, 3
        %vm4148 = vcmp.lt.s32.totalorder %v4126, 4
        %v4149 = vsel %vm4145, %v4129, %v4132
        %v4150 = vsel %vm4148, %v4138, 2102212464
        %v4151 = vsel %vm4147, %v4135, %v4150
        %v4152 = vsel %vm4146, %v4149, %v4151
        %v4153 = vsel %vm4145, %v4132, %v4135
        %v4154 = vsel %vm4148, %v4141, 920167782
        %v4155 = vsel %vm4147, %v4138, %v4154
        %v4156 = vsel %vm4146, %v4153, %v4155
        %v4157 = vsel %vm4145, %v4135, %v4138
        %v4158 = vsel %vm4148, %v4144, 1326507024
        %v4159 = vsel %vm4147, %v4141, %v4158
        %v4160 = vsel %vm4146, %v4157, %v4159
        %v4161 = vshll.u32 %v4121, 8
        %v4162 = vmul.u32.u64.compose %v4161, %v4160
        %v4163 = vextract.low.u32 %v4162
        %v4164 = vextract.high.u32 %v4162
        %v4165 = vmul.u32.u64.compose %v4161, %v4156
        %v4166 = vextract.low.u32 %v4165
        %v4167 = vextract.high.u32 %v4165
        %v4168 = vmul.u32 %v4161, %v4152
        %v4169 = vadd.s32 %v4164, %v4166
        %vm4170 = vc.u32 %v4164, %v4166
        %v4171 = vadd.s32 %v4167, 1
        %v4172 = vsel %vm4170, %v4171, %v4167
        %v4173 = vadd.s32 %v4168, %v4172
        %v4174 = vadd.s32 %v4173, 536870912
        %v4175 = vshrl.u32 %v4174, 30
        %v4176 = vshll.u32 %v4175, 30
        %v4177 = vsub.s32 %v4173, %v4176
        %vm4178 = vcmp.lt.s32.totalorder %v4177, 0
        %v4179 = vsub.s32 0, %v4177
        %v4180 = vsel %vm4178, %v4179, %v4177
        %v4181 = vclz %v4180
        %v4182 = vsub.s32 %v4181, 2
        %vm4183 = vcmp.gt.s32.totalorder 0, %v4182
        %v4184 = vsel %vm4183, 0, %v4182
        %v4185 = vsub.s32 32, %v4184
        %v4186 = vshll.u32 %v4177, %v4184
        %v4187 = vshrl.u32 %v4169, %v4185
        %v4188 = vor.u32 %v4186, %v4187
        %v4189 = vsub.s32 4294967266, %v4184
        %v4190 = vadd.s32 %v4189, 127
        %v4191 = vshll.u32 %v4190, 23
        %v4192 = vor.u32 4788187, %v4191
        %v4193 = vand.u32 2147483647, %v4192
        %v4195 = vcvt.s32.f32 %v4188
        %v4196 = vmul.f32 %v4195, %v4193
        %v4197 = vxor.u32 %v4196, 2147483648
        %v4198 = vsel %vm4115, %v4197, %v4196
        %v4199 = vsub.s32 4, %v4175
        %v4200 = vsel %vm4115, %v4199, %v4175
        %v4201 = vsel %vm4114, %v913, %v4198
        %v4202 = vsel %vm4114, 0, %v4200
        %v4203 = vcosq.f32.pop %v4201
        %v4204 = vsinq.f32.pop %v4201
        %vm4205 = vweird.f32 %v913
        %v4206 = vadd.s32 %v4202, 3
        %v4207 = vand.u32 %v4206, 3
        %vm4208 = vcmp.lt.s32.totalorder %v4207, 2
        %vm4209 = vcmp.eq.s32.totalorder %v4207, 0
        %v4210 = vxor.u32 %v4204, 2147483648
        %v4211 = vsel %vm4209, %v4203, %v4210
        %vm4212 = vcmp.eq.s32.totalorder %v4207, 2
        %v4213 = vxor.u32 %v4203, 2147483648
        %v4214 = vsel %vm4212, %v4213, %v4204
        %v4215 = vsel %vm4208, %v4211, %v4214
        %v4216 = vsel %vm4205, nan, %v4215
        %v4217 = vand.u32 2147483647, %v914
        %vm4218 = vcmp.le.f32.partialorder %v4217, 0.7853982
        %vm4219 = vcmp.lt.s32.totalorder %v914, 0
        %v4220 = vand.u32 %v914, 2139095040
        %v4221 = vshrl.u32 %v4220, 23
        %v4222 = vsub.s32 %v4221, 127
        %v4223 = vand.u32 2147483647, %v914
        %v4224 = vand.u32 %v4223, 8388607
        %v4225 = vor.u32 %v4224, 8388608
        %v4226 = vsub.s32 0, %v4225
        %v4227 = vadd.s32 %v4222, 1
        %vm4228 = vcmp.gt.s32.totalorder %v4227, 0
        %v4229 = vsel %vm4228, %v4227, 0
        %v4230 = vshrl.u32 %v4229, 5
        %v4231 = vand.u32 %v4229, 31
        %v4232 = vsub.s32 32, %v4231
        %v4233 = vshrl.u32 683565275, %v4232
        %v4234 = vshll.u32 683565275, %v4231
        %v4235 = vshrl.u32 2475754826, %v4232
        %v4236 = vor.u32 %v4234, %v4235
        %v4237 = vshll.u32 2475754826, %v4231
        %v4238 = vshrl.u32 2131351028, %v4232
        %v4239 = vor.u32 %v4237, %v4238
        %v4240 = vshll.u32 2131351028, %v4231
        %v4241 = vshrl.u32 2102212464, %v4232
        %v4242 = vor.u32 %v4240, %v4241
        %v4243 = vshll.u32 2102212464, %v4231
        %v4244 = vshrl.u32 920167782, %v4232
        %v4245 = vor.u32 %v4243, %v4244
        %v4246 = vshll.u32 920167782, %v4231
        %v4247 = vshrl.u32 1326507024, %v4232
        %v4248 = vor.u32 %v4246, %v4247
        %vm4249 = vcmp.lt.s32.totalorder %v4230, 1
        %vm4250 = vcmp.lt.s32.totalorder %v4230, 2
        %vm4251 = vcmp.lt.s32.totalorder %v4230, 3
        %vm4252 = vcmp.lt.s32.totalorder %v4230, 4
        %v4253 = vsel %vm4249, %v4233, %v4236
        %v4254 = vsel %vm4252, %v4242, 2102212464
        %v4255 = vsel %vm4251, %v4239, %v4254
        %v4256 = vsel %vm4250, %v4253, %v4255
        %v4257 = vsel %vm4249, %v4236, %v4239
        %v4258 = vsel %vm4252, %v4245, 920167782
        %v4259 = vsel %vm4251, %v4242, %v4258
        %v4260 = vsel %vm4250, %v4257, %v4259
        %v4261 = vsel %vm4249, %v4239, %v4242
        %v4262 = vsel %vm4252, %v4248, 1326507024
        %v4263 = vsel %vm4251, %v4245, %v4262
        %v4264 = vsel %vm4250, %v4261, %v4263
        %v4265 = vshll.u32 %v4225, 8
        %v4266 = vmul.u32.u64.compose %v4265, %v4264
        %v4267 = vextract.low.u32 %v4266
        %v4268 = vextract.high.u32 %v4266
        %v4269 = vmul.u32.u64.compose %v4265, %v4260
        %v4270 = vextract.low.u32 %v4269
        %v4271 = vextract.high.u32 %v4269
        %v4272 = vmul.u32 %v4265, %v4256
        %v4273 = vadd.s32 %v4268, %v4270
        %vm4274 = vc.u32 %v4268, %v4270
        %v4275 = vadd.s32 %v4271, 1
        %v4276 = vsel %vm4274, %v4275, %v4271
        %v4277 = vadd.s32 %v4272, %v4276
        %v4278 = vadd.s32 %v4277, 536870912
        %v4279 = vshrl.u32 %v4278, 30
        %v4280 = vshll.u32 %v4279, 30
        %v4281 = vsub.s32 %v4277, %v4280
        %vm4282 = vcmp.lt.s32.totalorder %v4281, 0
        %v4283 = vsub.s32 0, %v4281
        %v4284 = vsel %vm4282, %v4283, %v4281
        %v4285 = vclz %v4284
        %v4286 = vsub.s32 %v4285, 2
        %vm4287 = vcmp.gt.s32.totalorder 0, %v4286
        %v4288 = vsel %vm4287, 0, %v4286
        %v4289 = vsub.s32 32, %v4288
        %v4290 = vshll.u32 %v4281, %v4288
        %v4291 = vshrl.u32 %v4273, %v4289
        %v4292 = vor.u32 %v4290, %v4291
        %v4293 = vsub.s32 4294967266, %v4288
        %v4294 = vadd.s32 %v4293, 127
        %v4295 = vshll.u32 %v4294, 23
        %v4296 = vor.u32 4788187, %v4295
        %v4297 = vand.u32 2147483647, %v4296
        %v4299 = vcvt.s32.f32 %v4292
        %v4300 = vmul.f32 %v4299, %v4297
        %v4301 = vxor.u32 %v4300, 2147483648
        %v4302 = vsel %vm4219, %v4301, %v4300
        %v4303 = vsub.s32 4, %v4279
        %v4304 = vsel %vm4219, %v4303, %v4279
        %v4305 = vsel %vm4218, %v914, %v4302
        %v4306 = vsel %vm4218, 0, %v4304
        %v4307 = vcosq.f32.pop %v4305
        %v4308 = vsinq.f32.pop %v4305
        %vm4309 = vweird.f32 %v914
        %v4310 = vadd.s32 %v4306, 3
        %v4311 = vand.u32 %v4310, 3
        %vm4312 = vcmp.lt.s32.totalorder %v4311, 2
        %vm4313 = vcmp.eq.s32.totalorder %v4311, 0
        %v4314 = vxor.u32 %v4308, 2147483648
        %v4315 = vsel %vm4313, %v4307, %v4314
        %vm4316 = vcmp.eq.s32.totalorder %v4311, 2
        %v4317 = vxor.u32 %v4307, 2147483648
        %v4318 = vsel %vm4316, %v4317, %v4308
        %v4319 = vsel %vm4312, %v4315, %v4318
        %v4320 = vsel %vm4309, nan, %v4319
        %v4321 = vand.u32 2147483647, %v915
        %vm4322 = vcmp.le.f32.partialorder %v4321, 0.7853982
        %vm4323 = vcmp.lt.s32.totalorder %v915, 0
        %v4324 = vand.u32 %v915, 2139095040
        %v4325 = vshrl.u32 %v4324, 23
        %v4326 = vsub.s32 %v4325, 127
        %v4327 = vand.u32 2147483647, %v915
        %v4328 = vand.u32 %v4327, 8388607
        %v4329 = vor.u32 %v4328, 8388608
        %v4330 = vsub.s32 0, %v4329
        %v4331 = vadd.s32 %v4326, 1
        %vm4332 = vcmp.gt.s32.totalorder %v4331, 0
        %v4333 = vsel %vm4332, %v4331, 0
        %v4334 = vshrl.u32 %v4333, 5
        %v4335 = vand.u32 %v4333, 31
        %v4336 = vsub.s32 32, %v4335
        %v4337 = vshrl.u32 683565275, %v4336
        %v4338 = vshll.u32 683565275, %v4335
        %v4339 = vshrl.u32 2475754826, %v4336
        %v4340 = vor.u32 %v4338, %v4339
        %v4341 = vshll.u32 2475754826, %v4335
        %v4342 = vshrl.u32 2131351028, %v4336
        %v4343 = vor.u32 %v4341, %v4342
        %v4344 = vshll.u32 2131351028, %v4335
        %v4345 = vshrl.u32 2102212464, %v4336
        %v4346 = vor.u32 %v4344, %v4345
        %v4347 = vshll.u32 2102212464, %v4335
        %v4348 = vshrl.u32 920167782, %v4336
        %v4349 = vor.u32 %v4347, %v4348
        %v4350 = vshll.u32 920167782, %v4335
        %v4351 = vshrl.u32 1326507024, %v4336
        %v4352 = vor.u32 %v4350, %v4351
        %vm4353 = vcmp.lt.s32.totalorder %v4334, 1
        %vm4354 = vcmp.lt.s32.totalorder %v4334, 2
        %vm4355 = vcmp.lt.s32.totalorder %v4334, 3
        %vm4356 = vcmp.lt.s32.totalorder %v4334, 4
        %v4357 = vsel %vm4353, %v4337, %v4340
        %v4358 = vsel %vm4356, %v4346, 2102212464
        %v4359 = vsel %vm4355, %v4343, %v4358
        %v4360 = vsel %vm4354, %v4357, %v4359
        %v4361 = vsel %vm4353, %v4340, %v4343
        %v4362 = vsel %vm4356, %v4349, 920167782
        %v4363 = vsel %vm4355, %v4346, %v4362
        %v4364 = vsel %vm4354, %v4361, %v4363
        %v4365 = vsel %vm4353, %v4343, %v4346
        %v4366 = vsel %vm4356, %v4352, 1326507024
        %v4367 = vsel %vm4355, %v4349, %v4366
        %v4368 = vsel %vm4354, %v4365, %v4367
        %v4369 = vshll.u32 %v4329, 8
        %v4370 = vmul.u32.u64.compose %v4369, %v4368
        %v4371 = vextract.low.u32 %v4370
        %v4372 = vextract.high.u32 %v4370
        %v4373 = vmul.u32.u64.compose %v4369, %v4364
        %v4374 = vextract.low.u32 %v4373
        %v4375 = vextract.high.u32 %v4373
        %v4376 = vmul.u32 %v4369, %v4360
        %v4377 = vadd.s32 %v4372, %v4374
        %vm4378 = vc.u32 %v4372, %v4374
        %v4379 = vadd.s32 %v4375, 1
        %v4380 = vsel %vm4378, %v4379, %v4375
        %v4381 = vadd.s32 %v4376, %v4380
        %v4382 = vadd.s32 %v4381, 536870912
        %v4383 = vshrl.u32 %v4382, 30
        %v4384 = vshll.u32 %v4383, 30
        %v4385 = vsub.s32 %v4381, %v4384
        %vm4386 = vcmp.lt.s32.totalorder %v4385, 0
        %v4387 = vsub.s32 0, %v4385
        %v4388 = vsel %vm4386, %v4387, %v4385
        %v4389 = vclz %v4388
        %v4390 = vsub.s32 %v4389, 2
        %vm4391 = vcmp.gt.s32.totalorder 0, %v4390
        %v4392 = vsel %vm4391, 0, %v4390
        %v4393 = vsub.s32 32, %v4392
        %v4394 = vshll.u32 %v4385, %v4392
        %v4395 = vshrl.u32 %v4377, %v4393
        %v4396 = vor.u32 %v4394, %v4395
        %v4397 = vsub.s32 4294967266, %v4392
        %v4398 = vadd.s32 %v4397, 127
        %v4399 = vshll.u32 %v4398, 23
        %v4400 = vor.u32 4788187, %v4399
        %v4401 = vand.u32 2147483647, %v4400
        %v4403 = vcvt.s32.f32 %v4396
        %v4404 = vmul.f32 %v4403, %v4401
        %v4405 = vxor.u32 %v4404, 2147483648
        %v4406 = vsel %vm4323, %v4405, %v4404
        %v4407 = vsub.s32 4, %v4383
        %v4408 = vsel %vm4323, %v4407, %v4383
        %v4409 = vsel %vm4322, %v915, %v4406
        %v4410 = vsel %vm4322, 0, %v4408
        %v4411 = vcosq.f32.pop %v4409
        %v4412 = vsinq.f32.pop %v4409
        %vm4413 = vweird.f32 %v915
        %v4414 = vadd.s32 %v4410, 3
        %v4415 = vand.u32 %v4414, 3
        %vm4416 = vcmp.lt.s32.totalorder %v4415, 2
        %vm4417 = vcmp.eq.s32.totalorder %v4415, 0
        %v4418 = vxor.u32 %v4412, 2147483648
        %v4419 = vsel %vm4417, %v4411, %v4418
        %vm4420 = vcmp.eq.s32.totalorder %v4415, 2
        %v4421 = vxor.u32 %v4411, 2147483648
        %v4422 = vsel %vm4420, %v4421, %v4412
        %v4423 = vsel %vm4416, %v4419, %v4422
        %v4424 = vsel %vm4413, nan, %v4423
        %v4425 = vand.u32 2147483647, %v916
        %vm4426 = vcmp.le.f32.partialorder %v4425, 0.7853982
        %vm4427 = vcmp.lt.s32.totalorder %v916, 0
        %v4428 = vand.u32 %v916, 2139095040
        %v4429 = vshrl.u32 %v4428, 23
        %v4430 = vsub.s32 %v4429, 127
        %v4431 = vand.u32 2147483647, %v916
        %v4432 = vand.u32 %v4431, 8388607
        %v4433 = vor.u32 %v4432, 8388608
        %v4434 = vsub.s32 0, %v4433
        %v4435 = vadd.s32 %v4430, 1
        %vm4436 = vcmp.gt.s32.totalorder %v4435, 0
        %v4437 = vsel %vm4436, %v4435, 0
        %v4438 = vshrl.u32 %v4437, 5
        %v4439 = vand.u32 %v4437, 31
        %v4440 = vsub.s32 32, %v4439
        %v4441 = vshrl.u32 683565275, %v4440
        %v4442 = vshll.u32 683565275, %v4439
        %v4443 = vshrl.u32 2475754826, %v4440
        %v4444 = vor.u32 %v4442, %v4443
        %v4445 = vshll.u32 2475754826, %v4439
        %v4446 = vshrl.u32 2131351028, %v4440
        %v4447 = vor.u32 %v4445, %v4446
        %v4448 = vshll.u32 2131351028, %v4439
        %v4449 = vshrl.u32 2102212464, %v4440
        %v4450 = vor.u32 %v4448, %v4449
        %v4451 = vshll.u32 2102212464, %v4439
        %v4452 = vshrl.u32 920167782, %v4440
        %v4453 = vor.u32 %v4451, %v4452
        %v4454 = vshll.u32 920167782, %v4439
        %v4455 = vshrl.u32 1326507024, %v4440
        %v4456 = vor.u32 %v4454, %v4455
        %vm4457 = vcmp.lt.s32.totalorder %v4438, 1
        %vm4458 = vcmp.lt.s32.totalorder %v4438, 2
        %vm4459 = vcmp.lt.s32.totalorder %v4438, 3
        %vm4460 = vcmp.lt.s32.totalorder %v4438, 4
        %v4461 = vsel %vm4457, %v4441, %v4444
        %v4462 = vsel %vm4460, %v4450, 2102212464
        %v4463 = vsel %vm4459, %v4447, %v4462
        %v4464 = vsel %vm4458, %v4461, %v4463
        %v4465 = vsel %vm4457, %v4444, %v4447
        %v4466 = vsel %vm4460, %v4453, 920167782
        %v4467 = vsel %vm4459, %v4450, %v4466
        %v4468 = vsel %vm4458, %v4465, %v4467
        %v4469 = vsel %vm4457, %v4447, %v4450
        %v4470 = vsel %vm4460, %v4456, 1326507024
        %v4471 = vsel %vm4459, %v4453, %v4470
        %v4472 = vsel %vm4458, %v4469, %v4471
        %v4473 = vshll.u32 %v4433, 8
        %v4474 = vmul.u32.u64.compose %v4473, %v4472
        %v4475 = vextract.low.u32 %v4474
        %v4476 = vextract.high.u32 %v4474
        %v4477 = vmul.u32.u64.compose %v4473, %v4468
        %v4478 = vextract.low.u32 %v4477
        %v4479 = vextract.high.u32 %v4477
        %v4480 = vmul.u32 %v4473, %v4464
        %v4481 = vadd.s32 %v4476, %v4478
        %vm4482 = vc.u32 %v4476, %v4478
        %v4483 = vadd.s32 %v4479, 1
        %v4484 = vsel %vm4482, %v4483, %v4479
        %v4485 = vadd.s32 %v4480, %v4484
        %v4486 = vadd.s32 %v4485, 536870912
        %v4487 = vshrl.u32 %v4486, 30
        %v4488 = vshll.u32 %v4487, 30
        %v4489 = vsub.s32 %v4485, %v4488
        %vm4490 = vcmp.lt.s32.totalorder %v4489, 0
        %v4491 = vsub.s32 0, %v4489
        %v4492 = vsel %vm4490, %v4491, %v4489
        %v4493 = vclz %v4492
        %v4494 = vsub.s32 %v4493, 2
        %vm4495 = vcmp.gt.s32.totalorder 0, %v4494
        %v4496 = vsel %vm4495, 0, %v4494
        %v4497 = vsub.s32 32, %v4496
        %v4498 = vshll.u32 %v4489, %v4496
        %v4499 = vshrl.u32 %v4481, %v4497
        %v4500 = vor.u32 %v4498, %v4499
        %v4501 = vsub.s32 4294967266, %v4496
        %v4502 = vadd.s32 %v4501, 127
        %v4503 = vshll.u32 %v4502, 23
        %v4504 = vor.u32 4788187, %v4503
        %v4505 = vand.u32 2147483647, %v4504
        %v4507 = vcvt.s32.f32 %v4500
        %v4508 = vmul.f32 %v4507, %v4505
        %v4509 = vxor.u32 %v4508, 2147483648
        %v4510 = vsel %vm4427, %v4509, %v4508
        %v4511 = vsub.s32 4, %v4487
        %v4512 = vsel %vm4427, %v4511, %v4487
        %v4513 = vsel %vm4426, %v916, %v4510
        %v4514 = vsel %vm4426, 0, %v4512
        %v4515 = vcosq.f32.pop %v4513
        %v4516 = vsinq.f32.pop %v4513
        %vm4517 = vweird.f32 %v916
        %v4518 = vadd.s32 %v4514, 3
        %v4519 = vand.u32 %v4518, 3
        %vm4520 = vcmp.lt.s32.totalorder %v4519, 2
        %vm4521 = vcmp.eq.s32.totalorder %v4519, 0
        %v4522 = vxor.u32 %v4516, 2147483648
        %v4523 = vsel %vm4521, %v4515, %v4522
        %vm4524 = vcmp.eq.s32.totalorder %v4519, 2
        %v4525 = vxor.u32 %v4515, 2147483648
        %v4526 = vsel %vm4524, %v4525, %v4516
        %v4527 = vsel %vm4520, %v4523, %v4526
        %v4528 = vsel %vm4517, nan, %v4527
        %v4529 = vand.u32 2147483647, %v917
        %vm4530 = vcmp.le.f32.partialorder %v4529, 0.7853982
        %vm4531 = vcmp.lt.s32.totalorder %v917, 0
        %v4532 = vand.u32 %v917, 2139095040
        %v4533 = vshrl.u32 %v4532, 23
        %v4534 = vsub.s32 %v4533, 127
        %v4535 = vand.u32 2147483647, %v917
        %v4536 = vand.u32 %v4535, 8388607
        %v4537 = vor.u32 %v4536, 8388608
        %v4538 = vsub.s32 0, %v4537
        %v4539 = vadd.s32 %v4534, 1
        %vm4540 = vcmp.gt.s32.totalorder %v4539, 0
        %v4541 = vsel %vm4540, %v4539, 0
        %v4542 = vshrl.u32 %v4541, 5
        %v4543 = vand.u32 %v4541, 31
        %v4544 = vsub.s32 32, %v4543
        %v4545 = vshrl.u32 683565275, %v4544
        %v4546 = vshll.u32 683565275, %v4543
        %v4547 = vshrl.u32 2475754826, %v4544
        %v4548 = vor.u32 %v4546, %v4547
        %v4549 = vshll.u32 2475754826, %v4543
        %v4550 = vshrl.u32 2131351028, %v4544
        %v4551 = vor.u32 %v4549, %v4550
        %v4552 = vshll.u32 2131351028, %v4543
        %v4553 = vshrl.u32 2102212464, %v4544
        %v4554 = vor.u32 %v4552, %v4553
        %v4555 = vshll.u32 2102212464, %v4543
        %v4556 = vshrl.u32 920167782, %v4544
        %v4557 = vor.u32 %v4555, %v4556
        %v4558 = vshll.u32 920167782, %v4543
        %v4559 = vshrl.u32 1326507024, %v4544
        %v4560 = vor.u32 %v4558, %v4559
        %vm4561 = vcmp.lt.s32.totalorder %v4542, 1
        %vm4562 = vcmp.lt.s32.totalorder %v4542, 2
        %vm4563 = vcmp.lt.s32.totalorder %v4542, 3
        %vm4564 = vcmp.lt.s32.totalorder %v4542, 4
        %v4565 = vsel %vm4561, %v4545, %v4548
        %v4566 = vsel %vm4564, %v4554, 2102212464
        %v4567 = vsel %vm4563, %v4551, %v4566
        %v4568 = vsel %vm4562, %v4565, %v4567
        %v4569 = vsel %vm4561, %v4548, %v4551
        %v4570 = vsel %vm4564, %v4557, 920167782
        %v4571 = vsel %vm4563, %v4554, %v4570
        %v4572 = vsel %vm4562, %v4569, %v4571
        %v4573 = vsel %vm4561, %v4551, %v4554
        %v4574 = vsel %vm4564, %v4560, 1326507024
        %v4575 = vsel %vm4563, %v4557, %v4574
        %v4576 = vsel %vm4562, %v4573, %v4575
        %v4577 = vshll.u32 %v4537, 8
        %v4578 = vmul.u32.u64.compose %v4577, %v4576
        %v4579 = vextract.low.u32 %v4578
        %v4580 = vextract.high.u32 %v4578
        %v4581 = vmul.u32.u64.compose %v4577, %v4572
        %v4582 = vextract.low.u32 %v4581
        %v4583 = vextract.high.u32 %v4581
        %v4584 = vmul.u32 %v4577, %v4568
        %v4585 = vadd.s32 %v4580, %v4582
        %vm4586 = vc.u32 %v4580, %v4582
        %v4587 = vadd.s32 %v4583, 1
        %v4588 = vsel %vm4586, %v4587, %v4583
        %v4589 = vadd.s32 %v4584, %v4588
        %v4590 = vadd.s32 %v4589, 536870912
        %v4591 = vshrl.u32 %v4590, 30
        %v4592 = vshll.u32 %v4591, 30
        %v4593 = vsub.s32 %v4589, %v4592
        %vm4594 = vcmp.lt.s32.totalorder %v4593, 0
        %v4595 = vsub.s32 0, %v4593
        %v4596 = vsel %vm4594, %v4595, %v4593
        %v4597 = vclz %v4596
        %v4598 = vsub.s32 %v4597, 2
        %vm4599 = vcmp.gt.s32.totalorder 0, %v4598
        %v4600 = vsel %vm4599, 0, %v4598
        %v4601 = vsub.s32 32, %v4600
        %v4602 = vshll.u32 %v4593, %v4600
        %v4603 = vshrl.u32 %v4585, %v4601
        %v4604 = vor.u32 %v4602, %v4603
        %v4605 = vsub.s32 4294967266, %v4600
        %v4606 = vadd.s32 %v4605, 127
        %v4607 = vshll.u32 %v4606, 23
        %v4608 = vor.u32 4788187, %v4607
        %v4609 = vand.u32 2147483647, %v4608
        %v4611 = vcvt.s32.f32 %v4604
        %v4612 = vmul.f32 %v4611, %v4609
        %v4613 = vxor.u32 %v4612, 2147483648
        %v4614 = vsel %vm4531, %v4613, %v4612
        %v4615 = vsub.s32 4, %v4591
        %v4616 = vsel %vm4531, %v4615, %v4591
        %v4617 = vsel %vm4530, %v917, %v4614
        %v4618 = vsel %vm4530, 0, %v4616
        %v4619 = vcosq.f32.pop %v4617
        %v4620 = vsinq.f32.pop %v4617
        %vm4621 = vweird.f32 %v917
        %v4622 = vadd.s32 %v4618, 3
        %v4623 = vand.u32 %v4622, 3
        %vm4624 = vcmp.lt.s32.totalorder %v4623, 2
        %vm4625 = vcmp.eq.s32.totalorder %v4623, 0
        %v4626 = vxor.u32 %v4620, 2147483648
        %v4627 = vsel %vm4625, %v4619, %v4626
        %vm4628 = vcmp.eq.s32.totalorder %v4623, 2
        %v4629 = vxor.u32 %v4619, 2147483648
        %v4630 = vsel %vm4628, %v4629, %v4620
        %v4631 = vsel %vm4624, %v4627, %v4630
        %v4632 = vsel %vm4621, nan, %v4631
        %v4633 = vand.u32 2147483647, %v918
        %vm4634 = vcmp.le.f32.partialorder %v4633, 0.7853982
        %vm4635 = vcmp.lt.s32.totalorder %v918, 0
        %v4636 = vand.u32 %v918, 2139095040
        %v4637 = vshrl.u32 %v4636, 23
        %v4638 = vsub.s32 %v4637, 127
        %v4639 = vand.u32 2147483647, %v918
        %v4640 = vand.u32 %v4639, 8388607
        %v4641 = vor.u32 %v4640, 8388608
        %v4642 = vsub.s32 0, %v4641
        %v4643 = vadd.s32 %v4638, 1
        %vm4644 = vcmp.gt.s32.totalorder %v4643, 0
        %v4645 = vsel %vm4644, %v4643, 0
        %v4646 = vshrl.u32 %v4645, 5
        %v4647 = vand.u32 %v4645, 31
        %v4648 = vsub.s32 32, %v4647
        %v4649 = vshrl.u32 683565275, %v4648
        %v4650 = vshll.u32 683565275, %v4647
        %v4651 = vshrl.u32 2475754826, %v4648
        %v4652 = vor.u32 %v4650, %v4651
        %v4653 = vshll.u32 2475754826, %v4647
        %v4654 = vshrl.u32 2131351028, %v4648
        %v4655 = vor.u32 %v4653, %v4654
        %v4656 = vshll.u32 2131351028, %v4647
        %v4657 = vshrl.u32 2102212464, %v4648
        %v4658 = vor.u32 %v4656, %v4657
        %v4659 = vshll.u32 2102212464, %v4647
        %v4660 = vshrl.u32 920167782, %v4648
        %v4661 = vor.u32 %v4659, %v4660
        %v4662 = vshll.u32 920167782, %v4647
        %v4663 = vshrl.u32 1326507024, %v4648
        %v4664 = vor.u32 %v4662, %v4663
        %vm4665 = vcmp.lt.s32.totalorder %v4646, 1
        %vm4666 = vcmp.lt.s32.totalorder %v4646, 2
        %vm4667 = vcmp.lt.s32.totalorder %v4646, 3
        %vm4668 = vcmp.lt.s32.totalorder %v4646, 4
        %v4669 = vsel %vm4665, %v4649, %v4652
        %v4670 = vsel %vm4668, %v4658, 2102212464
        %v4671 = vsel %vm4667, %v4655, %v4670
        %v4672 = vsel %vm4666, %v4669, %v4671
        %v4673 = vsel %vm4665, %v4652, %v4655
        %v4674 = vsel %vm4668, %v4661, 920167782
        %v4675 = vsel %vm4667, %v4658, %v4674
        %v4676 = vsel %vm4666, %v4673, %v4675
        %v4677 = vsel %vm4665, %v4655, %v4658
        %v4678 = vsel %vm4668, %v4664, 1326507024
        %v4679 = vsel %vm4667, %v4661, %v4678
        %v4680 = vsel %vm4666, %v4677, %v4679
        %v4681 = vshll.u32 %v4641, 8
        %v4682 = vmul.u32.u64.compose %v4681, %v4680
        %v4683 = vextract.low.u32 %v4682
        %v4684 = vextract.high.u32 %v4682
        %v4685 = vmul.u32.u64.compose %v4681, %v4676
        %v4686 = vextract.low.u32 %v4685
        %v4687 = vextract.high.u32 %v4685
        %v4688 = vmul.u32 %v4681, %v4672
        %v4689 = vadd.s32 %v4684, %v4686
        %vm4690 = vc.u32 %v4684, %v4686
        %v4691 = vadd.s32 %v4687, 1
        %v4692 = vsel %vm4690, %v4691, %v4687
        %v4693 = vadd.s32 %v4688, %v4692
        %v4694 = vadd.s32 %v4693, 536870912
        %v4695 = vshrl.u32 %v4694, 30
        %v4696 = vshll.u32 %v4695, 30
        %v4697 = vsub.s32 %v4693, %v4696
        %vm4698 = vcmp.lt.s32.totalorder %v4697, 0
        %v4699 = vsub.s32 0, %v4697
        %v4700 = vsel %vm4698, %v4699, %v4697
        %v4701 = vclz %v4700
        %v4702 = vsub.s32 %v4701, 2
        %vm4703 = vcmp.gt.s32.totalorder 0, %v4702
        %v4704 = vsel %vm4703, 0, %v4702
        %v4705 = vsub.s32 32, %v4704
        %v4706 = vshll.u32 %v4697, %v4704
        %v4707 = vshrl.u32 %v4689, %v4705
        %v4708 = vor.u32 %v4706, %v4707
        %v4709 = vsub.s32 4294967266, %v4704
        %v4710 = vadd.s32 %v4709, 127
        %v4711 = vshll.u32 %v4710, 23
        %v4712 = vor.u32 4788187, %v4711
        %v4713 = vand.u32 2147483647, %v4712
        %v4715 = vcvt.s32.f32 %v4708
        %v4716 = vmul.f32 %v4715, %v4713
        %v4717 = vxor.u32 %v4716, 2147483648
        %v4718 = vsel %vm4635, %v4717, %v4716
        %v4719 = vsub.s32 4, %v4695
        %v4720 = vsel %vm4635, %v4719, %v4695
        %v4721 = vsel %vm4634, %v918, %v4718
        %v4722 = vsel %vm4634, 0, %v4720
        %v4723 = vcosq.f32.pop %v4721
        %v4724 = vsinq.f32.pop %v4721
        %vm4725 = vweird.f32 %v918
        %v4726 = vadd.s32 %v4722, 3
        %v4727 = vand.u32 %v4726, 3
        %vm4728 = vcmp.lt.s32.totalorder %v4727, 2
        %vm4729 = vcmp.eq.s32.totalorder %v4727, 0
        %v4730 = vxor.u32 %v4724, 2147483648
        %v4731 = vsel %vm4729, %v4723, %v4730
        %vm4732 = vcmp.eq.s32.totalorder %v4727, 2
        %v4733 = vxor.u32 %v4723, 2147483648
        %v4734 = vsel %vm4732, %v4733, %v4724
        %v4735 = vsel %vm4728, %v4731, %v4734
        %v4736 = vsel %vm4725, nan, %v4735
        %v4737 = vand.u32 2147483647, %v919
        %vm4738 = vcmp.le.f32.partialorder %v4737, 0.7853982
        %vm4739 = vcmp.lt.s32.totalorder %v919, 0
        %v4740 = vand.u32 %v919, 2139095040
        %v4741 = vshrl.u32 %v4740, 23
        %v4742 = vsub.s32 %v4741, 127
        %v4743 = vand.u32 2147483647, %v919
        %v4744 = vand.u32 %v4743, 8388607
        %v4745 = vor.u32 %v4744, 8388608
        %v4746 = vsub.s32 0, %v4745
        %v4747 = vadd.s32 %v4742, 1
        %vm4748 = vcmp.gt.s32.totalorder %v4747, 0
        %v4749 = vsel %vm4748, %v4747, 0
        %v4750 = vshrl.u32 %v4749, 5
        %v4751 = vand.u32 %v4749, 31
        %v4752 = vsub.s32 32, %v4751
        %v4753 = vshrl.u32 683565275, %v4752
        %v4754 = vshll.u32 683565275, %v4751
        %v4755 = vshrl.u32 2475754826, %v4752
        %v4756 = vor.u32 %v4754, %v4755
        %v4757 = vshll.u32 2475754826, %v4751
        %v4758 = vshrl.u32 2131351028, %v4752
        %v4759 = vor.u32 %v4757, %v4758
        %v4760 = vshll.u32 2131351028, %v4751
        %v4761 = vshrl.u32 2102212464, %v4752
        %v4762 = vor.u32 %v4760, %v4761
        %v4763 = vshll.u32 2102212464, %v4751
        %v4764 = vshrl.u32 920167782, %v4752
        %v4765 = vor.u32 %v4763, %v4764
        %v4766 = vshll.u32 920167782, %v4751
        %v4767 = vshrl.u32 1326507024, %v4752
        %v4768 = vor.u32 %v4766, %v4767
        %vm4769 = vcmp.lt.s32.totalorder %v4750, 1
        %vm4770 = vcmp.lt.s32.totalorder %v4750, 2
        %vm4771 = vcmp.lt.s32.totalorder %v4750, 3
        %vm4772 = vcmp.lt.s32.totalorder %v4750, 4
        %v4773 = vsel %vm4769, %v4753, %v4756
        %v4774 = vsel %vm4772, %v4762, 2102212464
        %v4775 = vsel %vm4771, %v4759, %v4774
        %v4776 = vsel %vm4770, %v4773, %v4775
        %v4777 = vsel %vm4769, %v4756, %v4759
        %v4778 = vsel %vm4772, %v4765, 920167782
        %v4779 = vsel %vm4771, %v4762, %v4778
        %v4780 = vsel %vm4770, %v4777, %v4779
        %v4781 = vsel %vm4769, %v4759, %v4762
        %v4782 = vsel %vm4772, %v4768, 1326507024
        %v4783 = vsel %vm4771, %v4765, %v4782
        %v4784 = vsel %vm4770, %v4781, %v4783
        %v4785 = vshll.u32 %v4745, 8
        %v4786 = vmul.u32.u64.compose %v4785, %v4784
        %v4787 = vextract.low.u32 %v4786
        %v4788 = vextract.high.u32 %v4786
        %v4789 = vmul.u32.u64.compose %v4785, %v4780
        %v4790 = vextract.low.u32 %v4789
        %v4791 = vextract.high.u32 %v4789
        %v4792 = vmul.u32 %v4785, %v4776
        %v4793 = vadd.s32 %v4788, %v4790
        %vm4794 = vc.u32 %v4788, %v4790
        %v4795 = vadd.s32 %v4791, 1
        %v4796 = vsel %vm4794, %v4795, %v4791
        %v4797 = vadd.s32 %v4792, %v4796
        %v4798 = vadd.s32 %v4797, 536870912
        %v4799 = vshrl.u32 %v4798, 30
        %v4800 = vshll.u32 %v4799, 30
        %v4801 = vsub.s32 %v4797, %v4800
        %vm4802 = vcmp.lt.s32.totalorder %v4801, 0
        %v4803 = vsub.s32 0, %v4801
        %v4804 = vsel %vm4802, %v4803, %v4801
        %v4805 = vclz %v4804
        %v4806 = vsub.s32 %v4805, 2
        %vm4807 = vcmp.gt.s32.totalorder 0, %v4806
        %v4808 = vsel %vm4807, 0, %v4806
        %v4809 = vsub.s32 32, %v4808
        %v4810 = vshll.u32 %v4801, %v4808
        %v4811 = vshrl.u32 %v4793, %v4809
        %v4812 = vor.u32 %v4810, %v4811
        %v4813 = vsub.s32 4294967266, %v4808
        %v4814 = vadd.s32 %v4813, 127
        %v4815 = vshll.u32 %v4814, 23
        %v4816 = vor.u32 4788187, %v4815
        %v4817 = vand.u32 2147483647, %v4816
        %v4819 = vcvt.s32.f32 %v4812
        %v4820 = vmul.f32 %v4819, %v4817
        %v4821 = vxor.u32 %v4820, 2147483648
        %v4822 = vsel %vm4739, %v4821, %v4820
        %v4823 = vsub.s32 4, %v4799
        %v4824 = vsel %vm4739, %v4823, %v4799
        %v4825 = vsel %vm4738, %v919, %v4822
        %v4826 = vsel %vm4738, 0, %v4824
        %v4827 = vcosq.f32.pop %v4825
        %v4828 = vsinq.f32.pop %v4825
        %vm4829 = vweird.f32 %v919
        %v4830 = vadd.s32 %v4826, 3
        %v4831 = vand.u32 %v4830, 3
        %vm4832 = vcmp.lt.s32.totalorder %v4831, 2
        %vm4833 = vcmp.eq.s32.totalorder %v4831, 0
        %v4834 = vxor.u32 %v4828, 2147483648
        %v4835 = vsel %vm4833, %v4827, %v4834
        %vm4836 = vcmp.eq.s32.totalorder %v4831, 2
        %v4837 = vxor.u32 %v4827, 2147483648
        %v4838 = vsel %vm4836, %v4837, %v4828
        %v4839 = vsel %vm4832, %v4835, %v4838
        %v4840 = vsel %vm4829, nan, %v4839
        %v4841 = vand.u32 2147483647, %v920
        %vm4842 = vcmp.le.f32.partialorder %v4841, 0.7853982
        %vm4843 = vcmp.lt.s32.totalorder %v920, 0
        %v4844 = vand.u32 %v920, 2139095040
        %v4845 = vshrl.u32 %v4844, 23
        %v4846 = vsub.s32 %v4845, 127
        %v4847 = vand.u32 2147483647, %v920
        %v4848 = vand.u32 %v4847, 8388607
        %v4849 = vor.u32 %v4848, 8388608
        %v4850 = vsub.s32 0, %v4849
        %v4851 = vadd.s32 %v4846, 1
        %vm4852 = vcmp.gt.s32.totalorder %v4851, 0
        %v4853 = vsel %vm4852, %v4851, 0
        %v4854 = vshrl.u32 %v4853, 5
        %v4855 = vand.u32 %v4853, 31
        %v4856 = vsub.s32 32, %v4855
        %v4857 = vshrl.u32 683565275, %v4856
        %v4858 = vshll.u32 683565275, %v4855
        %v4859 = vshrl.u32 2475754826, %v4856
        %v4860 = vor.u32 %v4858, %v4859
        %v4861 = vshll.u32 2475754826, %v4855
        %v4862 = vshrl.u32 2131351028, %v4856
        %v4863 = vor.u32 %v4861, %v4862
        %v4864 = vshll.u32 2131351028, %v4855
        %v4865 = vshrl.u32 2102212464, %v4856
        %v4866 = vor.u32 %v4864, %v4865
        %v4867 = vshll.u32 2102212464, %v4855
        %v4868 = vshrl.u32 920167782, %v4856
        %v4869 = vor.u32 %v4867, %v4868
        %v4870 = vshll.u32 920167782, %v4855
        %v4871 = vshrl.u32 1326507024, %v4856
        %v4872 = vor.u32 %v4870, %v4871
        %vm4873 = vcmp.lt.s32.totalorder %v4854, 1
        %vm4874 = vcmp.lt.s32.totalorder %v4854, 2
        %vm4875 = vcmp.lt.s32.totalorder %v4854, 3
        %vm4876 = vcmp.lt.s32.totalorder %v4854, 4
        %v4877 = vsel %vm4873, %v4857, %v4860
        %v4878 = vsel %vm4876, %v4866, 2102212464
        %v4879 = vsel %vm4875, %v4863, %v4878
        %v4880 = vsel %vm4874, %v4877, %v4879
        %v4881 = vsel %vm4873, %v4860, %v4863
        %v4882 = vsel %vm4876, %v4869, 920167782
        %v4883 = vsel %vm4875, %v4866, %v4882
        %v4884 = vsel %vm4874, %v4881, %v4883
        %v4885 = vsel %vm4873, %v4863, %v4866
        %v4886 = vsel %vm4876, %v4872, 1326507024
        %v4887 = vsel %vm4875, %v4869, %v4886
        %v4888 = vsel %vm4874, %v4885, %v4887
        %v4889 = vshll.u32 %v4849, 8
        %v4890 = vmul.u32.u64.compose %v4889, %v4888
        %v4891 = vextract.low.u32 %v4890
        %v4892 = vextract.high.u32 %v4890
        %v4893 = vmul.u32.u64.compose %v4889, %v4884
        %v4894 = vextract.low.u32 %v4893
        %v4895 = vextract.high.u32 %v4893
        %v4896 = vmul.u32 %v4889, %v4880
        %v4897 = vadd.s32 %v4892, %v4894
        %vm4898 = vc.u32 %v4892, %v4894
        %v4899 = vadd.s32 %v4895, 1
        %v4900 = vsel %vm4898, %v4899, %v4895
        %v4901 = vadd.s32 %v4896, %v4900
        %v4902 = vadd.s32 %v4901, 536870912
        %v4903 = vshrl.u32 %v4902, 30
        %v4904 = vshll.u32 %v4903, 30
        %v4905 = vsub.s32 %v4901, %v4904
        %vm4906 = vcmp.lt.s32.totalorder %v4905, 0
        %v4907 = vsub.s32 0, %v4905
        %v4908 = vsel %vm4906, %v4907, %v4905
        %v4909 = vclz %v4908
        %v4910 = vsub.s32 %v4909, 2
        %vm4911 = vcmp.gt.s32.totalorder 0, %v4910
        %v4912 = vsel %vm4911, 0, %v4910
        %v4913 = vsub.s32 32, %v4912
        %v4914 = vshll.u32 %v4905, %v4912
        %v4915 = vshrl.u32 %v4897, %v4913
        %v4916 = vor.u32 %v4914, %v4915
        %v4917 = vsub.s32 4294967266, %v4912
        %v4918 = vadd.s32 %v4917, 127
        %v4919 = vshll.u32 %v4918, 23
        %v4920 = vor.u32 4788187, %v4919
        %v4921 = vand.u32 2147483647, %v4920
        %v4923 = vcvt.s32.f32 %v4916
        %v4924 = vmul.f32 %v4923, %v4921
        %v4925 = vxor.u32 %v4924, 2147483648
        %v4926 = vsel %vm4843, %v4925, %v4924
        %v4927 = vsub.s32 4, %v4903
        %v4928 = vsel %vm4843, %v4927, %v4903
        %v4929 = vsel %vm4842, %v920, %v4926
        %v4930 = vsel %vm4842, 0, %v4928
        %v4931 = vcosq.f32.pop %v4929
        %v4932 = vsinq.f32.pop %v4929
        %vm4933 = vweird.f32 %v920
        %v4934 = vadd.s32 %v4930, 3
        %v4935 = vand.u32 %v4934, 3
        %vm4936 = vcmp.lt.s32.totalorder %v4935, 2
        %vm4937 = vcmp.eq.s32.totalorder %v4935, 0
        %v4938 = vxor.u32 %v4932, 2147483648
        %v4939 = vsel %vm4937, %v4931, %v4938
        %vm4940 = vcmp.eq.s32.totalorder %v4935, 2
        %v4941 = vxor.u32 %v4931, 2147483648
        %v4942 = vsel %vm4940, %v4941, %v4932
        %v4943 = vsel %vm4936, %v4939, %v4942
        %v4944 = vsel %vm4933, nan, %v4943
        %v4945 = vand.u32 2147483647, %v921
        %vm4946 = vcmp.le.f32.partialorder %v4945, 0.7853982
        %vm4947 = vcmp.lt.s32.totalorder %v921, 0
        %v4948 = vand.u32 %v921, 2139095040
        %v4949 = vshrl.u32 %v4948, 23
        %v4950 = vsub.s32 %v4949, 127
        %v4951 = vand.u32 2147483647, %v921
        %v4952 = vand.u32 %v4951, 8388607
        %v4953 = vor.u32 %v4952, 8388608
        %v4954 = vsub.s32 0, %v4953
        %v4955 = vadd.s32 %v4950, 1
        %vm4956 = vcmp.gt.s32.totalorder %v4955, 0
        %v4957 = vsel %vm4956, %v4955, 0
        %v4958 = vshrl.u32 %v4957, 5
        %v4959 = vand.u32 %v4957, 31
        %v4960 = vsub.s32 32, %v4959
        %v4961 = vshrl.u32 683565275, %v4960
        %v4962 = vshll.u32 683565275, %v4959
        %v4963 = vshrl.u32 2475754826, %v4960
        %v4964 = vor.u32 %v4962, %v4963
        %v4965 = vshll.u32 2475754826, %v4959
        %v4966 = vshrl.u32 2131351028, %v4960
        %v4967 = vor.u32 %v4965, %v4966
        %v4968 = vshll.u32 2131351028, %v4959
        %v4969 = vshrl.u32 2102212464, %v4960
        %v4970 = vor.u32 %v4968, %v4969
        %v4971 = vshll.u32 2102212464, %v4959
        %v4972 = vshrl.u32 920167782, %v4960
        %v4973 = vor.u32 %v4971, %v4972
        %v4974 = vshll.u32 920167782, %v4959
        %v4975 = vshrl.u32 1326507024, %v4960
        %v4976 = vor.u32 %v4974, %v4975
        %vm4977 = vcmp.lt.s32.totalorder %v4958, 1
        %vm4978 = vcmp.lt.s32.totalorder %v4958, 2
        %vm4979 = vcmp.lt.s32.totalorder %v4958, 3
        %vm4980 = vcmp.lt.s32.totalorder %v4958, 4
        %v4981 = vsel %vm4977, %v4961, %v4964
        %v4982 = vsel %vm4980, %v4970, 2102212464
        %v4983 = vsel %vm4979, %v4967, %v4982
        %v4984 = vsel %vm4978, %v4981, %v4983
        %v4985 = vsel %vm4977, %v4964, %v4967
        %v4986 = vsel %vm4980, %v4973, 920167782
        %v4987 = vsel %vm4979, %v4970, %v4986
        %v4988 = vsel %vm4978, %v4985, %v4987
        %v4989 = vsel %vm4977, %v4967, %v4970
        %v4990 = vsel %vm4980, %v4976, 1326507024
        %v4991 = vsel %vm4979, %v4973, %v4990
        %v4992 = vsel %vm4978, %v4989, %v4991
        %v4993 = vshll.u32 %v4953, 8
        %v4994 = vmul.u32.u64.compose %v4993, %v4992
        %v4995 = vextract.low.u32 %v4994
        %v4996 = vextract.high.u32 %v4994
        %v4997 = vmul.u32.u64.compose %v4993, %v4988
        %v4998 = vextract.low.u32 %v4997
        %v4999 = vextract.high.u32 %v4997
        %v5000 = vmul.u32 %v4993, %v4984
        %v5001 = vadd.s32 %v4996, %v4998
        %vm5002 = vc.u32 %v4996, %v4998
        %v5003 = vadd.s32 %v4999, 1
        %v5004 = vsel %vm5002, %v5003, %v4999
        %v5005 = vadd.s32 %v5000, %v5004
        %v5006 = vadd.s32 %v5005, 536870912
        %v5007 = vshrl.u32 %v5006, 30
        %v5008 = vshll.u32 %v5007, 30
        %v5009 = vsub.s32 %v5005, %v5008
        %vm5010 = vcmp.lt.s32.totalorder %v5009, 0
        %v5011 = vsub.s32 0, %v5009
        %v5012 = vsel %vm5010, %v5011, %v5009
        %v5013 = vclz %v5012
        %v5014 = vsub.s32 %v5013, 2
        %vm5015 = vcmp.gt.s32.totalorder 0, %v5014
        %v5016 = vsel %vm5015, 0, %v5014
        %v5017 = vsub.s32 32, %v5016
        %v5018 = vshll.u32 %v5009, %v5016
        %v5019 = vshrl.u32 %v5001, %v5017
        %v5020 = vor.u32 %v5018, %v5019
        %v5021 = vsub.s32 4294967266, %v5016
        %v5022 = vadd.s32 %v5021, 127
        %v5023 = vshll.u32 %v5022, 23
        %v5024 = vor.u32 4788187, %v5023
        %v5025 = vand.u32 2147483647, %v5024
        %v5027 = vcvt.s32.f32 %v5020
        %v5028 = vmul.f32 %v5027, %v5025
        %v5029 = vxor.u32 %v5028, 2147483648
        %v5030 = vsel %vm4947, %v5029, %v5028
        %v5031 = vsub.s32 4, %v5007
        %v5032 = vsel %vm4947, %v5031, %v5007
        %v5033 = vsel %vm4946, %v921, %v5030
        %v5034 = vsel %vm4946, 0, %v5032
        %v5035 = vcosq.f32.pop %v5033
        %v5036 = vsinq.f32.pop %v5033
        %vm5037 = vweird.f32 %v921
        %v5038 = vadd.s32 %v5034, 3
        %v5039 = vand.u32 %v5038, 3
        %vm5040 = vcmp.lt.s32.totalorder %v5039, 2
        %vm5041 = vcmp.eq.s32.totalorder %v5039, 0
        %v5042 = vxor.u32 %v5036, 2147483648
        %v5043 = vsel %vm5041, %v5035, %v5042
        %vm5044 = vcmp.eq.s32.totalorder %v5039, 2
        %v5045 = vxor.u32 %v5035, 2147483648
        %v5046 = vsel %vm5044, %v5045, %v5036
        %v5047 = vsel %vm5040, %v5043, %v5046
        %v5048 = vsel %vm5037, nan, %v5047
        %v5049 = vand.u32 2147483647, %v922
        %vm5050 = vcmp.le.f32.partialorder %v5049, 0.7853982
        %vm5051 = vcmp.lt.s32.totalorder %v922, 0
        %v5052 = vand.u32 %v922, 2139095040
        %v5053 = vshrl.u32 %v5052, 23
        %v5054 = vsub.s32 %v5053, 127
        %v5055 = vand.u32 2147483647, %v922
        %v5056 = vand.u32 %v5055, 8388607
        %v5057 = vor.u32 %v5056, 8388608
        %v5058 = vsub.s32 0, %v5057
        %v5059 = vadd.s32 %v5054, 1
        %vm5060 = vcmp.gt.s32.totalorder %v5059, 0
        %v5061 = vsel %vm5060, %v5059, 0
        %v5062 = vshrl.u32 %v5061, 5
        %v5063 = vand.u32 %v5061, 31
        %v5064 = vsub.s32 32, %v5063
        %v5065 = vshrl.u32 683565275, %v5064
        %v5066 = vshll.u32 683565275, %v5063
        %v5067 = vshrl.u32 2475754826, %v5064
        %v5068 = vor.u32 %v5066, %v5067
        %v5069 = vshll.u32 2475754826, %v5063
        %v5070 = vshrl.u32 2131351028, %v5064
        %v5071 = vor.u32 %v5069, %v5070
        %v5072 = vshll.u32 2131351028, %v5063
        %v5073 = vshrl.u32 2102212464, %v5064
        %v5074 = vor.u32 %v5072, %v5073
        %v5075 = vshll.u32 2102212464, %v5063
        %v5076 = vshrl.u32 920167782, %v5064
        %v5077 = vor.u32 %v5075, %v5076
        %v5078 = vshll.u32 920167782, %v5063
        %v5079 = vshrl.u32 1326507024, %v5064
        %v5080 = vor.u32 %v5078, %v5079
        %vm5081 = vcmp.lt.s32.totalorder %v5062, 1
        %vm5082 = vcmp.lt.s32.totalorder %v5062, 2
        %vm5083 = vcmp.lt.s32.totalorder %v5062, 3
        %vm5084 = vcmp.lt.s32.totalorder %v5062, 4
        %v5085 = vsel %vm5081, %v5065, %v5068
        %v5086 = vsel %vm5084, %v5074, 2102212464
        %v5087 = vsel %vm5083, %v5071, %v5086
        %v5088 = vsel %vm5082, %v5085, %v5087
        %v5089 = vsel %vm5081, %v5068, %v5071
        %v5090 = vsel %vm5084, %v5077, 920167782
        %v5091 = vsel %vm5083, %v5074, %v5090
        %v5092 = vsel %vm5082, %v5089, %v5091
        %v5093 = vsel %vm5081, %v5071, %v5074
        %v5094 = vsel %vm5084, %v5080, 1326507024
        %v5095 = vsel %vm5083, %v5077, %v5094
        %v5096 = vsel %vm5082, %v5093, %v5095
        %v5097 = vshll.u32 %v5057, 8
        %v5098 = vmul.u32.u64.compose %v5097, %v5096
        %v5099 = vextract.low.u32 %v5098
        %v5100 = vextract.high.u32 %v5098
        %v5101 = vmul.u32.u64.compose %v5097, %v5092
        %v5102 = vextract.low.u32 %v5101
        %v5103 = vextract.high.u32 %v5101
        %v5104 = vmul.u32 %v5097, %v5088
        %v5105 = vadd.s32 %v5100, %v5102
        %vm5106 = vc.u32 %v5100, %v5102
        %v5107 = vadd.s32 %v5103, 1
        %v5108 = vsel %vm5106, %v5107, %v5103
        %v5109 = vadd.s32 %v5104, %v5108
        %v5110 = vadd.s32 %v5109, 536870912
        %v5111 = vshrl.u32 %v5110, 30
        %v5112 = vshll.u32 %v5111, 30
        %v5113 = vsub.s32 %v5109, %v5112
        %vm5114 = vcmp.lt.s32.totalorder %v5113, 0
        %v5115 = vsub.s32 0, %v5113
        %v5116 = vsel %vm5114, %v5115, %v5113
        %v5117 = vclz %v5116
        %v5118 = vsub.s32 %v5117, 2
        %vm5119 = vcmp.gt.s32.totalorder 0, %v5118
        %v5120 = vsel %vm5119, 0, %v5118
        %v5121 = vsub.s32 32, %v5120
        %v5122 = vshll.u32 %v5113, %v5120
        %v5123 = vshrl.u32 %v5105, %v5121
        %v5124 = vor.u32 %v5122, %v5123
        %v5125 = vsub.s32 4294967266, %v5120
        %v5126 = vadd.s32 %v5125, 127
        %v5127 = vshll.u32 %v5126, 23
        %v5128 = vor.u32 4788187, %v5127
        %v5129 = vand.u32 2147483647, %v5128
        %v5131 = vcvt.s32.f32 %v5124
        %v5132 = vmul.f32 %v5131, %v5129
        %v5133 = vxor.u32 %v5132, 2147483648
        %v5134 = vsel %vm5051, %v5133, %v5132
        %v5135 = vsub.s32 4, %v5111
        %v5136 = vsel %vm5051, %v5135, %v5111
        %v5137 = vsel %vm5050, %v922, %v5134
        %v5138 = vsel %vm5050, 0, %v5136
        %v5139 = vcosq.f32.pop %v5137
        %v5140 = vsinq.f32.pop %v5137
        %vm5141 = vweird.f32 %v922
        %v5142 = vadd.s32 %v5138, 3
        %v5143 = vand.u32 %v5142, 3
        %vm5144 = vcmp.lt.s32.totalorder %v5143, 2
        %vm5145 = vcmp.eq.s32.totalorder %v5143, 0
        %v5146 = vxor.u32 %v5140, 2147483648
        %v5147 = vsel %vm5145, %v5139, %v5146
        %vm5148 = vcmp.eq.s32.totalorder %v5143, 2
        %v5149 = vxor.u32 %v5139, 2147483648
        %v5150 = vsel %vm5148, %v5149, %v5140
        %v5151 = vsel %vm5144, %v5147, %v5150
        %v5152 = vsel %vm5141, nan, %v5151
        %v5153 = vand.u32 2147483647, %v923
        %vm5154 = vcmp.le.f32.partialorder %v5153, 0.7853982
        %vm5155 = vcmp.lt.s32.totalorder %v923, 0
        %v5156 = vand.u32 %v923, 2139095040
        %v5157 = vshrl.u32 %v5156, 23
        %v5158 = vsub.s32 %v5157, 127
        %v5159 = vand.u32 2147483647, %v923
        %v5160 = vand.u32 %v5159, 8388607
        %v5161 = vor.u32 %v5160, 8388608
        %v5162 = vsub.s32 0, %v5161
        %v5163 = vadd.s32 %v5158, 1
        %vm5164 = vcmp.gt.s32.totalorder %v5163, 0
        %v5165 = vsel %vm5164, %v5163, 0
        %v5166 = vshrl.u32 %v5165, 5
        %v5167 = vand.u32 %v5165, 31
        %v5168 = vsub.s32 32, %v5167
        %v5169 = vshrl.u32 683565275, %v5168
        %v5170 = vshll.u32 683565275, %v5167
        %v5171 = vshrl.u32 2475754826, %v5168
        %v5172 = vor.u32 %v5170, %v5171
        %v5173 = vshll.u32 2475754826, %v5167
        %v5174 = vshrl.u32 2131351028, %v5168
        %v5175 = vor.u32 %v5173, %v5174
        %v5176 = vshll.u32 2131351028, %v5167
        %v5177 = vshrl.u32 2102212464, %v5168
        %v5178 = vor.u32 %v5176, %v5177
        %v5179 = vshll.u32 2102212464, %v5167
        %v5180 = vshrl.u32 920167782, %v5168
        %v5181 = vor.u32 %v5179, %v5180
        %v5182 = vshll.u32 920167782, %v5167
        %v5183 = vshrl.u32 1326507024, %v5168
        %v5184 = vor.u32 %v5182, %v5183
        %vm5185 = vcmp.lt.s32.totalorder %v5166, 1
        %vm5186 = vcmp.lt.s32.totalorder %v5166, 2
        %vm5187 = vcmp.lt.s32.totalorder %v5166, 3
        %vm5188 = vcmp.lt.s32.totalorder %v5166, 4
        %v5189 = vsel %vm5185, %v5169, %v5172
        %v5190 = vsel %vm5188, %v5178, 2102212464
        %v5191 = vsel %vm5187, %v5175, %v5190
        %v5192 = vsel %vm5186, %v5189, %v5191
        %v5193 = vsel %vm5185, %v5172, %v5175
        %v5194 = vsel %vm5188, %v5181, 920167782
        %v5195 = vsel %vm5187, %v5178, %v5194
        %v5196 = vsel %vm5186, %v5193, %v5195
        %v5197 = vsel %vm5185, %v5175, %v5178
        %v5198 = vsel %vm5188, %v5184, 1326507024
        %v5199 = vsel %vm5187, %v5181, %v5198
        %v5200 = vsel %vm5186, %v5197, %v5199
        %v5201 = vshll.u32 %v5161, 8
        %v5202 = vmul.u32.u64.compose %v5201, %v5200
        %v5203 = vextract.low.u32 %v5202
        %v5204 = vextract.high.u32 %v5202
        %v5205 = vmul.u32.u64.compose %v5201, %v5196
        %v5206 = vextract.low.u32 %v5205
        %v5207 = vextract.high.u32 %v5205
        %v5208 = vmul.u32 %v5201, %v5192
        %v5209 = vadd.s32 %v5204, %v5206
        %vm5210 = vc.u32 %v5204, %v5206
        %v5211 = vadd.s32 %v5207, 1
        %v5212 = vsel %vm5210, %v5211, %v5207
        %v5213 = vadd.s32 %v5208, %v5212
        %v5214 = vadd.s32 %v5213, 536870912
        %v5215 = vshrl.u32 %v5214, 30
        %v5216 = vshll.u32 %v5215, 30
        %v5217 = vsub.s32 %v5213, %v5216
        %vm5218 = vcmp.lt.s32.totalorder %v5217, 0
        %v5219 = vsub.s32 0, %v5217
        %v5220 = vsel %vm5218, %v5219, %v5217
        %v5221 = vclz %v5220
        %v5222 = vsub.s32 %v5221, 2
        %vm5223 = vcmp.gt.s32.totalorder 0, %v5222
        %v5224 = vsel %vm5223, 0, %v5222
        %v5225 = vsub.s32 32, %v5224
        %v5226 = vshll.u32 %v5217, %v5224
        %v5227 = vshrl.u32 %v5209, %v5225
        %v5228 = vor.u32 %v5226, %v5227
        %v5229 = vsub.s32 4294967266, %v5224
        %v5230 = vadd.s32 %v5229, 127
        %v5231 = vshll.u32 %v5230, 23
        %v5232 = vor.u32 4788187, %v5231
        %v5233 = vand.u32 2147483647, %v5232
        %v5235 = vcvt.s32.f32 %v5228
        %v5236 = vmul.f32 %v5235, %v5233
        %v5237 = vxor.u32 %v5236, 2147483648
        %v5238 = vsel %vm5155, %v5237, %v5236
        %v5239 = vsub.s32 4, %v5215
        %v5240 = vsel %vm5155, %v5239, %v5215
        %v5241 = vsel %vm5154, %v923, %v5238
        %v5242 = vsel %vm5154, 0, %v5240
        %v5243 = vcosq.f32.pop %v5241
        %v5244 = vsinq.f32.pop %v5241
        %vm5245 = vweird.f32 %v923
        %v5246 = vadd.s32 %v5242, 3
        %v5247 = vand.u32 %v5246, 3
        %vm5248 = vcmp.lt.s32.totalorder %v5247, 2
        %vm5249 = vcmp.eq.s32.totalorder %v5247, 0
        %v5250 = vxor.u32 %v5244, 2147483648
        %v5251 = vsel %vm5249, %v5243, %v5250
        %vm5252 = vcmp.eq.s32.totalorder %v5247, 2
        %v5253 = vxor.u32 %v5243, 2147483648
        %v5254 = vsel %vm5252, %v5253, %v5244
        %v5255 = vsel %vm5248, %v5251, %v5254
        %v5256 = vsel %vm5245, nan, %v5255
        %v5257 = vand.u32 2147483647, %v924
        %vm5258 = vcmp.le.f32.partialorder %v5257, 0.7853982
        %vm5259 = vcmp.lt.s32.totalorder %v924, 0
        %v5260 = vand.u32 %v924, 2139095040
        %v5261 = vshrl.u32 %v5260, 23
        %v5262 = vsub.s32 %v5261, 127
        %v5263 = vand.u32 2147483647, %v924
        %v5264 = vand.u32 %v5263, 8388607
        %v5265 = vor.u32 %v5264, 8388608
        %v5266 = vsub.s32 0, %v5265
        %v5267 = vadd.s32 %v5262, 1
        %vm5268 = vcmp.gt.s32.totalorder %v5267, 0
        %v5269 = vsel %vm5268, %v5267, 0
        %v5270 = vshrl.u32 %v5269, 5
        %v5271 = vand.u32 %v5269, 31
        %v5272 = vsub.s32 32, %v5271
        %v5273 = vshrl.u32 683565275, %v5272
        %v5274 = vshll.u32 683565275, %v5271
        %v5275 = vshrl.u32 2475754826, %v5272
        %v5276 = vor.u32 %v5274, %v5275
        %v5277 = vshll.u32 2475754826, %v5271
        %v5278 = vshrl.u32 2131351028, %v5272
        %v5279 = vor.u32 %v5277, %v5278
        %v5280 = vshll.u32 2131351028, %v5271
        %v5281 = vshrl.u32 2102212464, %v5272
        %v5282 = vor.u32 %v5280, %v5281
        %v5283 = vshll.u32 2102212464, %v5271
        %v5284 = vshrl.u32 920167782, %v5272
        %v5285 = vor.u32 %v5283, %v5284
        %v5286 = vshll.u32 920167782, %v5271
        %v5287 = vshrl.u32 1326507024, %v5272
        %v5288 = vor.u32 %v5286, %v5287
        %vm5289 = vcmp.lt.s32.totalorder %v5270, 1
        %vm5290 = vcmp.lt.s32.totalorder %v5270, 2
        %vm5291 = vcmp.lt.s32.totalorder %v5270, 3
        %vm5292 = vcmp.lt.s32.totalorder %v5270, 4
        %v5293 = vsel %vm5289, %v5273, %v5276
        %v5294 = vsel %vm5292, %v5282, 2102212464
        %v5295 = vsel %vm5291, %v5279, %v5294
        %v5296 = vsel %vm5290, %v5293, %v5295
        %v5297 = vsel %vm5289, %v5276, %v5279
        %v5298 = vsel %vm5292, %v5285, 920167782
        %v5299 = vsel %vm5291, %v5282, %v5298
        %v5300 = vsel %vm5290, %v5297, %v5299
        %v5301 = vsel %vm5289, %v5279, %v5282
        %v5302 = vsel %vm5292, %v5288, 1326507024
        %v5303 = vsel %vm5291, %v5285, %v5302
        %v5304 = vsel %vm5290, %v5301, %v5303
        %v5305 = vshll.u32 %v5265, 8
        %v5306 = vmul.u32.u64.compose %v5305, %v5304
        %v5307 = vextract.low.u32 %v5306
        %v5308 = vextract.high.u32 %v5306
        %v5309 = vmul.u32.u64.compose %v5305, %v5300
        %v5310 = vextract.low.u32 %v5309
        %v5311 = vextract.high.u32 %v5309
        %v5312 = vmul.u32 %v5305, %v5296
        %v5313 = vadd.s32 %v5308, %v5310
        %vm5314 = vc.u32 %v5308, %v5310
        %v5315 = vadd.s32 %v5311, 1
        %v5316 = vsel %vm5314, %v5315, %v5311
        %v5317 = vadd.s32 %v5312, %v5316
        %v5318 = vadd.s32 %v5317, 536870912
        %v5319 = vshrl.u32 %v5318, 30
        %v5320 = vshll.u32 %v5319, 30
        %v5321 = vsub.s32 %v5317, %v5320
        %vm5322 = vcmp.lt.s32.totalorder %v5321, 0
        %v5323 = vsub.s32 0, %v5321
        %v5324 = vsel %vm5322, %v5323, %v5321
        %v5325 = vclz %v5324
        %v5326 = vsub.s32 %v5325, 2
        %vm5327 = vcmp.gt.s32.totalorder 0, %v5326
        %v5328 = vsel %vm5327, 0, %v5326
        %v5329 = vsub.s32 32, %v5328
        %v5330 = vshll.u32 %v5321, %v5328
        %v5331 = vshrl.u32 %v5313, %v5329
        %v5332 = vor.u32 %v5330, %v5331
        %v5333 = vsub.s32 4294967266, %v5328
        %v5334 = vadd.s32 %v5333, 127
        %v5335 = vshll.u32 %v5334, 23
        %v5336 = vor.u32 4788187, %v5335
        %v5337 = vand.u32 2147483647, %v5336
        %v5339 = vcvt.s32.f32 %v5332
        %v5340 = vmul.f32 %v5339, %v5337
        %v5341 = vxor.u32 %v5340, 2147483648
        %v5342 = vsel %vm5259, %v5341, %v5340
        %v5343 = vsub.s32 4, %v5319
        %v5344 = vsel %vm5259, %v5343, %v5319
        %v5345 = vsel %vm5258, %v924, %v5342
        %v5346 = vsel %vm5258, 0, %v5344
        %v5347 = vcosq.f32.pop %v5345
        %v5348 = vsinq.f32.pop %v5345
        %vm5349 = vweird.f32 %v924
        %v5350 = vadd.s32 %v5346, 3
        %v5351 = vand.u32 %v5350, 3
        %vm5352 = vcmp.lt.s32.totalorder %v5351, 2
        %vm5353 = vcmp.eq.s32.totalorder %v5351, 0
        %v5354 = vxor.u32 %v5348, 2147483648
        %v5355 = vsel %vm5353, %v5347, %v5354
        %vm5356 = vcmp.eq.s32.totalorder %v5351, 2
        %v5357 = vxor.u32 %v5347, 2147483648
        %v5358 = vsel %vm5356, %v5357, %v5348
        %v5359 = vsel %vm5352, %v5355, %v5358
        %v5360 = vsel %vm5349, nan, %v5359
        %v5361 = vand.u32 2147483647, %v925
        %vm5362 = vcmp.le.f32.partialorder %v5361, 0.7853982
        %vm5363 = vcmp.lt.s32.totalorder %v925, 0
        %v5364 = vand.u32 %v925, 2139095040
        %v5365 = vshrl.u32 %v5364, 23
        %v5366 = vsub.s32 %v5365, 127
        %v5367 = vand.u32 2147483647, %v925
        %v5368 = vand.u32 %v5367, 8388607
        %v5369 = vor.u32 %v5368, 8388608
        %v5370 = vsub.s32 0, %v5369
        %v5371 = vadd.s32 %v5366, 1
        %vm5372 = vcmp.gt.s32.totalorder %v5371, 0
        %v5373 = vsel %vm5372, %v5371, 0
        %v5374 = vshrl.u32 %v5373, 5
        %v5375 = vand.u32 %v5373, 31
        %v5376 = vsub.s32 32, %v5375
        %v5377 = vshrl.u32 683565275, %v5376
        %v5378 = vshll.u32 683565275, %v5375
        %v5379 = vshrl.u32 2475754826, %v5376
        %v5380 = vor.u32 %v5378, %v5379
        %v5381 = vshll.u32 2475754826, %v5375
        %v5382 = vshrl.u32 2131351028, %v5376
        %v5383 = vor.u32 %v5381, %v5382
        %v5384 = vshll.u32 2131351028, %v5375
        %v5385 = vshrl.u32 2102212464, %v5376
        %v5386 = vor.u32 %v5384, %v5385
        %v5387 = vshll.u32 2102212464, %v5375
        %v5388 = vshrl.u32 920167782, %v5376
        %v5389 = vor.u32 %v5387, %v5388
        %v5390 = vshll.u32 920167782, %v5375
        %v5391 = vshrl.u32 1326507024, %v5376
        %v5392 = vor.u32 %v5390, %v5391
        %vm5393 = vcmp.lt.s32.totalorder %v5374, 1
        %vm5394 = vcmp.lt.s32.totalorder %v5374, 2
        %vm5395 = vcmp.lt.s32.totalorder %v5374, 3
        %vm5396 = vcmp.lt.s32.totalorder %v5374, 4
        %v5397 = vsel %vm5393, %v5377, %v5380
        %v5398 = vsel %vm5396, %v5386, 2102212464
        %v5399 = vsel %vm5395, %v5383, %v5398
        %v5400 = vsel %vm5394, %v5397, %v5399
        %v5401 = vsel %vm5393, %v5380, %v5383
        %v5402 = vsel %vm5396, %v5389, 920167782
        %v5403 = vsel %vm5395, %v5386, %v5402
        %v5404 = vsel %vm5394, %v5401, %v5403
        %v5405 = vsel %vm5393, %v5383, %v5386
        %v5406 = vsel %vm5396, %v5392, 1326507024
        %v5407 = vsel %vm5395, %v5389, %v5406
        %v5408 = vsel %vm5394, %v5405, %v5407
        %v5409 = vshll.u32 %v5369, 8
        %v5410 = vmul.u32.u64.compose %v5409, %v5408
        %v5411 = vextract.low.u32 %v5410
        %v5412 = vextract.high.u32 %v5410
        %v5413 = vmul.u32.u64.compose %v5409, %v5404
        %v5414 = vextract.low.u32 %v5413
        %v5415 = vextract.high.u32 %v5413
        %v5416 = vmul.u32 %v5409, %v5400
        %v5417 = vadd.s32 %v5412, %v5414
        %vm5418 = vc.u32 %v5412, %v5414
        %v5419 = vadd.s32 %v5415, 1
        %v5420 = vsel %vm5418, %v5419, %v5415
        %v5421 = vadd.s32 %v5416, %v5420
        %v5422 = vadd.s32 %v5421, 536870912
        %v5423 = vshrl.u32 %v5422, 30
        %v5424 = vshll.u32 %v5423, 30
        %v5425 = vsub.s32 %v5421, %v5424
        %vm5426 = vcmp.lt.s32.totalorder %v5425, 0
        %v5427 = vsub.s32 0, %v5425
        %v5428 = vsel %vm5426, %v5427, %v5425
        %v5429 = vclz %v5428
        %v5430 = vsub.s32 %v5429, 2
        %vm5431 = vcmp.gt.s32.totalorder 0, %v5430
        %v5432 = vsel %vm5431, 0, %v5430
        %v5433 = vsub.s32 32, %v5432
        %v5434 = vshll.u32 %v5425, %v5432
        %v5435 = vshrl.u32 %v5417, %v5433
        %v5436 = vor.u32 %v5434, %v5435
        %v5437 = vsub.s32 4294967266, %v5432
        %v5438 = vadd.s32 %v5437, 127
        %v5439 = vshll.u32 %v5438, 23
        %v5440 = vor.u32 4788187, %v5439
        %v5441 = vand.u32 2147483647, %v5440
        %v5443 = vcvt.s32.f32 %v5436
        %v5444 = vmul.f32 %v5443, %v5441
        %v5445 = vxor.u32 %v5444, 2147483648
        %v5446 = vsel %vm5363, %v5445, %v5444
        %v5447 = vsub.s32 4, %v5423
        %v5448 = vsel %vm5363, %v5447, %v5423
        %v5449 = vsel %vm5362, %v925, %v5446
        %v5450 = vsel %vm5362, 0, %v5448
        %v5451 = vcosq.f32.pop %v5449
        %v5452 = vsinq.f32.pop %v5449
        %vm5453 = vweird.f32 %v925
        %v5454 = vadd.s32 %v5450, 3
        %v5455 = vand.u32 %v5454, 3
        %vm5456 = vcmp.lt.s32.totalorder %v5455, 2
        %vm5457 = vcmp.eq.s32.totalorder %v5455, 0
        %v5458 = vxor.u32 %v5452, 2147483648
        %v5459 = vsel %vm5457, %v5451, %v5458
        %vm5460 = vcmp.eq.s32.totalorder %v5455, 2
        %v5461 = vxor.u32 %v5451, 2147483648
        %v5462 = vsel %vm5460, %v5461, %v5452
        %v5463 = vsel %vm5456, %v5459, %v5462
        %v5464 = vsel %vm5453, nan, %v5463
        %v5465 = vand.u32 2147483647, %v926
        %vm5466 = vcmp.le.f32.partialorder %v5465, 0.7853982
        %vm5467 = vcmp.lt.s32.totalorder %v926, 0
        %v5468 = vand.u32 %v926, 2139095040
        %v5469 = vshrl.u32 %v5468, 23
        %v5470 = vsub.s32 %v5469, 127
        %v5471 = vand.u32 2147483647, %v926
        %v5472 = vand.u32 %v5471, 8388607
        %v5473 = vor.u32 %v5472, 8388608
        %v5474 = vsub.s32 0, %v5473
        %v5475 = vadd.s32 %v5470, 1
        %vm5476 = vcmp.gt.s32.totalorder %v5475, 0
        %v5477 = vsel %vm5476, %v5475, 0
        %v5478 = vshrl.u32 %v5477, 5
        %v5479 = vand.u32 %v5477, 31
        %v5480 = vsub.s32 32, %v5479
        %v5481 = vshrl.u32 683565275, %v5480
        %v5482 = vshll.u32 683565275, %v5479
        %v5483 = vshrl.u32 2475754826, %v5480
        %v5484 = vor.u32 %v5482, %v5483
        %v5485 = vshll.u32 2475754826, %v5479
        %v5486 = vshrl.u32 2131351028, %v5480
        %v5487 = vor.u32 %v5485, %v5486
        %v5488 = vshll.u32 2131351028, %v5479
        %v5489 = vshrl.u32 2102212464, %v5480
        %v5490 = vor.u32 %v5488, %v5489
        %v5491 = vshll.u32 2102212464, %v5479
        %v5492 = vshrl.u32 920167782, %v5480
        %v5493 = vor.u32 %v5491, %v5492
        %v5494 = vshll.u32 920167782, %v5479
        %v5495 = vshrl.u32 1326507024, %v5480
        %v5496 = vor.u32 %v5494, %v5495
        %vm5497 = vcmp.lt.s32.totalorder %v5478, 1
        %vm5498 = vcmp.lt.s32.totalorder %v5478, 2
        %vm5499 = vcmp.lt.s32.totalorder %v5478, 3
        %vm5500 = vcmp.lt.s32.totalorder %v5478, 4
        %v5501 = vsel %vm5497, %v5481, %v5484
        %v5502 = vsel %vm5500, %v5490, 2102212464
        %v5503 = vsel %vm5499, %v5487, %v5502
        %v5504 = vsel %vm5498, %v5501, %v5503
        %v5505 = vsel %vm5497, %v5484, %v5487
        %v5506 = vsel %vm5500, %v5493, 920167782
        %v5507 = vsel %vm5499, %v5490, %v5506
        %v5508 = vsel %vm5498, %v5505, %v5507
        %v5509 = vsel %vm5497, %v5487, %v5490
        %v5510 = vsel %vm5500, %v5496, 1326507024
        %v5511 = vsel %vm5499, %v5493, %v5510
        %v5512 = vsel %vm5498, %v5509, %v5511
        %v5513 = vshll.u32 %v5473, 8
        %v5514 = vmul.u32.u64.compose %v5513, %v5512
        %v5515 = vextract.low.u32 %v5514
        %v5516 = vextract.high.u32 %v5514
        %v5517 = vmul.u32.u64.compose %v5513, %v5508
        %v5518 = vextract.low.u32 %v5517
        %v5519 = vextract.high.u32 %v5517
        %v5520 = vmul.u32 %v5513, %v5504
        %v5521 = vadd.s32 %v5516, %v5518
        %vm5522 = vc.u32 %v5516, %v5518
        %v5523 = vadd.s32 %v5519, 1
        %v5524 = vsel %vm5522, %v5523, %v5519
        %v5525 = vadd.s32 %v5520, %v5524
        %v5526 = vadd.s32 %v5525, 536870912
        %v5527 = vshrl.u32 %v5526, 30
        %v5528 = vshll.u32 %v5527, 30
        %v5529 = vsub.s32 %v5525, %v5528
        %vm5530 = vcmp.lt.s32.totalorder %v5529, 0
        %v5531 = vsub.s32 0, %v5529
        %v5532 = vsel %vm5530, %v5531, %v5529
        %v5533 = vclz %v5532
        %v5534 = vsub.s32 %v5533, 2
        %vm5535 = vcmp.gt.s32.totalorder 0, %v5534
        %v5536 = vsel %vm5535, 0, %v5534
        %v5537 = vsub.s32 32, %v5536
        %v5538 = vshll.u32 %v5529, %v5536
        %v5539 = vshrl.u32 %v5521, %v5537
        %v5540 = vor.u32 %v5538, %v5539
        %v5541 = vsub.s32 4294967266, %v5536
        %v5542 = vadd.s32 %v5541, 127
        %v5543 = vshll.u32 %v5542, 23
        %v5544 = vor.u32 4788187, %v5543
        %v5545 = vand.u32 2147483647, %v5544
        %v5547 = vcvt.s32.f32 %v5540
        %v5548 = vmul.f32 %v5547, %v5545
        %v5549 = vxor.u32 %v5548, 2147483648
        %v5550 = vsel %vm5467, %v5549, %v5548
        %v5551 = vsub.s32 4, %v5527
        %v5552 = vsel %vm5467, %v5551, %v5527
        %v5553 = vsel %vm5466, %v926, %v5550
        %v5554 = vsel %vm5466, 0, %v5552
        %v5555 = vcosq.f32.pop %v5553
        %v5556 = vsinq.f32.pop %v5553
        %vm5557 = vweird.f32 %v926
        %v5558 = vadd.s32 %v5554, 3
        %v5559 = vand.u32 %v5558, 3
        %vm5560 = vcmp.lt.s32.totalorder %v5559, 2
        %vm5561 = vcmp.eq.s32.totalorder %v5559, 0
        %v5562 = vxor.u32 %v5556, 2147483648
        %v5563 = vsel %vm5561, %v5555, %v5562
        %vm5564 = vcmp.eq.s32.totalorder %v5559, 2
        %v5565 = vxor.u32 %v5555, 2147483648
        %v5566 = vsel %vm5564, %v5565, %v5556
        %v5567 = vsel %vm5560, %v5563, %v5566
        %v5568 = vsel %vm5557, nan, %v5567
        %v5569 = vand.u32 2147483647, %v927
        %vm5570 = vcmp.le.f32.partialorder %v5569, 0.7853982
        %vm5571 = vcmp.lt.s32.totalorder %v927, 0
        %v5572 = vand.u32 %v927, 2139095040
        %v5573 = vshrl.u32 %v5572, 23
        %v5574 = vsub.s32 %v5573, 127
        %v5575 = vand.u32 2147483647, %v927
        %v5576 = vand.u32 %v5575, 8388607
        %v5577 = vor.u32 %v5576, 8388608
        %v5578 = vsub.s32 0, %v5577
        %v5579 = vadd.s32 %v5574, 1
        %vm5580 = vcmp.gt.s32.totalorder %v5579, 0
        %v5581 = vsel %vm5580, %v5579, 0
        %v5582 = vshrl.u32 %v5581, 5
        %v5583 = vand.u32 %v5581, 31
        %v5584 = vsub.s32 32, %v5583
        %v5585 = vshrl.u32 683565275, %v5584
        %v5586 = vshll.u32 683565275, %v5583
        %v5587 = vshrl.u32 2475754826, %v5584
        %v5588 = vor.u32 %v5586, %v5587
        %v5589 = vshll.u32 2475754826, %v5583
        %v5590 = vshrl.u32 2131351028, %v5584
        %v5591 = vor.u32 %v5589, %v5590
        %v5592 = vshll.u32 2131351028, %v5583
        %v5593 = vshrl.u32 2102212464, %v5584
        %v5594 = vor.u32 %v5592, %v5593
        %v5595 = vshll.u32 2102212464, %v5583
        %v5596 = vshrl.u32 920167782, %v5584
        %v5597 = vor.u32 %v5595, %v5596
        %v5598 = vshll.u32 920167782, %v5583
        %v5599 = vshrl.u32 1326507024, %v5584
        %v5600 = vor.u32 %v5598, %v5599
        %vm5601 = vcmp.lt.s32.totalorder %v5582, 1
        %vm5602 = vcmp.lt.s32.totalorder %v5582, 2
        %vm5603 = vcmp.lt.s32.totalorder %v5582, 3
        %vm5604 = vcmp.lt.s32.totalorder %v5582, 4
        %v5605 = vsel %vm5601, %v5585, %v5588
        %v5606 = vsel %vm5604, %v5594, 2102212464
        %v5607 = vsel %vm5603, %v5591, %v5606
        %v5608 = vsel %vm5602, %v5605, %v5607
        %v5609 = vsel %vm5601, %v5588, %v5591
        %v5610 = vsel %vm5604, %v5597, 920167782
        %v5611 = vsel %vm5603, %v5594, %v5610
        %v5612 = vsel %vm5602, %v5609, %v5611
        %v5613 = vsel %vm5601, %v5591, %v5594
        %v5614 = vsel %vm5604, %v5600, 1326507024
        %v5615 = vsel %vm5603, %v5597, %v5614
        %v5616 = vsel %vm5602, %v5613, %v5615
        %v5617 = vshll.u32 %v5577, 8
        %v5618 = vmul.u32.u64.compose %v5617, %v5616
        %v5619 = vextract.low.u32 %v5618
        %v5620 = vextract.high.u32 %v5618
        %v5621 = vmul.u32.u64.compose %v5617, %v5612
        %v5622 = vextract.low.u32 %v5621
        %v5623 = vextract.high.u32 %v5621
        %v5624 = vmul.u32 %v5617, %v5608
        %v5625 = vadd.s32 %v5620, %v5622
        %vm5626 = vc.u32 %v5620, %v5622
        %v5627 = vadd.s32 %v5623, 1
        %v5628 = vsel %vm5626, %v5627, %v5623
        %v5629 = vadd.s32 %v5624, %v5628
        %v5630 = vadd.s32 %v5629, 536870912
        %v5631 = vshrl.u32 %v5630, 30
        %v5632 = vshll.u32 %v5631, 30
        %v5633 = vsub.s32 %v5629, %v5632
        %vm5634 = vcmp.lt.s32.totalorder %v5633, 0
        %v5635 = vsub.s32 0, %v5633
        %v5636 = vsel %vm5634, %v5635, %v5633
        %v5637 = vclz %v5636
        %v5638 = vsub.s32 %v5637, 2
        %vm5639 = vcmp.gt.s32.totalorder 0, %v5638
        %v5640 = vsel %vm5639, 0, %v5638
        %v5641 = vsub.s32 32, %v5640
        %v5642 = vshll.u32 %v5633, %v5640
        %v5643 = vshrl.u32 %v5625, %v5641
        %v5644 = vor.u32 %v5642, %v5643
        %v5645 = vsub.s32 4294967266, %v5640
        %v5646 = vadd.s32 %v5645, 127
        %v5647 = vshll.u32 %v5646, 23
        %v5648 = vor.u32 4788187, %v5647
        %v5649 = vand.u32 2147483647, %v5648
        %v5651 = vcvt.s32.f32 %v5644
        %v5652 = vmul.f32 %v5651, %v5649
        %v5653 = vxor.u32 %v5652, 2147483648
        %v5654 = vsel %vm5571, %v5653, %v5652
        %v5655 = vsub.s32 4, %v5631
        %v5656 = vsel %vm5571, %v5655, %v5631
        %v5657 = vsel %vm5570, %v927, %v5654
        %v5658 = vsel %vm5570, 0, %v5656
        %v5659 = vcosq.f32.pop %v5657
        %v5660 = vsinq.f32.pop %v5657
        %vm5661 = vweird.f32 %v927
        %v5662 = vadd.s32 %v5658, 3
        %v5663 = vand.u32 %v5662, 3
        %vm5664 = vcmp.lt.s32.totalorder %v5663, 2
        %vm5665 = vcmp.eq.s32.totalorder %v5663, 0
        %v5666 = vxor.u32 %v5660, 2147483648
        %v5667 = vsel %vm5665, %v5659, %v5666
        %vm5668 = vcmp.eq.s32.totalorder %v5663, 2
        %v5669 = vxor.u32 %v5659, 2147483648
        %v5670 = vsel %vm5668, %v5669, %v5660
        %v5671 = vsel %vm5664, %v5667, %v5670
        %v5672 = vsel %vm5661, nan, %v5671
        %v5673 = vand.u32 2147483647, %v928
        %vm5674 = vcmp.le.f32.partialorder %v5673, 0.7853982
        %vm5675 = vcmp.lt.s32.totalorder %v928, 0
        %v5676 = vand.u32 %v928, 2139095040
        %v5677 = vshrl.u32 %v5676, 23
        %v5678 = vsub.s32 %v5677, 127
        %v5679 = vand.u32 2147483647, %v928
        %v5680 = vand.u32 %v5679, 8388607
        %v5681 = vor.u32 %v5680, 8388608
        %v5682 = vsub.s32 0, %v5681
        %v5683 = vadd.s32 %v5678, 1
        %vm5684 = vcmp.gt.s32.totalorder %v5683, 0
        %v5685 = vsel %vm5684, %v5683, 0
        %v5686 = vshrl.u32 %v5685, 5
        %v5687 = vand.u32 %v5685, 31
        %v5688 = vsub.s32 32, %v5687
        %v5689 = vshrl.u32 683565275, %v5688
        %v5690 = vshll.u32 683565275, %v5687
        %v5691 = vshrl.u32 2475754826, %v5688
        %v5692 = vor.u32 %v5690, %v5691
        %v5693 = vshll.u32 2475754826, %v5687
        %v5694 = vshrl.u32 2131351028, %v5688
        %v5695 = vor.u32 %v5693, %v5694
        %v5696 = vshll.u32 2131351028, %v5687
        %v5697 = vshrl.u32 2102212464, %v5688
        %v5698 = vor.u32 %v5696, %v5697
        %v5699 = vshll.u32 2102212464, %v5687
        %v5700 = vshrl.u32 920167782, %v5688
        %v5701 = vor.u32 %v5699, %v5700
        %v5702 = vshll.u32 920167782, %v5687
        %v5703 = vshrl.u32 1326507024, %v5688
        %v5704 = vor.u32 %v5702, %v5703
        %vm5705 = vcmp.lt.s32.totalorder %v5686, 1
        %vm5706 = vcmp.lt.s32.totalorder %v5686, 2
        %vm5707 = vcmp.lt.s32.totalorder %v5686, 3
        %vm5708 = vcmp.lt.s32.totalorder %v5686, 4
        %v5709 = vsel %vm5705, %v5689, %v5692
        %v5710 = vsel %vm5708, %v5698, 2102212464
        %v5711 = vsel %vm5707, %v5695, %v5710
        %v5712 = vsel %vm5706, %v5709, %v5711
        %v5713 = vsel %vm5705, %v5692, %v5695
        %v5714 = vsel %vm5708, %v5701, 920167782
        %v5715 = vsel %vm5707, %v5698, %v5714
        %v5716 = vsel %vm5706, %v5713, %v5715
        %v5717 = vsel %vm5705, %v5695, %v5698
        %v5718 = vsel %vm5708, %v5704, 1326507024
        %v5719 = vsel %vm5707, %v5701, %v5718
        %v5720 = vsel %vm5706, %v5717, %v5719
        %v5721 = vshll.u32 %v5681, 8
        %v5722 = vmul.u32.u64.compose %v5721, %v5720
        %v5723 = vextract.low.u32 %v5722
        %v5724 = vextract.high.u32 %v5722
        %v5725 = vmul.u32.u64.compose %v5721, %v5716
        %v5726 = vextract.low.u32 %v5725
        %v5727 = vextract.high.u32 %v5725
        %v5728 = vmul.u32 %v5721, %v5712
        %v5729 = vadd.s32 %v5724, %v5726
        %vm5730 = vc.u32 %v5724, %v5726
        %v5731 = vadd.s32 %v5727, 1
        %v5732 = vsel %vm5730, %v5731, %v5727
        %v5733 = vadd.s32 %v5728, %v5732
        %v5734 = vadd.s32 %v5733, 536870912
        %v5735 = vshrl.u32 %v5734, 30
        %v5736 = vshll.u32 %v5735, 30
        %v5737 = vsub.s32 %v5733, %v5736
        %vm5738 = vcmp.lt.s32.totalorder %v5737, 0
        %v5739 = vsub.s32 0, %v5737
        %v5740 = vsel %vm5738, %v5739, %v5737
        %v5741 = vclz %v5740
        %v5742 = vsub.s32 %v5741, 2
        %vm5743 = vcmp.gt.s32.totalorder 0, %v5742
        %v5744 = vsel %vm5743, 0, %v5742
        %v5745 = vsub.s32 32, %v5744
        %v5746 = vshll.u32 %v5737, %v5744
        %v5747 = vshrl.u32 %v5729, %v5745
        %v5748 = vor.u32 %v5746, %v5747
        %v5749 = vsub.s32 4294967266, %v5744
        %v5750 = vadd.s32 %v5749, 127
        %v5751 = vshll.u32 %v5750, 23
        %v5752 = vor.u32 4788187, %v5751
        %v5753 = vand.u32 2147483647, %v5752
        %v5755 = vcvt.s32.f32 %v5748
        %v5756 = vmul.f32 %v5755, %v5753
        %v5757 = vxor.u32 %v5756, 2147483648
        %v5758 = vsel %vm5675, %v5757, %v5756
        %v5759 = vsub.s32 4, %v5735
        %v5760 = vsel %vm5675, %v5759, %v5735
        %v5761 = vsel %vm5674, %v928, %v5758
        %v5762 = vsel %vm5674, 0, %v5760
        %v5763 = vcosq.f32.pop %v5761
        %v5764 = vsinq.f32.pop %v5761
        %vm5765 = vweird.f32 %v928
        %v5766 = vadd.s32 %v5762, 3
        %v5767 = vand.u32 %v5766, 3
        %vm5768 = vcmp.lt.s32.totalorder %v5767, 2
        %vm5769 = vcmp.eq.s32.totalorder %v5767, 0
        %v5770 = vxor.u32 %v5764, 2147483648
        %v5771 = vsel %vm5769, %v5763, %v5770
        %vm5772 = vcmp.eq.s32.totalorder %v5767, 2
        %v5773 = vxor.u32 %v5763, 2147483648
        %v5774 = vsel %vm5772, %v5773, %v5764
        %v5775 = vsel %vm5768, %v5771, %v5774
        %v5776 = vsel %vm5765, nan, %v5775
        %v5777 = vand.u32 2147483647, %v929
        %vm5778 = vcmp.le.f32.partialorder %v5777, 0.7853982
        %vm5779 = vcmp.lt.s32.totalorder %v929, 0
        %v5780 = vand.u32 %v929, 2139095040
        %v5781 = vshrl.u32 %v5780, 23
        %v5782 = vsub.s32 %v5781, 127
        %v5783 = vand.u32 2147483647, %v929
        %v5784 = vand.u32 %v5783, 8388607
        %v5785 = vor.u32 %v5784, 8388608
        %v5786 = vsub.s32 0, %v5785
        %v5787 = vadd.s32 %v5782, 1
        %vm5788 = vcmp.gt.s32.totalorder %v5787, 0
        %v5789 = vsel %vm5788, %v5787, 0
        %v5790 = vshrl.u32 %v5789, 5
        %v5791 = vand.u32 %v5789, 31
        %v5792 = vsub.s32 32, %v5791
        %v5793 = vshrl.u32 683565275, %v5792
        %v5794 = vshll.u32 683565275, %v5791
        %v5795 = vshrl.u32 2475754826, %v5792
        %v5796 = vor.u32 %v5794, %v5795
        %v5797 = vshll.u32 2475754826, %v5791
        %v5798 = vshrl.u32 2131351028, %v5792
        %v5799 = vor.u32 %v5797, %v5798
        %v5800 = vshll.u32 2131351028, %v5791
        %v5801 = vshrl.u32 2102212464, %v5792
        %v5802 = vor.u32 %v5800, %v5801
        %v5803 = vshll.u32 2102212464, %v5791
        %v5804 = vshrl.u32 920167782, %v5792
        %v5805 = vor.u32 %v5803, %v5804
        %v5806 = vshll.u32 920167782, %v5791
        %v5807 = vshrl.u32 1326507024, %v5792
        %v5808 = vor.u32 %v5806, %v5807
        %vm5809 = vcmp.lt.s32.totalorder %v5790, 1
        %vm5810 = vcmp.lt.s32.totalorder %v5790, 2
        %vm5811 = vcmp.lt.s32.totalorder %v5790, 3
        %vm5812 = vcmp.lt.s32.totalorder %v5790, 4
        %v5813 = vsel %vm5809, %v5793, %v5796
        %v5814 = vsel %vm5812, %v5802, 2102212464
        %v5815 = vsel %vm5811, %v5799, %v5814
        %v5816 = vsel %vm5810, %v5813, %v5815
        %v5817 = vsel %vm5809, %v5796, %v5799
        %v5818 = vsel %vm5812, %v5805, 920167782
        %v5819 = vsel %vm5811, %v5802, %v5818
        %v5820 = vsel %vm5810, %v5817, %v5819
        %v5821 = vsel %vm5809, %v5799, %v5802
        %v5822 = vsel %vm5812, %v5808, 1326507024
        %v5823 = vsel %vm5811, %v5805, %v5822
        %v5824 = vsel %vm5810, %v5821, %v5823
        %v5825 = vshll.u32 %v5785, 8
        %v5826 = vmul.u32.u64.compose %v5825, %v5824
        %v5827 = vextract.low.u32 %v5826
        %v5828 = vextract.high.u32 %v5826
        %v5829 = vmul.u32.u64.compose %v5825, %v5820
        %v5830 = vextract.low.u32 %v5829
        %v5831 = vextract.high.u32 %v5829
        %v5832 = vmul.u32 %v5825, %v5816
        %v5833 = vadd.s32 %v5828, %v5830
        %vm5834 = vc.u32 %v5828, %v5830
        %v5835 = vadd.s32 %v5831, 1
        %v5836 = vsel %vm5834, %v5835, %v5831
        %v5837 = vadd.s32 %v5832, %v5836
        %v5838 = vadd.s32 %v5837, 536870912
        %v5839 = vshrl.u32 %v5838, 30
        %v5840 = vshll.u32 %v5839, 30
        %v5841 = vsub.s32 %v5837, %v5840
        %vm5842 = vcmp.lt.s32.totalorder %v5841, 0
        %v5843 = vsub.s32 0, %v5841
        %v5844 = vsel %vm5842, %v5843, %v5841
        %v5845 = vclz %v5844
        %v5846 = vsub.s32 %v5845, 2
        %vm5847 = vcmp.gt.s32.totalorder 0, %v5846
        %v5848 = vsel %vm5847, 0, %v5846
        %v5849 = vsub.s32 32, %v5848
        %v5850 = vshll.u32 %v5841, %v5848
        %v5851 = vshrl.u32 %v5833, %v5849
        %v5852 = vor.u32 %v5850, %v5851
        %v5853 = vsub.s32 4294967266, %v5848
        %v5854 = vadd.s32 %v5853, 127
        %v5855 = vshll.u32 %v5854, 23
        %v5856 = vor.u32 4788187, %v5855
        %v5857 = vand.u32 2147483647, %v5856
        %v5859 = vcvt.s32.f32 %v5852
        %v5860 = vmul.f32 %v5859, %v5857
        %v5861 = vxor.u32 %v5860, 2147483648
        %v5862 = vsel %vm5779, %v5861, %v5860
        %v5863 = vsub.s32 4, %v5839
        %v5864 = vsel %vm5779, %v5863, %v5839
        %v5865 = vsel %vm5778, %v929, %v5862
        %v5866 = vsel %vm5778, 0, %v5864
        %v5867 = vcosq.f32.pop %v5865
        %v5868 = vsinq.f32.pop %v5865
        %vm5869 = vweird.f32 %v929
        %v5870 = vadd.s32 %v5866, 3
        %v5871 = vand.u32 %v5870, 3
        %vm5872 = vcmp.lt.s32.totalorder %v5871, 2
        %vm5873 = vcmp.eq.s32.totalorder %v5871, 0
        %v5874 = vxor.u32 %v5868, 2147483648
        %v5875 = vsel %vm5873, %v5867, %v5874
        %vm5876 = vcmp.eq.s32.totalorder %v5871, 2
        %v5877 = vxor.u32 %v5867, 2147483648
        %v5878 = vsel %vm5876, %v5877, %v5868
        %v5879 = vsel %vm5872, %v5875, %v5878
        %v5880 = vsel %vm5869, nan, %v5879
        %v5881 = vand.u32 2147483647, %v930
        %vm5882 = vcmp.le.f32.partialorder %v5881, 0.7853982
        %vm5883 = vcmp.lt.s32.totalorder %v930, 0
        %v5884 = vand.u32 %v930, 2139095040
        %v5885 = vshrl.u32 %v5884, 23
        %v5886 = vsub.s32 %v5885, 127
        %v5887 = vand.u32 2147483647, %v930
        %v5888 = vand.u32 %v5887, 8388607
        %v5889 = vor.u32 %v5888, 8388608
        %v5890 = vsub.s32 0, %v5889
        %v5891 = vadd.s32 %v5886, 1
        %vm5892 = vcmp.gt.s32.totalorder %v5891, 0
        %v5893 = vsel %vm5892, %v5891, 0
        %v5894 = vshrl.u32 %v5893, 5
        %v5895 = vand.u32 %v5893, 31
        %v5896 = vsub.s32 32, %v5895
        %v5897 = vshrl.u32 683565275, %v5896
        %v5898 = vshll.u32 683565275, %v5895
        %v5899 = vshrl.u32 2475754826, %v5896
        %v5900 = vor.u32 %v5898, %v5899
        %v5901 = vshll.u32 2475754826, %v5895
        %v5902 = vshrl.u32 2131351028, %v5896
        %v5903 = vor.u32 %v5901, %v5902
        %v5904 = vshll.u32 2131351028, %v5895
        %v5905 = vshrl.u32 2102212464, %v5896
        %v5906 = vor.u32 %v5904, %v5905
        %v5907 = vshll.u32 2102212464, %v5895
        %v5908 = vshrl.u32 920167782, %v5896
        %v5909 = vor.u32 %v5907, %v5908
        %v5910 = vshll.u32 920167782, %v5895
        %v5911 = vshrl.u32 1326507024, %v5896
        %v5912 = vor.u32 %v5910, %v5911
        %vm5913 = vcmp.lt.s32.totalorder %v5894, 1
        %vm5914 = vcmp.lt.s32.totalorder %v5894, 2
        %vm5915 = vcmp.lt.s32.totalorder %v5894, 3
        %vm5916 = vcmp.lt.s32.totalorder %v5894, 4
        %v5917 = vsel %vm5913, %v5897, %v5900
        %v5918 = vsel %vm5916, %v5906, 2102212464
        %v5919 = vsel %vm5915, %v5903, %v5918
        %v5920 = vsel %vm5914, %v5917, %v5919
        %v5921 = vsel %vm5913, %v5900, %v5903
        %v5922 = vsel %vm5916, %v5909, 920167782
        %v5923 = vsel %vm5915, %v5906, %v5922
        %v5924 = vsel %vm5914, %v5921, %v5923
        %v5925 = vsel %vm5913, %v5903, %v5906
        %v5926 = vsel %vm5916, %v5912, 1326507024
        %v5927 = vsel %vm5915, %v5909, %v5926
        %v5928 = vsel %vm5914, %v5925, %v5927
        %v5929 = vshll.u32 %v5889, 8
        %v5930 = vmul.u32.u64.compose %v5929, %v5928
        %v5931 = vextract.low.u32 %v5930
        %v5932 = vextract.high.u32 %v5930
        %v5933 = vmul.u32.u64.compose %v5929, %v5924
        %v5934 = vextract.low.u32 %v5933
        %v5935 = vextract.high.u32 %v5933
        %v5936 = vmul.u32 %v5929, %v5920
        %v5937 = vadd.s32 %v5932, %v5934
        %vm5938 = vc.u32 %v5932, %v5934
        %v5939 = vadd.s32 %v5935, 1
        %v5940 = vsel %vm5938, %v5939, %v5935
        %v5941 = vadd.s32 %v5936, %v5940
        %v5942 = vadd.s32 %v5941, 536870912
        %v5943 = vshrl.u32 %v5942, 30
        %v5944 = vshll.u32 %v5943, 30
        %v5945 = vsub.s32 %v5941, %v5944
        %vm5946 = vcmp.lt.s32.totalorder %v5945, 0
        %v5947 = vsub.s32 0, %v5945
        %v5948 = vsel %vm5946, %v5947, %v5945
        %v5949 = vclz %v5948
        %v5950 = vsub.s32 %v5949, 2
        %vm5951 = vcmp.gt.s32.totalorder 0, %v5950
        %v5952 = vsel %vm5951, 0, %v5950
        %v5953 = vsub.s32 32, %v5952
        %v5954 = vshll.u32 %v5945, %v5952
        %v5955 = vshrl.u32 %v5937, %v5953
        %v5956 = vor.u32 %v5954, %v5955
        %v5957 = vsub.s32 4294967266, %v5952
        %v5958 = vadd.s32 %v5957, 127
        %v5959 = vshll.u32 %v5958, 23
        %v5960 = vor.u32 4788187, %v5959
        %v5961 = vand.u32 2147483647, %v5960
        %v5963 = vcvt.s32.f32 %v5956
        %v5964 = vmul.f32 %v5963, %v5961
        %v5965 = vxor.u32 %v5964, 2147483648
        %v5966 = vsel %vm5883, %v5965, %v5964
        %v5967 = vsub.s32 4, %v5943
        %v5968 = vsel %vm5883, %v5967, %v5943
        %v5969 = vsel %vm5882, %v930, %v5966
        %v5970 = vsel %vm5882, 0, %v5968
        %v5971 = vcosq.f32.pop %v5969
        %v5972 = vsinq.f32.pop %v5969
        %vm5973 = vweird.f32 %v930
        %v5974 = vadd.s32 %v5970, 3
        %v5975 = vand.u32 %v5974, 3
        %vm5976 = vcmp.lt.s32.totalorder %v5975, 2
        %vm5977 = vcmp.eq.s32.totalorder %v5975, 0
        %v5978 = vxor.u32 %v5972, 2147483648
        %v5979 = vsel %vm5977, %v5971, %v5978
        %vm5980 = vcmp.eq.s32.totalorder %v5975, 2
        %v5981 = vxor.u32 %v5971, 2147483648
        %v5982 = vsel %vm5980, %v5981, %v5972
        %v5983 = vsel %vm5976, %v5979, %v5982
        %v5984 = vsel %vm5973, nan, %v5983
        %v5985 = vand.u32 2147483647, %v931
        %vm5986 = vcmp.le.f32.partialorder %v5985, 0.7853982
        %vm5987 = vcmp.lt.s32.totalorder %v931, 0
        %v5988 = vand.u32 %v931, 2139095040
        %v5989 = vshrl.u32 %v5988, 23
        %v5990 = vsub.s32 %v5989, 127
        %v5991 = vand.u32 2147483647, %v931
        %v5992 = vand.u32 %v5991, 8388607
        %v5993 = vor.u32 %v5992, 8388608
        %v5994 = vsub.s32 0, %v5993
        %v5995 = vadd.s32 %v5990, 1
        %vm5996 = vcmp.gt.s32.totalorder %v5995, 0
        %v5997 = vsel %vm5996, %v5995, 0
        %v5998 = vshrl.u32 %v5997, 5
        %v5999 = vand.u32 %v5997, 31
        %v6000 = vsub.s32 32, %v5999
        %v6001 = vshrl.u32 683565275, %v6000
        %v6002 = vshll.u32 683565275, %v5999
        %v6003 = vshrl.u32 2475754826, %v6000
        %v6004 = vor.u32 %v6002, %v6003
        %v6005 = vshll.u32 2475754826, %v5999
        %v6006 = vshrl.u32 2131351028, %v6000
        %v6007 = vor.u32 %v6005, %v6006
        %v6008 = vshll.u32 2131351028, %v5999
        %v6009 = vshrl.u32 2102212464, %v6000
        %v6010 = vor.u32 %v6008, %v6009
        %v6011 = vshll.u32 2102212464, %v5999
        %v6012 = vshrl.u32 920167782, %v6000
        %v6013 = vor.u32 %v6011, %v6012
        %v6014 = vshll.u32 920167782, %v5999
        %v6015 = vshrl.u32 1326507024, %v6000
        %v6016 = vor.u32 %v6014, %v6015
        %vm6017 = vcmp.lt.s32.totalorder %v5998, 1
        %vm6018 = vcmp.lt.s32.totalorder %v5998, 2
        %vm6019 = vcmp.lt.s32.totalorder %v5998, 3
        %vm6020 = vcmp.lt.s32.totalorder %v5998, 4
        %v6021 = vsel %vm6017, %v6001, %v6004
        %v6022 = vsel %vm6020, %v6010, 2102212464
        %v6023 = vsel %vm6019, %v6007, %v6022
        %v6024 = vsel %vm6018, %v6021, %v6023
        %v6025 = vsel %vm6017, %v6004, %v6007
        %v6026 = vsel %vm6020, %v6013, 920167782
        %v6027 = vsel %vm6019, %v6010, %v6026
        %v6028 = vsel %vm6018, %v6025, %v6027
        %v6029 = vsel %vm6017, %v6007, %v6010
        %v6030 = vsel %vm6020, %v6016, 1326507024
        %v6031 = vsel %vm6019, %v6013, %v6030
        %v6032 = vsel %vm6018, %v6029, %v6031
        %v6033 = vshll.u32 %v5993, 8
        %v6034 = vmul.u32.u64.compose %v6033, %v6032
        %v6035 = vextract.low.u32 %v6034
        %v6036 = vextract.high.u32 %v6034
        %v6037 = vmul.u32.u64.compose %v6033, %v6028
        %v6038 = vextract.low.u32 %v6037
        %v6039 = vextract.high.u32 %v6037
        %v6040 = vmul.u32 %v6033, %v6024
        %v6041 = vadd.s32 %v6036, %v6038
        %vm6042 = vc.u32 %v6036, %v6038
        %v6043 = vadd.s32 %v6039, 1
        %v6044 = vsel %vm6042, %v6043, %v6039
        %v6045 = vadd.s32 %v6040, %v6044
        %v6046 = vadd.s32 %v6045, 536870912
        %v6047 = vshrl.u32 %v6046, 30
        %v6048 = vshll.u32 %v6047, 30
        %v6049 = vsub.s32 %v6045, %v6048
        %vm6050 = vcmp.lt.s32.totalorder %v6049, 0
        %v6051 = vsub.s32 0, %v6049
        %v6052 = vsel %vm6050, %v6051, %v6049
        %v6053 = vclz %v6052
        %v6054 = vsub.s32 %v6053, 2
        %vm6055 = vcmp.gt.s32.totalorder 0, %v6054
        %v6056 = vsel %vm6055, 0, %v6054
        %v6057 = vsub.s32 32, %v6056
        %v6058 = vshll.u32 %v6049, %v6056
        %v6059 = vshrl.u32 %v6041, %v6057
        %v6060 = vor.u32 %v6058, %v6059
        %v6061 = vsub.s32 4294967266, %v6056
        %v6062 = vadd.s32 %v6061, 127
        %v6063 = vshll.u32 %v6062, 23
        %v6064 = vor.u32 4788187, %v6063
        %v6065 = vand.u32 2147483647, %v6064
        %v6067 = vcvt.s32.f32 %v6060
        %v6068 = vmul.f32 %v6067, %v6065
        %v6069 = vxor.u32 %v6068, 2147483648
        %v6070 = vsel %vm5987, %v6069, %v6068
        %v6071 = vsub.s32 4, %v6047
        %v6072 = vsel %vm5987, %v6071, %v6047
        %v6073 = vsel %vm5986, %v931, %v6070
        %v6074 = vsel %vm5986, 0, %v6072
        %v6075 = vcosq.f32.pop %v6073
        %v6076 = vsinq.f32.pop %v6073
        %vm6077 = vweird.f32 %v931
        %v6078 = vadd.s32 %v6074, 3
        %v6079 = vand.u32 %v6078, 3
        %vm6080 = vcmp.lt.s32.totalorder %v6079, 2
        %vm6081 = vcmp.eq.s32.totalorder %v6079, 0
        %v6082 = vxor.u32 %v6076, 2147483648
        %v6083 = vsel %vm6081, %v6075, %v6082
        %vm6084 = vcmp.eq.s32.totalorder %v6079, 2
        %v6085 = vxor.u32 %v6075, 2147483648
        %v6086 = vsel %vm6084, %v6085, %v6076
        %v6087 = vsel %vm6080, %v6083, %v6086
        %v6088 = vsel %vm6077, nan, %v6087
        %v6089 = vand.u32 2147483647, %v932
        %vm6090 = vcmp.le.f32.partialorder %v6089, 0.7853982
        %vm6091 = vcmp.lt.s32.totalorder %v932, 0
        %v6092 = vand.u32 %v932, 2139095040
        %v6093 = vshrl.u32 %v6092, 23
        %v6094 = vsub.s32 %v6093, 127
        %v6095 = vand.u32 2147483647, %v932
        %v6096 = vand.u32 %v6095, 8388607
        %v6097 = vor.u32 %v6096, 8388608
        %v6098 = vsub.s32 0, %v6097
        %v6099 = vadd.s32 %v6094, 1
        %vm6100 = vcmp.gt.s32.totalorder %v6099, 0
        %v6101 = vsel %vm6100, %v6099, 0
        %v6102 = vshrl.u32 %v6101, 5
        %v6103 = vand.u32 %v6101, 31
        %v6104 = vsub.s32 32, %v6103
        %v6105 = vshrl.u32 683565275, %v6104
        %v6106 = vshll.u32 683565275, %v6103
        %v6107 = vshrl.u32 2475754826, %v6104
        %v6108 = vor.u32 %v6106, %v6107
        %v6109 = vshll.u32 2475754826, %v6103
        %v6110 = vshrl.u32 2131351028, %v6104
        %v6111 = vor.u32 %v6109, %v6110
        %v6112 = vshll.u32 2131351028, %v6103
        %v6113 = vshrl.u32 2102212464, %v6104
        %v6114 = vor.u32 %v6112, %v6113
        %v6115 = vshll.u32 2102212464, %v6103
        %v6116 = vshrl.u32 920167782, %v6104
        %v6117 = vor.u32 %v6115, %v6116
        %v6118 = vshll.u32 920167782, %v6103
        %v6119 = vshrl.u32 1326507024, %v6104
        %v6120 = vor.u32 %v6118, %v6119
        %vm6121 = vcmp.lt.s32.totalorder %v6102, 1
        %vm6122 = vcmp.lt.s32.totalorder %v6102, 2
        %vm6123 = vcmp.lt.s32.totalorder %v6102, 3
        %vm6124 = vcmp.lt.s32.totalorder %v6102, 4
        %v6125 = vsel %vm6121, %v6105, %v6108
        %v6126 = vsel %vm6124, %v6114, 2102212464
        %v6127 = vsel %vm6123, %v6111, %v6126
        %v6128 = vsel %vm6122, %v6125, %v6127
        %v6129 = vsel %vm6121, %v6108, %v6111
        %v6130 = vsel %vm6124, %v6117, 920167782
        %v6131 = vsel %vm6123, %v6114, %v6130
        %v6132 = vsel %vm6122, %v6129, %v6131
        %v6133 = vsel %vm6121, %v6111, %v6114
        %v6134 = vsel %vm6124, %v6120, 1326507024
        %v6135 = vsel %vm6123, %v6117, %v6134
        %v6136 = vsel %vm6122, %v6133, %v6135
        %v6137 = vshll.u32 %v6097, 8
        %v6138 = vmul.u32.u64.compose %v6137, %v6136
        %v6139 = vextract.low.u32 %v6138
        %v6140 = vextract.high.u32 %v6138
        %v6141 = vmul.u32.u64.compose %v6137, %v6132
        %v6142 = vextract.low.u32 %v6141
        %v6143 = vextract.high.u32 %v6141
        %v6144 = vmul.u32 %v6137, %v6128
        %v6145 = vadd.s32 %v6140, %v6142
        %vm6146 = vc.u32 %v6140, %v6142
        %v6147 = vadd.s32 %v6143, 1
        %v6148 = vsel %vm6146, %v6147, %v6143
        %v6149 = vadd.s32 %v6144, %v6148
        %v6150 = vadd.s32 %v6149, 536870912
        %v6151 = vshrl.u32 %v6150, 30
        %v6152 = vshll.u32 %v6151, 30
        %v6153 = vsub.s32 %v6149, %v6152
        %vm6154 = vcmp.lt.s32.totalorder %v6153, 0
        %v6155 = vsub.s32 0, %v6153
        %v6156 = vsel %vm6154, %v6155, %v6153
        %v6157 = vclz %v6156
        %v6158 = vsub.s32 %v6157, 2
        %vm6159 = vcmp.gt.s32.totalorder 0, %v6158
        %v6160 = vsel %vm6159, 0, %v6158
        %v6161 = vsub.s32 32, %v6160
        %v6162 = vshll.u32 %v6153, %v6160
        %v6163 = vshrl.u32 %v6145, %v6161
        %v6164 = vor.u32 %v6162, %v6163
        %v6165 = vsub.s32 4294967266, %v6160
        %v6166 = vadd.s32 %v6165, 127
        %v6167 = vshll.u32 %v6166, 23
        %v6168 = vor.u32 4788187, %v6167
        %v6169 = vand.u32 2147483647, %v6168
        %v6171 = vcvt.s32.f32 %v6164
        %v6172 = vmul.f32 %v6171, %v6169
        %v6173 = vxor.u32 %v6172, 2147483648
        %v6174 = vsel %vm6091, %v6173, %v6172
        %v6175 = vsub.s32 4, %v6151
        %v6176 = vsel %vm6091, %v6175, %v6151
        %v6177 = vsel %vm6090, %v932, %v6174
        %v6178 = vsel %vm6090, 0, %v6176
        %v6179 = vcosq.f32.pop %v6177
        %v6180 = vsinq.f32.pop %v6177
        %vm6181 = vweird.f32 %v932
        %v6182 = vadd.s32 %v6178, 3
        %v6183 = vand.u32 %v6182, 3
        %vm6184 = vcmp.lt.s32.totalorder %v6183, 2
        %vm6185 = vcmp.eq.s32.totalorder %v6183, 0
        %v6186 = vxor.u32 %v6180, 2147483648
        %v6187 = vsel %vm6185, %v6179, %v6186
        %vm6188 = vcmp.eq.s32.totalorder %v6183, 2
        %v6189 = vxor.u32 %v6179, 2147483648
        %v6190 = vsel %vm6188, %v6189, %v6180
        %v6191 = vsel %vm6184, %v6187, %v6190
        %v6192 = vsel %vm6181, nan, %v6191
        %v6193 = vand.u32 2147483647, %v933
        %vm6194 = vcmp.le.f32.partialorder %v6193, 0.7853982
        %vm6195 = vcmp.lt.s32.totalorder %v933, 0
        %v6196 = vand.u32 %v933, 2139095040
        %v6197 = vshrl.u32 %v6196, 23
        %v6198 = vsub.s32 %v6197, 127
        %v6199 = vand.u32 2147483647, %v933
        %v6200 = vand.u32 %v6199, 8388607
        %v6201 = vor.u32 %v6200, 8388608
        %v6202 = vsub.s32 0, %v6201
        %v6203 = vadd.s32 %v6198, 1
        %vm6204 = vcmp.gt.s32.totalorder %v6203, 0
        %v6205 = vsel %vm6204, %v6203, 0
        %v6206 = vshrl.u32 %v6205, 5
        %v6207 = vand.u32 %v6205, 31
        %v6208 = vsub.s32 32, %v6207
        %v6209 = vshrl.u32 683565275, %v6208
        %v6210 = vshll.u32 683565275, %v6207
        %v6211 = vshrl.u32 2475754826, %v6208
        %v6212 = vor.u32 %v6210, %v6211
        %v6213 = vshll.u32 2475754826, %v6207
        %v6214 = vshrl.u32 2131351028, %v6208
        %v6215 = vor.u32 %v6213, %v6214
        %v6216 = vshll.u32 2131351028, %v6207
        %v6217 = vshrl.u32 2102212464, %v6208
        %v6218 = vor.u32 %v6216, %v6217
        %v6219 = vshll.u32 2102212464, %v6207
        %v6220 = vshrl.u32 920167782, %v6208
        %v6221 = vor.u32 %v6219, %v6220
        %v6222 = vshll.u32 920167782, %v6207
        %v6223 = vshrl.u32 1326507024, %v6208
        %v6224 = vor.u32 %v6222, %v6223
        %vm6225 = vcmp.lt.s32.totalorder %v6206, 1
        %vm6226 = vcmp.lt.s32.totalorder %v6206, 2
        %vm6227 = vcmp.lt.s32.totalorder %v6206, 3
        %vm6228 = vcmp.lt.s32.totalorder %v6206, 4
        %v6229 = vsel %vm6225, %v6209, %v6212
        %v6230 = vsel %vm6228, %v6218, 2102212464
        %v6231 = vsel %vm6227, %v6215, %v6230
        %v6232 = vsel %vm6226, %v6229, %v6231
        %v6233 = vsel %vm6225, %v6212, %v6215
        %v6234 = vsel %vm6228, %v6221, 920167782
        %v6235 = vsel %vm6227, %v6218, %v6234
        %v6236 = vsel %vm6226, %v6233, %v6235
        %v6237 = vsel %vm6225, %v6215, %v6218
        %v6238 = vsel %vm6228, %v6224, 1326507024
        %v6239 = vsel %vm6227, %v6221, %v6238
        %v6240 = vsel %vm6226, %v6237, %v6239
        %v6241 = vshll.u32 %v6201, 8
        %v6242 = vmul.u32.u64.compose %v6241, %v6240
        %v6243 = vextract.low.u32 %v6242
        %v6244 = vextract.high.u32 %v6242
        %v6245 = vmul.u32.u64.compose %v6241, %v6236
        %v6246 = vextract.low.u32 %v6245
        %v6247 = vextract.high.u32 %v6245
        %v6248 = vmul.u32 %v6241, %v6232
        %v6249 = vadd.s32 %v6244, %v6246
        %vm6250 = vc.u32 %v6244, %v6246
        %v6251 = vadd.s32 %v6247, 1
        %v6252 = vsel %vm6250, %v6251, %v6247
        %v6253 = vadd.s32 %v6248, %v6252
        %v6254 = vadd.s32 %v6253, 536870912
        %v6255 = vshrl.u32 %v6254, 30
        %v6256 = vshll.u32 %v6255, 30
        %v6257 = vsub.s32 %v6253, %v6256
        %vm6258 = vcmp.lt.s32.totalorder %v6257, 0
        %v6259 = vsub.s32 0, %v6257
        %v6260 = vsel %vm6258, %v6259, %v6257
        %v6261 = vclz %v6260
        %v6262 = vsub.s32 %v6261, 2
        %vm6263 = vcmp.gt.s32.totalorder 0, %v6262
        %v6264 = vsel %vm6263, 0, %v6262
        %v6265 = vsub.s32 32, %v6264
        %v6266 = vshll.u32 %v6257, %v6264
        %v6267 = vshrl.u32 %v6249, %v6265
        %v6268 = vor.u32 %v6266, %v6267
        %v6269 = vsub.s32 4294967266, %v6264
        %v6270 = vadd.s32 %v6269, 127
        %v6271 = vshll.u32 %v6270, 23
        %v6272 = vor.u32 4788187, %v6271
        %v6273 = vand.u32 2147483647, %v6272
        %v6275 = vcvt.s32.f32 %v6268
        %v6276 = vmul.f32 %v6275, %v6273
        %v6277 = vxor.u32 %v6276, 2147483648
        %v6278 = vsel %vm6195, %v6277, %v6276
        %v6279 = vsub.s32 4, %v6255
        %v6280 = vsel %vm6195, %v6279, %v6255
        %v6281 = vsel %vm6194, %v933, %v6278
        %v6282 = vsel %vm6194, 0, %v6280
        %v6283 = vcosq.f32.pop %v6281
        %v6284 = vsinq.f32.pop %v6281
        %vm6285 = vweird.f32 %v933
        %v6286 = vadd.s32 %v6282, 3
        %v6287 = vand.u32 %v6286, 3
        %vm6288 = vcmp.lt.s32.totalorder %v6287, 2
        %vm6289 = vcmp.eq.s32.totalorder %v6287, 0
        %v6290 = vxor.u32 %v6284, 2147483648
        %v6291 = vsel %vm6289, %v6283, %v6290
        %vm6292 = vcmp.eq.s32.totalorder %v6287, 2
        %v6293 = vxor.u32 %v6283, 2147483648
        %v6294 = vsel %vm6292, %v6293, %v6284
        %v6295 = vsel %vm6288, %v6291, %v6294
        %v6296 = vsel %vm6285, nan, %v6295
        %v6297 = vand.u32 2147483647, %v934
        %vm6298 = vcmp.le.f32.partialorder %v6297, 0.7853982
        %vm6299 = vcmp.lt.s32.totalorder %v934, 0
        %v6300 = vand.u32 %v934, 2139095040
        %v6301 = vshrl.u32 %v6300, 23
        %v6302 = vsub.s32 %v6301, 127
        %v6303 = vand.u32 2147483647, %v934
        %v6304 = vand.u32 %v6303, 8388607
        %v6305 = vor.u32 %v6304, 8388608
        %v6306 = vsub.s32 0, %v6305
        %v6307 = vadd.s32 %v6302, 1
        %vm6308 = vcmp.gt.s32.totalorder %v6307, 0
        %v6309 = vsel %vm6308, %v6307, 0
        %v6310 = vshrl.u32 %v6309, 5
        %v6311 = vand.u32 %v6309, 31
        %v6312 = vsub.s32 32, %v6311
        %v6313 = vshrl.u32 683565275, %v6312
        %v6314 = vshll.u32 683565275, %v6311
        %v6315 = vshrl.u32 2475754826, %v6312
        %v6316 = vor.u32 %v6314, %v6315
        %v6317 = vshll.u32 2475754826, %v6311
        %v6318 = vshrl.u32 2131351028, %v6312
        %v6319 = vor.u32 %v6317, %v6318
        %v6320 = vshll.u32 2131351028, %v6311
        %v6321 = vshrl.u32 2102212464, %v6312
        %v6322 = vor.u32 %v6320, %v6321
        %v6323 = vshll.u32 2102212464, %v6311
        %v6324 = vshrl.u32 920167782, %v6312
        %v6325 = vor.u32 %v6323, %v6324
        %v6326 = vshll.u32 920167782, %v6311
        %v6327 = vshrl.u32 1326507024, %v6312
        %v6328 = vor.u32 %v6326, %v6327
        %vm6329 = vcmp.lt.s32.totalorder %v6310, 1
        %vm6330 = vcmp.lt.s32.totalorder %v6310, 2
        %vm6331 = vcmp.lt.s32.totalorder %v6310, 3
        %vm6332 = vcmp.lt.s32.totalorder %v6310, 4
        %v6333 = vsel %vm6329, %v6313, %v6316
        %v6334 = vsel %vm6332, %v6322, 2102212464
        %v6335 = vsel %vm6331, %v6319, %v6334
        %v6336 = vsel %vm6330, %v6333, %v6335
        %v6337 = vsel %vm6329, %v6316, %v6319
        %v6338 = vsel %vm6332, %v6325, 920167782
        %v6339 = vsel %vm6331, %v6322, %v6338
        %v6340 = vsel %vm6330, %v6337, %v6339
        %v6341 = vsel %vm6329, %v6319, %v6322
        %v6342 = vsel %vm6332, %v6328, 1326507024
        %v6343 = vsel %vm6331, %v6325, %v6342
        %v6344 = vsel %vm6330, %v6341, %v6343
        %v6345 = vshll.u32 %v6305, 8
        %v6346 = vmul.u32.u64.compose %v6345, %v6344
        %v6347 = vextract.low.u32 %v6346
        %v6348 = vextract.high.u32 %v6346
        %v6349 = vmul.u32.u64.compose %v6345, %v6340
        %v6350 = vextract.low.u32 %v6349
        %v6351 = vextract.high.u32 %v6349
        %v6352 = vmul.u32 %v6345, %v6336
        %v6353 = vadd.s32 %v6348, %v6350
        %vm6354 = vc.u32 %v6348, %v6350
        %v6355 = vadd.s32 %v6351, 1
        %v6356 = vsel %vm6354, %v6355, %v6351
        %v6357 = vadd.s32 %v6352, %v6356
        %v6358 = vadd.s32 %v6357, 536870912
        %v6359 = vshrl.u32 %v6358, 30
        %v6360 = vshll.u32 %v6359, 30
        %v6361 = vsub.s32 %v6357, %v6360
        %vm6362 = vcmp.lt.s32.totalorder %v6361, 0
        %v6363 = vsub.s32 0, %v6361
        %v6364 = vsel %vm6362, %v6363, %v6361
        %v6365 = vclz %v6364
        %v6366 = vsub.s32 %v6365, 2
        %vm6367 = vcmp.gt.s32.totalorder 0, %v6366
        %v6368 = vsel %vm6367, 0, %v6366
        %v6369 = vsub.s32 32, %v6368
        %v6370 = vshll.u32 %v6361, %v6368
        %v6371 = vshrl.u32 %v6353, %v6369
        %v6372 = vor.u32 %v6370, %v6371
        %v6373 = vsub.s32 4294967266, %v6368
        %v6374 = vadd.s32 %v6373, 127
        %v6375 = vshll.u32 %v6374, 23
        %v6376 = vor.u32 4788187, %v6375
        %v6377 = vand.u32 2147483647, %v6376
        %v6379 = vcvt.s32.f32 %v6372
        %v6380 = vmul.f32 %v6379, %v6377
        %v6381 = vxor.u32 %v6380, 2147483648
        %v6382 = vsel %vm6299, %v6381, %v6380
        %v6383 = vsub.s32 4, %v6359
        %v6384 = vsel %vm6299, %v6383, %v6359
        %v6385 = vsel %vm6298, %v934, %v6382
        %v6386 = vsel %vm6298, 0, %v6384
        %v6387 = vcosq.f32.pop %v6385
        %v6388 = vsinq.f32.pop %v6385
        %vm6389 = vweird.f32 %v934
        %v6390 = vadd.s32 %v6386, 3
        %v6391 = vand.u32 %v6390, 3
        %vm6392 = vcmp.lt.s32.totalorder %v6391, 2
        %vm6393 = vcmp.eq.s32.totalorder %v6391, 0
        %v6394 = vxor.u32 %v6388, 2147483648
        %v6395 = vsel %vm6393, %v6387, %v6394
        %vm6396 = vcmp.eq.s32.totalorder %v6391, 2
        %v6397 = vxor.u32 %v6387, 2147483648
        %v6398 = vsel %vm6396, %v6397, %v6388
        %v6399 = vsel %vm6392, %v6395, %v6398
        %v6400 = vsel %vm6389, nan, %v6399
        %v6401 = vand.u32 2147483647, %v935
        %vm6402 = vcmp.le.f32.partialorder %v6401, 0.7853982
        %vm6403 = vcmp.lt.s32.totalorder %v935, 0
        %v6404 = vand.u32 %v935, 2139095040
        %v6405 = vshrl.u32 %v6404, 23
        %v6406 = vsub.s32 %v6405, 127
        %v6407 = vand.u32 2147483647, %v935
        %v6408 = vand.u32 %v6407, 8388607
        %v6409 = vor.u32 %v6408, 8388608
        %v6410 = vsub.s32 0, %v6409
        %v6411 = vadd.s32 %v6406, 1
        %vm6412 = vcmp.gt.s32.totalorder %v6411, 0
        %v6413 = vsel %vm6412, %v6411, 0
        %v6414 = vshrl.u32 %v6413, 5
        %v6415 = vand.u32 %v6413, 31
        %v6416 = vsub.s32 32, %v6415
        %v6417 = vshrl.u32 683565275, %v6416
        %v6418 = vshll.u32 683565275, %v6415
        %v6419 = vshrl.u32 2475754826, %v6416
        %v6420 = vor.u32 %v6418, %v6419
        %v6421 = vshll.u32 2475754826, %v6415
        %v6422 = vshrl.u32 2131351028, %v6416
        %v6423 = vor.u32 %v6421, %v6422
        %v6424 = vshll.u32 2131351028, %v6415
        %v6425 = vshrl.u32 2102212464, %v6416
        %v6426 = vor.u32 %v6424, %v6425
        %v6427 = vshll.u32 2102212464, %v6415
        %v6428 = vshrl.u32 920167782, %v6416
        %v6429 = vor.u32 %v6427, %v6428
        %v6430 = vshll.u32 920167782, %v6415
        %v6431 = vshrl.u32 1326507024, %v6416
        %v6432 = vor.u32 %v6430, %v6431
        %vm6433 = vcmp.lt.s32.totalorder %v6414, 1
        %vm6434 = vcmp.lt.s32.totalorder %v6414, 2
        %vm6435 = vcmp.lt.s32.totalorder %v6414, 3
        %vm6436 = vcmp.lt.s32.totalorder %v6414, 4
        %v6437 = vsel %vm6433, %v6417, %v6420
        %v6438 = vsel %vm6436, %v6426, 2102212464
        %v6439 = vsel %vm6435, %v6423, %v6438
        %v6440 = vsel %vm6434, %v6437, %v6439
        %v6441 = vsel %vm6433, %v6420, %v6423
        %v6442 = vsel %vm6436, %v6429, 920167782
        %v6443 = vsel %vm6435, %v6426, %v6442
        %v6444 = vsel %vm6434, %v6441, %v6443
        %v6445 = vsel %vm6433, %v6423, %v6426
        %v6446 = vsel %vm6436, %v6432, 1326507024
        %v6447 = vsel %vm6435, %v6429, %v6446
        %v6448 = vsel %vm6434, %v6445, %v6447
        %v6449 = vshll.u32 %v6409, 8
        %v6450 = vmul.u32.u64.compose %v6449, %v6448
        %v6451 = vextract.low.u32 %v6450
        %v6452 = vextract.high.u32 %v6450
        %v6453 = vmul.u32.u64.compose %v6449, %v6444
        %v6454 = vextract.low.u32 %v6453
        %v6455 = vextract.high.u32 %v6453
        %v6456 = vmul.u32 %v6449, %v6440
        %v6457 = vadd.s32 %v6452, %v6454
        %vm6458 = vc.u32 %v6452, %v6454
        %v6459 = vadd.s32 %v6455, 1
        %v6460 = vsel %vm6458, %v6459, %v6455
        %v6461 = vadd.s32 %v6456, %v6460
        %v6462 = vadd.s32 %v6461, 536870912
        %v6463 = vshrl.u32 %v6462, 30
        %v6464 = vshll.u32 %v6463, 30
        %v6465 = vsub.s32 %v6461, %v6464
        %vm6466 = vcmp.lt.s32.totalorder %v6465, 0
        %v6467 = vsub.s32 0, %v6465
        %v6468 = vsel %vm6466, %v6467, %v6465
        %v6469 = vclz %v6468
        %v6470 = vsub.s32 %v6469, 2
        %vm6471 = vcmp.gt.s32.totalorder 0, %v6470
        %v6472 = vsel %vm6471, 0, %v6470
        %v6473 = vsub.s32 32, %v6472
        %v6474 = vshll.u32 %v6465, %v6472
        %v6475 = vshrl.u32 %v6457, %v6473
        %v6476 = vor.u32 %v6474, %v6475
        %v6477 = vsub.s32 4294967266, %v6472
        %v6478 = vadd.s32 %v6477, 127
        %v6479 = vshll.u32 %v6478, 23
        %v6480 = vor.u32 4788187, %v6479
        %v6481 = vand.u32 2147483647, %v6480
        %v6483 = vcvt.s32.f32 %v6476
        %v6484 = vmul.f32 %v6483, %v6481
        %v6485 = vxor.u32 %v6484, 2147483648
        %v6486 = vsel %vm6403, %v6485, %v6484
        %v6487 = vsub.s32 4, %v6463
        %v6488 = vsel %vm6403, %v6487, %v6463
        %v6489 = vsel %vm6402, %v935, %v6486
        %v6490 = vsel %vm6402, 0, %v6488
        %v6491 = vcosq.f32.pop %v6489
        %v6492 = vsinq.f32.pop %v6489
        %vm6493 = vweird.f32 %v935
        %v6494 = vadd.s32 %v6490, 3
        %v6495 = vand.u32 %v6494, 3
        %vm6496 = vcmp.lt.s32.totalorder %v6495, 2
        %vm6497 = vcmp.eq.s32.totalorder %v6495, 0
        %v6498 = vxor.u32 %v6492, 2147483648
        %v6499 = vsel %vm6497, %v6491, %v6498
        %vm6500 = vcmp.eq.s32.totalorder %v6495, 2
        %v6501 = vxor.u32 %v6491, 2147483648
        %v6502 = vsel %vm6500, %v6501, %v6492
        %v6503 = vsel %vm6496, %v6499, %v6502
        %v6504 = vsel %vm6493, nan, %v6503
        %v6505 = vand.u32 2147483647, %v936
        %vm6506 = vcmp.le.f32.partialorder %v6505, 0.7853982
        %vm6507 = vcmp.lt.s32.totalorder %v936, 0
        %v6508 = vand.u32 %v936, 2139095040
        %v6509 = vshrl.u32 %v6508, 23
        %v6510 = vsub.s32 %v6509, 127
        %v6511 = vand.u32 2147483647, %v936
        %v6512 = vand.u32 %v6511, 8388607
        %v6513 = vor.u32 %v6512, 8388608
        %v6514 = vsub.s32 0, %v6513
        %v6515 = vadd.s32 %v6510, 1
        %vm6516 = vcmp.gt.s32.totalorder %v6515, 0
        %v6517 = vsel %vm6516, %v6515, 0
        %v6518 = vshrl.u32 %v6517, 5
        %v6519 = vand.u32 %v6517, 31
        %v6520 = vsub.s32 32, %v6519
        %v6521 = vshrl.u32 683565275, %v6520
        %v6522 = vshll.u32 683565275, %v6519
        %v6523 = vshrl.u32 2475754826, %v6520
        %v6524 = vor.u32 %v6522, %v6523
        %v6525 = vshll.u32 2475754826, %v6519
        %v6526 = vshrl.u32 2131351028, %v6520
        %v6527 = vor.u32 %v6525, %v6526
        %v6528 = vshll.u32 2131351028, %v6519
        %v6529 = vshrl.u32 2102212464, %v6520
        %v6530 = vor.u32 %v6528, %v6529
        %v6531 = vshll.u32 2102212464, %v6519
        %v6532 = vshrl.u32 920167782, %v6520
        %v6533 = vor.u32 %v6531, %v6532
        %v6534 = vshll.u32 920167782, %v6519
        %v6535 = vshrl.u32 1326507024, %v6520
        %v6536 = vor.u32 %v6534, %v6535
        %vm6537 = vcmp.lt.s32.totalorder %v6518, 1
        %vm6538 = vcmp.lt.s32.totalorder %v6518, 2
        %vm6539 = vcmp.lt.s32.totalorder %v6518, 3
        %vm6540 = vcmp.lt.s32.totalorder %v6518, 4
        %v6541 = vsel %vm6537, %v6521, %v6524
        %v6542 = vsel %vm6540, %v6530, 2102212464
        %v6543 = vsel %vm6539, %v6527, %v6542
        %v6544 = vsel %vm6538, %v6541, %v6543
        %v6545 = vsel %vm6537, %v6524, %v6527
        %v6546 = vsel %vm6540, %v6533, 920167782
        %v6547 = vsel %vm6539, %v6530, %v6546
        %v6548 = vsel %vm6538, %v6545, %v6547
        %v6549 = vsel %vm6537, %v6527, %v6530
        %v6550 = vsel %vm6540, %v6536, 1326507024
        %v6551 = vsel %vm6539, %v6533, %v6550
        %v6552 = vsel %vm6538, %v6549, %v6551
        %v6553 = vshll.u32 %v6513, 8
        %v6554 = vmul.u32.u64.compose %v6553, %v6552
        %v6555 = vextract.low.u32 %v6554
        %v6556 = vextract.high.u32 %v6554
        %v6557 = vmul.u32.u64.compose %v6553, %v6548
        %v6558 = vextract.low.u32 %v6557
        %v6559 = vextract.high.u32 %v6557
        %v6560 = vmul.u32 %v6553, %v6544
        %v6561 = vadd.s32 %v6556, %v6558
        %vm6562 = vc.u32 %v6556, %v6558
        %v6563 = vadd.s32 %v6559, 1
        %v6564 = vsel %vm6562, %v6563, %v6559
        %v6565 = vadd.s32 %v6560, %v6564
        %v6566 = vadd.s32 %v6565, 536870912
        %v6567 = vshrl.u32 %v6566, 30
        %v6568 = vshll.u32 %v6567, 30
        %v6569 = vsub.s32 %v6565, %v6568
        %vm6570 = vcmp.lt.s32.totalorder %v6569, 0
        %v6571 = vsub.s32 0, %v6569
        %v6572 = vsel %vm6570, %v6571, %v6569
        %v6573 = vclz %v6572
        %v6574 = vsub.s32 %v6573, 2
        %vm6575 = vcmp.gt.s32.totalorder 0, %v6574
        %v6576 = vsel %vm6575, 0, %v6574
        %v6577 = vsub.s32 32, %v6576
        %v6578 = vshll.u32 %v6569, %v6576
        %v6579 = vshrl.u32 %v6561, %v6577
        %v6580 = vor.u32 %v6578, %v6579
        %v6581 = vsub.s32 4294967266, %v6576
        %v6582 = vadd.s32 %v6581, 127
        %v6583 = vshll.u32 %v6582, 23
        %v6584 = vor.u32 4788187, %v6583
        %v6585 = vand.u32 2147483647, %v6584
        %v6587 = vcvt.s32.f32 %v6580
        %v6588 = vmul.f32 %v6587, %v6585
        %v6589 = vxor.u32 %v6588, 2147483648
        %v6590 = vsel %vm6507, %v6589, %v6588
        %v6591 = vsub.s32 4, %v6567
        %v6592 = vsel %vm6507, %v6591, %v6567
        %v6593 = vsel %vm6506, %v936, %v6590
        %v6594 = vsel %vm6506, 0, %v6592
        %v6595 = vcosq.f32.pop %v6593
        %v6596 = vsinq.f32.pop %v6593
        %vm6597 = vweird.f32 %v936
        %v6598 = vadd.s32 %v6594, 3
        %v6599 = vand.u32 %v6598, 3
        %vm6600 = vcmp.lt.s32.totalorder %v6599, 2
        %vm6601 = vcmp.eq.s32.totalorder %v6599, 0
        %v6602 = vxor.u32 %v6596, 2147483648
        %v6603 = vsel %vm6601, %v6595, %v6602
        %vm6604 = vcmp.eq.s32.totalorder %v6599, 2
        %v6605 = vxor.u32 %v6595, 2147483648
        %v6606 = vsel %vm6604, %v6605, %v6596
        %v6607 = vsel %vm6600, %v6603, %v6606
        %v6608 = vsel %vm6597, nan, %v6607
        %v6609 = vand.u32 2147483647, %v937
        %vm6610 = vcmp.le.f32.partialorder %v6609, 0.7853982
        %vm6611 = vcmp.lt.s32.totalorder %v937, 0
        %v6612 = vand.u32 %v937, 2139095040
        %v6613 = vshrl.u32 %v6612, 23
        %v6614 = vsub.s32 %v6613, 127
        %v6615 = vand.u32 2147483647, %v937
        %v6616 = vand.u32 %v6615, 8388607
        %v6617 = vor.u32 %v6616, 8388608
        %v6618 = vsub.s32 0, %v6617
        %v6619 = vadd.s32 %v6614, 1
        %vm6620 = vcmp.gt.s32.totalorder %v6619, 0
        %v6621 = vsel %vm6620, %v6619, 0
        %v6622 = vshrl.u32 %v6621, 5
        %v6623 = vand.u32 %v6621, 31
        %v6624 = vsub.s32 32, %v6623
        %v6625 = vshrl.u32 683565275, %v6624
        %v6626 = vshll.u32 683565275, %v6623
        %v6627 = vshrl.u32 2475754826, %v6624
        %v6628 = vor.u32 %v6626, %v6627
        %v6629 = vshll.u32 2475754826, %v6623
        %v6630 = vshrl.u32 2131351028, %v6624
        %v6631 = vor.u32 %v6629, %v6630
        %v6632 = vshll.u32 2131351028, %v6623
        %v6633 = vshrl.u32 2102212464, %v6624
        %v6634 = vor.u32 %v6632, %v6633
        %v6635 = vshll.u32 2102212464, %v6623
        %v6636 = vshrl.u32 920167782, %v6624
        %v6637 = vor.u32 %v6635, %v6636
        %v6638 = vshll.u32 920167782, %v6623
        %v6639 = vshrl.u32 1326507024, %v6624
        %v6640 = vor.u32 %v6638, %v6639
        %vm6641 = vcmp.lt.s32.totalorder %v6622, 1
        %vm6642 = vcmp.lt.s32.totalorder %v6622, 2
        %vm6643 = vcmp.lt.s32.totalorder %v6622, 3
        %vm6644 = vcmp.lt.s32.totalorder %v6622, 4
        %v6645 = vsel %vm6641, %v6625, %v6628
        %v6646 = vsel %vm6644, %v6634, 2102212464
        %v6647 = vsel %vm6643, %v6631, %v6646
        %v6648 = vsel %vm6642, %v6645, %v6647
        %v6649 = vsel %vm6641, %v6628, %v6631
        %v6650 = vsel %vm6644, %v6637, 920167782
        %v6651 = vsel %vm6643, %v6634, %v6650
        %v6652 = vsel %vm6642, %v6649, %v6651
        %v6653 = vsel %vm6641, %v6631, %v6634
        %v6654 = vsel %vm6644, %v6640, 1326507024
        %v6655 = vsel %vm6643, %v6637, %v6654
        %v6656 = vsel %vm6642, %v6653, %v6655
        %v6657 = vshll.u32 %v6617, 8
        %v6658 = vmul.u32.u64.compose %v6657, %v6656
        %v6659 = vextract.low.u32 %v6658
        %v6660 = vextract.high.u32 %v6658
        %v6661 = vmul.u32.u64.compose %v6657, %v6652
        %v6662 = vextract.low.u32 %v6661
        %v6663 = vextract.high.u32 %v6661
        %v6664 = vmul.u32 %v6657, %v6648
        %v6665 = vadd.s32 %v6660, %v6662
        %vm6666 = vc.u32 %v6660, %v6662
        %v6667 = vadd.s32 %v6663, 1
        %v6668 = vsel %vm6666, %v6667, %v6663
        %v6669 = vadd.s32 %v6664, %v6668
        %v6670 = vadd.s32 %v6669, 536870912
        %v6671 = vshrl.u32 %v6670, 30
        %v6672 = vshll.u32 %v6671, 30
        %v6673 = vsub.s32 %v6669, %v6672
        %vm6674 = vcmp.lt.s32.totalorder %v6673, 0
        %v6675 = vsub.s32 0, %v6673
        %v6676 = vsel %vm6674, %v6675, %v6673
        %v6677 = vclz %v6676
        %v6678 = vsub.s32 %v6677, 2
        %vm6679 = vcmp.gt.s32.totalorder 0, %v6678
        %v6680 = vsel %vm6679, 0, %v6678
        %v6681 = vsub.s32 32, %v6680
        %v6682 = vshll.u32 %v6673, %v6680
        %v6683 = vshrl.u32 %v6665, %v6681
        %v6684 = vor.u32 %v6682, %v6683
        %v6685 = vsub.s32 4294967266, %v6680
        %v6686 = vadd.s32 %v6685, 127
        %v6687 = vshll.u32 %v6686, 23
        %v6688 = vor.u32 4788187, %v6687
        %v6689 = vand.u32 2147483647, %v6688
        %v6691 = vcvt.s32.f32 %v6684
        %v6692 = vmul.f32 %v6691, %v6689
        %v6693 = vxor.u32 %v6692, 2147483648
        %v6694 = vsel %vm6611, %v6693, %v6692
        %v6695 = vsub.s32 4, %v6671
        %v6696 = vsel %vm6611, %v6695, %v6671
        %v6697 = vsel %vm6610, %v937, %v6694
        %v6698 = vsel %vm6610, 0, %v6696
        %v6699 = vcosq.f32.pop %v6697
        %v6700 = vsinq.f32.pop %v6697
        %vm6701 = vweird.f32 %v937
        %v6702 = vadd.s32 %v6698, 3
        %v6703 = vand.u32 %v6702, 3
        %vm6704 = vcmp.lt.s32.totalorder %v6703, 2
        %vm6705 = vcmp.eq.s32.totalorder %v6703, 0
        %v6706 = vxor.u32 %v6700, 2147483648
        %v6707 = vsel %vm6705, %v6699, %v6706
        %vm6708 = vcmp.eq.s32.totalorder %v6703, 2
        %v6709 = vxor.u32 %v6699, 2147483648
        %v6710 = vsel %vm6708, %v6709, %v6700
        %v6711 = vsel %vm6704, %v6707, %v6710
        %v6712 = vsel %vm6701, nan, %v6711
        %v6713 = vand.u32 2147483647, %v938
        %vm6714 = vcmp.le.f32.partialorder %v6713, 0.7853982
        %vm6715 = vcmp.lt.s32.totalorder %v938, 0
        %v6716 = vand.u32 %v938, 2139095040
        %v6717 = vshrl.u32 %v6716, 23
        %v6718 = vsub.s32 %v6717, 127
        %v6719 = vand.u32 2147483647, %v938
        %v6720 = vand.u32 %v6719, 8388607
        %v6721 = vor.u32 %v6720, 8388608
        %v6722 = vsub.s32 0, %v6721
        %v6723 = vadd.s32 %v6718, 1
        %vm6724 = vcmp.gt.s32.totalorder %v6723, 0
        %v6725 = vsel %vm6724, %v6723, 0
        %v6726 = vshrl.u32 %v6725, 5
        %v6727 = vand.u32 %v6725, 31
        %v6728 = vsub.s32 32, %v6727
        %v6729 = vshrl.u32 683565275, %v6728
        %v6730 = vshll.u32 683565275, %v6727
        %v6731 = vshrl.u32 2475754826, %v6728
        %v6732 = vor.u32 %v6730, %v6731
        %v6733 = vshll.u32 2475754826, %v6727
        %v6734 = vshrl.u32 2131351028, %v6728
        %v6735 = vor.u32 %v6733, %v6734
        %v6736 = vshll.u32 2131351028, %v6727
        %v6737 = vshrl.u32 2102212464, %v6728
        %v6738 = vor.u32 %v6736, %v6737
        %v6739 = vshll.u32 2102212464, %v6727
        %v6740 = vshrl.u32 920167782, %v6728
        %v6741 = vor.u32 %v6739, %v6740
        %v6742 = vshll.u32 920167782, %v6727
        %v6743 = vshrl.u32 1326507024, %v6728
        %v6744 = vor.u32 %v6742, %v6743
        %vm6745 = vcmp.lt.s32.totalorder %v6726, 1
        %vm6746 = vcmp.lt.s32.totalorder %v6726, 2
        %vm6747 = vcmp.lt.s32.totalorder %v6726, 3
        %vm6748 = vcmp.lt.s32.totalorder %v6726, 4
        %v6749 = vsel %vm6745, %v6729, %v6732
        %v6750 = vsel %vm6748, %v6738, 2102212464
        %v6751 = vsel %vm6747, %v6735, %v6750
        %v6752 = vsel %vm6746, %v6749, %v6751
        %v6753 = vsel %vm6745, %v6732, %v6735
        %v6754 = vsel %vm6748, %v6741, 920167782
        %v6755 = vsel %vm6747, %v6738, %v6754
        %v6756 = vsel %vm6746, %v6753, %v6755
        %v6757 = vsel %vm6745, %v6735, %v6738
        %v6758 = vsel %vm6748, %v6744, 1326507024
        %v6759 = vsel %vm6747, %v6741, %v6758
        %v6760 = vsel %vm6746, %v6757, %v6759
        %v6761 = vshll.u32 %v6721, 8
        %v6762 = vmul.u32.u64.compose %v6761, %v6760
        %v6763 = vextract.low.u32 %v6762
        %v6764 = vextract.high.u32 %v6762
        %v6765 = vmul.u32.u64.compose %v6761, %v6756
        %v6766 = vextract.low.u32 %v6765
        %v6767 = vextract.high.u32 %v6765
        %v6768 = vmul.u32 %v6761, %v6752
        %v6769 = vadd.s32 %v6764, %v6766
        %vm6770 = vc.u32 %v6764, %v6766
        %v6771 = vadd.s32 %v6767, 1
        %v6772 = vsel %vm6770, %v6771, %v6767
        %v6773 = vadd.s32 %v6768, %v6772
        %v6774 = vadd.s32 %v6773, 536870912
        %v6775 = vshrl.u32 %v6774, 30
        %v6776 = vshll.u32 %v6775, 30
        %v6777 = vsub.s32 %v6773, %v6776
        %vm6778 = vcmp.lt.s32.totalorder %v6777, 0
        %v6779 = vsub.s32 0, %v6777
        %v6780 = vsel %vm6778, %v6779, %v6777
        %v6781 = vclz %v6780
        %v6782 = vsub.s32 %v6781, 2
        %vm6783 = vcmp.gt.s32.totalorder 0, %v6782
        %v6784 = vsel %vm6783, 0, %v6782
        %v6785 = vsub.s32 32, %v6784
        %v6786 = vshll.u32 %v6777, %v6784
        %v6787 = vshrl.u32 %v6769, %v6785
        %v6788 = vor.u32 %v6786, %v6787
        %v6789 = vsub.s32 4294967266, %v6784
        %v6790 = vadd.s32 %v6789, 127
        %v6791 = vshll.u32 %v6790, 23
        %v6792 = vor.u32 4788187, %v6791
        %v6793 = vand.u32 2147483647, %v6792
        %v6795 = vcvt.s32.f32 %v6788
        %v6796 = vmul.f32 %v6795, %v6793
        %v6797 = vxor.u32 %v6796, 2147483648
        %v6798 = vsel %vm6715, %v6797, %v6796
        %v6799 = vsub.s32 4, %v6775
        %v6800 = vsel %vm6715, %v6799, %v6775
        %v6801 = vsel %vm6714, %v938, %v6798
        %v6802 = vsel %vm6714, 0, %v6800
        %v6803 = vcosq.f32.pop %v6801
        %v6804 = vsinq.f32.pop %v6801
        %vm6805 = vweird.f32 %v938
        %v6806 = vadd.s32 %v6802, 3
        %v6807 = vand.u32 %v6806, 3
        %vm6808 = vcmp.lt.s32.totalorder %v6807, 2
        %vm6809 = vcmp.eq.s32.totalorder %v6807, 0
        %v6810 = vxor.u32 %v6804, 2147483648
        %v6811 = vsel %vm6809, %v6803, %v6810
        %vm6812 = vcmp.eq.s32.totalorder %v6807, 2
        %v6813 = vxor.u32 %v6803, 2147483648
        %v6814 = vsel %vm6812, %v6813, %v6804
        %v6815 = vsel %vm6808, %v6811, %v6814
        %v6816 = vsel %vm6805, nan, %v6815
        %v6817 = vand.u32 2147483647, %v939
        %vm6818 = vcmp.le.f32.partialorder %v6817, 0.7853982
        %vm6819 = vcmp.lt.s32.totalorder %v939, 0
        %v6820 = vand.u32 %v939, 2139095040
        %v6821 = vshrl.u32 %v6820, 23
        %v6822 = vsub.s32 %v6821, 127
        %v6823 = vand.u32 2147483647, %v939
        %v6824 = vand.u32 %v6823, 8388607
        %v6825 = vor.u32 %v6824, 8388608
        %v6826 = vsub.s32 0, %v6825
        %v6827 = vadd.s32 %v6822, 1
        %vm6828 = vcmp.gt.s32.totalorder %v6827, 0
        %v6829 = vsel %vm6828, %v6827, 0
        %v6830 = vshrl.u32 %v6829, 5
        %v6831 = vand.u32 %v6829, 31
        %v6832 = vsub.s32 32, %v6831
        %v6833 = vshrl.u32 683565275, %v6832
        %v6834 = vshll.u32 683565275, %v6831
        %v6835 = vshrl.u32 2475754826, %v6832
        %v6836 = vor.u32 %v6834, %v6835
        %v6837 = vshll.u32 2475754826, %v6831
        %v6838 = vshrl.u32 2131351028, %v6832
        %v6839 = vor.u32 %v6837, %v6838
        %v6840 = vshll.u32 2131351028, %v6831
        %v6841 = vshrl.u32 2102212464, %v6832
        %v6842 = vor.u32 %v6840, %v6841
        %v6843 = vshll.u32 2102212464, %v6831
        %v6844 = vshrl.u32 920167782, %v6832
        %v6845 = vor.u32 %v6843, %v6844
        %v6846 = vshll.u32 920167782, %v6831
        %v6847 = vshrl.u32 1326507024, %v6832
        %v6848 = vor.u32 %v6846, %v6847
        %vm6849 = vcmp.lt.s32.totalorder %v6830, 1
        %vm6850 = vcmp.lt.s32.totalorder %v6830, 2
        %vm6851 = vcmp.lt.s32.totalorder %v6830, 3
        %vm6852 = vcmp.lt.s32.totalorder %v6830, 4
        %v6853 = vsel %vm6849, %v6833, %v6836
        %v6854 = vsel %vm6852, %v6842, 2102212464
        %v6855 = vsel %vm6851, %v6839, %v6854
        %v6856 = vsel %vm6850, %v6853, %v6855
        %v6857 = vsel %vm6849, %v6836, %v6839
        %v6858 = vsel %vm6852, %v6845, 920167782
        %v6859 = vsel %vm6851, %v6842, %v6858
        %v6860 = vsel %vm6850, %v6857, %v6859
        %v6861 = vsel %vm6849, %v6839, %v6842
        %v6862 = vsel %vm6852, %v6848, 1326507024
        %v6863 = vsel %vm6851, %v6845, %v6862
        %v6864 = vsel %vm6850, %v6861, %v6863
        %v6865 = vshll.u32 %v6825, 8
        %v6866 = vmul.u32.u64.compose %v6865, %v6864
        %v6867 = vextract.low.u32 %v6866
        %v6868 = vextract.high.u32 %v6866
        %v6869 = vmul.u32.u64.compose %v6865, %v6860
        %v6870 = vextract.low.u32 %v6869
        %v6871 = vextract.high.u32 %v6869
        %v6872 = vmul.u32 %v6865, %v6856
        %v6873 = vadd.s32 %v6868, %v6870
        %vm6874 = vc.u32 %v6868, %v6870
        %v6875 = vadd.s32 %v6871, 1
        %v6876 = vsel %vm6874, %v6875, %v6871
        %v6877 = vadd.s32 %v6872, %v6876
        %v6878 = vadd.s32 %v6877, 536870912
        %v6879 = vshrl.u32 %v6878, 30
        %v6880 = vshll.u32 %v6879, 30
        %v6881 = vsub.s32 %v6877, %v6880
        %vm6882 = vcmp.lt.s32.totalorder %v6881, 0
        %v6883 = vsub.s32 0, %v6881
        %v6884 = vsel %vm6882, %v6883, %v6881
        %v6885 = vclz %v6884
        %v6886 = vsub.s32 %v6885, 2
        %vm6887 = vcmp.gt.s32.totalorder 0, %v6886
        %v6888 = vsel %vm6887, 0, %v6886
        %v6889 = vsub.s32 32, %v6888
        %v6890 = vshll.u32 %v6881, %v6888
        %v6891 = vshrl.u32 %v6873, %v6889
        %v6892 = vor.u32 %v6890, %v6891
        %v6893 = vsub.s32 4294967266, %v6888
        %v6894 = vadd.s32 %v6893, 127
        %v6895 = vshll.u32 %v6894, 23
        %v6896 = vor.u32 4788187, %v6895
        %v6897 = vand.u32 2147483647, %v6896
        %v6899 = vcvt.s32.f32 %v6892
        %v6900 = vmul.f32 %v6899, %v6897
        %v6901 = vxor.u32 %v6900, 2147483648
        %v6902 = vsel %vm6819, %v6901, %v6900
        %v6903 = vsub.s32 4, %v6879
        %v6904 = vsel %vm6819, %v6903, %v6879
        %v6905 = vsel %vm6818, %v939, %v6902
        %v6906 = vsel %vm6818, 0, %v6904
        %v6907 = vcosq.f32.pop %v6905
        %v6908 = vsinq.f32.pop %v6905
        %vm6909 = vweird.f32 %v939
        %v6910 = vadd.s32 %v6906, 3
        %v6911 = vand.u32 %v6910, 3
        %vm6912 = vcmp.lt.s32.totalorder %v6911, 2
        %vm6913 = vcmp.eq.s32.totalorder %v6911, 0
        %v6914 = vxor.u32 %v6908, 2147483648
        %v6915 = vsel %vm6913, %v6907, %v6914
        %vm6916 = vcmp.eq.s32.totalorder %v6911, 2
        %v6917 = vxor.u32 %v6907, 2147483648
        %v6918 = vsel %vm6916, %v6917, %v6908
        %v6919 = vsel %vm6912, %v6915, %v6918
        %v6920 = vsel %vm6909, nan, %v6919
        %v6921 = vand.u32 2147483647, %v940
        %vm6922 = vcmp.le.f32.partialorder %v6921, 0.7853982
        %vm6923 = vcmp.lt.s32.totalorder %v940, 0
        %v6924 = vand.u32 %v940, 2139095040
        %v6925 = vshrl.u32 %v6924, 23
        %v6926 = vsub.s32 %v6925, 127
        %v6927 = vand.u32 2147483647, %v940
        %v6928 = vand.u32 %v6927, 8388607
        %v6929 = vor.u32 %v6928, 8388608
        %v6930 = vsub.s32 0, %v6929
        %v6931 = vadd.s32 %v6926, 1
        %vm6932 = vcmp.gt.s32.totalorder %v6931, 0
        %v6933 = vsel %vm6932, %v6931, 0
        %v6934 = vshrl.u32 %v6933, 5
        %v6935 = vand.u32 %v6933, 31
        %v6936 = vsub.s32 32, %v6935
        %v6937 = vshrl.u32 683565275, %v6936
        %v6938 = vshll.u32 683565275, %v6935
        %v6939 = vshrl.u32 2475754826, %v6936
        %v6940 = vor.u32 %v6938, %v6939
        %v6941 = vshll.u32 2475754826, %v6935
        %v6942 = vshrl.u32 2131351028, %v6936
        %v6943 = vor.u32 %v6941, %v6942
        %v6944 = vshll.u32 2131351028, %v6935
        %v6945 = vshrl.u32 2102212464, %v6936
        %v6946 = vor.u32 %v6944, %v6945
        %v6947 = vshll.u32 2102212464, %v6935
        %v6948 = vshrl.u32 920167782, %v6936
        %v6949 = vor.u32 %v6947, %v6948
        %v6950 = vshll.u32 920167782, %v6935
        %v6951 = vshrl.u32 1326507024, %v6936
        %v6952 = vor.u32 %v6950, %v6951
        %vm6953 = vcmp.lt.s32.totalorder %v6934, 1
        %vm6954 = vcmp.lt.s32.totalorder %v6934, 2
        %vm6955 = vcmp.lt.s32.totalorder %v6934, 3
        %vm6956 = vcmp.lt.s32.totalorder %v6934, 4
        %v6957 = vsel %vm6953, %v6937, %v6940
        %v6958 = vsel %vm6956, %v6946, 2102212464
        %v6959 = vsel %vm6955, %v6943, %v6958
        %v6960 = vsel %vm6954, %v6957, %v6959
        %v6961 = vsel %vm6953, %v6940, %v6943
        %v6962 = vsel %vm6956, %v6949, 920167782
        %v6963 = vsel %vm6955, %v6946, %v6962
        %v6964 = vsel %vm6954, %v6961, %v6963
        %v6965 = vsel %vm6953, %v6943, %v6946
        %v6966 = vsel %vm6956, %v6952, 1326507024
        %v6967 = vsel %vm6955, %v6949, %v6966
        %v6968 = vsel %vm6954, %v6965, %v6967
        %v6969 = vshll.u32 %v6929, 8
        %v6970 = vmul.u32.u64.compose %v6969, %v6968
        %v6971 = vextract.low.u32 %v6970
        %v6972 = vextract.high.u32 %v6970
        %v6973 = vmul.u32.u64.compose %v6969, %v6964
        %v6974 = vextract.low.u32 %v6973
        %v6975 = vextract.high.u32 %v6973
        %v6976 = vmul.u32 %v6969, %v6960
        %v6977 = vadd.s32 %v6972, %v6974
        %vm6978 = vc.u32 %v6972, %v6974
        %v6979 = vadd.s32 %v6975, 1
        %v6980 = vsel %vm6978, %v6979, %v6975
        %v6981 = vadd.s32 %v6976, %v6980
        %v6982 = vadd.s32 %v6981, 536870912
        %v6983 = vshrl.u32 %v6982, 30
        %v6984 = vshll.u32 %v6983, 30
        %v6985 = vsub.s32 %v6981, %v6984
        %vm6986 = vcmp.lt.s32.totalorder %v6985, 0
        %v6987 = vsub.s32 0, %v6985
        %v6988 = vsel %vm6986, %v6987, %v6985
        %v6989 = vclz %v6988
        %v6990 = vsub.s32 %v6989, 2
        %vm6991 = vcmp.gt.s32.totalorder 0, %v6990
        %v6992 = vsel %vm6991, 0, %v6990
        %v6993 = vsub.s32 32, %v6992
        %v6994 = vshll.u32 %v6985, %v6992
        %v6995 = vshrl.u32 %v6977, %v6993
        %v6996 = vor.u32 %v6994, %v6995
        %v6997 = vsub.s32 4294967266, %v6992
        %v6998 = vadd.s32 %v6997, 127
        %v6999 = vshll.u32 %v6998, 23
        %v7000 = vor.u32 4788187, %v6999
        %v7001 = vand.u32 2147483647, %v7000
        %v7003 = vcvt.s32.f32 %v6996
        %v7004 = vmul.f32 %v7003, %v7001
        %v7005 = vxor.u32 %v7004, 2147483648
        %v7006 = vsel %vm6923, %v7005, %v7004
        %v7007 = vsub.s32 4, %v6983
        %v7008 = vsel %vm6923, %v7007, %v6983
        %v7009 = vsel %vm6922, %v940, %v7006
        %v7010 = vsel %vm6922, 0, %v7008
        %v7011 = vcosq.f32.pop %v7009
        %v7012 = vsinq.f32.pop %v7009
        %vm7013 = vweird.f32 %v940
        %v7014 = vadd.s32 %v7010, 3
        %v7015 = vand.u32 %v7014, 3
        %vm7016 = vcmp.lt.s32.totalorder %v7015, 2
        %vm7017 = vcmp.eq.s32.totalorder %v7015, 0
        %v7018 = vxor.u32 %v7012, 2147483648
        %v7019 = vsel %vm7017, %v7011, %v7018
        %vm7020 = vcmp.eq.s32.totalorder %v7015, 2
        %v7021 = vxor.u32 %v7011, 2147483648
        %v7022 = vsel %vm7020, %v7021, %v7012
        %v7023 = vsel %vm7016, %v7019, %v7022
        %v7024 = vsel %vm7013, nan, %v7023
        %v7025 = vand.u32 2147483647, %v941
        %vm7026 = vcmp.le.f32.partialorder %v7025, 0.7853982
        %vm7027 = vcmp.lt.s32.totalorder %v941, 0
        %v7028 = vand.u32 %v941, 2139095040
        %v7029 = vshrl.u32 %v7028, 23
        %v7030 = vsub.s32 %v7029, 127
        %v7031 = vand.u32 2147483647, %v941
        %v7032 = vand.u32 %v7031, 8388607
        %v7033 = vor.u32 %v7032, 8388608
        %v7034 = vsub.s32 0, %v7033
        %v7035 = vadd.s32 %v7030, 1
        %vm7036 = vcmp.gt.s32.totalorder %v7035, 0
        %v7037 = vsel %vm7036, %v7035, 0
        %v7038 = vshrl.u32 %v7037, 5
        %v7039 = vand.u32 %v7037, 31
        %v7040 = vsub.s32 32, %v7039
        %v7041 = vshrl.u32 683565275, %v7040
        %v7042 = vshll.u32 683565275, %v7039
        %v7043 = vshrl.u32 2475754826, %v7040
        %v7044 = vor.u32 %v7042, %v7043
        %v7045 = vshll.u32 2475754826, %v7039
        %v7046 = vshrl.u32 2131351028, %v7040
        %v7047 = vor.u32 %v7045, %v7046
        %v7048 = vshll.u32 2131351028, %v7039
        %v7049 = vshrl.u32 2102212464, %v7040
        %v7050 = vor.u32 %v7048, %v7049
        %v7051 = vshll.u32 2102212464, %v7039
        %v7052 = vshrl.u32 920167782, %v7040
        %v7053 = vor.u32 %v7051, %v7052
        %v7054 = vshll.u32 920167782, %v7039
        %v7055 = vshrl.u32 1326507024, %v7040
        %v7056 = vor.u32 %v7054, %v7055
        %vm7057 = vcmp.lt.s32.totalorder %v7038, 1
        %vm7058 = vcmp.lt.s32.totalorder %v7038, 2
        %vm7059 = vcmp.lt.s32.totalorder %v7038, 3
        %vm7060 = vcmp.lt.s32.totalorder %v7038, 4
        %v7061 = vsel %vm7057, %v7041, %v7044
        %v7062 = vsel %vm7060, %v7050, 2102212464
        %v7063 = vsel %vm7059, %v7047, %v7062
        %v7064 = vsel %vm7058, %v7061, %v7063
        %v7065 = vsel %vm7057, %v7044, %v7047
        %v7066 = vsel %vm7060, %v7053, 920167782
        %v7067 = vsel %vm7059, %v7050, %v7066
        %v7068 = vsel %vm7058, %v7065, %v7067
        %v7069 = vsel %vm7057, %v7047, %v7050
        %v7070 = vsel %vm7060, %v7056, 1326507024
        %v7071 = vsel %vm7059, %v7053, %v7070
        %v7072 = vsel %vm7058, %v7069, %v7071
        %v7073 = vshll.u32 %v7033, 8
        %v7074 = vmul.u32.u64.compose %v7073, %v7072
        %v7075 = vextract.low.u32 %v7074
        %v7076 = vextract.high.u32 %v7074
        %v7077 = vmul.u32.u64.compose %v7073, %v7068
        %v7078 = vextract.low.u32 %v7077
        %v7079 = vextract.high.u32 %v7077
        %v7080 = vmul.u32 %v7073, %v7064
        %v7081 = vadd.s32 %v7076, %v7078
        %vm7082 = vc.u32 %v7076, %v7078
        %v7083 = vadd.s32 %v7079, 1
        %v7084 = vsel %vm7082, %v7083, %v7079
        %v7085 = vadd.s32 %v7080, %v7084
        %v7086 = vadd.s32 %v7085, 536870912
        %v7087 = vshrl.u32 %v7086, 30
        %v7088 = vshll.u32 %v7087, 30
        %v7089 = vsub.s32 %v7085, %v7088
        %vm7090 = vcmp.lt.s32.totalorder %v7089, 0
        %v7091 = vsub.s32 0, %v7089
        %v7092 = vsel %vm7090, %v7091, %v7089
        %v7093 = vclz %v7092
        %v7094 = vsub.s32 %v7093, 2
        %vm7095 = vcmp.gt.s32.totalorder 0, %v7094
        %v7096 = vsel %vm7095, 0, %v7094
        %v7097 = vsub.s32 32, %v7096
        %v7098 = vshll.u32 %v7089, %v7096
        %v7099 = vshrl.u32 %v7081, %v7097
        %v7100 = vor.u32 %v7098, %v7099
        %v7101 = vsub.s32 4294967266, %v7096
        %v7102 = vadd.s32 %v7101, 127
        %v7103 = vshll.u32 %v7102, 23
        %v7104 = vor.u32 4788187, %v7103
        %v7105 = vand.u32 2147483647, %v7104
        %v7107 = vcvt.s32.f32 %v7100
        %v7108 = vmul.f32 %v7107, %v7105
        %v7109 = vxor.u32 %v7108, 2147483648
        %v7110 = vsel %vm7027, %v7109, %v7108
        %v7111 = vsub.s32 4, %v7087
        %v7112 = vsel %vm7027, %v7111, %v7087
        %v7113 = vsel %vm7026, %v941, %v7110
        %v7114 = vsel %vm7026, 0, %v7112
        %v7115 = vcosq.f32.pop %v7113
        %v7116 = vsinq.f32.pop %v7113
        %vm7117 = vweird.f32 %v941
        %v7118 = vadd.s32 %v7114, 3
        %v7119 = vand.u32 %v7118, 3
        %vm7120 = vcmp.lt.s32.totalorder %v7119, 2
        %vm7121 = vcmp.eq.s32.totalorder %v7119, 0
        %v7122 = vxor.u32 %v7116, 2147483648
        %v7123 = vsel %vm7121, %v7115, %v7122
        %vm7124 = vcmp.eq.s32.totalorder %v7119, 2
        %v7125 = vxor.u32 %v7115, 2147483648
        %v7126 = vsel %vm7124, %v7125, %v7116
        %v7127 = vsel %vm7120, %v7123, %v7126
        %v7128 = vsel %vm7117, nan, %v7127
        %v7129 = vand.u32 2147483647, %v942
        %vm7130 = vcmp.le.f32.partialorder %v7129, 0.7853982
        %vm7131 = vcmp.lt.s32.totalorder %v942, 0
        %v7132 = vand.u32 %v942, 2139095040
        %v7133 = vshrl.u32 %v7132, 23
        %v7134 = vsub.s32 %v7133, 127
        %v7135 = vand.u32 2147483647, %v942
        %v7136 = vand.u32 %v7135, 8388607
        %v7137 = vor.u32 %v7136, 8388608
        %v7138 = vsub.s32 0, %v7137
        %v7139 = vadd.s32 %v7134, 1
        %vm7140 = vcmp.gt.s32.totalorder %v7139, 0
        %v7141 = vsel %vm7140, %v7139, 0
        %v7142 = vshrl.u32 %v7141, 5
        %v7143 = vand.u32 %v7141, 31
        %v7144 = vsub.s32 32, %v7143
        %v7145 = vshrl.u32 683565275, %v7144
        %v7146 = vshll.u32 683565275, %v7143
        %v7147 = vshrl.u32 2475754826, %v7144
        %v7148 = vor.u32 %v7146, %v7147
        %v7149 = vshll.u32 2475754826, %v7143
        %v7150 = vshrl.u32 2131351028, %v7144
        %v7151 = vor.u32 %v7149, %v7150
        %v7152 = vshll.u32 2131351028, %v7143
        %v7153 = vshrl.u32 2102212464, %v7144
        %v7154 = vor.u32 %v7152, %v7153
        %v7155 = vshll.u32 2102212464, %v7143
        %v7156 = vshrl.u32 920167782, %v7144
        %v7157 = vor.u32 %v7155, %v7156
        %v7158 = vshll.u32 920167782, %v7143
        %v7159 = vshrl.u32 1326507024, %v7144
        %v7160 = vor.u32 %v7158, %v7159
        %vm7161 = vcmp.lt.s32.totalorder %v7142, 1
        %vm7162 = vcmp.lt.s32.totalorder %v7142, 2
        %vm7163 = vcmp.lt.s32.totalorder %v7142, 3
        %vm7164 = vcmp.lt.s32.totalorder %v7142, 4
        %v7165 = vsel %vm7161, %v7145, %v7148
        %v7166 = vsel %vm7164, %v7154, 2102212464
        %v7167 = vsel %vm7163, %v7151, %v7166
        %v7168 = vsel %vm7162, %v7165, %v7167
        %v7169 = vsel %vm7161, %v7148, %v7151
        %v7170 = vsel %vm7164, %v7157, 920167782
        %v7171 = vsel %vm7163, %v7154, %v7170
        %v7172 = vsel %vm7162, %v7169, %v7171
        %v7173 = vsel %vm7161, %v7151, %v7154
        %v7174 = vsel %vm7164, %v7160, 1326507024
        %v7175 = vsel %vm7163, %v7157, %v7174
        %v7176 = vsel %vm7162, %v7173, %v7175
        %v7177 = vshll.u32 %v7137, 8
        %v7178 = vmul.u32.u64.compose %v7177, %v7176
        %v7179 = vextract.low.u32 %v7178
        %v7180 = vextract.high.u32 %v7178
        %v7181 = vmul.u32.u64.compose %v7177, %v7172
        %v7182 = vextract.low.u32 %v7181
        %v7183 = vextract.high.u32 %v7181
        %v7184 = vmul.u32 %v7177, %v7168
        %v7185 = vadd.s32 %v7180, %v7182
        %vm7186 = vc.u32 %v7180, %v7182
        %v7187 = vadd.s32 %v7183, 1
        %v7188 = vsel %vm7186, %v7187, %v7183
        %v7189 = vadd.s32 %v7184, %v7188
        %v7190 = vadd.s32 %v7189, 536870912
        %v7191 = vshrl.u32 %v7190, 30
        %v7192 = vshll.u32 %v7191, 30
        %v7193 = vsub.s32 %v7189, %v7192
        %vm7194 = vcmp.lt.s32.totalorder %v7193, 0
        %v7195 = vsub.s32 0, %v7193
        %v7196 = vsel %vm7194, %v7195, %v7193
        %v7197 = vclz %v7196
        %v7198 = vsub.s32 %v7197, 2
        %vm7199 = vcmp.gt.s32.totalorder 0, %v7198
        %v7200 = vsel %vm7199, 0, %v7198
        %v7201 = vsub.s32 32, %v7200
        %v7202 = vshll.u32 %v7193, %v7200
        %v7203 = vshrl.u32 %v7185, %v7201
        %v7204 = vor.u32 %v7202, %v7203
        %v7205 = vsub.s32 4294967266, %v7200
        %v7206 = vadd.s32 %v7205, 127
        %v7207 = vshll.u32 %v7206, 23
        %v7208 = vor.u32 4788187, %v7207
        %v7209 = vand.u32 2147483647, %v7208
        %v7211 = vcvt.s32.f32 %v7204
        %v7212 = vmul.f32 %v7211, %v7209
        %v7213 = vxor.u32 %v7212, 2147483648
        %v7214 = vsel %vm7131, %v7213, %v7212
        %v7215 = vsub.s32 4, %v7191
        %v7216 = vsel %vm7131, %v7215, %v7191
        %v7217 = vsel %vm7130, %v942, %v7214
        %v7218 = vsel %vm7130, 0, %v7216
        %v7219 = vcosq.f32.pop %v7217
        %v7220 = vsinq.f32.pop %v7217
        %vm7221 = vweird.f32 %v942
        %v7222 = vadd.s32 %v7218, 3
        %v7223 = vand.u32 %v7222, 3
        %vm7224 = vcmp.lt.s32.totalorder %v7223, 2
        %vm7225 = vcmp.eq.s32.totalorder %v7223, 0
        %v7226 = vxor.u32 %v7220, 2147483648
        %v7227 = vsel %vm7225, %v7219, %v7226
        %vm7228 = vcmp.eq.s32.totalorder %v7223, 2
        %v7229 = vxor.u32 %v7219, 2147483648
        %v7230 = vsel %vm7228, %v7229, %v7220
        %v7231 = vsel %vm7224, %v7227, %v7230
        %v7232 = vsel %vm7221, nan, %v7231
        %v7233 = vand.u32 2147483647, %v943
        %vm7234 = vcmp.le.f32.partialorder %v7233, 0.7853982
        %vm7235 = vcmp.lt.s32.totalorder %v943, 0
        %v7236 = vand.u32 %v943, 2139095040
        %v7237 = vshrl.u32 %v7236, 23
        %v7238 = vsub.s32 %v7237, 127
        %v7239 = vand.u32 2147483647, %v943
        %v7240 = vand.u32 %v7239, 8388607
        %v7241 = vor.u32 %v7240, 8388608
        %v7242 = vsub.s32 0, %v7241
        %v7243 = vadd.s32 %v7238, 1
        %vm7244 = vcmp.gt.s32.totalorder %v7243, 0
        %v7245 = vsel %vm7244, %v7243, 0
        %v7246 = vshrl.u32 %v7245, 5
        %v7247 = vand.u32 %v7245, 31
        %v7248 = vsub.s32 32, %v7247
        %v7249 = vshrl.u32 683565275, %v7248
        %v7250 = vshll.u32 683565275, %v7247
        %v7251 = vshrl.u32 2475754826, %v7248
        %v7252 = vor.u32 %v7250, %v7251
        %v7253 = vshll.u32 2475754826, %v7247
        %v7254 = vshrl.u32 2131351028, %v7248
        %v7255 = vor.u32 %v7253, %v7254
        %v7256 = vshll.u32 2131351028, %v7247
        %v7257 = vshrl.u32 2102212464, %v7248
        %v7258 = vor.u32 %v7256, %v7257
        %v7259 = vshll.u32 2102212464, %v7247
        %v7260 = vshrl.u32 920167782, %v7248
        %v7261 = vor.u32 %v7259, %v7260
        %v7262 = vshll.u32 920167782, %v7247
        %v7263 = vshrl.u32 1326507024, %v7248
        %v7264 = vor.u32 %v7262, %v7263
        %vm7265 = vcmp.lt.s32.totalorder %v7246, 1
        %vm7266 = vcmp.lt.s32.totalorder %v7246, 2
        %vm7267 = vcmp.lt.s32.totalorder %v7246, 3
        %vm7268 = vcmp.lt.s32.totalorder %v7246, 4
        %v7269 = vsel %vm7265, %v7249, %v7252
        %v7270 = vsel %vm7268, %v7258, 2102212464
        %v7271 = vsel %vm7267, %v7255, %v7270
        %v7272 = vsel %vm7266, %v7269, %v7271
        %v7273 = vsel %vm7265, %v7252, %v7255
        %v7274 = vsel %vm7268, %v7261, 920167782
        %v7275 = vsel %vm7267, %v7258, %v7274
        %v7276 = vsel %vm7266, %v7273, %v7275
        %v7277 = vsel %vm7265, %v7255, %v7258
        %v7278 = vsel %vm7268, %v7264, 1326507024
        %v7279 = vsel %vm7267, %v7261, %v7278
        %v7280 = vsel %vm7266, %v7277, %v7279
        %v7281 = vshll.u32 %v7241, 8
        %v7282 = vmul.u32.u64.compose %v7281, %v7280
        %v7283 = vextract.low.u32 %v7282
        %v7284 = vextract.high.u32 %v7282
        %v7285 = vmul.u32.u64.compose %v7281, %v7276
        %v7286 = vextract.low.u32 %v7285
        %v7287 = vextract.high.u32 %v7285
        %v7288 = vmul.u32 %v7281, %v7272
        %v7289 = vadd.s32 %v7284, %v7286
        %vm7290 = vc.u32 %v7284, %v7286
        %v7291 = vadd.s32 %v7287, 1
        %v7292 = vsel %vm7290, %v7291, %v7287
        %v7293 = vadd.s32 %v7288, %v7292
        %v7294 = vadd.s32 %v7293, 536870912
        %v7295 = vshrl.u32 %v7294, 30
        %v7296 = vshll.u32 %v7295, 30
        %v7297 = vsub.s32 %v7293, %v7296
        %vm7298 = vcmp.lt.s32.totalorder %v7297, 0
        %v7299 = vsub.s32 0, %v7297
        %v7300 = vsel %vm7298, %v7299, %v7297
        %v7301 = vclz %v7300
        %v7302 = vsub.s32 %v7301, 2
        %vm7303 = vcmp.gt.s32.totalorder 0, %v7302
        %v7304 = vsel %vm7303, 0, %v7302
        %v7305 = vsub.s32 32, %v7304
        %v7306 = vshll.u32 %v7297, %v7304
        %v7307 = vshrl.u32 %v7289, %v7305
        %v7308 = vor.u32 %v7306, %v7307
        %v7309 = vsub.s32 4294967266, %v7304
        %v7310 = vadd.s32 %v7309, 127
        %v7311 = vshll.u32 %v7310, 23
        %v7312 = vor.u32 4788187, %v7311
        %v7313 = vand.u32 2147483647, %v7312
        %v7315 = vcvt.s32.f32 %v7308
        %v7316 = vmul.f32 %v7315, %v7313
        %v7317 = vxor.u32 %v7316, 2147483648
        %v7318 = vsel %vm7235, %v7317, %v7316
        %v7319 = vsub.s32 4, %v7295
        %v7320 = vsel %vm7235, %v7319, %v7295
        %v7321 = vsel %vm7234, %v943, %v7318
        %v7322 = vsel %vm7234, 0, %v7320
        %v7323 = vcosq.f32.pop %v7321
        %v7324 = vsinq.f32.pop %v7321
        %vm7325 = vweird.f32 %v943
        %v7326 = vadd.s32 %v7322, 3
        %v7327 = vand.u32 %v7326, 3
        %vm7328 = vcmp.lt.s32.totalorder %v7327, 2
        %vm7329 = vcmp.eq.s32.totalorder %v7327, 0
        %v7330 = vxor.u32 %v7324, 2147483648
        %v7331 = vsel %vm7329, %v7323, %v7330
        %vm7332 = vcmp.eq.s32.totalorder %v7327, 2
        %v7333 = vxor.u32 %v7323, 2147483648
        %v7334 = vsel %vm7332, %v7333, %v7324
        %v7335 = vsel %vm7328, %v7331, %v7334
        %v7336 = vsel %vm7325, nan, %v7335
        %v7337 = vand.u32 2147483647, %v944
        %vm7338 = vcmp.le.f32.partialorder %v7337, 0.7853982
        %vm7339 = vcmp.lt.s32.totalorder %v944, 0
        %v7340 = vand.u32 %v944, 2139095040
        %v7341 = vshrl.u32 %v7340, 23
        %v7342 = vsub.s32 %v7341, 127
        %v7343 = vand.u32 2147483647, %v944
        %v7344 = vand.u32 %v7343, 8388607
        %v7345 = vor.u32 %v7344, 8388608
        %v7346 = vsub.s32 0, %v7345
        %v7347 = vadd.s32 %v7342, 1
        %vm7348 = vcmp.gt.s32.totalorder %v7347, 0
        %v7349 = vsel %vm7348, %v7347, 0
        %v7350 = vshrl.u32 %v7349, 5
        %v7351 = vand.u32 %v7349, 31
        %v7352 = vsub.s32 32, %v7351
        %v7353 = vshrl.u32 683565275, %v7352
        %v7354 = vshll.u32 683565275, %v7351
        %v7355 = vshrl.u32 2475754826, %v7352
        %v7356 = vor.u32 %v7354, %v7355
        %v7357 = vshll.u32 2475754826, %v7351
        %v7358 = vshrl.u32 2131351028, %v7352
        %v7359 = vor.u32 %v7357, %v7358
        %v7360 = vshll.u32 2131351028, %v7351
        %v7361 = vshrl.u32 2102212464, %v7352
        %v7362 = vor.u32 %v7360, %v7361
        %v7363 = vshll.u32 2102212464, %v7351
        %v7364 = vshrl.u32 920167782, %v7352
        %v7365 = vor.u32 %v7363, %v7364
        %v7366 = vshll.u32 920167782, %v7351
        %v7367 = vshrl.u32 1326507024, %v7352
        %v7368 = vor.u32 %v7366, %v7367
        %vm7369 = vcmp.lt.s32.totalorder %v7350, 1
        %vm7370 = vcmp.lt.s32.totalorder %v7350, 2
        %vm7371 = vcmp.lt.s32.totalorder %v7350, 3
        %vm7372 = vcmp.lt.s32.totalorder %v7350, 4
        %v7373 = vsel %vm7369, %v7353, %v7356
        %v7374 = vsel %vm7372, %v7362, 2102212464
        %v7375 = vsel %vm7371, %v7359, %v7374
        %v7376 = vsel %vm7370, %v7373, %v7375
        %v7377 = vsel %vm7369, %v7356, %v7359
        %v7378 = vsel %vm7372, %v7365, 920167782
        %v7379 = vsel %vm7371, %v7362, %v7378
        %v7380 = vsel %vm7370, %v7377, %v7379
        %v7381 = vsel %vm7369, %v7359, %v7362
        %v7382 = vsel %vm7372, %v7368, 1326507024
        %v7383 = vsel %vm7371, %v7365, %v7382
        %v7384 = vsel %vm7370, %v7381, %v7383
        %v7385 = vshll.u32 %v7345, 8
        %v7386 = vmul.u32.u64.compose %v7385, %v7384
        %v7387 = vextract.low.u32 %v7386
        %v7388 = vextract.high.u32 %v7386
        %v7389 = vmul.u32.u64.compose %v7385, %v7380
        %v7390 = vextract.low.u32 %v7389
        %v7391 = vextract.high.u32 %v7389
        %v7392 = vmul.u32 %v7385, %v7376
        %v7393 = vadd.s32 %v7388, %v7390
        %vm7394 = vc.u32 %v7388, %v7390
        %v7395 = vadd.s32 %v7391, 1
        %v7396 = vsel %vm7394, %v7395, %v7391
        %v7397 = vadd.s32 %v7392, %v7396
        %v7398 = vadd.s32 %v7397, 536870912
        %v7399 = vshrl.u32 %v7398, 30
        %v7400 = vshll.u32 %v7399, 30
        %v7401 = vsub.s32 %v7397, %v7400
        %vm7402 = vcmp.lt.s32.totalorder %v7401, 0
        %v7403 = vsub.s32 0, %v7401
        %v7404 = vsel %vm7402, %v7403, %v7401
        %v7405 = vclz %v7404
        %v7406 = vsub.s32 %v7405, 2
        %vm7407 = vcmp.gt.s32.totalorder 0, %v7406
        %v7408 = vsel %vm7407, 0, %v7406
        %v7409 = vsub.s32 32, %v7408
        %v7410 = vshll.u32 %v7401, %v7408
        %v7411 = vshrl.u32 %v7393, %v7409
        %v7412 = vor.u32 %v7410, %v7411
        %v7413 = vsub.s32 4294967266, %v7408
        %v7414 = vadd.s32 %v7413, 127
        %v7415 = vshll.u32 %v7414, 23
        %v7416 = vor.u32 4788187, %v7415
        %v7417 = vand.u32 2147483647, %v7416
        %v7419 = vcvt.s32.f32 %v7412
        %v7420 = vmul.f32 %v7419, %v7417
        %v7421 = vxor.u32 %v7420, 2147483648
        %v7422 = vsel %vm7339, %v7421, %v7420
        %v7423 = vsub.s32 4, %v7399
        %v7424 = vsel %vm7339, %v7423, %v7399
        %v7425 = vsel %vm7338, %v944, %v7422
        %v7426 = vsel %vm7338, 0, %v7424
        %v7427 = vcosq.f32.pop %v7425
        %v7428 = vsinq.f32.pop %v7425
        %vm7429 = vweird.f32 %v944
        %v7430 = vadd.s32 %v7426, 3
        %v7431 = vand.u32 %v7430, 3
        %vm7432 = vcmp.lt.s32.totalorder %v7431, 2
        %vm7433 = vcmp.eq.s32.totalorder %v7431, 0
        %v7434 = vxor.u32 %v7428, 2147483648
        %v7435 = vsel %vm7433, %v7427, %v7434
        %vm7436 = vcmp.eq.s32.totalorder %v7431, 2
        %v7437 = vxor.u32 %v7427, 2147483648
        %v7438 = vsel %vm7436, %v7437, %v7428
        %v7439 = vsel %vm7432, %v7435, %v7438
        %v7440 = vsel %vm7429, nan, %v7439
        %v7441 = vand.u32 2147483647, %v945
        %vm7442 = vcmp.le.f32.partialorder %v7441, 0.7853982
        %vm7443 = vcmp.lt.s32.totalorder %v945, 0
        %v7444 = vand.u32 %v945, 2139095040
        %v7445 = vshrl.u32 %v7444, 23
        %v7446 = vsub.s32 %v7445, 127
        %v7447 = vand.u32 2147483647, %v945
        %v7448 = vand.u32 %v7447, 8388607
        %v7449 = vor.u32 %v7448, 8388608
        %v7450 = vsub.s32 0, %v7449
        %v7451 = vadd.s32 %v7446, 1
        %vm7452 = vcmp.gt.s32.totalorder %v7451, 0
        %v7453 = vsel %vm7452, %v7451, 0
        %v7454 = vshrl.u32 %v7453, 5
        %v7455 = vand.u32 %v7453, 31
        %v7456 = vsub.s32 32, %v7455
        %v7457 = vshrl.u32 683565275, %v7456
        %v7458 = vshll.u32 683565275, %v7455
        %v7459 = vshrl.u32 2475754826, %v7456
        %v7460 = vor.u32 %v7458, %v7459
        %v7461 = vshll.u32 2475754826, %v7455
        %v7462 = vshrl.u32 2131351028, %v7456
        %v7463 = vor.u32 %v7461, %v7462
        %v7464 = vshll.u32 2131351028, %v7455
        %v7465 = vshrl.u32 2102212464, %v7456
        %v7466 = vor.u32 %v7464, %v7465
        %v7467 = vshll.u32 2102212464, %v7455
        %v7468 = vshrl.u32 920167782, %v7456
        %v7469 = vor.u32 %v7467, %v7468
        %v7470 = vshll.u32 920167782, %v7455
        %v7471 = vshrl.u32 1326507024, %v7456
        %v7472 = vor.u32 %v7470, %v7471
        %vm7473 = vcmp.lt.s32.totalorder %v7454, 1
        %vm7474 = vcmp.lt.s32.totalorder %v7454, 2
        %vm7475 = vcmp.lt.s32.totalorder %v7454, 3
        %vm7476 = vcmp.lt.s32.totalorder %v7454, 4
        %v7477 = vsel %vm7473, %v7457, %v7460
        %v7478 = vsel %vm7476, %v7466, 2102212464
        %v7479 = vsel %vm7475, %v7463, %v7478
        %v7480 = vsel %vm7474, %v7477, %v7479
        %v7481 = vsel %vm7473, %v7460, %v7463
        %v7482 = vsel %vm7476, %v7469, 920167782
        %v7483 = vsel %vm7475, %v7466, %v7482
        %v7484 = vsel %vm7474, %v7481, %v7483
        %v7485 = vsel %vm7473, %v7463, %v7466
        %v7486 = vsel %vm7476, %v7472, 1326507024
        %v7487 = vsel %vm7475, %v7469, %v7486
        %v7488 = vsel %vm7474, %v7485, %v7487
        %v7489 = vshll.u32 %v7449, 8
        %v7490 = vmul.u32.u64.compose %v7489, %v7488
        %v7491 = vextract.low.u32 %v7490
        %v7492 = vextract.high.u32 %v7490
        %v7493 = vmul.u32.u64.compose %v7489, %v7484
        %v7494 = vextract.low.u32 %v7493
        %v7495 = vextract.high.u32 %v7493
        %v7496 = vmul.u32 %v7489, %v7480
        %v7497 = vadd.s32 %v7492, %v7494
        %vm7498 = vc.u32 %v7492, %v7494
        %v7499 = vadd.s32 %v7495, 1
        %v7500 = vsel %vm7498, %v7499, %v7495
        %v7501 = vadd.s32 %v7496, %v7500
        %v7502 = vadd.s32 %v7501, 536870912
        %v7503 = vshrl.u32 %v7502, 30
        %v7504 = vshll.u32 %v7503, 30
        %v7505 = vsub.s32 %v7501, %v7504
        %vm7506 = vcmp.lt.s32.totalorder %v7505, 0
        %v7507 = vsub.s32 0, %v7505
        %v7508 = vsel %vm7506, %v7507, %v7505
        %v7509 = vclz %v7508
        %v7510 = vsub.s32 %v7509, 2
        %vm7511 = vcmp.gt.s32.totalorder 0, %v7510
        %v7512 = vsel %vm7511, 0, %v7510
        %v7513 = vsub.s32 32, %v7512
        %v7514 = vshll.u32 %v7505, %v7512
        %v7515 = vshrl.u32 %v7497, %v7513
        %v7516 = vor.u32 %v7514, %v7515
        %v7517 = vsub.s32 4294967266, %v7512
        %v7518 = vadd.s32 %v7517, 127
        %v7519 = vshll.u32 %v7518, 23
        %v7520 = vor.u32 4788187, %v7519
        %v7521 = vand.u32 2147483647, %v7520
        %v7523 = vcvt.s32.f32 %v7516
        %v7524 = vmul.f32 %v7523, %v7521
        %v7525 = vxor.u32 %v7524, 2147483648
        %v7526 = vsel %vm7443, %v7525, %v7524
        %v7527 = vsub.s32 4, %v7503
        %v7528 = vsel %vm7443, %v7527, %v7503
        %v7529 = vsel %vm7442, %v945, %v7526
        %v7530 = vsel %vm7442, 0, %v7528
        %v7531 = vcosq.f32.pop %v7529
        %v7532 = vsinq.f32.pop %v7529
        %vm7533 = vweird.f32 %v945
        %v7534 = vadd.s32 %v7530, 3
        %v7535 = vand.u32 %v7534, 3
        %vm7536 = vcmp.lt.s32.totalorder %v7535, 2
        %vm7537 = vcmp.eq.s32.totalorder %v7535, 0
        %v7538 = vxor.u32 %v7532, 2147483648
        %v7539 = vsel %vm7537, %v7531, %v7538
        %vm7540 = vcmp.eq.s32.totalorder %v7535, 2
        %v7541 = vxor.u32 %v7531, 2147483648
        %v7542 = vsel %vm7540, %v7541, %v7532
        %v7543 = vsel %vm7536, %v7539, %v7542
        %v7544 = vsel %vm7533, nan, %v7543
        %v7545 = vand.u32 2147483647, %v946
        %vm7546 = vcmp.le.f32.partialorder %v7545, 0.7853982
        %vm7547 = vcmp.lt.s32.totalorder %v946, 0
        %v7548 = vand.u32 %v946, 2139095040
        %v7549 = vshrl.u32 %v7548, 23
        %v7550 = vsub.s32 %v7549, 127
        %v7551 = vand.u32 2147483647, %v946
        %v7552 = vand.u32 %v7551, 8388607
        %v7553 = vor.u32 %v7552, 8388608
        %v7554 = vsub.s32 0, %v7553
        %v7555 = vadd.s32 %v7550, 1
        %vm7556 = vcmp.gt.s32.totalorder %v7555, 0
        %v7557 = vsel %vm7556, %v7555, 0
        %v7558 = vshrl.u32 %v7557, 5
        %v7559 = vand.u32 %v7557, 31
        %v7560 = vsub.s32 32, %v7559
        %v7561 = vshrl.u32 683565275, %v7560
        %v7562 = vshll.u32 683565275, %v7559
        %v7563 = vshrl.u32 2475754826, %v7560
        %v7564 = vor.u32 %v7562, %v7563
        %v7565 = vshll.u32 2475754826, %v7559
        %v7566 = vshrl.u32 2131351028, %v7560
        %v7567 = vor.u32 %v7565, %v7566
        %v7568 = vshll.u32 2131351028, %v7559
        %v7569 = vshrl.u32 2102212464, %v7560
        %v7570 = vor.u32 %v7568, %v7569
        %v7571 = vshll.u32 2102212464, %v7559
        %v7572 = vshrl.u32 920167782, %v7560
        %v7573 = vor.u32 %v7571, %v7572
        %v7574 = vshll.u32 920167782, %v7559
        %v7575 = vshrl.u32 1326507024, %v7560
        %v7576 = vor.u32 %v7574, %v7575
        %vm7577 = vcmp.lt.s32.totalorder %v7558, 1
        %vm7578 = vcmp.lt.s32.totalorder %v7558, 2
        %vm7579 = vcmp.lt.s32.totalorder %v7558, 3
        %vm7580 = vcmp.lt.s32.totalorder %v7558, 4
        %v7581 = vsel %vm7577, %v7561, %v7564
        %v7582 = vsel %vm7580, %v7570, 2102212464
        %v7583 = vsel %vm7579, %v7567, %v7582
        %v7584 = vsel %vm7578, %v7581, %v7583
        %v7585 = vsel %vm7577, %v7564, %v7567
        %v7586 = vsel %vm7580, %v7573, 920167782
        %v7587 = vsel %vm7579, %v7570, %v7586
        %v7588 = vsel %vm7578, %v7585, %v7587
        %v7589 = vsel %vm7577, %v7567, %v7570
        %v7590 = vsel %vm7580, %v7576, 1326507024
        %v7591 = vsel %vm7579, %v7573, %v7590
        %v7592 = vsel %vm7578, %v7589, %v7591
        %v7593 = vshll.u32 %v7553, 8
        %v7594 = vmul.u32.u64.compose %v7593, %v7592
        %v7595 = vextract.low.u32 %v7594
        %v7596 = vextract.high.u32 %v7594
        %v7597 = vmul.u32.u64.compose %v7593, %v7588
        %v7598 = vextract.low.u32 %v7597
        %v7599 = vextract.high.u32 %v7597
        %v7600 = vmul.u32 %v7593, %v7584
        %v7601 = vadd.s32 %v7596, %v7598
        %vm7602 = vc.u32 %v7596, %v7598
        %v7603 = vadd.s32 %v7599, 1
        %v7604 = vsel %vm7602, %v7603, %v7599
        %v7605 = vadd.s32 %v7600, %v7604
        %v7606 = vadd.s32 %v7605, 536870912
        %v7607 = vshrl.u32 %v7606, 30
        %v7608 = vshll.u32 %v7607, 30
        %v7609 = vsub.s32 %v7605, %v7608
        %vm7610 = vcmp.lt.s32.totalorder %v7609, 0
        %v7611 = vsub.s32 0, %v7609
        %v7612 = vsel %vm7610, %v7611, %v7609
        %v7613 = vclz %v7612
        %v7614 = vsub.s32 %v7613, 2
        %vm7615 = vcmp.gt.s32.totalorder 0, %v7614
        %v7616 = vsel %vm7615, 0, %v7614
        %v7617 = vsub.s32 32, %v7616
        %v7618 = vshll.u32 %v7609, %v7616
        %v7619 = vshrl.u32 %v7601, %v7617
        %v7620 = vor.u32 %v7618, %v7619
        %v7621 = vsub.s32 4294967266, %v7616
        %v7622 = vadd.s32 %v7621, 127
        %v7623 = vshll.u32 %v7622, 23
        %v7624 = vor.u32 4788187, %v7623
        %v7625 = vand.u32 2147483647, %v7624
        %v7627 = vcvt.s32.f32 %v7620
        %v7628 = vmul.f32 %v7627, %v7625
        %v7629 = vxor.u32 %v7628, 2147483648
        %v7630 = vsel %vm7547, %v7629, %v7628
        %v7631 = vsub.s32 4, %v7607
        %v7632 = vsel %vm7547, %v7631, %v7607
        %v7633 = vsel %vm7546, %v946, %v7630
        %v7634 = vsel %vm7546, 0, %v7632
        %v7635 = vcosq.f32.pop %v7633
        %v7636 = vsinq.f32.pop %v7633
        %vm7637 = vweird.f32 %v946
        %v7638 = vadd.s32 %v7634, 3
        %v7639 = vand.u32 %v7638, 3
        %vm7640 = vcmp.lt.s32.totalorder %v7639, 2
        %vm7641 = vcmp.eq.s32.totalorder %v7639, 0
        %v7642 = vxor.u32 %v7636, 2147483648
        %v7643 = vsel %vm7641, %v7635, %v7642
        %vm7644 = vcmp.eq.s32.totalorder %v7639, 2
        %v7645 = vxor.u32 %v7635, 2147483648
        %v7646 = vsel %vm7644, %v7645, %v7636
        %v7647 = vsel %vm7640, %v7643, %v7646
        %v7648 = vsel %vm7637, nan, %v7647
        %v7649 = vand.u32 2147483647, %v947
        %vm7650 = vcmp.le.f32.partialorder %v7649, 0.7853982
        %vm7651 = vcmp.lt.s32.totalorder %v947, 0
        %v7652 = vand.u32 %v947, 2139095040
        %v7653 = vshrl.u32 %v7652, 23
        %v7654 = vsub.s32 %v7653, 127
        %v7655 = vand.u32 2147483647, %v947
        %v7656 = vand.u32 %v7655, 8388607
        %v7657 = vor.u32 %v7656, 8388608
        %v7658 = vsub.s32 0, %v7657
        %v7659 = vadd.s32 %v7654, 1
        %vm7660 = vcmp.gt.s32.totalorder %v7659, 0
        %v7661 = vsel %vm7660, %v7659, 0
        %v7662 = vshrl.u32 %v7661, 5
        %v7663 = vand.u32 %v7661, 31
        %v7664 = vsub.s32 32, %v7663
        %v7665 = vshrl.u32 683565275, %v7664
        %v7666 = vshll.u32 683565275, %v7663
        %v7667 = vshrl.u32 2475754826, %v7664
        %v7668 = vor.u32 %v7666, %v7667
        %v7669 = vshll.u32 2475754826, %v7663
        %v7670 = vshrl.u32 2131351028, %v7664
        %v7671 = vor.u32 %v7669, %v7670
        %v7672 = vshll.u32 2131351028, %v7663
        %v7673 = vshrl.u32 2102212464, %v7664
        %v7674 = vor.u32 %v7672, %v7673
        %v7675 = vshll.u32 2102212464, %v7663
        %v7676 = vshrl.u32 920167782, %v7664
        %v7677 = vor.u32 %v7675, %v7676
        %v7678 = vshll.u32 920167782, %v7663
        %v7679 = vshrl.u32 1326507024, %v7664
        %v7680 = vor.u32 %v7678, %v7679
        %vm7681 = vcmp.lt.s32.totalorder %v7662, 1
        %vm7682 = vcmp.lt.s32.totalorder %v7662, 2
        %vm7683 = vcmp.lt.s32.totalorder %v7662, 3
        %vm7684 = vcmp.lt.s32.totalorder %v7662, 4
        %v7685 = vsel %vm7681, %v7665, %v7668
        %v7686 = vsel %vm7684, %v7674, 2102212464
        %v7687 = vsel %vm7683, %v7671, %v7686
        %v7688 = vsel %vm7682, %v7685, %v7687
        %v7689 = vsel %vm7681, %v7668, %v7671
        %v7690 = vsel %vm7684, %v7677, 920167782
        %v7691 = vsel %vm7683, %v7674, %v7690
        %v7692 = vsel %vm7682, %v7689, %v7691
        %v7693 = vsel %vm7681, %v7671, %v7674
        %v7694 = vsel %vm7684, %v7680, 1326507024
        %v7695 = vsel %vm7683, %v7677, %v7694
        %v7696 = vsel %vm7682, %v7693, %v7695
        %v7697 = vshll.u32 %v7657, 8
        %v7698 = vmul.u32.u64.compose %v7697, %v7696
        %v7699 = vextract.low.u32 %v7698
        %v7700 = vextract.high.u32 %v7698
        %v7701 = vmul.u32.u64.compose %v7697, %v7692
        %v7702 = vextract.low.u32 %v7701
        %v7703 = vextract.high.u32 %v7701
        %v7704 = vmul.u32 %v7697, %v7688
        %v7705 = vadd.s32 %v7700, %v7702
        %vm7706 = vc.u32 %v7700, %v7702
        %v7707 = vadd.s32 %v7703, 1
        %v7708 = vsel %vm7706, %v7707, %v7703
        %v7709 = vadd.s32 %v7704, %v7708
        %v7710 = vadd.s32 %v7709, 536870912
        %v7711 = vshrl.u32 %v7710, 30
        %v7712 = vshll.u32 %v7711, 30
        %v7713 = vsub.s32 %v7709, %v7712
        %vm7714 = vcmp.lt.s32.totalorder %v7713, 0
        %v7715 = vsub.s32 0, %v7713
        %v7716 = vsel %vm7714, %v7715, %v7713
        %v7717 = vclz %v7716
        %v7718 = vsub.s32 %v7717, 2
        %vm7719 = vcmp.gt.s32.totalorder 0, %v7718
        %v7720 = vsel %vm7719, 0, %v7718
        %v7721 = vsub.s32 32, %v7720
        %v7722 = vshll.u32 %v7713, %v7720
        %v7723 = vshrl.u32 %v7705, %v7721
        %v7724 = vor.u32 %v7722, %v7723
        %v7725 = vsub.s32 4294967266, %v7720
        %v7726 = vadd.s32 %v7725, 127
        %v7727 = vshll.u32 %v7726, 23
        %v7728 = vor.u32 4788187, %v7727
        %v7729 = vand.u32 2147483647, %v7728
        %v7731 = vcvt.s32.f32 %v7724
        %v7732 = vmul.f32 %v7731, %v7729
        %v7733 = vxor.u32 %v7732, 2147483648
        %v7734 = vsel %vm7651, %v7733, %v7732
        %v7735 = vsub.s32 4, %v7711
        %v7736 = vsel %vm7651, %v7735, %v7711
        %v7737 = vsel %vm7650, %v947, %v7734
        %v7738 = vsel %vm7650, 0, %v7736
        %v7739 = vcosq.f32.pop %v7737
        %v7740 = vsinq.f32.pop %v7737
        %vm7741 = vweird.f32 %v947
        %v7742 = vadd.s32 %v7738, 3
        %v7743 = vand.u32 %v7742, 3
        %vm7744 = vcmp.lt.s32.totalorder %v7743, 2
        %vm7745 = vcmp.eq.s32.totalorder %v7743, 0
        %v7746 = vxor.u32 %v7740, 2147483648
        %v7747 = vsel %vm7745, %v7739, %v7746
        %vm7748 = vcmp.eq.s32.totalorder %v7743, 2
        %v7749 = vxor.u32 %v7739, 2147483648
        %v7750 = vsel %vm7748, %v7749, %v7740
        %v7751 = vsel %vm7744, %v7747, %v7750
        %v7752 = vsel %vm7741, nan, %v7751
        %v7753 = vand.u32 2147483647, %v948
        %vm7754 = vcmp.le.f32.partialorder %v7753, 0.7853982
        %vm7755 = vcmp.lt.s32.totalorder %v948, 0
        %v7756 = vand.u32 %v948, 2139095040
        %v7757 = vshrl.u32 %v7756, 23
        %v7758 = vsub.s32 %v7757, 127
        %v7759 = vand.u32 2147483647, %v948
        %v7760 = vand.u32 %v7759, 8388607
        %v7761 = vor.u32 %v7760, 8388608
        %v7762 = vsub.s32 0, %v7761
        %v7763 = vadd.s32 %v7758, 1
        %vm7764 = vcmp.gt.s32.totalorder %v7763, 0
        %v7765 = vsel %vm7764, %v7763, 0
        %v7766 = vshrl.u32 %v7765, 5
        %v7767 = vand.u32 %v7765, 31
        %v7768 = vsub.s32 32, %v7767
        %v7769 = vshrl.u32 683565275, %v7768
        %v7770 = vshll.u32 683565275, %v7767
        %v7771 = vshrl.u32 2475754826, %v7768
        %v7772 = vor.u32 %v7770, %v7771
        %v7773 = vshll.u32 2475754826, %v7767
        %v7774 = vshrl.u32 2131351028, %v7768
        %v7775 = vor.u32 %v7773, %v7774
        %v7776 = vshll.u32 2131351028, %v7767
        %v7777 = vshrl.u32 2102212464, %v7768
        %v7778 = vor.u32 %v7776, %v7777
        %v7779 = vshll.u32 2102212464, %v7767
        %v7780 = vshrl.u32 920167782, %v7768
        %v7781 = vor.u32 %v7779, %v7780
        %v7782 = vshll.u32 920167782, %v7767
        %v7783 = vshrl.u32 1326507024, %v7768
        %v7784 = vor.u32 %v7782, %v7783
        %vm7785 = vcmp.lt.s32.totalorder %v7766, 1
        %vm7786 = vcmp.lt.s32.totalorder %v7766, 2
        %vm7787 = vcmp.lt.s32.totalorder %v7766, 3
        %vm7788 = vcmp.lt.s32.totalorder %v7766, 4
        %v7789 = vsel %vm7785, %v7769, %v7772
        %v7790 = vsel %vm7788, %v7778, 2102212464
        %v7791 = vsel %vm7787, %v7775, %v7790
        %v7792 = vsel %vm7786, %v7789, %v7791
        %v7793 = vsel %vm7785, %v7772, %v7775
        %v7794 = vsel %vm7788, %v7781, 920167782
        %v7795 = vsel %vm7787, %v7778, %v7794
        %v7796 = vsel %vm7786, %v7793, %v7795
        %v7797 = vsel %vm7785, %v7775, %v7778
        %v7798 = vsel %vm7788, %v7784, 1326507024
        %v7799 = vsel %vm7787, %v7781, %v7798
        %v7800 = vsel %vm7786, %v7797, %v7799
        %v7801 = vshll.u32 %v7761, 8
        %v7802 = vmul.u32.u64.compose %v7801, %v7800
        %v7803 = vextract.low.u32 %v7802
        %v7804 = vextract.high.u32 %v7802
        %v7805 = vmul.u32.u64.compose %v7801, %v7796
        %v7806 = vextract.low.u32 %v7805
        %v7807 = vextract.high.u32 %v7805
        %v7808 = vmul.u32 %v7801, %v7792
        %v7809 = vadd.s32 %v7804, %v7806
        %vm7810 = vc.u32 %v7804, %v7806
        %v7811 = vadd.s32 %v7807, 1
        %v7812 = vsel %vm7810, %v7811, %v7807
        %v7813 = vadd.s32 %v7808, %v7812
        %v7814 = vadd.s32 %v7813, 536870912
        %v7815 = vshrl.u32 %v7814, 30
        %v7816 = vshll.u32 %v7815, 30
        %v7817 = vsub.s32 %v7813, %v7816
        %vm7818 = vcmp.lt.s32.totalorder %v7817, 0
        %v7819 = vsub.s32 0, %v7817
        %v7820 = vsel %vm7818, %v7819, %v7817
        %v7821 = vclz %v7820
        %v7822 = vsub.s32 %v7821, 2
        %vm7823 = vcmp.gt.s32.totalorder 0, %v7822
        %v7824 = vsel %vm7823, 0, %v7822
        %v7825 = vsub.s32 32, %v7824
        %v7826 = vshll.u32 %v7817, %v7824
        %v7827 = vshrl.u32 %v7809, %v7825
        %v7828 = vor.u32 %v7826, %v7827
        %v7829 = vsub.s32 4294967266, %v7824
        %v7830 = vadd.s32 %v7829, 127
        %v7831 = vshll.u32 %v7830, 23
        %v7832 = vor.u32 4788187, %v7831
        %v7833 = vand.u32 2147483647, %v7832
        %v7835 = vcvt.s32.f32 %v7828
        %v7836 = vmul.f32 %v7835, %v7833
        %v7837 = vxor.u32 %v7836, 2147483648
        %v7838 = vsel %vm7755, %v7837, %v7836
        %v7839 = vsub.s32 4, %v7815
        %v7840 = vsel %vm7755, %v7839, %v7815
        %v7841 = vsel %vm7754, %v948, %v7838
        %v7842 = vsel %vm7754, 0, %v7840
        %v7843 = vcosq.f32.pop %v7841
        %v7844 = vsinq.f32.pop %v7841
        %vm7845 = vweird.f32 %v948
        %v7846 = vadd.s32 %v7842, 3
        %v7847 = vand.u32 %v7846, 3
        %vm7848 = vcmp.lt.s32.totalorder %v7847, 2
        %vm7849 = vcmp.eq.s32.totalorder %v7847, 0
        %v7850 = vxor.u32 %v7844, 2147483648
        %v7851 = vsel %vm7849, %v7843, %v7850
        %vm7852 = vcmp.eq.s32.totalorder %v7847, 2
        %v7853 = vxor.u32 %v7843, 2147483648
        %v7854 = vsel %vm7852, %v7853, %v7844
        %v7855 = vsel %vm7848, %v7851, %v7854
        %v7856 = vsel %vm7845, nan, %v7855
        %v7857 = vand.u32 2147483647, %v949
        %vm7858 = vcmp.le.f32.partialorder %v7857, 0.7853982
        %vm7859 = vcmp.lt.s32.totalorder %v949, 0
        %v7860 = vand.u32 %v949, 2139095040
        %v7861 = vshrl.u32 %v7860, 23
        %v7862 = vsub.s32 %v7861, 127
        %v7863 = vand.u32 2147483647, %v949
        %v7864 = vand.u32 %v7863, 8388607
        %v7865 = vor.u32 %v7864, 8388608
        %v7866 = vsub.s32 0, %v7865
        %v7867 = vadd.s32 %v7862, 1
        %vm7868 = vcmp.gt.s32.totalorder %v7867, 0
        %v7869 = vsel %vm7868, %v7867, 0
        %v7870 = vshrl.u32 %v7869, 5
        %v7871 = vand.u32 %v7869, 31
        %v7872 = vsub.s32 32, %v7871
        %v7873 = vshrl.u32 683565275, %v7872
        %v7874 = vshll.u32 683565275, %v7871
        %v7875 = vshrl.u32 2475754826, %v7872
        %v7876 = vor.u32 %v7874, %v7875
        %v7877 = vshll.u32 2475754826, %v7871
        %v7878 = vshrl.u32 2131351028, %v7872
        %v7879 = vor.u32 %v7877, %v7878
        %v7880 = vshll.u32 2131351028, %v7871
        %v7881 = vshrl.u32 2102212464, %v7872
        %v7882 = vor.u32 %v7880, %v7881
        %v7883 = vshll.u32 2102212464, %v7871
        %v7884 = vshrl.u32 920167782, %v7872
        %v7885 = vor.u32 %v7883, %v7884
        %v7886 = vshll.u32 920167782, %v7871
        %v7887 = vshrl.u32 1326507024, %v7872
        %v7888 = vor.u32 %v7886, %v7887
        %vm7889 = vcmp.lt.s32.totalorder %v7870, 1
        %vm7890 = vcmp.lt.s32.totalorder %v7870, 2
        %vm7891 = vcmp.lt.s32.totalorder %v7870, 3
        %vm7892 = vcmp.lt.s32.totalorder %v7870, 4
        %v7893 = vsel %vm7889, %v7873, %v7876
        %v7894 = vsel %vm7892, %v7882, 2102212464
        %v7895 = vsel %vm7891, %v7879, %v7894
        %v7896 = vsel %vm7890, %v7893, %v7895
        %v7897 = vsel %vm7889, %v7876, %v7879
        %v7898 = vsel %vm7892, %v7885, 920167782
        %v7899 = vsel %vm7891, %v7882, %v7898
        %v7900 = vsel %vm7890, %v7897, %v7899
        %v7901 = vsel %vm7889, %v7879, %v7882
        %v7902 = vsel %vm7892, %v7888, 1326507024
        %v7903 = vsel %vm7891, %v7885, %v7902
        %v7904 = vsel %vm7890, %v7901, %v7903
        %v7905 = vshll.u32 %v7865, 8
        %v7906 = vmul.u32.u64.compose %v7905, %v7904
        %v7907 = vextract.low.u32 %v7906
        %v7908 = vextract.high.u32 %v7906
        %v7909 = vmul.u32.u64.compose %v7905, %v7900
        %v7910 = vextract.low.u32 %v7909
        %v7911 = vextract.high.u32 %v7909
        %v7912 = vmul.u32 %v7905, %v7896
        %v7913 = vadd.s32 %v7908, %v7910
        %vm7914 = vc.u32 %v7908, %v7910
        %v7915 = vadd.s32 %v7911, 1
        %v7916 = vsel %vm7914, %v7915, %v7911
        %v7917 = vadd.s32 %v7912, %v7916
        %v7918 = vadd.s32 %v7917, 536870912
        %v7919 = vshrl.u32 %v7918, 30
        %v7920 = vshll.u32 %v7919, 30
        %v7921 = vsub.s32 %v7917, %v7920
        %vm7922 = vcmp.lt.s32.totalorder %v7921, 0
        %v7923 = vsub.s32 0, %v7921
        %v7924 = vsel %vm7922, %v7923, %v7921
        %v7925 = vclz %v7924
        %v7926 = vsub.s32 %v7925, 2
        %vm7927 = vcmp.gt.s32.totalorder 0, %v7926
        %v7928 = vsel %vm7927, 0, %v7926
        %v7929 = vsub.s32 32, %v7928
        %v7930 = vshll.u32 %v7921, %v7928
        %v7931 = vshrl.u32 %v7913, %v7929
        %v7932 = vor.u32 %v7930, %v7931
        %v7933 = vsub.s32 4294967266, %v7928
        %v7934 = vadd.s32 %v7933, 127
        %v7935 = vshll.u32 %v7934, 23
        %v7936 = vor.u32 4788187, %v7935
        %v7937 = vand.u32 2147483647, %v7936
        %v7939 = vcvt.s32.f32 %v7932
        %v7940 = vmul.f32 %v7939, %v7937
        %v7941 = vxor.u32 %v7940, 2147483648
        %v7942 = vsel %vm7859, %v7941, %v7940
        %v7943 = vsub.s32 4, %v7919
        %v7944 = vsel %vm7859, %v7943, %v7919
        %v7945 = vsel %vm7858, %v949, %v7942
        %v7946 = vsel %vm7858, 0, %v7944
        %v7947 = vcosq.f32.pop %v7945
        %v7948 = vsinq.f32.pop %v7945
        %vm7949 = vweird.f32 %v949
        %v7950 = vadd.s32 %v7946, 3
        %v7951 = vand.u32 %v7950, 3
        %vm7952 = vcmp.lt.s32.totalorder %v7951, 2
        %vm7953 = vcmp.eq.s32.totalorder %v7951, 0
        %v7954 = vxor.u32 %v7948, 2147483648
        %v7955 = vsel %vm7953, %v7947, %v7954
        %vm7956 = vcmp.eq.s32.totalorder %v7951, 2
        %v7957 = vxor.u32 %v7947, 2147483648
        %v7958 = vsel %vm7956, %v7957, %v7948
        %v7959 = vsel %vm7952, %v7955, %v7958
        %v7960 = vsel %vm7949, nan, %v7959
        %v7961 = vand.u32 2147483647, %v950
        %vm7962 = vcmp.le.f32.partialorder %v7961, 0.7853982
        %vm7963 = vcmp.lt.s32.totalorder %v950, 0
        %v7964 = vand.u32 %v950, 2139095040
        %v7965 = vshrl.u32 %v7964, 23
        %v7966 = vsub.s32 %v7965, 127
        %v7967 = vand.u32 2147483647, %v950
        %v7968 = vand.u32 %v7967, 8388607
        %v7969 = vor.u32 %v7968, 8388608
        %v7970 = vsub.s32 0, %v7969
        %v7971 = vadd.s32 %v7966, 1
        %vm7972 = vcmp.gt.s32.totalorder %v7971, 0
        %v7973 = vsel %vm7972, %v7971, 0
        %v7974 = vshrl.u32 %v7973, 5
        %v7975 = vand.u32 %v7973, 31
        %v7976 = vsub.s32 32, %v7975
        %v7977 = vshrl.u32 683565275, %v7976
        %v7978 = vshll.u32 683565275, %v7975
        %v7979 = vshrl.u32 2475754826, %v7976
        %v7980 = vor.u32 %v7978, %v7979
        %v7981 = vshll.u32 2475754826, %v7975
        %v7982 = vshrl.u32 2131351028, %v7976
        %v7983 = vor.u32 %v7981, %v7982
        %v7984 = vshll.u32 2131351028, %v7975
        %v7985 = vshrl.u32 2102212464, %v7976
        %v7986 = vor.u32 %v7984, %v7985
        %v7987 = vshll.u32 2102212464, %v7975
        %v7988 = vshrl.u32 920167782, %v7976
        %v7989 = vor.u32 %v7987, %v7988
        %v7990 = vshll.u32 920167782, %v7975
        %v7991 = vshrl.u32 1326507024, %v7976
        %v7992 = vor.u32 %v7990, %v7991
        %vm7993 = vcmp.lt.s32.totalorder %v7974, 1
        %vm7994 = vcmp.lt.s32.totalorder %v7974, 2
        %vm7995 = vcmp.lt.s32.totalorder %v7974, 3
        %vm7996 = vcmp.lt.s32.totalorder %v7974, 4
        %v7997 = vsel %vm7993, %v7977, %v7980
        %v7998 = vsel %vm7996, %v7986, 2102212464
        %v7999 = vsel %vm7995, %v7983, %v7998
        %v8000 = vsel %vm7994, %v7997, %v7999
        %v8001 = vsel %vm7993, %v7980, %v7983
        %v8002 = vsel %vm7996, %v7989, 920167782
        %v8003 = vsel %vm7995, %v7986, %v8002
        %v8004 = vsel %vm7994, %v8001, %v8003
        %v8005 = vsel %vm7993, %v7983, %v7986
        %v8006 = vsel %vm7996, %v7992, 1326507024
        %v8007 = vsel %vm7995, %v7989, %v8006
        %v8008 = vsel %vm7994, %v8005, %v8007
        %v8009 = vshll.u32 %v7969, 8
        %v8010 = vmul.u32.u64.compose %v8009, %v8008
        %v8011 = vextract.low.u32 %v8010
        %v8012 = vextract.high.u32 %v8010
        %v8013 = vmul.u32.u64.compose %v8009, %v8004
        %v8014 = vextract.low.u32 %v8013
        %v8015 = vextract.high.u32 %v8013
        %v8016 = vmul.u32 %v8009, %v8000
        %v8017 = vadd.s32 %v8012, %v8014
        %vm8018 = vc.u32 %v8012, %v8014
        %v8019 = vadd.s32 %v8015, 1
        %v8020 = vsel %vm8018, %v8019, %v8015
        %v8021 = vadd.s32 %v8016, %v8020
        %v8022 = vadd.s32 %v8021, 536870912
        %v8023 = vshrl.u32 %v8022, 30
        %v8024 = vshll.u32 %v8023, 30
        %v8025 = vsub.s32 %v8021, %v8024
        %vm8026 = vcmp.lt.s32.totalorder %v8025, 0
        %v8027 = vsub.s32 0, %v8025
        %v8028 = vsel %vm8026, %v8027, %v8025
        %v8029 = vclz %v8028
        %v8030 = vsub.s32 %v8029, 2
        %vm8031 = vcmp.gt.s32.totalorder 0, %v8030
        %v8032 = vsel %vm8031, 0, %v8030
        %v8033 = vsub.s32 32, %v8032
        %v8034 = vshll.u32 %v8025, %v8032
        %v8035 = vshrl.u32 %v8017, %v8033
        %v8036 = vor.u32 %v8034, %v8035
        %v8037 = vsub.s32 4294967266, %v8032
        %v8038 = vadd.s32 %v8037, 127
        %v8039 = vshll.u32 %v8038, 23
        %v8040 = vor.u32 4788187, %v8039
        %v8041 = vand.u32 2147483647, %v8040
        %v8043 = vcvt.s32.f32 %v8036
        %v8044 = vmul.f32 %v8043, %v8041
        %v8045 = vxor.u32 %v8044, 2147483648
        %v8046 = vsel %vm7963, %v8045, %v8044
        %v8047 = vsub.s32 4, %v8023
        %v8048 = vsel %vm7963, %v8047, %v8023
        %v8049 = vsel %vm7962, %v950, %v8046
        %v8050 = vsel %vm7962, 0, %v8048
        %v8051 = vcosq.f32.pop %v8049
        %v8052 = vsinq.f32.pop %v8049
        %vm8053 = vweird.f32 %v950
        %v8054 = vadd.s32 %v8050, 3
        %v8055 = vand.u32 %v8054, 3
        %vm8056 = vcmp.lt.s32.totalorder %v8055, 2
        %vm8057 = vcmp.eq.s32.totalorder %v8055, 0
        %v8058 = vxor.u32 %v8052, 2147483648
        %v8059 = vsel %vm8057, %v8051, %v8058
        %vm8060 = vcmp.eq.s32.totalorder %v8055, 2
        %v8061 = vxor.u32 %v8051, 2147483648
        %v8062 = vsel %vm8060, %v8061, %v8052
        %v8063 = vsel %vm8056, %v8059, %v8062
        %v8064 = vsel %vm8053, nan, %v8063
        %v8065 = vmul.f32 %v1345, 1.442695
        %v8066 = vpow.pop %v8065
        %v8067 = vmul.f32 %v1346, 1.442695
        %v8068 = vpow.pop %v8067
        %v8069 = vmul.f32 %v1347, 1.442695
        %v8070 = vpow.pop %v8069
        %v8071 = vmul.f32 %v1348, 1.442695
        %v8072 = vpow.pop %v8071
        %v8073 = vmul.f32 %v1349, 1.442695
        %v8074 = vpow.pop %v8073
        %v8075 = vmul.f32 %v1350, 1.442695
        %v8076 = vpow.pop %v8075
        %v8077 = vmul.f32 %v1351, 1.442695
        %v8078 = vpow.pop %v8077
        %v8079 = vmul.f32 %v1352, 1.442695
        %v8080 = vpow.pop %v8079
        %v8081 = vmul.f32 %v1353, 1.442695
        %v8082 = vpow.pop %v8081
        %v8083 = vmul.f32 %v1354, 1.442695
        %v8084 = vpow.pop %v8083
        %v8085 = vmul.f32 %v1355, 1.442695
        %v8086 = vpow.pop %v8085
        %v8087 = vmul.f32 %v1356, 1.442695
        %v8088 = vpow.pop %v8087
        %v8089 = vmul.f32 %v1357, 1.442695
        %v8090 = vpow.pop %v8089
        %v8091 = vmul.f32 %v1358, 1.442695
        %v8092 = vpow.pop %v8091
        %v8093 = vmul.f32 %v1359, 1.442695
        %v8094 = vpow.pop %v8093
        %v8095 = vmul.f32 %v1360, 1.442695
        %v8096 = vpow.pop %v8095
        %v8097 = vmul.f32 %v1361, 1.442695
        %v8098 = vpow.pop %v8097
        %v8099 = vmul.f32 %v1362, 1.442695
        %v8100 = vpow.pop %v8099
        %v8101 = vmul.f32 %v1363, 1.442695
        %v8102 = vpow.pop %v8101
        %v8103 = vmul.f32 %v1364, 1.442695
        %v8104 = vpow.pop %v8103
        %v8105 = vmul.f32 %v1365, 1.442695
        %v8106 = vpow.pop %v8105
        %v8107 = vmul.f32 %v1366, 1.442695
        %v8108 = vpow.pop %v8107
        %v8109 = vmul.f32 %v1367, 1.442695
        %v8110 = vpow.pop %v8109
        %v8111 = vmul.f32 %v1368, 1.442695
        %v8112 = vpow.pop %v8111
        %v8113 = vmul.f32 %v1369, 1.442695
        %v8114 = vpow.pop %v8113
        %v8115 = vmul.f32 %v1370, 1.442695
        %v8116 = vpow.pop %v8115
        %v8117 = vmul.f32 %v1371, 1.442695
        %v8118 = vpow.pop %v8117
        %v8119 = vmul.f32 %v1372, 1.442695
        %v8120 = vpow.pop %v8119
        %v8121 = vmul.f32 %v1373, 1.442695
        %v8122 = vpow.pop %v8121
        %v8123 = vmul.f32 %v1374, 1.442695
        %v8124 = vpow.pop %v8123
        %v8125 = vmul.f32 %v1375, 1.442695
        %v8126 = vpow.pop %v8125
        %v8127 = vmul.f32 %v1376, 1.442695
        %v8128 = vpow.pop %v8127
        %v8129 = vmul.f32 %v1377, 1.442695
        %v8130 = vpow.pop %v8129
        %v8131 = vmul.f32 %v1378, 1.442695
        %v8132 = vpow.pop %v8131
        %v8133 = vmul.f32 %v1379, 1.442695
        %v8134 = vpow.pop %v8133
        %v8135 = vmul.f32 %v1380, 1.442695
        %v8136 = vpow.pop %v8135
        %v8137 = vmul.f32 %v1381, 1.442695
        %v8138 = vpow.pop %v8137
        %v8139 = vmul.f32 %v1382, 1.442695
        %v8140 = vpow.pop %v8139
        %v8141 = vmul.f32 %v1383, 1.442695
        %v8142 = vpow.pop %v8141
        %v8143 = vmul.f32 %v1384, 1.442695
        %v8144 = vpow.pop %v8143
        %v8145 = vmul.f32 %v1385, 1.442695
        %v8146 = vpow.pop %v8145
        %v8147 = vmul.f32 %v1386, 1.442695
        %v8148 = vpow.pop %v8147
        %v8149 = vmul.f32 %v1387, 1.442695
        %v8150 = vpow.pop %v8149
        %v8151 = vmul.f32 %v1388, 1.442695
        %v8152 = vpow.pop %v8151
        %v8153 = vmul.f32 %v1389, 1.442695
        %v8154 = vpow.pop %v8153
        %v8155 = vmul.f32 %v1390, 1.442695
        %v8156 = vpow.pop %v8155
        %v8157 = vmul.f32 %v1391, 1.442695
        %v8158 = vpow.pop %v8157
        %v8159 = vmul.f32 %v1392, 1.442695
        %v8160 = vpow.pop %v8159
        %v8161 = vmul.f32 %v1393, 1.442695
        %v8162 = vpow.pop %v8161
        %v8163 = vmul.f32 %v1394, 1.442695
        %v8164 = vpow.pop %v8163
        %v8165 = vmul.f32 %v1395, 1.442695
        %v8166 = vpow.pop %v8165
        %v8167 = vmul.f32 %v1396, 1.442695
        %v8168 = vpow.pop %v8167
        %v8169 = vmul.f32 %v1397, 1.442695
        %v8170 = vpow.pop %v8169
        %v8171 = vmul.f32 %v1398, 1.442695
        %v8172 = vpow.pop %v8171
        %v8173 = vmul.f32 %v1399, 1.442695
        %v8174 = vpow.pop %v8173
        %v8175 = vmul.f32 %v1400, 1.442695
        %v8176 = vpow.pop %v8175
        %v8177 = vmul.f32 %v1401, 1.442695
        %v8178 = vpow.pop %v8177
        %v8179 = vmul.f32 %v1402, 1.442695
        %v8180 = vpow.pop %v8179
        %v8181 = vmul.f32 %v1403, 1.442695
        %v8182 = vpow.pop %v8181
        %v8183 = vmul.f32 %v1404, 1.442695
        %v8184 = vpow.pop %v8183
        %v8185 = vmul.f32 %v1405, 1.442695
        %v8186 = vpow.pop %v8185
        %v8187 = vmul.f32 %v1406, 1.442695
        %v8188 = vpow.pop %v8187
        %v8189 = vmul.f32 %v1407, 1.442695
        %v8190 = vpow.pop %v8189
        %v8191 = vmul.f32 %v1408, 1.442695
        %v8192 = vpow.pop %v8191
        %v8193 = vmul.f32 %v1512, %v8066
        %v8194 = vmul.f32 %v1616, %v8068
        %v8195 = vmul.f32 %v1720, %v8070
        %v8196 = vmul.f32 %v1824, %v8072
        %v8197 = vmul.f32 %v1928, %v8074
        %v8198 = vmul.f32 %v2032, %v8076
        %v8199 = vmul.f32 %v2136, %v8078
        %v8200 = vmul.f32 %v2240, %v8080
        %v8201 = vmul.f32 %v2344, %v8082
        %v8202 = vmul.f32 %v2448, %v8084
        %v8203 = vmul.f32 %v2552, %v8086
        %v8204 = vmul.f32 %v2656, %v8088
        %v8205 = vmul.f32 %v2760, %v8090
        %v8206 = vmul.f32 %v2864, %v8092
        %v8207 = vmul.f32 %v2968, %v8094
        %v8208 = vmul.f32 %v3072, %v8096
        %v8209 = vmul.f32 %v3176, %v8098
        %v8210 = vmul.f32 %v3280, %v8100
        %v8211 = vmul.f32 %v3384, %v8102
        %v8212 = vmul.f32 %v3488, %v8104
        %v8213 = vmul.f32 %v3592, %v8106
        %v8214 = vmul.f32 %v3696, %v8108
        %v8215 = vmul.f32 %v3800, %v8110
        %v8216 = vmul.f32 %v3904, %v8112
        %v8217 = vmul.f32 %v4008, %v8114
        %v8218 = vmul.f32 %v4112, %v8116
        %v8219 = vmul.f32 %v4216, %v8118
        %v8220 = vmul.f32 %v4320, %v8120
        %v8221 = vmul.f32 %v4424, %v8122
        %v8222 = vmul.f32 %v4528, %v8124
        %v8223 = vmul.f32 %v4632, %v8126
        %v8224 = vmul.f32 %v4736, %v8128
        %v8225 = vmul.f32 %v4840, %v8130
        %v8226 = vmul.f32 %v4944, %v8132
        %v8227 = vmul.f32 %v5048, %v8134
        %v8228 = vmul.f32 %v5152, %v8136
        %v8229 = vmul.f32 %v5256, %v8138
        %v8230 = vmul.f32 %v5360, %v8140
        %v8231 = vmul.f32 %v5464, %v8142
        %v8232 = vmul.f32 %v5568, %v8144
        %v8233 = vmul.f32 %v5672, %v8146
        %v8234 = vmul.f32 %v5776, %v8148
        %v8235 = vmul.f32 %v5880, %v8150
        %v8236 = vmul.f32 %v5984, %v8152
        %v8237 = vmul.f32 %v6088, %v8154
        %v8238 = vmul.f32 %v6192, %v8156
        %v8239 = vmul.f32 %v6296, %v8158
        %v8240 = vmul.f32 %v6400, %v8160
        %v8241 = vmul.f32 %v6504, %v8162
        %v8242 = vmul.f32 %v6608, %v8164
        %v8243 = vmul.f32 %v6712, %v8166
        %v8244 = vmul.f32 %v6816, %v8168
        %v8245 = vmul.f32 %v6920, %v8170
        %v8246 = vmul.f32 %v7024, %v8172
        %v8247 = vmul.f32 %v7128, %v8174
        %v8248 = vmul.f32 %v7232, %v8176
        %v8249 = vmul.f32 %v7336, %v8178
        %v8250 = vmul.f32 %v7440, %v8180
        %v8251 = vmul.f32 %v7544, %v8182
        %v8252 = vmul.f32 %v7648, %v8184
        %v8253 = vmul.f32 %v7752, %v8186
        %v8254 = vmul.f32 %v7856, %v8188
        %v8255 = vmul.f32 %v7960, %v8190
        %v8256 = vmul.f32 %v8064, %v8192
        %8257 = vst [vmem:[%s164] sm:$0xff] %v8193
        %8258 = vst [vmem:[%s164 + $0x8] sm:$0xff] %v8194
        %8259 = vst [vmem:[%s164 + $0x10] sm:$0xff] %v8195
        %8260 = vst [vmem:[%s164 + $0x18] sm:$0xff] %v8196
        %8261 = vst [vmem:[%s164 + $0x20] sm:$0xff] %v8197
        %8262 = vst [vmem:[%s164 + $0x28] sm:$0xff] %v8198
        %8263 = vst [vmem:[%s164 + $0x30] sm:$0xff] %v8199
        %8264 = vst [vmem:[%s164 + $0x38] sm:$0xff] %v8200
        %8265 = vst [vmem:[%s164 + $0x40] sm:$0xff] %v8201
        %8266 = vst [vmem:[%s164 + $0x48] sm:$0xff] %v8202
        %8267 = vst [vmem:[%s164 + $0x50] sm:$0xff] %v8203
        %8268 = vst [vmem:[%s164 + $0x58] sm:$0xff] %v8204
        %8269 = vst [vmem:[%s164 + $0x60] sm:$0xff] %v8205
        %8270 = vst [vmem:[%s164 + $0x68] sm:$0xff] %v8206
        %8271 = vst [vmem:[%s164 + $0x70] sm:$0xff] %v8207
        %8272 = vst [vmem:[%s164 + $0x78] sm:$0xff] %v8208
        %8273 = vst [vmem:[%s164 + $0x80] sm:$0xff] %v8209
        %8274 = vst [vmem:[%s164 + $0x88] sm:$0xff] %v8210
        %8275 = vst [vmem:[%s164 + $0x90] sm:$0xff] %v8211
        %8276 = vst [vmem:[%s164 + $0x98] sm:$0xff] %v8212
        %8277 = vst [vmem:[%s164 + $0xa0] sm:$0xff] %v8213
        %8278 = vst [vmem:[%s164 + $0xa8] sm:$0xff] %v8214
        %8279 = vst [vmem:[%s164 + $0xb0] sm:$0xff] %v8215
        %8280 = vst [vmem:[%s164 + $0xb8] sm:$0xff] %v8216
        %8281 = vst [vmem:[%s164 + $0xc0] sm:$0xff] %v8217
        %8282 = vst [vmem:[%s164 + $0xc8] sm:$0xff] %v8218
        %8283 = vst [vmem:[%s164 + $0xd0] sm:$0xff] %v8219
        %8284 = vst [vmem:[%s164 + $0xd8] sm:$0xff] %v8220
        %8285 = vst [vmem:[%s164 + $0xe0] sm:$0xff] %v8221
        %8286 = vst [vmem:[%s164 + $0xe8] sm:$0xff] %v8222
        %8287 = vst [vmem:[%s164 + $0xf0] sm:$0xff] %v8223
        %8288 = vst [vmem:[%s164 + $0xf8] sm:$0xff] %v8224
        %8289 = vst [vmem:[%s164 + $0x100] sm:$0xff] %v8225
        %8290 = vst [vmem:[%s164 + $0x108] sm:$0xff] %v8226
        %8291 = vst [vmem:[%s164 + $0x110] sm:$0xff] %v8227
        %8292 = vst [vmem:[%s164 + $0x118] sm:$0xff] %v8228
        %8293 = vst [vmem:[%s164 + $0x120] sm:$0xff] %v8229
        %8294 = vst [vmem:[%s164 + $0x128] sm:$0xff] %v8230
        %8295 = vst [vmem:[%s164 + $0x130] sm:$0xff] %v8231
        %8296 = vst [vmem:[%s164 + $0x138] sm:$0xff] %v8232
        %8297 = vst [vmem:[%s164 + $0x140] sm:$0xff] %v8233
        %8298 = vst [vmem:[%s164 + $0x148] sm:$0xff] %v8234
        %8299 = vst [vmem:[%s164 + $0x150] sm:$0xff] %v8235
        %8300 = vst [vmem:[%s164 + $0x158] sm:$0xff] %v8236
        %8301 = vst [vmem:[%s164 + $0x160] sm:$0xff] %v8237
        %8302 = vst [vmem:[%s164 + $0x168] sm:$0xff] %v8238
        %8303 = vst [vmem:[%s164 + $0x170] sm:$0xff] %v8239
        %8304 = vst [vmem:[%s164 + $0x178] sm:$0xff] %v8240
        %8305 = vst [vmem:[%s164 + $0x180] sm:$0xff] %v8241
        %8306 = vst [vmem:[%s164 + $0x188] sm:$0xff] %v8242
        %8307 = vst [vmem:[%s164 + $0x190] sm:$0xff] %v8243
        %8308 = vst [vmem:[%s164 + $0x198] sm:$0xff] %v8244
        %8309 = vst [vmem:[%s164 + $0x1a0] sm:$0xff] %v8245
        %8310 = vst [vmem:[%s164 + $0x1a8] sm:$0xff] %v8246
        %8311 = vst [vmem:[%s164 + $0x1b0] sm:$0xff] %v8247
        %8312 = vst [vmem:[%s164 + $0x1b8] sm:$0xff] %v8248
        %8313 = vst [vmem:[%s164 + $0x1c0] sm:$0xff] %v8249
        %8314 = vst [vmem:[%s164 + $0x1c8] sm:$0xff] %v8250
        %8315 = vst [vmem:[%s164 + $0x1d0] sm:$0xff] %v8251
        %8316 = vst [vmem:[%s164 + $0x1d8] sm:$0xff] %v8252
        %8317 = vst [vmem:[%s164 + $0x1e0] sm:$0xff] %v8253
        %8318 = vst [vmem:[%s164 + $0x1e8] sm:$0xff] %v8254
        %8319 = vst [vmem:[%s164 + $0x1f0] sm:$0xff] %v8255
        %8320 = vst [vmem:[%s164 + $0x1f8] sm:$0xff] %v8256
        %s8321 = sand.u32 %s93, 1
        %s8322 = scalar_lea.sflag [#allocation3], %s8321
        %s8323 = sand.u32 %s93, 1
        %s8324 = smul.addr %s8323, 512
        %s8325 = scalar_lea.vmem [#allocation2], %s8324
        // Predicated region
        $region33: #{gabor_layer.1} parent=31 // pred_check
          %p8326 = pneg %p103
        $region34: #{gabor_layer.1} parent=31 // pred_check_branch
          %8328 = sbr.rel (%p8326) target = $region36
        $region35: #{gabor_layer.1} parent=31 // pred_region
          %s8329 = smul.u32 64, %s17
          %s8331 = ssub.s32 8192, 8192
          %8332 = vsyncadd %s8322, %s8331
          %s8333 = smul.addr %s8329, 128
          %s8334 = scalar_lea.hbm %s3, %s8333
          %s8335 = sshll.u32 %s8325, 4
          %s8336 = int_to_ptr.vmem [resolvable:$true] %s8335
          %8341 = dma.vmem_to_hbm [thread:$0]  %s8336, 8192, %s8334, %s8322, 128, 128, 8
        $region36: #{gabor_layer.1} parent=31 // pred_fallthru
          _
      $region32: #{gabor_layer.1} parent=5 // pred_fallthru
        _
      %p8342 = scmp.le.s32.totalorder 2, %s12
      // Predicated region
      $region37: #{gabor_layer.1} parent=5 // pred_check
        %p8343 = pneg %p8342
      $region38: #{gabor_layer.1} parent=5 // pred_check_branch
        %8345 = sbr.rel (%p8343) target = $region40
      $region39: #{gabor_layer.1} parent=5 // pred_region
        %s8346 = ssub.s32 %s12, 2
        // Predicated region
        $region41: #{gabor_layer.1} parent=39 // pred_check
          %p8347 = pneg %p109
        $region42: #{gabor_layer.1} parent=39 // pred_check_branch
          %8349 = sbr.rel (%p8347) target = $region44
        $region43: #{gabor_layer.1} parent=39 // pred_region
          %s8350 = sand.u32 %s94, 1
          %s8351 = scalar_lea.sflag [#allocation3], %s8350
          %s8352 = sand.u32 %s94, 1
          %s8353 = smul.addr %s8352, 512
          %s8354 = scalar_lea.vmem [#allocation2], %s8353
          %8355 = dma.done %s8351, 8192
        $region44: #{gabor_layer.1} parent=39 // pred_fallthru
          _
      $region40: #{gabor_layer.1} parent=5 // pred_fallthru
        _
    $region6: #{gabor_layer.1} parent=1 // loop_footer
      %s16 = sadd.s32 1, %s12
    $region7: #{gabor_layer.1} parent=1 // loop_footer_branch
      %11 = sbr.rel target = $region3
    $region8: #{gabor_layer.1} parent=1 // loop_exit
      _
    %8356 = vsyncpa [#allocation3], 1
    %s8357 = scalar_lea.sflag [#allocation3], 1
    %8358 = vsyncpa %s8357, 1

</llo_original>
